<compile_context>
chip_gen: v5e
topology: v5e:2x2
jax: 0.10.0
libtpu: 0.0.40
codegen_flags: <defaults>
</compile_context>

<pallas_src>
import functools

import jax
import jax.numpy as jnp
from jax.experimental import pallas as pl
from jax.experimental.pallas import tpu as pltpu


# ----------------------------------------------------------------------------
# In-kernel exact GELU (PyTorch nn.GELU default is erf-based).  erf is built
# from the Abramowitz & Stegun 7.1.26 rational approximation (|err| <= 1.5e-7)
# using only mul/add/exp, which all lower cleanly in Mosaic.
# ----------------------------------------------------------------------------
def _erf_approx(x):
    a1, a2, a3, a4, a5 = 0.254829592, -0.284496736, 1.421413741, -1.453152027, 1.061405429
    p = 0.3275911
    sign = jnp.where(x >= 0.0, 1.0, -1.0)
    ax = jnp.abs(x)
    t = 1.0 / (1.0 + p * ax)
    poly = ((((a5 * t + a4) * t + a3) * t + a2) * t + a1) * t
    return sign * (1.0 - poly * jnp.exp(-ax * ax))


def _gelu_exact(x):
    return 0.5 * x * (1.0 + _erf_approx(x * 0.7071067811865476))


# ----------------------------------------------------------------------------
# Bilinear interpolation matrices, matching F.interpolate(mode='bilinear',
# align_corners=False):  src = max((dst+0.5)*in/out - 0.5, 0).
# ----------------------------------------------------------------------------
def _bilinear_1d(out_size, in_size):
    scale = in_size / out_size
    dst = jnp.arange(out_size, dtype=jnp.float32)
    src = jnp.maximum((dst + 0.5) * scale - 0.5, 0.0)
    i0 = jnp.minimum(jnp.floor(src).astype(jnp.int32), in_size - 1)
    i1 = jnp.minimum(i0 + 1, in_size - 1)
    lam = src - i0.astype(jnp.float32)
    w0 = jax.nn.one_hot(i0, in_size, dtype=jnp.float32) * (1.0 - lam)[:, None]
    w1 = jax.nn.one_hot(i1, in_size, dtype=jnp.float32) * lam[:, None]
    return w0 + w1                                         # (out_size, in_size)


def _bilinear_2d_matrix(h, w, hq, wq):
    wh = _bilinear_1d(h, hq)                               # (h, hq)
    ww = _bilinear_1d(w, wq)                               # (w, wq)
    m = jnp.einsum('ip,jq->ijpq', wh, ww)                  # (h, w, hq, wq)
    return m.reshape(h * w, hq * wq)                       # token-major (i*w+j, p*wq+q)


# ----------------------------------------------------------------------------
# Fused FusionBlock kernel (one grid step per batch element).
# ----------------------------------------------------------------------------
def _fusion_block_kernel(
    wk_ref,       # VMEM (H*L, C_in*L)  kron(w_conv, I_L)   -- 1x1-conv as one matmul
    bconv_ref,    # VMEM (H*L, 1)       per-row conv bias (b_conv repeated L times)
    v_ref,        # VMEM (1, H, T, Dh)
    wpT_ref,      # VMEM (C, C)         proj weight, pre-transposed
    bp_ref,       # VMEM (1, C)         proj bias
    m_ref,        # VMEM (N, L)         bilinear upsample matrix
    res_ref,      # VMEM (1, N, C)      residual tokens
    g_ref,        # VMEM (1, C)         LayerNorm weight
    be_ref,       # VMEM (1, C)         LayerNorm bias
    w1T_ref,      # VMEM (C, Ch)        mlp.fc1 weight^T
    b1_ref,       # VMEM (1, Ch)
    w2T_ref,      # VMEM (Ch, C)        mlp.fc2 weight^T
    b2_ref,       # VMEM (1, C)
    *rest,        # fea_no score refs (1, H*L, T), then out_ref (1, N, C), then cat scratch
    fea_no, num_heads, head_dim, q_len, ln_eps,
):
    score_refs = rest[:fea_no]
    out_ref = rest[fea_no]
    cat_ref = rest[fea_no + 1]                             # VMEM (C_in*L, T) scratch

    H, Dh, L = num_heads, head_dim, q_len
    HL = H * L
    dim = H * Dh

    # ---- fuse_attn: 1x1 Conv2d over channels, as ONE MXU matmul ------------
    # Stack the fea_no lane-dense (H*L, T) score blocks into a (C_in*L, T)
    # scratch (row order == torch.cat channel order), then a single
    # (H*L, C_in*L) @ (C_in*L, T) matmul yields the fused scores directly in
    # (H*L, T) layout.
    for f in range(fea_no):
        cat_ref[f * HL:(f + 1) * HL, :] = score_refs[f][0]
    scores = jnp.dot(wk_ref[...], cat_ref[...],
                     preferred_element_type=jnp.float32)            # (H*L, T)
    scores = scores + bconv_ref[...]

    # ---- softmax over the key axis T (EUP reciprocal, VALU-free divide) ----
    m = jnp.max(scores, axis=-1, keepdims=True)
    p = jnp.exp(scores - m)
    attn = p * pl.reciprocal(jnp.sum(p, axis=-1, keepdims=True), approx=True)
    # TODO(synk): attn_drop / proj_drop / mlp drop / drop_path are identity (p=0.0), omitted.

    # ---- einsum 'bhlt,bhtv->bhlv' + 'b h l d -> b l (h d)' + Linear(proj) --
    # Head-merge is folded into the projection: y += x_h @ W_proj^T[hDh:(h+1)Dh, :].
    # The tiny H=4 static unroll keeps only x_h live per iteration.
    y = jnp.zeros((L, dim), jnp.float32)
    for hh in range(H):
        xh = jnp.dot(attn[hh * L:(hh + 1) * L, :], v_ref[0, hh],
                     preferred_element_type=jnp.float32)            # (L, Dh)
        y = y + jnp.dot(xh, wpT_ref[hh * Dh:(hh + 1) * Dh, :],
                        preferred_element_type=jnp.float32)         # (L, C)
    y = y + bp_ref[...]

    # ---- bilinear upsample (as a matmul over tokens) + residual ------------
    x = res_ref[0].astype(jnp.float32) + jnp.dot(
        m_ref[...], y, preferred_element_type=jnp.float32)          # (N, C)

    # ---- norm2 (LayerNorm over C) + MLP (fc1 -> GELU -> fc2) + residual ----
    mu = jnp.mean(x, axis=-1, keepdims=True)
    xc = x - mu
    var = jnp.mean(xc * xc, axis=-1, keepdims=True)
    xn = xc * jax.lax.rsqrt(var + ln_eps)
    xn = xn * g_ref[...] + be_ref[...]

    h1 = jnp.dot(xn, w1T_ref[...], preferred_element_type=jnp.float32) + b1_ref[...]
    h1 = _gelu_exact(h1)
    h2 = jnp.dot(h1, w2T_ref[...], preferred_element_type=jnp.float32) + b2_ref[...]

    out_ref[0] = (x + h2).astype(out_ref.dtype)


# ----------------------------------------------------------------------------
# Wrapper: layout plumbing + pallas_call.
# ----------------------------------------------------------------------------
def fusion_block_forward(attn_scores, v, res, params, *, h, w, num_heads,
                         stride_q=2, ln_eps=1e-5):
    """attn_scores: list of fea_no arrays (B, H, L, T); v: (B, H, T, Dh);
    res: (B, h*w, C).  Returns (B, C, h, w)."""
    f32 = jnp.float32
    B, H, T, Dh = v.shape[0], num_heads, v.shape[2], v.shape[3]
    dim = H * Dh
    hq, wq = h // stride_q, w // stride_q
    L = hq * wq
    N = h * w
    fea_no = len(attn_scores)
    c_in = H * fea_no
    assert attn_scores[0].shape == (B, H, L, T)
    assert res.shape == (B, N, dim)

    # Lane-dense score layout (free reshape in XLA): (B, H, L, T) -> (B, H*L, T).
    scores2d = [s.astype(f32).reshape(B, H * L, T) for s in attn_scores]

    # 1x1-conv weight expanded so the conv is a single matmul producing (H*L, T).
    w_kron = jnp.kron(params["w_conv"].astype(f32), jnp.eye(L, dtype=f32))   # (H*L, C_in*L)
    b_conv_rows = jnp.repeat(params["b_conv"].astype(f32), L).reshape(H * L, 1)

    w_projT = params["w_proj"].astype(f32).T                                  # (C, C)
    b_proj = params["b_proj"].astype(f32).reshape(1, dim)
    m2d = _bilinear_2d_matrix(h, w, hq, wq)                                   # (N, L)
    gamma = params["gamma"].astype(f32).reshape(1, dim)
    beta = params["beta"].astype(f32).reshape(1, dim)
    w1T = params["w1"].astype(f32).T                                          # (C, Ch)
    b1 = params["b1"].astype(f32).reshape(1, -1)
    w2T = params["w2"].astype(f32).T                                          # (Ch, C)
    b2 = params["b2"].astype(f32).reshape(1, dim)
    hidden = w1T.shape[1]

    kernel = functools.partial(
        _fusion_block_kernel,
        fea_no=fea_no, num_heads=H, head_dim=Dh, q_len=L, ln_eps=ln_eps)

    in_specs = [
        pl.BlockSpec((H * L, c_in * L), lambda b: (0, 0)),      # kron conv weight
        pl.BlockSpec((H * L, 1), lambda b: (0, 0)),             # conv bias rows
        pl.BlockSpec((1, H, T, Dh), lambda b: (b, 0, 0, 0)),    # v
        pl.BlockSpec((dim, dim), lambda b: (0, 0)),             # proj weight^T
        pl.BlockSpec((1, dim), lambda b: (0, 0)),               # proj bias
        pl.BlockSpec((N, L), lambda b: (0, 0)),                 # bilinear matrix
        pl.BlockSpec((1, N, dim), lambda b: (b, 0, 0)),         # residual tokens
        pl.BlockSpec((1, dim), lambda b: (0, 0)),               # LN weight
        pl.BlockSpec((1, dim), lambda b: (0, 0)),               # LN bias
        pl.BlockSpec((dim, hidden), lambda b: (0, 0)),          # fc1 weight^T
        pl.BlockSpec((1, hidden), lambda b: (0, 0)),            # fc1 bias
        pl.BlockSpec((hidden, dim), lambda b: (0, 0)),          # fc2 weight^T
        pl.BlockSpec((1, dim), lambda b: (0, 0)),               # fc2 bias
    ] + [pl.BlockSpec((1, H * L, T), lambda b: (b, 0, 0)) for _ in range(fea_no)]

    out_tokens = pl.pallas_call(
        kernel,
        out_shape=jax.ShapeDtypeStruct((B, N, dim), f32),
        grid_spec=pltpu.PrefetchScalarGridSpec(
            num_scalar_prefetch=0,
            grid=(B,),
            in_specs=in_specs,
            out_specs=pl.BlockSpec((1, N, dim), lambda b: (b, 0, 0)),
            scratch_shapes=[pltpu.VMEM((c_in * L, T), f32)],
        ),
        compiler_params=pltpu.CompilerParams(
            dimension_semantics=("parallel",),          # shards batch across v7x's 2 TCs
            vmem_limit_bytes=32 * 1024 * 1024,          # explicit budget; ~6 MiB actually used
        ),
    )(w_kron, b_conv_rows, v, w_projT, b_proj, m2d, res, gamma, beta,
      w1T, b1, w2T, b2, *scores2d)

    # final rearrange 'b (h w) c -> b c h w' -- pure layout plumbing in XLA.
    return jnp.transpose(out_tokens, (0, 2, 1)).reshape(B, dim, h, w)


# ----------------------------------------------------------------------------
# Pure-JAX reference mirroring the PyTorch FusionBlock.forward (f32, HIGHEST).
# ----------------------------------------------------------------------------
def reference(attn_scores, v, res, params, *, h, w, stride_q=2, ln_eps=1e-5):
    prec = jax.lax.Precision.HIGHEST
    cat = jnp.concatenate(attn_scores, axis=1)                               # (B, C_in, L, T)
    score = jnp.einsum('hc,bclt->bhlt', params["w_conv"], cat, precision=prec)
    score = score + params["b_conv"][None, :, None, None]
    attn = jax.nn.softmax(score, axis=-1)
    x = jnp.einsum('bhlt,bhtv->bhlv', attn, v, precision=prec)               # (B, H, L, Dh)
    B, H, L, Dh = x.shape
    x = jnp.transpose(x, (0, 2, 1, 3)).reshape(B, L, H * Dh)                 # 'b h l d -> b l (h d)'
    x = jnp.einsum('blk,ck->blc', x, params["w_proj"], precision=prec) + params["b_proj"]
    hq, wq = h // stride_q, w // stride_q
    m2d = _bilinear_2d_matrix(h, w, hq, wq)                                  # (N, L)
    up = jnp.einsum('nl,blc->bnc', m2d, x, precision=prec)                   # bilinear upsample
    x = res + up
    mu = x.mean(-1, keepdims=True)
    var = jnp.mean((x - mu) ** 2, axis=-1, keepdims=True)
    xn = (x - mu) * jax.lax.rsqrt(var + ln_eps) * params["gamma"] + params["beta"]
    h1 = jnp.einsum('bnc,hc->bnh', xn, params["w1"], precision=prec) + params["b1"]
    h1 = jax.nn.gelu(h1, approximate=False)
    h2 = jnp.einsum('bnh,ch->bnc', h1, params["w2"], precision=prec) + params["b2"]
    y = x + h2
    return jnp.transpose(y, (0, 2, 1)).reshape(B, H * Dh, h, w)


if __name__ == "__main__":
    # Shapes consistent with FusionBlock: h=w=16, stride_q=2 -> L=64 query
    # tokens, N=256 output tokens; embed_dim=128 (4 heads x 32), mlp hidden=512,
    # key length T=128, task_no (fea_no)=3.
    B, fea_no, num_heads, head_dim = 2, 3, 4, 32
    h = w = 16
    stride_q = 2
    T = 128
    dim = num_heads * head_dim
    hidden = 4 * dim
    hq, wq = h // stride_q, w // stride_q
    L = hq * wq
    N = h * w
    c_in = num_heads * fea_no

    key = jax.random.PRNGKey(0)
    ks = jax.random.split(key, 16)
    attn_scores = [
        jax.random.normal(ks[i], (B, num_heads, L, T), jnp.float32)
        for i in range(fea_no)
    ]
    v = jax.random.normal(ks[3], (B, num_heads, T, head_dim), jnp.float32)
    res = jax.random.normal(ks[4], (B, N, dim), jnp.float32)

    params = {
        "w_conv": 0.2 * jax.random.normal(ks[5], (num_heads, c_in), jnp.float32),
        "b_conv": 0.1 * jax.random.normal(ks[6], (num_heads,), jnp.float32),
        "w_proj": 0.1 * jax.random.normal(ks[7], (dim, dim), jnp.float32),
        "b_proj": 0.1 * jax.random.normal(ks[8], (dim,), jnp.float32),
        "gamma": 1.0 + 0.1 * jax.random.normal(ks[9], (dim,), jnp.float32),
        "beta": 0.1 * jax.random.normal(ks[10], (dim,), jnp.float32),
        "w1": 0.06 * jax.random.normal(ks[11], (hidden, dim), jnp.float32),
        "b1": 0.05 * jax.random.normal(ks[12], (hidden,), jnp.float32),
        "w2": 0.04 * jax.random.normal(ks[13], (dim, hidden), jnp.float32),
        "b2": 0.05 * jax.random.normal(ks[14], (dim,), jnp.float32),
    }

    out = fusion_block_forward(attn_scores, v, res, params,
                               h=h, w=w, num_heads=num_heads, stride_q=stride_q)
    out = jax.block_until_ready(out)

    ref = reference(attn_scores, v, res, params, h=h, w=w, stride_q=stride_q)
    assert out.shape == (B, dim, h, w), out.shape
    # Tolerance loosened vs. the f32 HIGHEST reference: kernel matmuls use the
    # MXU-native DEFAULT precision (bf16 passes, f32 accumulation).
    err = float(jnp.max(jnp.abs(out - ref)))
    assert jnp.allclose(out, ref, rtol=3e-2, atol=3e-2), (
        "mismatch: max abs err = %e" % err)

    print("KERNEL_OK")
</pallas_src>

<mosaic_0001>
module attributes {stable_mosaic.version = 11 : i64} {
  func.func @_fusion_block_kernel(%arg0: i32, %arg1: memref<256x768xf32, #tpu.memory_space<vmem>>, %arg2: memref<256x1xf32, #tpu.memory_space<vmem>>, %arg3: memref<1x4x128x32xf32, #tpu.memory_space<vmem>>, %arg4: memref<128x128xf32, #tpu.memory_space<vmem>>, %arg5: memref<1x128xf32, #tpu.memory_space<vmem>>, %arg6: memref<256x64xf32, #tpu.memory_space<vmem>>, %arg7: memref<1x256x128xf32, #tpu.memory_space<vmem>>, %arg8: memref<1x128xf32, #tpu.memory_space<vmem>>, %arg9: memref<1x128xf32, #tpu.memory_space<vmem>>, %arg10: memref<128x512xf32, #tpu.memory_space<vmem>>, %arg11: memref<1x512xf32, #tpu.memory_space<vmem>>, %arg12: memref<512x128xf32, #tpu.memory_space<vmem>>, %arg13: memref<1x128xf32, #tpu.memory_space<vmem>>, %arg14: memref<1x256x128xf32, #tpu.memory_space<vmem>>, %arg15: memref<1x256x128xf32, #tpu.memory_space<vmem>>, %arg16: memref<1x256x128xf32, #tpu.memory_space<vmem>>, %arg17: memref<1x256x128xf32, #tpu.memory_space<vmem>>, %arg18: memref<768x128xf32, #tpu.memory_space<vmem>>) attributes {dimension_semantics = [#tpu.dimension_semantics<parallel>], iteration_bounds = array<i64: 2>, scalar_prefetch = 0 : i64, scratch_operands = 1 : i64, tpu.core_type = #tpu.core_type<tc>, window_params = [{pipeline_mode = #tpu.pipeline_mode<synchronous>, transform_indices = @transform_0, window_bounds = array<i64: 256, 768>}, {pipeline_mode = #tpu.pipeline_mode<synchronous>, transform_indices = @transform_1, window_bounds = array<i64: 256, 1>}, {transform_indices = @transform_2, window_bounds = array<i64: 1, 4, 128, 32>}, {pipeline_mode = #tpu.pipeline_mode<synchronous>, transform_indices = @transform_3, window_bounds = array<i64: 128, 128>}, {pipeline_mode = #tpu.pipeline_mode<synchronous>, transform_indices = @transform_4, window_bounds = array<i64: 1, 128>}, {pipeline_mode = #tpu.pipeline_mode<synchronous>, transform_indices = @transform_5, window_bounds = array<i64: 256, 64>}, {transform_indices = @transform_6, window_bounds = array<i64: 1, 256, 128>}, {pipeline_mode = #tpu.pipeline_mode<synchronous>, transform_indices = @transform_7, window_bounds = array<i64: 1, 128>}, {pipeline_mode = #tpu.pipeline_mode<synchronous>, transform_indices = @transform_8, window_bounds = array<i64: 1, 128>}, {pipeline_mode = #tpu.pipeline_mode<synchronous>, transform_indices = @transform_9, window_bounds = array<i64: 128, 512>}, {pipeline_mode = #tpu.pipeline_mode<synchronous>, transform_indices = @transform_10, window_bounds = array<i64: 1, 512>}, {pipeline_mode = #tpu.pipeline_mode<synchronous>, transform_indices = @transform_11, window_bounds = array<i64: 512, 128>}, {pipeline_mode = #tpu.pipeline_mode<synchronous>, transform_indices = @transform_12, window_bounds = array<i64: 1, 128>}, {transform_indices = @transform_13, window_bounds = array<i64: 1, 256, 128>}, {transform_indices = @transform_14, window_bounds = array<i64: 1, 256, 128>}, {transform_indices = @transform_15, window_bounds = array<i64: 1, 256, 128>}, {transform_indices = @transform_16, window_bounds = array<i64: 1, 256, 128>}]} {
    %c0 = arith.constant 0 : index
    %c0_0 = arith.constant 0 : index
    %c0_1 = arith.constant 0 : index
    %0 = vector.load %arg14[%c0, %c0_0, %c0_1] : memref<1x256x128xf32, #tpu.memory_space<vmem>>, vector<1x256x128xf32>
    %1 = vector.shape_cast %0 : vector<1x256x128xf32> to vector<256x128xf32>
    %c0_2 = arith.constant 0 : index
    %c0_3 = arith.constant 0 : index
    %2 = vector.load %arg18[%c0_2, %c0_3] : memref<768x128xf32, #tpu.memory_space<vmem>>, vector<256x128xf32>
    tpu.vector_store %arg18[%c0_2, %c0_3], %1 {strides = array<i32>} : memref<768x128xf32, #tpu.memory_space<vmem>>, vector<256x128xf32>,
    %c0_4 = arith.constant 0 : index
    %c0_5 = arith.constant 0 : index
    %c0_6 = arith.constant 0 : index
    %3 = vector.load %arg15[%c0_4, %c0_5, %c0_6] : memref<1x256x128xf32, #tpu.memory_space<vmem>>, vector<1x256x128xf32>
    %4 = vector.shape_cast %3 : vector<1x256x128xf32> to vector<256x128xf32>
    %c256 = arith.constant 256 : index
    %c0_7 = arith.constant 0 : index
    %5 = vector.load %arg18[%c256, %c0_7] : memref<768x128xf32, #tpu.memory_space<vmem>>, vector<256x128xf32>
    tpu.vector_store %arg18[%c256, %c0_7], %4 {strides = array<i32>} : memref<768x128xf32, #tpu.memory_space<vmem>>, vector<256x128xf32>,
    %c0_8 = arith.constant 0 : index
    %c0_9 = arith.constant 0 : index
    %c0_10 = arith.constant 0 : index
    %6 = vector.load %arg16[%c0_8, %c0_9, %c0_10] : memref<1x256x128xf32, #tpu.memory_space<vmem>>, vector<1x256x128xf32>
    %7 = vector.shape_cast %6 : vector<1x256x128xf32> to vector<256x128xf32>
    %c512 = arith.constant 512 : index
    %c0_11 = arith.constant 0 : index
    %8 = vector.load %arg18[%c512, %c0_11] : memref<768x128xf32, #tpu.memory_space<vmem>>, vector<256x128xf32>
    tpu.vector_store %arg18[%c512, %c0_11], %7 {strides = array<i32>} : memref<768x128xf32, #tpu.memory_space<vmem>>, vector<256x128xf32>,
    %c0_12 = arith.constant 0 : index
    %c0_13 = arith.constant 0 : index
    %9 = vector.load %arg1[%c0_12, %c0_13] : memref<256x768xf32, #tpu.memory_space<vmem>>, vector<256x768xf32>
    %c0_14 = arith.constant 0 : index
    %c0_15 = arith.constant 0 : index
    %10 = vector.load %arg18[%c0_14, %c0_15] : memref<768x128xf32, #tpu.memory_space<vmem>>, vector<768x128xf32>
    %cst = arith.constant dense<0.000000e+00> : vector<256x128xf32>
    %11 = tpu.matmul %9, %10, %cst {dimension_numbers = #tpu.dot_dimension_numbers<[1], [0], [0], [1], [0, 0, 1, 1], [], []>} : vector<256x768xf32>, vector<768x128xf32>, vector<256x128xf32> -> vector<256x128xf32>
    %c0_16 = arith.constant 0 : index
    %c0_17 = arith.constant 0 : index
    %12 = vector.load %arg2[%c0_16, %c0_17] : memref<256x1xf32, #tpu.memory_space<vmem>>, vector<256x1xf32>
    %13 = vector.broadcast %12 : vector<256x1xf32> to vector<256x128xf32>
    %14 = arith.addf %11, %13 : vector<256x128xf32>
    %cst_18 = arith.constant dense<0xFF800000> : vector<256xf32>
    %15 = vector.multi_reduction <maximumf>, %14, %cst_18 [1] : vector<256x128xf32> to vector<256xf32>
    %16 = vector.shape_cast %15 : vector<256xf32> to vector<256x1xf32>
    %17 = vector.broadcast %16 : vector<256x1xf32> to vector<256x128xf32>
    %18 = arith.subf %14, %17 : vector<256x128xf32>
    %19 = math.exp %18 : vector<256x128xf32>
    %cst_19 = arith.constant dense<0.000000e+00> : vector<256xf32>
    %20 = vector.multi_reduction <add>, %19, %cst_19 [1] : vector<256x128xf32> to vector<256xf32>
    %21 = vector.shape_cast %20 : vector<256xf32> to vector<256x1xf32>
    %22 = tpu.reciprocal %21 {approx = true} : vector<256x1xf32> -> vector<256x1xf32>
    %23 = vector.broadcast %22 : vector<256x1xf32> to vector<256x128xf32>
    %24 = arith.mulf %19, %23 : vector<256x128xf32>
    %cst_20 = arith.constant 0.000000e+00 : f32
    %25 = vector.broadcast %cst_20 : f32 to vector<64x128xf32>
    %26 = vector.extract_strided_slice %24 {offsets = [0, 0], sizes = [64, 128], strides = [1, 1]} : vector<256x128xf32> to vector<64x128xf32>
    %c0_21 = arith.constant 0 : index
    %c0_22 = arith.constant 0 : index
    %c0_23 = arith.constant 0 : index
    %c0_24 = arith.constant 0 : index
    %27 = vector.load %arg3[%c0_21, %c0_22, %c0_23, %c0_24] : memref<1x4x128x32xf32, #tpu.memory_space<vmem>>, vector<1x1x128x32xf32>
    %28 = vector.shape_cast %27 : vector<1x1x128x32xf32> to vector<128x32xf32>
    %cst_25 = arith.constant dense<0.000000e+00> : vector<64x32xf32>
    %29 = tpu.matmul %26, %28, %cst_25 {dimension_numbers = #tpu.dot_dimension_numbers<[1], [0], [0], [1], [0, 0, 1, 1], [], []>} : vector<64x128xf32>, vector<128x32xf32>, vector<64x32xf32> -> vector<64x32xf32>
    %c0_26 = arith.constant 0 : index
    %c0_27 = arith.constant 0 : index
    %30 = vector.load %arg4[%c0_26, %c0_27] : memref<128x128xf32, #tpu.memory_space<vmem>>, vector<32x128xf32>
    %cst_28 = arith.constant dense<0.000000e+00> : vector<64x128xf32>
    %31 = tpu.matmul %29, %30, %cst_28 {dimension_numbers = #tpu.dot_dimension_numbers<[1], [0], [0], [1], [0, 0, 1, 1], [], []>} : vector<64x32xf32>, vector<32x128xf32>, vector<64x128xf32> -> vector<64x128xf32>
    %32 = arith.addf %25, %31 : vector<64x128xf32>
    %33 = vector.extract_strided_slice %24 {offsets = [64, 0], sizes = [64, 128], strides = [1, 1]} : vector<256x128xf32> to vector<64x128xf32>
    %c0_29 = arith.constant 0 : index
    %c1 = arith.constant 1 : index
    %c0_30 = arith.constant 0 : index
    %c0_31 = arith.constant 0 : index
    %34 = vector.load %arg3[%c0_29, %c1, %c0_30, %c0_31] : memref<1x4x128x32xf32, #tpu.memory_space<vmem>>, vector<1x1x128x32xf32>
    %35 = vector.shape_cast %34 : vector<1x1x128x32xf32> to vector<128x32xf32>
    %cst_32 = arith.constant dense<0.000000e+00> : vector<64x32xf32>
    %36 = tpu.matmul %33, %35, %cst_32 {dimension_numbers = #tpu.dot_dimension_numbers<[1], [0], [0], [1], [0, 0, 1, 1], [], []>} : vector<64x128xf32>, vector<128x32xf32>, vector<64x32xf32> -> vector<64x32xf32>
    %c32 = arith.constant 32 : index
    %c0_33 = arith.constant 0 : index
    %37 = vector.load %arg4[%c32, %c0_33] : memref<128x128xf32, #tpu.memory_space<vmem>>, vector<32x128xf32>
    %cst_34 = arith.constant dense<0.000000e+00> : vector<64x128xf32>
    %38 = tpu.matmul %36, %37, %cst_34 {dimension_numbers = #tpu.dot_dimension_numbers<[1], [0], [0], [1], [0, 0, 1, 1], [], []>} : vector<64x32xf32>, vector<32x128xf32>, vector<64x128xf32> -> vector<64x128xf32>
    %39 = arith.addf %32, %38 : vector<64x128xf32>
    %40 = vector.extract_strided_slice %24 {offsets = [128, 0], sizes = [64, 128], strides = [1, 1]} : vector<256x128xf32> to vector<64x128xf32>
    %c0_35 = arith.constant 0 : index
    %c2 = arith.constant 2 : index
    %c0_36 = arith.constant 0 : index
    %c0_37 = arith.constant 0 : index
    %41 = vector.load %arg3[%c0_35, %c2, %c0_36, %c0_37] : memref<1x4x128x32xf32, #tpu.memory_space<vmem>>, vector<1x1x128x32xf32>
    %42 = vector.shape_cast %41 : vector<1x1x128x32xf32> to vector<128x32xf32>
    %cst_38 = arith.constant dense<0.000000e+00> : vector<64x32xf32>
    %43 = tpu.matmul %40, %42, %cst_38 {dimension_numbers = #tpu.dot_dimension_numbers<[1], [0], [0], [1], [0, 0, 1, 1], [], []>} : vector<64x128xf32>, vector<128x32xf32>, vector<64x32xf32> -> vector<64x32xf32>
    %c64 = arith.constant 64 : index
    %c0_39 = arith.constant 0 : index
    %44 = vector.load %arg4[%c64, %c0_39] : memref<128x128xf32, #tpu.memory_space<vmem>>, vector<32x128xf32>
    %cst_40 = arith.constant dense<0.000000e+00> : vector<64x128xf32>
    %45 = tpu.matmul %43, %44, %cst_40 {dimension_numbers = #tpu.dot_dimension_numbers<[1], [0], [0], [1], [0, 0, 1, 1], [], []>} : vector<64x32xf32>, vector<32x128xf32>, vector<64x128xf32> -> vector<64x128xf32>
    %46 = arith.addf %39, %45 : vector<64x128xf32>
    %47 = vector.extract_strided_slice %24 {offsets = [192, 0], sizes = [64, 128], strides = [1, 1]} : vector<256x128xf32> to vector<64x128xf32>
    %c0_41 = arith.constant 0 : index
    %c3 = arith.constant 3 : index
    %c0_42 = arith.constant 0 : index
    %c0_43 = arith.constant 0 : index
    %48 = vector.load %arg3[%c0_41, %c3, %c0_42, %c0_43] : memref<1x4x128x32xf32, #tpu.memory_space<vmem>>, vector<1x1x128x32xf32>
    %49 = vector.shape_cast %48 : vector<1x1x128x32xf32> to vector<128x32xf32>
    %cst_44 = arith.constant dense<0.000000e+00> : vector<64x32xf32>
    %50 = tpu.matmul %47, %49, %cst_44 {dimension_numbers = #tpu.dot_dimension_numbers<[1], [0], [0], [1], [0, 0, 1, 1], [], []>} : vector<64x128xf32>, vector<128x32xf32>, vector<64x32xf32> -> vector<64x32xf32>
    %c96 = arith.constant 96 : index
    %c0_45 = arith.constant 0 : index
    %51 = vector.load %arg4[%c96, %c0_45] : memref<128x128xf32, #tpu.memory_space<vmem>>, vector<32x128xf32>
    %cst_46 = arith.constant dense<0.000000e+00> : vector<64x128xf32>
    %52 = tpu.matmul %50, %51, %cst_46 {dimension_numbers = #tpu.dot_dimension_numbers<[1], [0], [0], [1], [0, 0, 1, 1], [], []>} : vector<64x32xf32>, vector<32x128xf32>, vector<64x128xf32> -> vector<64x128xf32>
    %53 = arith.addf %46, %52 : vector<64x128xf32>
    %c0_47 = arith.constant 0 : index
    %c0_48 = arith.constant 0 : index
    %54 = vector.load %arg5[%c0_47, %c0_48] : memref<1x128xf32, #tpu.memory_space<vmem>>, vector<1x128xf32>
    %55 = vector.broadcast %54 : vector<1x128xf32> to vector<64x128xf32>
    %56 = arith.addf %53, %55 : vector<64x128xf32>
    %c0_49 = arith.constant 0 : index
    %c0_50 = arith.constant 0 : index
    %c0_51 = arith.constant 0 : index
    %57 = vector.load %arg7[%c0_49, %c0_50, %c0_51] : memref<1x256x128xf32, #tpu.memory_space<vmem>>, vector<1x256x128xf32>
    %58 = vector.shape_cast %57 : vector<1x256x128xf32> to vector<256x128xf32>
    %c0_52 = arith.constant 0 : index
    %c0_53 = arith.constant 0 : index
    %59 = vector.load %arg6[%c0_52, %c0_53] : memref<256x64xf32, #tpu.memory_space<vmem>>, vector<256x64xf32>
    %cst_54 = arith.constant dense<0.000000e+00> : vector<256x128xf32>
    %60 = tpu.matmul %59, %56, %cst_54 {dimension_numbers = #tpu.dot_dimension_numbers<[1], [0], [0], [1], [0, 0, 1, 1], [], []>} : vector<256x64xf32>, vector<64x128xf32>, vector<256x128xf32> -> vector<256x128xf32>
    %61 = arith.addf %58, %60 : vector<256x128xf32>
    %cst_55 = arith.constant dense<0.000000e+00> : vector<256xf32>
    %62 = vector.multi_reduction <add>, %61, %cst_55 [1] : vector<256x128xf32> to vector<256xf32>
    %63 = vector.shape_cast %62 : vector<256xf32> to vector<256x1xf32>
    %cst_56 = arith.constant 1.280000e+02 : f32
    %64 = vector.broadcast %cst_56 : f32 to vector<256x1xf32>
    %65 = arith.divf %63, %64 : vector<256x1xf32>
    %66 = vector.broadcast %65 : vector<256x1xf32> to vector<256x128xf32>
    %67 = arith.subf %61, %66 : vector<256x128xf32>
    %68 = arith.mulf %67, %67 : vector<256x128xf32>
    %cst_57 = arith.constant dense<0.000000e+00> : vector<256xf32>
    %69 = vector.multi_reduction <add>, %68, %cst_57 [1] : vector<256x128xf32> to vector<256xf32>
    %70 = vector.shape_cast %69 : vector<256xf32> to vector<256x1xf32>
    %cst_58 = arith.constant 1.280000e+02 : f32
    %71 = vector.broadcast %cst_58 : f32 to vector<256x1xf32>
    %72 = arith.divf %70, %71 : vector<256x1xf32>
    %cst_59 = arith.constant 9.99999974E-6 : f32
    %73 = vector.broadcast %cst_59 : f32 to vector<256x1xf32>
    %74 = arith.addf %72, %73 : vector<256x1xf32>
    %75 = math.rsqrt %74 : vector<256x1xf32>
    %76 = vector.broadcast %75 : vector<256x1xf32> to vector<256x128xf32>
    %77 = arith.mulf %67, %76 : vector<256x128xf32>
    %c0_60 = arith.constant 0 : index
    %c0_61 = arith.constant 0 : index
    %78 = vector.load %arg8[%c0_60, %c0_61] : memref<1x128xf32, #tpu.memory_space<vmem>>, vector<1x128xf32>
    %79 = vector.broadcast %78 : vector<1x128xf32> to vector<256x128xf32>
    %80 = arith.mulf %77, %79 : vector<256x128xf32>
    %c0_62 = arith.constant 0 : index
    %c0_63 = arith.constant 0 : index
    %81 = vector.load %arg9[%c0_62, %c0_63] : memref<1x128xf32, #tpu.memory_space<vmem>>, vector<1x128xf32>
    %82 = vector.broadcast %81 : vector<1x128xf32> to vector<256x128xf32>
    %83 = arith.addf %80, %82 : vector<256x128xf32>
    %c0_64 = arith.constant 0 : index
    %c0_65 = arith.constant 0 : index
    %84 = vector.load %arg10[%c0_64, %c0_65] : memref<128x512xf32, #tpu.memory_space<vmem>>, vector<128x512xf32>
    %cst_66 = arith.constant dense<0.000000e+00> : vector<256x512xf32>
    %85 = tpu.matmul %83, %84, %cst_66 {dimension_numbers = #tpu.dot_dimension_numbers<[1], [0], [0], [1], [0, 0, 1, 1], [], []>} : vector<256x128xf32>, vector<128x512xf32>, vector<256x512xf32> -> vector<256x512xf32>
    %c0_67 = arith.constant 0 : index
    %c0_68 = arith.constant 0 : index
    %86 = vector.load %arg11[%c0_67, %c0_68] : memref<1x512xf32, #tpu.memory_space<vmem>>, vector<1x512xf32>
    %87 = vector.broadcast %86 : vector<1x512xf32> to vector<256x512xf32>
    %88 = arith.addf %85, %87 : vector<256x512xf32>
    %cst_69 = arith.constant 5.000000e-01 : f32
    %89 = vector.broadcast %cst_69 : f32 to vector<256x512xf32>
    %90 = arith.mulf %89, %88 : vector<256x512xf32>
    %cst_70 = arith.constant 0.707106769 : f32
    %91 = vector.broadcast %cst_70 : f32 to vector<256x512xf32>
    %92 = arith.mulf %88, %91 : vector<256x512xf32>
    %cst_71 = arith.constant 0.000000e+00 : f32
    %93 = vector.broadcast %cst_71 : f32 to vector<256x512xf32>
    %94 = arith.cmpf oge, %92, %93 : vector<256x512xf32>
    %cst_72 = arith.constant 1.000000e+00 : f32
    %cst_73 = arith.constant -1.000000e+00 : f32
    %95 = vector.broadcast %cst_72 : f32 to vector<256x512xf32>
    %96 = vector.broadcast %cst_73 : f32 to vector<256x512xf32>
    %97 = arith.select %94, %95, %96 : vector<256x512xi1>, vector<256x512xf32>
    %98 = math.absf %92 : vector<256x512xf32>
    %cst_74 = arith.constant 0.327591091 : f32
    %99 = vector.broadcast %cst_74 : f32 to vector<256x512xf32>
    %100 = arith.mulf %99, %98 : vector<256x512xf32>
    %cst_75 = arith.constant 1.000000e+00 : f32
    %101 = vector.broadcast %cst_75 : f32 to vector<256x512xf32>
    %102 = arith.addf %101, %100 : vector<256x512xf32>
    %cst_76 = arith.constant 1.000000e+00 : f32
    %103 = vector.broadcast %cst_76 : f32 to vector<256x512xf32>
    %104 = arith.divf %103, %102 : vector<256x512xf32>
    %cst_77 = arith.constant 1.06140542 : f32
    %105 = vector.broadcast %cst_77 : f32 to vector<256x512xf32>
    %106 = arith.mulf %105, %104 : vector<256x512xf32>
    %cst_78 = arith.constant -1.45315206 : f32
    %107 = vector.broadcast %cst_78 : f32 to vector<256x512xf32>
    %108 = arith.addf %106, %107 : vector<256x512xf32>
    %109 = arith.mulf %108, %104 : vector<256x512xf32>
    %cst_79 = arith.constant 1.42141378 : f32
    %110 = vector.broadcast %cst_79 : f32 to vector<256x512xf32>
    %111 = arith.addf %109, %110 : vector<256x512xf32>
    %112 = arith.mulf %111, %104 : vector<256x512xf32>
    %cst_80 = arith.constant -0.284496725 : f32
    %113 = vector.broadcast %cst_80 : f32 to vector<256x512xf32>
    %114 = arith.addf %112, %113 : vector<256x512xf32>
    %115 = arith.mulf %114, %104 : vector<256x512xf32>
    %cst_81 = arith.constant 0.254829586 : f32
    %116 = vector.broadcast %cst_81 : f32 to vector<256x512xf32>
    %117 = arith.addf %115, %116 : vector<256x512xf32>
    %118 = arith.mulf %117, %104 : vector<256x512xf32>
    %cst_82 = arith.constant 0.000000e+00 : f32
    %119 = vector.broadcast %cst_82 : f32 to vector<256x512xf32>
    %120 = arith.subf %119, %98 : vector<256x512xf32>
    %121 = arith.mulf %120, %98 : vector<256x512xf32>
    %122 = math.exp %121 : vector<256x512xf32>
    %123 = arith.mulf %118, %122 : vector<256x512xf32>
    %cst_83 = arith.constant 1.000000e+00 : f32
    %124 = vector.broadcast %cst_83 : f32 to vector<256x512xf32>
    %125 = arith.subf %124, %123 : vector<256x512xf32>
    %126 = arith.mulf %97, %125 : vector<256x512xf32>
    %cst_84 = arith.constant 1.000000e+00 : f32
    %127 = vector.broadcast %cst_84 : f32 to vector<256x512xf32>
    %128 = arith.addf %127, %126 : vector<256x512xf32>
    %129 = arith.mulf %90, %128 : vector<256x512xf32>
    %c0_85 = arith.constant 0 : index
    %c0_86 = arith.constant 0 : index
    %130 = vector.load %arg12[%c0_85, %c0_86] : memref<512x128xf32, #tpu.memory_space<vmem>>, vector<512x128xf32>
    %cst_87 = arith.constant dense<0.000000e+00> : vector<256x128xf32>
    %131 = tpu.matmul %129, %130, %cst_87 {dimension_numbers = #tpu.dot_dimension_numbers<[1], [0], [0], [1], [0, 0, 1, 1], [], []>} : vector<256x512xf32>, vector<512x128xf32>, vector<256x128xf32> -> vector<256x128xf32>
    %c0_88 = arith.constant 0 : index
    %c0_89 = arith.constant 0 : index
    %132 = vector.load %arg13[%c0_88, %c0_89] : memref<1x128xf32, #tpu.memory_space<vmem>>, vector<1x128xf32>
    %133 = vector.broadcast %132 : vector<1x128xf32> to vector<256x128xf32>
    %134 = arith.addf %131, %133 : vector<256x128xf32>
    %135 = arith.addf %61, %134 : vector<256x128xf32>
    %c0_90 = arith.constant 0 : index
    %c0_91 = arith.constant 0 : index
    %c0_92 = arith.constant 0 : index
    %136 = vector.load %arg17[%c0_90, %c0_91, %c0_92] : memref<1x256x128xf32, #tpu.memory_space<vmem>>, vector<1x256x128xf32>
    %137 = vector.shape_cast %136 : vector<1x256x128xf32> to vector<256x128xf32>
    %138 = vector.shape_cast %135 : vector<256x128xf32> to vector<1x256x128xf32>
    tpu.vector_store %arg17[%c0_90, %c0_91, %c0_92], %138 {strides = array<i32>} : memref<1x256x128xf32, #tpu.memory_space<vmem>>, vector<1x256x128xf32>,
    return
  }
  func.func @transform_0(%arg0: i32) -> (i32, i32) {
    %c0_i32 = arith.constant 0 : i32
    %c0_i32_0 = arith.constant 0 : i32
    %c0_i32_1 = arith.constant 0 : i32
    return %c0_i32, %c0_i32_0 : i32, i32
  }
  func.func @transform_1(%arg0: i32) -> (i32, i32) {
    %c0_i32 = arith.constant 0 : i32
    %c0_i32_0 = arith.constant 0 : i32
    %c0_i32_1 = arith.constant 0 : i32
    return %c0_i32, %c0_i32_0 : i32, i32
  }
  func.func @transform_2(%arg0: i32) -> (i32, i32, i32, i32) {
    %c0_i32 = arith.constant 0 : i32
    %c0_i32_0 = arith.constant 0 : i32
    %c0_i32_1 = arith.constant 0 : i32
    %c0_i32_2 = arith.constant 0 : i32
    return %arg0, %c0_i32, %c0_i32_0, %c0_i32_1 : i32, i32, i32, i32
  }
  func.func @transform_3(%arg0: i32) -> (i32, i32) {
    %c0_i32 = arith.constant 0 : i32
    %c0_i32_0 = arith.constant 0 : i32
    %c0_i32_1 = arith.constant 0 : i32
    return %c0_i32, %c0_i32_0 : i32, i32
  }
  func.func @transform_4(%arg0: i32) -> (i32, i32) {
    %c0_i32 = arith.constant 0 : i32
    %c0_i32_0 = arith.constant 0 : i32
    %c0_i32_1 = arith.constant 0 : i32
    return %c0_i32, %c0_i32_0 : i32, i32
  }
  func.func @transform_5(%arg0: i32) -> (i32, i32) {
    %c0_i32 = arith.constant 0 : i32
    %c0_i32_0 = arith.constant 0 : i32
    %c0_i32_1 = arith.constant 0 : i32
    return %c0_i32, %c0_i32_0 : i32, i32
  }
  func.func @transform_6(%arg0: i32) -> (i32, i32, i32) {
    %c0_i32 = arith.constant 0 : i32
    %c0_i32_0 = arith.constant 0 : i32
    %c0_i32_1 = arith.constant 0 : i32
    return %arg0, %c0_i32, %c0_i32_0 : i32, i32, i32
  }
  func.func @transform_7(%arg0: i32) -> (i32, i32) {
    %c0_i32 = arith.constant 0 : i32
    %c0_i32_0 = arith.constant 0 : i32
    %c0_i32_1 = arith.constant 0 : i32
    return %c0_i32, %c0_i32_0 : i32, i32
  }
  func.func @transform_8(%arg0: i32) -> (i32, i32) {
    %c0_i32 = arith.constant 0 : i32
    %c0_i32_0 = arith.constant 0 : i32
    %c0_i32_1 = arith.constant 0 : i32
    return %c0_i32, %c0_i32_0 : i32, i32
  }
  func.func @transform_9(%arg0: i32) -> (i32, i32) {
    %c0_i32 = arith.constant 0 : i32
    %c0_i32_0 = arith.constant 0 : i32
    %c0_i32_1 = arith.constant 0 : i32
    return %c0_i32, %c0_i32_0 : i32, i32
  }
  func.func @transform_10(%arg0: i32) -> (i32, i32) {
    %c0_i32 = arith.constant 0 : i32
    %c0_i32_0 = arith.constant 0 : i32
    %c0_i32_1 = arith.constant 0 : i32
    return %c0_i32, %c0_i32_0 : i32, i32
  }
  func.func @transform_11(%arg0: i32) -> (i32, i32) {
    %c0_i32 = arith.constant 0 : i32
    %c0_i32_0 = arith.constant 0 : i32
    %c0_i32_1 = arith.constant 0 : i32
    return %c0_i32, %c0_i32_0 : i32, i32
  }
  func.func @transform_12(%arg0: i32) -> (i32, i32) {
    %c0_i32 = arith.constant 0 : i32
    %c0_i32_0 = arith.constant 0 : i32
    %c0_i32_1 = arith.constant 0 : i32
    return %c0_i32, %c0_i32_0 : i32, i32
  }
  func.func @transform_13(%arg0: i32) -> (i32, i32, i32) {
    %c0_i32 = arith.constant 0 : i32
    %c0_i32_0 = arith.constant 0 : i32
    %c0_i32_1 = arith.constant 0 : i32
    return %arg0, %c0_i32, %c0_i32_0 : i32, i32, i32
  }
  func.func @transform_14(%arg0: i32) -> (i32, i32, i32) {
    %c0_i32 = arith.constant 0 : i32
    %c0_i32_0 = arith.constant 0 : i32
    %c0_i32_1 = arith.constant 0 : i32
    return %arg0, %c0_i32, %c0_i32_0 : i32, i32, i32
  }
  func.func @transform_15(%arg0: i32) -> (i32, i32, i32) {
    %c0_i32 = arith.constant 0 : i32
    %c0_i32_0 = arith.constant 0 : i32
    %c0_i32_1 = arith.constant 0 : i32
    return %arg0, %c0_i32, %c0_i32_0 : i32, i32, i32
  }
  func.func @transform_16(%arg0: i32) -> (i32, i32, i32) {
    %c0_i32 = arith.constant 0 : i32
    %c0_i32_0 = arith.constant 0 : i32
    %c0_i32_1 = arith.constant 0 : i32
    return %arg0, %c0_i32, %c0_i32_0 : i32, i32, i32
  }
}

</mosaic_0001>

<llo_original>
// kernel: tpu_custom_call.1
$region0: #{tpu_custom_call.1}
  #allocation0 [shape = 'u32[]', space=smem, size = 0x4, offset = 0x4, fixed_abs, tag = 'smem constant byte address 0x4 - core index']
  #allocation1 [shape = 'u32[72,128]{1,0:T(1,128)}', space=vmem, size = 0x9000, scoped, tag = 'internal scratch']
  #allocation2 [shape = 'f32[768,128]{1,0:T(8,128)}', space=vmem, size = 0x60000, scoped, tag = 'scratch operand']
  %s0 = inlined_call_operand.hbm [shape: f32[256,768], index: 0, kind: input, shape index: {}]
  %s1 = inlined_call_operand.vmem [shape: f32[256,1], index: 1, kind: input, shape index: {}]
  %s2 = inlined_call_operand.vmem [shape: f32[2,4,128,32], index: 2, kind: input, shape index: {}]
  %s3 = inlined_call_operand.vmem [shape: f32[128,128], index: 3, kind: input, shape index: {}]
  %s4 = inlined_call_operand.vmem [shape: f32[1,128], index: 4, kind: input, shape index: {}]
  %s5 = inlined_call_operand.vmem [shape: f32[256,64], index: 5, kind: input, shape index: {}]
  %s6 = inlined_call_operand.vmem [shape: f32[2,256,128], index: 6, kind: input, shape index: {}]
  %s7 = inlined_call_operand.vmem [shape: f32[1,128], index: 7, kind: input, shape index: {}]
  %s8 = inlined_call_operand.vmem [shape: f32[1,128], index: 8, kind: input, shape index: {}]
  %s9 = inlined_call_operand.vmem [shape: f32[128,512], index: 9, kind: input, shape index: {}]
  %s10 = inlined_call_operand.vmem [shape: f32[1,512], index: 10, kind: input, shape index: {}]
  %s11 = inlined_call_operand.hbm [shape: f32[512,128], index: 11, kind: input, shape index: {}]
  %s12 = inlined_call_operand.vmem [shape: f32[1,128], index: 12, kind: input, shape index: {}]
  %s13 = inlined_call_operand.hbm [shape: f32[2,256,128], index: 13, kind: input, shape index: {}]
  %s14 = inlined_call_operand.hbm [shape: f32[2,256,128], index: 14, kind: input, shape index: {}]
  %s15 = inlined_call_operand.hbm [shape: f32[2,256,128], index: 15, kind: input, shape index: {}]
  %s16 = inlined_call_operand.hbm [shape: f32[2,256,128], index: 16, kind: output, shape index: {}]
  %s17 = sld [smem:[#allocation0]]
  $region117: #{tpu_custom_call.1} parent=0
    _
  %s19 = ssub.s32 1, %s17
  %s20 = scalar_select 0, %s19, %s17
  $region1: #{tpu_custom_call.1} parent=0
    #allocation3 [shape = 'u8[786432]{0}', space=vmem, size = 0xc0000, scoped, tag = 'input window, operand 0, single buffered']
    #allocation4 [shape = 's32[2]{0}', space=sflag, size = 0x8, scoped, tag = 'scoped memory for tpu_custom_call.1']
    #allocation5 [shape = 's32[2]{0}', space=sflag, size = 0x8, scoped, tag = 'scoped memory for tpu_custom_call.1']
    #allocation6 [shape = 'u8[262144]{0}', space=vmem, size = 0x40000, scoped, tag = 'input window, operand 11, single buffered']
    #allocation7 [shape = 's32[1]{0}', space=sflag, size = 0x4, scoped, tag = 'scoped memory for tpu_custom_call.1']
    #allocation8 [shape = 'u8[262144]{0}', space=vmem, size = 0x40000, scoped, tag = 'input window, operand 13']
    #allocation9 [shape = 'u8[262144]{0}', space=vmem, size = 0x40000, scoped, tag = 'input window, operand 14']
    #allocation10 [shape = 'u8[262144]{0}', space=vmem, size = 0x40000, scoped, tag = 'input window, operand 15']
    #allocation11 [shape = 'u8[262144]{0}', space=vmem, size = 0x40000, scoped, tag = 'output window, operand 0']
    %21 = vsyncpa [#allocation4], 0
    %22 = vsyncpa [#allocation7], 0
    %23 = vsyncpa [#allocation5], 0
    %s24 = scalar_lea.sflag [#allocation5], 1
    %25 = vsyncpa %s24, 0
    loop: start=0, step=1, limit=4
    $region2: #{tpu_custom_call.1} parent=1 // loop_pre_header
      _
    $region3: #{tpu_custom_call.1} parent=1 // loop_header
      %s27 = sphi 0, %s31
      %p28 = scmp.ge.s32.totalorder %s27, 4
      %s35 = sphi 0, %s35
      %s37 = sphi 0, %s35
      %s38 = sphi 0, %s37
      %s52 = sphi 0, %s38
      %s56 = sphi 0, %s56
      %s58 = sphi 0, %s56
      %s59 = sphi 0, %s58
      %s73 = sphi 0, %s59
      %s79 = sphi 0, %s81
      %s82 = sphi 0, %s79
      %s83 = sphi 0, %s82
      %s99 = sphi 0, %s83
      %s103 = sphi 0, %s103
      %s105 = sphi 0, %s103
      %s106 = sphi 0, %s105
      %s120 = sphi 0, %s106
      %s124 = sphi 0, %s124
      %s126 = sphi 0, %s124
      %s127 = sphi 0, %s126
      %s141 = sphi 0, %s127
      %s145 = sphi 0, %s145
      %s147 = sphi 0, %s145
      %s148 = sphi 0, %s147
      %s162 = sphi 0, %s148
      %s168 = sphi 0, %s170
      %s171 = sphi 0, %s168
      %s172 = sphi 0, %s171
      %s188 = sphi 0, %s172
      %s192 = sphi 0, %s192
      %s194 = sphi 0, %s192
      %s195 = sphi 0, %s194
      %s209 = sphi 0, %s195
      %s213 = sphi 0, %s213
      %s215 = sphi 0, %s213
      %s216 = sphi 0, %s215
      %s230 = sphi 0, %s216
      %s234 = sphi 0, %s234
      %s236 = sphi 0, %s234
      %s237 = sphi 0, %s236
      %s251 = sphi 0, %s237
      %s255 = sphi 0, %s255
      %s257 = sphi 0, %s255
      %s258 = sphi 0, %s257
      %s272 = sphi 0, %s258
      %s276 = sphi 0, %s276
      %s278 = sphi 0, %s276
      %s279 = sphi 0, %s278
      %s293 = sphi 0, %s279
      %s297 = sphi 0, %s297
      %s299 = sphi 0, %s297
      %s300 = sphi 0, %s299
      %s314 = sphi 0, %s300
      %s320 = sphi 0, %s322
      %s323 = sphi 0, %s320
      %s324 = sphi 0, %s323
      %s340 = sphi 0, %s324
      %s346 = sphi 0, %s348
      %s349 = sphi 0, %s346
      %s350 = sphi 0, %s349
      %s366 = sphi 0, %s350
      %s372 = sphi 0, %s374
      %s375 = sphi 0, %s372
      %s376 = sphi 0, %s375
      %s392 = sphi 0, %s376
      %s398 = sphi 0, %s400
      %s401 = sphi 0, %s398
      %s402 = sphi 0, %s401
      %s418 = sphi 0, %s402
    $region4: #{tpu_custom_call.1} parent=1 // loop_header_branch
      %30 = sbr.rel (%p28) target = $region8
    $region5: #{tpu_custom_call.1} parent=1 // loop_body
      %s32 = ssub.s32 %s27, 1
      %s33 = ssub.s32 %s27, 2
      %s34 = sadd.s32 %s27, 1
      %s36 = sadd.s32 %s35, 1
      %p39 = scmp.eq.s32.totalorder %s27, 1
      %p40 = scmp.ne.s32.totalorder %s35, %s37
      %p41 = scmp.eq.s32.totalorder %s27, 0
      %p42 = por %p40, %p41
      %p43 = scmp.ne.s32.totalorder %s35, %s37
      %p44 = scmp.eq.s32.totalorder %s32, 1
      %p45 = por %p43, %p44
      %p46 = scmp.ne.s32.totalorder %s37, %s38
      %p47 = scmp.eq.s32.totalorder %s32, 0
      %p48 = por %p46, %p47
      %p49 = scmp.ne.s32.totalorder %s37, %s38
      %p50 = scmp.eq.s32.totalorder %s33, 1
      %p51 = por %p49, %p50
      %p53 = scmp.ne.s32.totalorder %s38, %s52
      %p54 = scmp.eq.s32.totalorder %s33, 0
      %p55 = por %p53, %p54
      %s57 = sadd.s32 %s56, 1
      %p60 = scmp.eq.s32.totalorder %s27, 1
      %p61 = scmp.ne.s32.totalorder %s56, %s58
      %p62 = scmp.eq.s32.totalorder %s27, 0
      %p63 = por %p61, %p62
      %p64 = scmp.ne.s32.totalorder %s56, %s58
      %p65 = scmp.eq.s32.totalorder %s32, 1
      %p66 = por %p64, %p65
      %p67 = scmp.ne.s32.totalorder %s58, %s59
      %p68 = scmp.eq.s32.totalorder %s32, 0
      %p69 = por %p67, %p68
      %p70 = scmp.ne.s32.totalorder %s58, %s59
      %p71 = scmp.eq.s32.totalorder %s33, 1
      %p72 = por %p70, %p71
      %p74 = scmp.ne.s32.totalorder %s59, %s73
      %p75 = scmp.eq.s32.totalorder %s33, 0
      %p76 = por %p74, %p75
      %s77 = ssub.s32 %s27, %s34
      %p78 = scmp.eq.s32.totalorder %s77, 0
      %s80 = sadd.s32 %s79, 1
      %s81 = scalar_select %p78, %s79, %s80
      %p84 = pneg %p78
      %p85 = scmp.eq.s32.totalorder %s27, 1
      %p86 = por %p84, %p85
      %p87 = scmp.ne.s32.totalorder %s79, %s82
      %p88 = scmp.eq.s32.totalorder %s27, 0
      %p89 = por %p87, %p88
      %p90 = scmp.ne.s32.totalorder %s79, %s82
      %p91 = scmp.eq.s32.totalorder %s32, 1
      %p92 = por %p90, %p91
      %p93 = scmp.ne.s32.totalorder %s82, %s83
      %p94 = scmp.eq.s32.totalorder %s32, 0
      %p95 = por %p93, %p94
      %p96 = scmp.ne.s32.totalorder %s82, %s83
      %p97 = scmp.eq.s32.totalorder %s33, 1
      %p98 = por %p96, %p97
      %p100 = scmp.ne.s32.totalorder %s83, %s99
      %p101 = scmp.eq.s32.totalorder %s33, 0
      %p102 = por %p100, %p101
      %s104 = sadd.s32 %s103, 1
      %p107 = scmp.eq.s32.totalorder %s27, 1
      %p108 = scmp.ne.s32.totalorder %s103, %s105
      %p109 = scmp.eq.s32.totalorder %s27, 0
      %p110 = por %p108, %p109
      %p111 = scmp.ne.s32.totalorder %s103, %s105
      %p112 = scmp.eq.s32.totalorder %s32, 1
      %p113 = por %p111, %p112
      %p114 = scmp.ne.s32.totalorder %s105, %s106
      %p115 = scmp.eq.s32.totalorder %s32, 0
      %p116 = por %p114, %p115
      %p117 = scmp.ne.s32.totalorder %s105, %s106
      %p118 = scmp.eq.s32.totalorder %s33, 1
      %p119 = por %p117, %p118
      %p121 = scmp.ne.s32.totalorder %s106, %s120
      %p122 = scmp.eq.s32.totalorder %s33, 0
      %p123 = por %p121, %p122
      %s125 = sadd.s32 %s124, 1
      %p128 = scmp.eq.s32.totalorder %s27, 1
      %p129 = scmp.ne.s32.totalorder %s124, %s126
      %p130 = scmp.eq.s32.totalorder %s27, 0
      %p131 = por %p129, %p130
      %p132 = scmp.ne.s32.totalorder %s124, %s126
      %p133 = scmp.eq.s32.totalorder %s32, 1
      %p134 = por %p132, %p133
      %p135 = scmp.ne.s32.totalorder %s126, %s127
      %p136 = scmp.eq.s32.totalorder %s32, 0
      %p137 = por %p135, %p136
      %p138 = scmp.ne.s32.totalorder %s126, %s127
      %p139 = scmp.eq.s32.totalorder %s33, 1
      %p140 = por %p138, %p139
      %p142 = scmp.ne.s32.totalorder %s127, %s141
      %p143 = scmp.eq.s32.totalorder %s33, 0
      %p144 = por %p142, %p143
      %s146 = sadd.s32 %s145, 1
      %p149 = scmp.eq.s32.totalorder %s27, 1
      %p150 = scmp.ne.s32.totalorder %s145, %s147
      %p151 = scmp.eq.s32.totalorder %s27, 0
      %p152 = por %p150, %p151
      %p153 = scmp.ne.s32.totalorder %s145, %s147
      %p154 = scmp.eq.s32.totalorder %s32, 1
      %p155 = por %p153, %p154
      %p156 = scmp.ne.s32.totalorder %s147, %s148
      %p157 = scmp.eq.s32.totalorder %s32, 0
      %p158 = por %p156, %p157
      %p159 = scmp.ne.s32.totalorder %s147, %s148
      %p160 = scmp.eq.s32.totalorder %s33, 1
      %p161 = por %p159, %p160
      %p163 = scmp.ne.s32.totalorder %s148, %s162
      %p164 = scmp.eq.s32.totalorder %s33, 0
      %p165 = por %p163, %p164
      %s166 = ssub.s32 %s27, %s34
      %p167 = scmp.eq.s32.totalorder %s166, 0
      %s169 = sadd.s32 %s168, 1
      %s170 = scalar_select %p167, %s168, %s169
      %p173 = pneg %p167
      %p174 = scmp.eq.s32.totalorder %s27, 1
      %p175 = por %p173, %p174
      %p176 = scmp.ne.s32.totalorder %s168, %s171
      %p177 = scmp.eq.s32.totalorder %s27, 0
      %p178 = por %p176, %p177
      %p179 = scmp.ne.s32.totalorder %s168, %s171
      %p180 = scmp.eq.s32.totalorder %s32, 1
      %p181 = por %p179, %p180
      %p182 = scmp.ne.s32.totalorder %s171, %s172
      %p183 = scmp.eq.s32.totalorder %s32, 0
      %p184 = por %p182, %p183
      %p185 = scmp.ne.s32.totalorder %s171, %s172
      %p186 = scmp.eq.s32.totalorder %s33, 1
      %p187 = por %p185, %p186
      %p189 = scmp.ne.s32.totalorder %s172, %s188
      %p190 = scmp.eq.s32.totalorder %s33, 0
      %p191 = por %p189, %p190
      %s193 = sadd.s32 %s192, 1
      %p196 = scmp.eq.s32.totalorder %s27, 1
      %p197 = scmp.ne.s32.totalorder %s192, %s194
      %p198 = scmp.eq.s32.totalorder %s27, 0
      %p199 = por %p197, %p198
      %p200 = scmp.ne.s32.totalorder %s192, %s194
      %p201 = scmp.eq.s32.totalorder %s32, 1
      %p202 = por %p200, %p201
      %p203 = scmp.ne.s32.totalorder %s194, %s195
      %p204 = scmp.eq.s32.totalorder %s32, 0
      %p205 = por %p203, %p204
      %p206 = scmp.ne.s32.totalorder %s194, %s195
      %p207 = scmp.eq.s32.totalorder %s33, 1
      %p208 = por %p206, %p207
      %p210 = scmp.ne.s32.totalorder %s195, %s209
      %p211 = scmp.eq.s32.totalorder %s33, 0
      %p212 = por %p210, %p211
      %s214 = sadd.s32 %s213, 1
      %p217 = scmp.eq.s32.totalorder %s27, 1
      %p218 = scmp.ne.s32.totalorder %s213, %s215
      %p219 = scmp.eq.s32.totalorder %s27, 0
      %p220 = por %p218, %p219
      %p221 = scmp.ne.s32.totalorder %s213, %s215
      %p222 = scmp.eq.s32.totalorder %s32, 1
      %p223 = por %p221, %p222
      %p224 = scmp.ne.s32.totalorder %s215, %s216
      %p225 = scmp.eq.s32.totalorder %s32, 0
      %p226 = por %p224, %p225
      %p227 = scmp.ne.s32.totalorder %s215, %s216
      %p228 = scmp.eq.s32.totalorder %s33, 1
      %p229 = por %p227, %p228
      %p231 = scmp.ne.s32.totalorder %s216, %s230
      %p232 = scmp.eq.s32.totalorder %s33, 0
      %p233 = por %p231, %p232
      %s235 = sadd.s32 %s234, 1
      %p238 = scmp.eq.s32.totalorder %s27, 1
      %p239 = scmp.ne.s32.totalorder %s234, %s236
      %p240 = scmp.eq.s32.totalorder %s27, 0
      %p241 = por %p239, %p240
      %p242 = scmp.ne.s32.totalorder %s234, %s236
      %p243 = scmp.eq.s32.totalorder %s32, 1
      %p244 = por %p242, %p243
      %p245 = scmp.ne.s32.totalorder %s236, %s237
      %p246 = scmp.eq.s32.totalorder %s32, 0
      %p247 = por %p245, %p246
      %p248 = scmp.ne.s32.totalorder %s236, %s237
      %p249 = scmp.eq.s32.totalorder %s33, 1
      %p250 = por %p248, %p249
      %p252 = scmp.ne.s32.totalorder %s237, %s251
      %p253 = scmp.eq.s32.totalorder %s33, 0
      %p254 = por %p252, %p253
      %s256 = sadd.s32 %s255, 1
      %p259 = scmp.eq.s32.totalorder %s27, 1
      %p260 = scmp.ne.s32.totalorder %s255, %s257
      %p261 = scmp.eq.s32.totalorder %s27, 0
      %p262 = por %p260, %p261
      %p263 = scmp.ne.s32.totalorder %s255, %s257
      %p264 = scmp.eq.s32.totalorder %s32, 1
      %p265 = por %p263, %p264
      %p266 = scmp.ne.s32.totalorder %s257, %s258
      %p267 = scmp.eq.s32.totalorder %s32, 0
      %p268 = por %p266, %p267
      %p269 = scmp.ne.s32.totalorder %s257, %s258
      %p270 = scmp.eq.s32.totalorder %s33, 1
      %p271 = por %p269, %p270
      %p273 = scmp.ne.s32.totalorder %s258, %s272
      %p274 = scmp.eq.s32.totalorder %s33, 0
      %p275 = por %p273, %p274
      %s277 = sadd.s32 %s276, 1
      %p280 = scmp.eq.s32.totalorder %s27, 1
      %p281 = scmp.ne.s32.totalorder %s276, %s278
      %p282 = scmp.eq.s32.totalorder %s27, 0
      %p283 = por %p281, %p282
      %p284 = scmp.ne.s32.totalorder %s276, %s278
      %p285 = scmp.eq.s32.totalorder %s32, 1
      %p286 = por %p284, %p285
      %p287 = scmp.ne.s32.totalorder %s278, %s279
      %p288 = scmp.eq.s32.totalorder %s32, 0
      %p289 = por %p287, %p288
      %p290 = scmp.ne.s32.totalorder %s278, %s279
      %p291 = scmp.eq.s32.totalorder %s33, 1
      %p292 = por %p290, %p291
      %p294 = scmp.ne.s32.totalorder %s279, %s293
      %p295 = scmp.eq.s32.totalorder %s33, 0
      %p296 = por %p294, %p295
      %s298 = sadd.s32 %s297, 1
      %p301 = scmp.eq.s32.totalorder %s27, 1
      %p302 = scmp.ne.s32.totalorder %s297, %s299
      %p303 = scmp.eq.s32.totalorder %s27, 0
      %p304 = por %p302, %p303
      %p305 = scmp.ne.s32.totalorder %s297, %s299
      %p306 = scmp.eq.s32.totalorder %s32, 1
      %p307 = por %p305, %p306
      %p308 = scmp.ne.s32.totalorder %s299, %s300
      %p309 = scmp.eq.s32.totalorder %s32, 0
      %p310 = por %p308, %p309
      %p311 = scmp.ne.s32.totalorder %s299, %s300
      %p312 = scmp.eq.s32.totalorder %s33, 1
      %p313 = por %p311, %p312
      %p315 = scmp.ne.s32.totalorder %s300, %s314
      %p316 = scmp.eq.s32.totalorder %s33, 0
      %p317 = por %p315, %p316
      %s318 = ssub.s32 %s27, %s34
      %p319 = scmp.eq.s32.totalorder %s318, 0
      %s321 = sadd.s32 %s320, 1
      %s322 = scalar_select %p319, %s320, %s321
      %p325 = pneg %p319
      %p326 = scmp.eq.s32.totalorder %s27, 1
      %p327 = por %p325, %p326
      %p328 = scmp.ne.s32.totalorder %s320, %s323
      %p329 = scmp.eq.s32.totalorder %s27, 0
      %p330 = por %p328, %p329
      %p331 = scmp.ne.s32.totalorder %s320, %s323
      %p332 = scmp.eq.s32.totalorder %s32, 1
      %p333 = por %p331, %p332
      %p334 = scmp.ne.s32.totalorder %s323, %s324
      %p335 = scmp.eq.s32.totalorder %s32, 0
      %p336 = por %p334, %p335
      %p337 = scmp.ne.s32.totalorder %s323, %s324
      %p338 = scmp.eq.s32.totalorder %s33, 1
      %p339 = por %p337, %p338
      %p341 = scmp.ne.s32.totalorder %s324, %s340
      %p342 = scmp.eq.s32.totalorder %s33, 0
      %p343 = por %p341, %p342
      %s344 = ssub.s32 %s27, %s34
      %p345 = scmp.eq.s32.totalorder %s344, 0
      %s347 = sadd.s32 %s346, 1
      %s348 = scalar_select %p345, %s346, %s347
      %p351 = pneg %p345
      %p352 = scmp.eq.s32.totalorder %s27, 1
      %p353 = por %p351, %p352
      %p354 = scmp.ne.s32.totalorder %s346, %s349
      %p355 = scmp.eq.s32.totalorder %s27, 0
      %p356 = por %p354, %p355
      %p357 = scmp.ne.s32.totalorder %s346, %s349
      %p358 = scmp.eq.s32.totalorder %s32, 1
      %p359 = por %p357, %p358
      %p360 = scmp.ne.s32.totalorder %s349, %s350
      %p361 = scmp.eq.s32.totalorder %s32, 0
      %p362 = por %p360, %p361
      %p363 = scmp.ne.s32.totalorder %s349, %s350
      %p364 = scmp.eq.s32.totalorder %s33, 1
      %p365 = por %p363, %p364
      %p367 = scmp.ne.s32.totalorder %s350, %s366
      %p368 = scmp.eq.s32.totalorder %s33, 0
      %p369 = por %p367, %p368
      %s370 = ssub.s32 %s27, %s34
      %p371 = scmp.eq.s32.totalorder %s370, 0
      %s373 = sadd.s32 %s372, 1
      %s374 = scalar_select %p371, %s372, %s373
      %p377 = pneg %p371
      %p378 = scmp.eq.s32.totalorder %s27, 1
      %p379 = por %p377, %p378
      %p380 = scmp.ne.s32.totalorder %s372, %s375
      %p381 = scmp.eq.s32.totalorder %s27, 0
      %p382 = por %p380, %p381
      %p383 = scmp.ne.s32.totalorder %s372, %s375
      %p384 = scmp.eq.s32.totalorder %s32, 1
      %p385 = por %p383, %p384
      %p386 = scmp.ne.s32.totalorder %s375, %s376
      %p387 = scmp.eq.s32.totalorder %s32, 0
      %p388 = por %p386, %p387
      %p389 = scmp.ne.s32.totalorder %s375, %s376
      %p390 = scmp.eq.s32.totalorder %s33, 1
      %p391 = por %p389, %p390
      %p393 = scmp.ne.s32.totalorder %s376, %s392
      %p394 = scmp.eq.s32.totalorder %s33, 0
      %p395 = por %p393, %p394
      %s396 = ssub.s32 %s27, %s34
      %p397 = scmp.eq.s32.totalorder %s396, 0
      %s399 = sadd.s32 %s398, 1
      %s400 = scalar_select %p397, %s398, %s399
      %p403 = pneg %p397
      %p404 = scmp.eq.s32.totalorder %s27, 1
      %p405 = por %p403, %p404
      %p406 = scmp.ne.s32.totalorder %s398, %s401
      %p407 = scmp.eq.s32.totalorder %s27, 0
      %p408 = por %p406, %p407
      %p409 = scmp.ne.s32.totalorder %s398, %s401
      %p410 = scmp.eq.s32.totalorder %s32, 1
      %p411 = por %p409, %p410
      %p412 = scmp.ne.s32.totalorder %s401, %s402
      %p413 = scmp.eq.s32.totalorder %s32, 0
      %p414 = por %p412, %p413
      %p415 = scmp.ne.s32.totalorder %s401, %s402
      %p416 = scmp.eq.s32.totalorder %s33, 1
      %p417 = por %p415, %p416
      %p419 = scmp.ne.s32.totalorder %s402, %s418
      %p420 = scmp.eq.s32.totalorder %s33, 0
      %p421 = por %p419, %p420
      %p422 = scmp.le.s32.totalorder 1, %s27
      %p423 = scmp.lt.s32.totalorder %s27, 3
      %p424 = pnand %p422, %p423
      %p425 = pneg %p424
      // Predicated region
      $region9: #{tpu_custom_call.1} parent=5 // pred_check
        _
      $region10: #{tpu_custom_call.1} parent=5 // pred_check_branch
        %427 = sbr.rel (%p424) target = $region12
      $region11: #{tpu_custom_call.1} parent=5 // pred_region
        %s428 = ssub.s32 %s27, 1
        // Predicated region
        $region13: #{tpu_custom_call.1} parent=11 // pred_check
          %p429 = pneg %p48
        $region14: #{tpu_custom_call.1} parent=11 // pred_check_branch
          %431 = sbr.rel (%p429) target = $region16
        $region15: #{tpu_custom_call.1} parent=11 // pred_region
          %433 = vsyncadd [#allocation4], 0
          %s434 = sshll.u32 %s0, 4
          %s435 = int_to_ptr.hbm [resolvable:$true] %s434
          %s436 = sshll.u32 [#allocation3], 4
          %s437 = int_to_ptr.vmem [resolvable:$true] %s436
          %442 = dma.hbm_to_vmem [thread:$0]  %s435, 24576, %s437, [#allocation4], 768, 768, 48
        $region16: #{tpu_custom_call.1} parent=11 // pred_fallthru
          _
        // Predicated region
        $region17: #{tpu_custom_call.1} parent=11 // pred_check
          %p443 = pneg %p69
        $region18: #{tpu_custom_call.1} parent=11 // pred_check_branch
          %445 = sbr.rel (%p443) target = $region20
        $region19: #{tpu_custom_call.1} parent=11 // pred_region
          _
        $region20: #{tpu_custom_call.1} parent=11 // pred_fallthru
          _
        // Predicated region
        $region21: #{tpu_custom_call.1} parent=11 // pred_check
          %p446 = pneg %p116
        $region22: #{tpu_custom_call.1} parent=11 // pred_check_branch
          %448 = sbr.rel (%p446) target = $region24
        $region23: #{tpu_custom_call.1} parent=11 // pred_region
          _
        $region24: #{tpu_custom_call.1} parent=11 // pred_fallthru
          _
        // Predicated region
        $region25: #{tpu_custom_call.1} parent=11 // pred_check
          %p449 = pneg %p137
        $region26: #{tpu_custom_call.1} parent=11 // pred_check_branch
          %451 = sbr.rel (%p449) target = $region28
        $region27: #{tpu_custom_call.1} parent=11 // pred_region
          _
        $region28: #{tpu_custom_call.1} parent=11 // pred_fallthru
          _
        // Predicated region
        $region29: #{tpu_custom_call.1} parent=11 // pred_check
          %p452 = pneg %p158
        $region30: #{tpu_custom_call.1} parent=11 // pred_check_branch
          %454 = sbr.rel (%p452) target = $region32
        $region31: #{tpu_custom_call.1} parent=11 // pred_region
          _
        $region32: #{tpu_custom_call.1} parent=11 // pred_fallthru
          _
        // Predicated region
        $region33: #{tpu_custom_call.1} parent=11 // pred_check
          %p455 = pneg %p205
        $region34: #{tpu_custom_call.1} parent=11 // pred_check_branch
          %457 = sbr.rel (%p455) target = $region36
        $region35: #{tpu_custom_call.1} parent=11 // pred_region
          _
        $region36: #{tpu_custom_call.1} parent=11 // pred_fallthru
          _
        // Predicated region
        $region37: #{tpu_custom_call.1} parent=11 // pred_check
          %p458 = pneg %p226
        $region38: #{tpu_custom_call.1} parent=11 // pred_check_branch
          %460 = sbr.rel (%p458) target = $region40
        $region39: #{tpu_custom_call.1} parent=11 // pred_region
          _
        $region40: #{tpu_custom_call.1} parent=11 // pred_fallthru
          _
        // Predicated region
        $region41: #{tpu_custom_call.1} parent=11 // pred_check
          %p461 = pneg %p247
        $region42: #{tpu_custom_call.1} parent=11 // pred_check_branch
          %463 = sbr.rel (%p461) target = $region44
        $region43: #{tpu_custom_call.1} parent=11 // pred_region
          _
        $region44: #{tpu_custom_call.1} parent=11 // pred_fallthru
          _
        // Predicated region
        $region45: #{tpu_custom_call.1} parent=11 // pred_check
          %p464 = pneg %p268
        $region46: #{tpu_custom_call.1} parent=11 // pred_check_branch
          %466 = sbr.rel (%p464) target = $region48
        $region47: #{tpu_custom_call.1} parent=11 // pred_region
          _
        $region48: #{tpu_custom_call.1} parent=11 // pred_fallthru
          _
        // Predicated region
        $region49: #{tpu_custom_call.1} parent=11 // pred_check
          %p467 = pneg %p289
        $region50: #{tpu_custom_call.1} parent=11 // pred_check_branch
          %469 = sbr.rel (%p467) target = $region52
        $region51: #{tpu_custom_call.1} parent=11 // pred_region
          %471 = vsyncadd [#allocation7], 0
          %s472 = sshll.u32 %s11, 4
          %s473 = int_to_ptr.hbm [resolvable:$true] %s472
          %s474 = sshll.u32 [#allocation6], 4
          %s475 = int_to_ptr.vmem [resolvable:$true] %s474
          %480 = dma.hbm_to_vmem [thread:$0]  %s473, 8192, %s475, [#allocation7], 128, 128, 8
        $region52: #{tpu_custom_call.1} parent=11 // pred_fallthru
          _
        // Predicated region
        $region53: #{tpu_custom_call.1} parent=11 // pred_check
          %p481 = pneg %p310
        $region54: #{tpu_custom_call.1} parent=11 // pred_check_branch
          %483 = sbr.rel (%p481) target = $region56
        $region55: #{tpu_custom_call.1} parent=11 // pred_region
          _
        $region56: #{tpu_custom_call.1} parent=11 // pred_fallthru
          _
      $region12: #{tpu_custom_call.1} parent=5 // pred_fallthru
        _
      %p484 = scmp.lt.s32.totalorder %s27, 2
      // Predicated region
      $region57: #{tpu_custom_call.1} parent=5 // pred_check
        %p485 = pneg %p484
      $region58: #{tpu_custom_call.1} parent=5 // pred_check_branch
        %487 = sbr.rel (%p485) target = $region60
      $region59: #{tpu_custom_call.1} parent=5 // pred_region
        // Predicated region
        $region61: #{tpu_custom_call.1} parent=59 // pred_check
          %p488 = pneg %p89
        $region62: #{tpu_custom_call.1} parent=59 // pred_check_branch
          %490 = sbr.rel (%p488) target = $region64
        $region63: #{tpu_custom_call.1} parent=59 // pred_region
          %p491 = scmp.lt.s32.totalorder %s27, 1
          %s492 = scalar_select %p491, %s27, 1
          %s493 = smul.addr %s492, 64
          %s494 = smul.addr %s493, 8
          %s495 = scalar_lea.vmem %s2, %s494
        $region64: #{tpu_custom_call.1} parent=59 // pred_fallthru
          _
        // Predicated region
        $region65: #{tpu_custom_call.1} parent=59 // pred_check
          %p496 = pneg %p178
        $region66: #{tpu_custom_call.1} parent=59 // pred_check_branch
          %498 = sbr.rel (%p496) target = $region68
        $region67: #{tpu_custom_call.1} parent=59 // pred_region
          %p499 = scmp.lt.s32.totalorder %s27, 1
          %s500 = scalar_select %p499, %s27, 1
          %s501 = smul.addr %s500, 32
          %s502 = smul.addr %s501, 8
          %s503 = scalar_lea.vmem %s6, %s502
        $region68: #{tpu_custom_call.1} parent=59 // pred_fallthru
          _
        // Predicated region
        $region69: #{tpu_custom_call.1} parent=59 // pred_check
          %p504 = pneg %p330
        $region70: #{tpu_custom_call.1} parent=59 // pred_check_branch
          %506 = sbr.rel (%p504) target = $region72
        $region71: #{tpu_custom_call.1} parent=59 // pred_region
          %s507 = sand.u32 %s27, 1
          %s508 = scalar_lea.sflag [#allocation4], %s507
          %s509 = sand.u32 %s320, 1
          %s510 = smul.addr %s509, 256
          %s511 = scalar_lea.vmem [#allocation8], %s510
          %513 = vsyncadd %s508, 0
          %s514 = smul.addr %s27, 32
          %s515 = smul.addr %s514, 8
          %s516 = scalar_lea.hbm %s13, %s515
          %s517 = sshll.u32 %s516, 4
          %s518 = int_to_ptr.hbm [resolvable:$true] %s517
          %s519 = sshll.u32 %s511, 4
          %s520 = int_to_ptr.vmem [resolvable:$true] %s519
          %525 = dma.hbm_to_vmem [thread:$0]  %s518, 4096, %s520, %s508, 128, 128, 8
        $region72: #{tpu_custom_call.1} parent=59 // pred_fallthru
          _
        // Predicated region
        $region73: #{tpu_custom_call.1} parent=59 // pred_check
          %p526 = pneg %p356
        $region74: #{tpu_custom_call.1} parent=59 // pred_check_branch
          %528 = sbr.rel (%p526) target = $region76
        $region75: #{tpu_custom_call.1} parent=59 // pred_region
          %s529 = sand.u32 %s27, 1
          %s530 = scalar_lea.sflag [#allocation4], %s529
          %s531 = sand.u32 %s346, 1
          %s532 = smul.addr %s531, 256
          %s533 = scalar_lea.vmem [#allocation9], %s532
          %535 = vsyncadd %s530, 0
          %s536 = smul.addr %s27, 32
          %s537 = smul.addr %s536, 8
          %s538 = scalar_lea.hbm %s14, %s537
          %s539 = sshll.u32 %s538, 4
          %s540 = int_to_ptr.hbm [resolvable:$true] %s539
          %s541 = sshll.u32 %s533, 4
          %s542 = int_to_ptr.vmem [resolvable:$true] %s541
          %547 = dma.hbm_to_vmem [thread:$0]  %s540, 4096, %s542, %s530, 128, 128, 8
        $region76: #{tpu_custom_call.1} parent=59 // pred_fallthru
          _
        // Predicated region
        $region77: #{tpu_custom_call.1} parent=59 // pred_check
          %p548 = pneg %p382
        $region78: #{tpu_custom_call.1} parent=59 // pred_check_branch
          %550 = sbr.rel (%p548) target = $region80
        $region79: #{tpu_custom_call.1} parent=59 // pred_region
          %s551 = sand.u32 %s27, 1
          %s552 = scalar_lea.sflag [#allocation4], %s551
          %s553 = sand.u32 %s372, 1
          %s554 = smul.addr %s553, 256
          %s555 = scalar_lea.vmem [#allocation10], %s554
          %557 = vsyncadd %s552, 0
          %s558 = smul.addr %s27, 32
          %s559 = smul.addr %s558, 8
          %s560 = scalar_lea.hbm %s15, %s559
          %s561 = sshll.u32 %s560, 4
          %s562 = int_to_ptr.hbm [resolvable:$true] %s561
          %s563 = sshll.u32 %s555, 4
          %s564 = int_to_ptr.vmem [resolvable:$true] %s563
          %569 = dma.hbm_to_vmem [thread:$0]  %s562, 4096, %s564, %s552, 128, 128, 8
        $region80: #{tpu_custom_call.1} parent=59 // pred_fallthru
          _
      $region60: #{tpu_custom_call.1} parent=5 // pred_fallthru
        _
      %p570 = scmp.le.s32.totalorder 1, %s27
      %p571 = scmp.lt.s32.totalorder %s27, 3
      %p572 = pnand %p570, %p571
      %p573 = pneg %p572
      // Predicated region
      $region81: #{tpu_custom_call.1} parent=5 // pred_check
        _
      $region82: #{tpu_custom_call.1} parent=5 // pred_check_branch
        %575 = sbr.rel (%p572) target = $region84
      $region83: #{tpu_custom_call.1} parent=5 // pred_region
        %s576 = ssub.s32 %s27, 1
        // Predicated region
        $region85: #{tpu_custom_call.1} parent=83 // pred_check
          %p577 = pneg %p48
        $region86: #{tpu_custom_call.1} parent=83 // pred_check_branch
          %579 = sbr.rel (%p577) target = $region88
        $region87: #{tpu_custom_call.1} parent=83 // pred_region
          %581 = dma.done [#allocation4], 24576
        $region88: #{tpu_custom_call.1} parent=83 // pred_fallthru
          _
        // Predicated region
        $region89: #{tpu_custom_call.1} parent=83 // pred_check
          %p582 = pneg %p289
        $region90: #{tpu_custom_call.1} parent=83 // pred_check_branch
          %584 = sbr.rel (%p582) target = $region92
        $region91: #{tpu_custom_call.1} parent=83 // pred_region
          %586 = dma.done [#allocation7], 8192
        $region92: #{tpu_custom_call.1} parent=83 // pred_fallthru
          _
        %s587 = sand.u32 %s32, 1
        %s588 = scalar_lea.sflag [#allocation4], %s587
        %s589 = sand.u32 %s323, 1
        %s590 = smul.addr %s589, 256
        %s591 = scalar_lea.vmem [#allocation8], %s590
        // Predicated region
        $region93: #{tpu_custom_call.1} parent=83 // pred_check
          %p592 = pneg %p336
        $region94: #{tpu_custom_call.1} parent=83 // pred_check_branch
          %594 = sbr.rel (%p592) target = $region96
        $region95: #{tpu_custom_call.1} parent=83 // pred_region
          %596 = dma.done %s588, 4096
        $region96: #{tpu_custom_call.1} parent=83 // pred_fallthru
          _
        %s597 = sand.u32 %s32, 1
        %s598 = scalar_lea.sflag [#allocation4], %s597
        %s599 = sand.u32 %s349, 1
        %s600 = smul.addr %s599, 256
        %s601 = scalar_lea.vmem [#allocation9], %s600
        // Predicated region
        $region97: #{tpu_custom_call.1} parent=83 // pred_check
          %p602 = pneg %p362
        $region98: #{tpu_custom_call.1} parent=83 // pred_check_branch
          %604 = sbr.rel (%p602) target = $region100
        $region99: #{tpu_custom_call.1} parent=83 // pred_region
          %606 = dma.done %s598, 4096
        $region100: #{tpu_custom_call.1} parent=83 // pred_fallthru
          _
        %s607 = sand.u32 %s32, 1
        %s608 = scalar_lea.sflag [#allocation4], %s607
        %s609 = sand.u32 %s375, 1
        %s610 = smul.addr %s609, 256
        %s611 = scalar_lea.vmem [#allocation10], %s610
        // Predicated region
        $region101: #{tpu_custom_call.1} parent=83 // pred_check
          %p612 = pneg %p388
        $region102: #{tpu_custom_call.1} parent=83 // pred_check_branch
          %614 = sbr.rel (%p612) target = $region104
        $region103: #{tpu_custom_call.1} parent=83 // pred_region
          %616 = dma.done %s608, 4096
        $region104: #{tpu_custom_call.1} parent=83 // pred_fallthru
          _
        %p617 = pneg %p48
        %p618 = pneg %p45
        %p619 = pneg %p69
        %p620 = pneg %p66
        %p621 = scmp.lt.s32.totalorder %s32, 1
        %s622 = scalar_select %p621, %s32, 1
        %s623 = smul.addr %s622, 64
        %s624 = smul.addr %s623, 8
        %s625 = scalar_lea.vmem %s2, %s624
        %p626 = pneg %p95
        %p627 = pneg %p92
        %p628 = pneg %p116
        %p629 = pneg %p113
        %p630 = pneg %p137
        %p631 = pneg %p134
        %p632 = pneg %p158
        %p633 = pneg %p155
        %p634 = scmp.lt.s32.totalorder %s32, 1
        %s635 = scalar_select %p634, %s32, 1
        %s636 = smul.addr %s635, 32
        %s637 = smul.addr %s636, 8
        %s638 = scalar_lea.vmem %s6, %s637
        %p639 = pneg %p184
        %p640 = pneg %p181
        %p641 = pneg %p205
        %p642 = pneg %p202
        %p643 = pneg %p226
        %p644 = pneg %p223
        %p645 = pneg %p247
        %p646 = pneg %p244
        %p647 = pneg %p268
        %p648 = pneg %p265
        %p649 = pneg %p289
        %p650 = pneg %p286
        %p651 = pneg %p310
        %p652 = pneg %p307
        %s653 = sand.u32 %s32, 1
        %s654 = scalar_lea.sflag [#allocation4], %s653
        %s655 = sand.u32 %s323, 1
        %s656 = smul.addr %s655, 256
        %s657 = scalar_lea.vmem [#allocation8], %s656
        %p658 = pneg %p336
        %p659 = pneg %p333
        %s660 = sand.u32 %s32, 1
        %s661 = scalar_lea.sflag [#allocation4], %s660
        %s662 = sand.u32 %s349, 1
        %s663 = smul.addr %s662, 256
        %s664 = scalar_lea.vmem [#allocation9], %s663
        %p665 = pneg %p362
        %p666 = pneg %p359
        %s667 = sand.u32 %s32, 1
        %s668 = scalar_lea.sflag [#allocation4], %s667
        %s669 = sand.u32 %s375, 1
        %s670 = smul.addr %s669, 256
        %s671 = scalar_lea.vmem [#allocation10], %s670
        %p672 = pneg %p388
        %p673 = pneg %p385
        %p674 = pneg %p414
        %p675 = pneg %p411
        %s676 = sand.u32 %s401, 1
        %s677 = scalar_lea.sflag [#allocation5], %s676
        %s678 = sand.u32 %s401, 1
        %s679 = smul.addr %s678, 256
        %s680 = scalar_lea.vmem [#allocation11], %s679
        %p681 = scmp.lt.s32.totalorder %s32, 1
        %s682 = scalar_select %p681, %s32, 1
        %s683 = smul.addr %s682, 64
        %s684 = smul.addr %s683, 8
        %s685 = scalar_lea.vmem %s2, %s684
        %p686 = scmp.lt.s32.totalorder %s32, 1
        %s687 = scalar_select %p686, %s32, 1
        %s688 = smul.addr %s687, 32
        %s689 = smul.addr %s688, 8
        %s690 = scalar_lea.vmem %s6, %s689
        %v691 = vld [vmem:[%s591] sm:$0xff]
        %v692 = vld [vmem:[%s591 + $0x8] sm:$0xff]
        %v693 = vld [vmem:[%s591 + $0x10] sm:$0xff]
        %v694 = vld [vmem:[%s591 + $0x18] sm:$0xff]
        %v695 = vld [vmem:[%s591 + $0x20] sm:$0xff]
        %v696 = vld [vmem:[%s591 + $0x28] sm:$0xff]
        %v697 = vld [vmem:[%s591 + $0x30] sm:$0xff]
        %v698 = vld [vmem:[%s591 + $0x38] sm:$0xff]
        %v699 = vld [vmem:[%s591 + $0x40] sm:$0xff]
        %v700 = vld [vmem:[%s591 + $0x48] sm:$0xff]
        %v701 = vld [vmem:[%s591 + $0x50] sm:$0xff]
        %v702 = vld [vmem:[%s591 + $0x58] sm:$0xff]
        %v703 = vld [vmem:[%s591 + $0x60] sm:$0xff]
        %v704 = vld [vmem:[%s591 + $0x68] sm:$0xff]
        %v705 = vld [vmem:[%s591 + $0x70] sm:$0xff]
        %v706 = vld [vmem:[%s591 + $0x78] sm:$0xff]
        %v707 = vld [vmem:[%s591 + $0x80] sm:$0xff]
        %v708 = vld [vmem:[%s591 + $0x88] sm:$0xff]
        %v709 = vld [vmem:[%s591 + $0x90] sm:$0xff]
        %v710 = vld [vmem:[%s591 + $0x98] sm:$0xff]
        %v711 = vld [vmem:[%s591 + $0xa0] sm:$0xff]
        %v712 = vld [vmem:[%s591 + $0xa8] sm:$0xff]
        %v713 = vld [vmem:[%s591 + $0xb0] sm:$0xff]
        %v714 = vld [vmem:[%s591 + $0xb8] sm:$0xff]
        %v715 = vld [vmem:[%s591 + $0xc0] sm:$0xff]
        %v716 = vld [vmem:[%s591 + $0xc8] sm:$0xff]
        %v717 = vld [vmem:[%s591 + $0xd0] sm:$0xff]
        %v718 = vld [vmem:[%s591 + $0xd8] sm:$0xff]
        %v719 = vld [vmem:[%s591 + $0xe0] sm:$0xff]
        %v720 = vld [vmem:[%s591 + $0xe8] sm:$0xff]
        %v721 = vld [vmem:[%s591 + $0xf0] sm:$0xff]
        %v722 = vld [vmem:[%s591 + $0xf8] sm:$0xff]
        %723 = vst [vmem:[#allocation2] sm:$0xff] %v691
        %724 = vst [vmem:[#allocation2 + $0x8] sm:$0xff] %v692
        %725 = vst [vmem:[#allocation2 + $0x10] sm:$0xff] %v693
        %726 = vst [vmem:[#allocation2 + $0x18] sm:$0xff] %v694
        %727 = vst [vmem:[#allocation2 + $0x20] sm:$0xff] %v695
        %728 = vst [vmem:[#allocation2 + $0x28] sm:$0xff] %v696
        %729 = vst [vmem:[#allocation2 + $0x30] sm:$0xff] %v697
        %730 = vst [vmem:[#allocation2 + $0x38] sm:$0xff] %v698
        %731 = vst [vmem:[#allocation2 + $0x40] sm:$0xff] %v699
        %732 = vst [vmem:[#allocation2 + $0x48] sm:$0xff] %v700
        %733 = vst [vmem:[#allocation2 + $0x50] sm:$0xff] %v701
        %734 = vst [vmem:[#allocation2 + $0x58] sm:$0xff] %v702
        %735 = vst [vmem:[#allocation2 + $0x60] sm:$0xff] %v703
        %736 = vst [vmem:[#allocation2 + $0x68] sm:$0xff] %v704
        %737 = vst [vmem:[#allocation2 + $0x70] sm:$0xff] %v705
        %738 = vst [vmem:[#allocation2 + $0x78] sm:$0xff] %v706
        %739 = vst [vmem:[#allocation2 + $0x80] sm:$0xff] %v707
        %740 = vst [vmem:[#allocation2 + $0x88] sm:$0xff] %v708
        %741 = vst [vmem:[#allocation2 + $0x90] sm:$0xff] %v709
        %742 = vst [vmem:[#allocation2 + $0x98] sm:$0xff] %v710
        %743 = vst [vmem:[#allocation2 + $0xa0] sm:$0xff] %v711
        %744 = vst [vmem:[#allocation2 + $0xa8] sm:$0xff] %v712
        %745 = vst [vmem:[#allocation2 + $0xb0] sm:$0xff] %v713
        %746 = vst [vmem:[#allocation2 + $0xb8] sm:$0xff] %v714
        %747 = vst [vmem:[#allocation2 + $0xc0] sm:$0xff] %v715
        %748 = vst [vmem:[#allocation2 + $0xc8] sm:$0xff] %v716
        %749 = vst [vmem:[#allocation2 + $0xd0] sm:$0xff] %v717
        %750 = vst [vmem:[#allocation2 + $0xd8] sm:$0xff] %v718
        %751 = vst [vmem:[#allocation2 + $0xe0] sm:$0xff] %v719
        %752 = vst [vmem:[#allocation2 + $0xe8] sm:$0xff] %v720
        %753 = vst [vmem:[#allocation2 + $0xf0] sm:$0xff] %v721
        %754 = vst [vmem:[#allocation2 + $0xf8] sm:$0xff] %v722
        %v755 = vld [vmem:[%s601] sm:$0xff]
        %v756 = vld [vmem:[%s601 + $0x8] sm:$0xff]
        %v757 = vld [vmem:[%s601 + $0x10] sm:$0xff]
        %v758 = vld [vmem:[%s601 + $0x18] sm:$0xff]
        %v759 = vld [vmem:[%s601 + $0x20] sm:$0xff]
        %v760 = vld [vmem:[%s601 + $0x28] sm:$0xff]
        %v761 = vld [vmem:[%s601 + $0x30] sm:$0xff]
        %v762 = vld [vmem:[%s601 + $0x38] sm:$0xff]
        %v763 = vld [vmem:[%s601 + $0x40] sm:$0xff]
        %v764 = vld [vmem:[%s601 + $0x48] sm:$0xff]
        %v765 = vld [vmem:[%s601 + $0x50] sm:$0xff]
        %v766 = vld [vmem:[%s601 + $0x58] sm:$0xff]
        %v767 = vld [vmem:[%s601 + $0x60] sm:$0xff]
        %v768 = vld [vmem:[%s601 + $0x68] sm:$0xff]
        %v769 = vld [vmem:[%s601 + $0x70] sm:$0xff]
        %v770 = vld [vmem:[%s601 + $0x78] sm:$0xff]
        %v771 = vld [vmem:[%s601 + $0x80] sm:$0xff]
        %v772 = vld [vmem:[%s601 + $0x88] sm:$0xff]
        %v773 = vld [vmem:[%s601 + $0x90] sm:$0xff]
        %v774 = vld [vmem:[%s601 + $0x98] sm:$0xff]
        %v775 = vld [vmem:[%s601 + $0xa0] sm:$0xff]
        %v776 = vld [vmem:[%s601 + $0xa8] sm:$0xff]
        %v777 = vld [vmem:[%s601 + $0xb0] sm:$0xff]
        %v778 = vld [vmem:[%s601 + $0xb8] sm:$0xff]
        %v779 = vld [vmem:[%s601 + $0xc0] sm:$0xff]
        %v780 = vld [vmem:[%s601 + $0xc8] sm:$0xff]
        %v781 = vld [vmem:[%s601 + $0xd0] sm:$0xff]
        %v782 = vld [vmem:[%s601 + $0xd8] sm:$0xff]
        %v783 = vld [vmem:[%s601 + $0xe0] sm:$0xff]
        %v784 = vld [vmem:[%s601 + $0xe8] sm:$0xff]
        %v785 = vld [vmem:[%s601 + $0xf0] sm:$0xff]
        %v786 = vld [vmem:[%s601 + $0xf8] sm:$0xff]
        %787 = vst [vmem:[#allocation2 + $0x100] sm:$0xff] %v755
        %788 = vst [vmem:[#allocation2 + $0x108] sm:$0xff] %v756
        %789 = vst [vmem:[#allocation2 + $0x110] sm:$0xff] %v757
        %790 = vst [vmem:[#allocation2 + $0x118] sm:$0xff] %v758
        %791 = vst [vmem:[#allocation2 + $0x120] sm:$0xff] %v759
        %792 = vst [vmem:[#allocation2 + $0x128] sm:$0xff] %v760
        %793 = vst [vmem:[#allocation2 + $0x130] sm:$0xff] %v761
        %794 = vst [vmem:[#allocation2 + $0x138] sm:$0xff] %v762
        %795 = vst [vmem:[#allocation2 + $0x140] sm:$0xff] %v763
        %796 = vst [vmem:[#allocation2 + $0x148] sm:$0xff] %v764
        %797 = vst [vmem:[#allocation2 + $0x150] sm:$0xff] %v765
        %798 = vst [vmem:[#allocation2 + $0x158] sm:$0xff] %v766
        %799 = vst [vmem:[#allocation2 + $0x160] sm:$0xff] %v767
        %800 = vst [vmem:[#allocation2 + $0x168] sm:$0xff] %v768
        %801 = vst [vmem:[#allocation2 + $0x170] sm:$0xff] %v769
        %802 = vst [vmem:[#allocation2 + $0x178] sm:$0xff] %v770
        %803 = vst [vmem:[#allocation2 + $0x180] sm:$0xff] %v771
        %804 = vst [vmem:[#allocation2 + $0x188] sm:$0xff] %v772
        %805 = vst [vmem:[#allocation2 + $0x190] sm:$0xff] %v773
        %806 = vst [vmem:[#allocation2 + $0x198] sm:$0xff] %v774
        %807 = vst [vmem:[#allocation2 + $0x1a0] sm:$0xff] %v775
        %808 = vst [vmem:[#allocation2 + $0x1a8] sm:$0xff] %v776
        %809 = vst [vmem:[#allocation2 + $0x1b0] sm:$0xff] %v777
        %810 = vst [vmem:[#allocation2 + $0x1b8] sm:$0xff] %v778
        %811 = vst [vmem:[#allocation2 + $0x1c0] sm:$0xff] %v779
        %812 = vst [vmem:[#allocation2 + $0x1c8] sm:$0xff] %v780
        %813 = vst [vmem:[#allocation2 + $0x1d0] sm:$0xff] %v781
        %814 = vst [vmem:[#allocation2 + $0x1d8] sm:$0xff] %v782
        %815 = vst [vmem:[#allocation2 + $0x1e0] sm:$0xff] %v783
        %816 = vst [vmem:[#allocation2 + $0x1e8] sm:$0xff] %v784
        %817 = vst [vmem:[#allocation2 + $0x1f0] sm:$0xff] %v785
        %818 = vst [vmem:[#allocation2 + $0x1f8] sm:$0xff] %v786
        %v819 = vld [vmem:[%s611] sm:$0xff]
        %v820 = vld [vmem:[%s611 + $0x8] sm:$0xff]
        %v821 = vld [vmem:[%s611 + $0x10] sm:$0xff]
        %v822 = vld [vmem:[%s611 + $0x18] sm:$0xff]
        %v823 = vld [vmem:[%s611 + $0x20] sm:$0xff]
        %v824 = vld [vmem:[%s611 + $0x28] sm:$0xff]
        %v825 = vld [vmem:[%s611 + $0x30] sm:$0xff]
        %v826 = vld [vmem:[%s611 + $0x38] sm:$0xff]
        %v827 = vld [vmem:[%s611 + $0x40] sm:$0xff]
        %v828 = vld [vmem:[%s611 + $0x48] sm:$0xff]
        %v829 = vld [vmem:[%s611 + $0x50] sm:$0xff]
        %v830 = vld [vmem:[%s611 + $0x58] sm:$0xff]
        %v831 = vld [vmem:[%s611 + $0x60] sm:$0xff]
        %v832 = vld [vmem:[%s611 + $0x68] sm:$0xff]
        %v833 = vld [vmem:[%s611 + $0x70] sm:$0xff]
        %v834 = vld [vmem:[%s611 + $0x78] sm:$0xff]
        %v835 = vld [vmem:[%s611 + $0x80] sm:$0xff]
        %v836 = vld [vmem:[%s611 + $0x88] sm:$0xff]
        %v837 = vld [vmem:[%s611 + $0x90] sm:$0xff]
        %v838 = vld [vmem:[%s611 + $0x98] sm:$0xff]
        %v839 = vld [vmem:[%s611 + $0xa0] sm:$0xff]
        %v840 = vld [vmem:[%s611 + $0xa8] sm:$0xff]
        %v841 = vld [vmem:[%s611 + $0xb0] sm:$0xff]
        %v842 = vld [vmem:[%s611 + $0xb8] sm:$0xff]
        %v843 = vld [vmem:[%s611 + $0xc0] sm:$0xff]
        %v844 = vld [vmem:[%s611 + $0xc8] sm:$0xff]
        %v845 = vld [vmem:[%s611 + $0xd0] sm:$0xff]
        %v846 = vld [vmem:[%s611 + $0xd8] sm:$0xff]
        %v847 = vld [vmem:[%s611 + $0xe0] sm:$0xff]
        %v848 = vld [vmem:[%s611 + $0xe8] sm:$0xff]
        %v849 = vld [vmem:[%s611 + $0xf0] sm:$0xff]
        %v850 = vld [vmem:[%s611 + $0xf8] sm:$0xff]
        %851 = vst [vmem:[#allocation2 + $0x200] sm:$0xff] %v819
        %852 = vst [vmem:[#allocation2 + $0x208] sm:$0xff] %v820
        %853 = vst [vmem:[#allocation2 + $0x210] sm:$0xff] %v821
        %854 = vst [vmem:[#allocation2 + $0x218] sm:$0xff] %v822
        %855 = vst [vmem:[#allocation2 + $0x220] sm:$0xff] %v823
        %856 = vst [vmem:[#allocation2 + $0x228] sm:$0xff] %v824
        %857 = vst [vmem:[#allocation2 + $0x230] sm:$0xff] %v825
        %858 = vst [vmem:[#allocation2 + $0x238] sm:$0xff] %v826
        %859 = vst [vmem:[#allocation2 + $0x240] sm:$0xff] %v827
        %860 = vst [vmem:[#allocation2 + $0x248] sm:$0xff] %v828
        %861 = vst [vmem:[#allocation2 + $0x250] sm:$0xff] %v829
        %862 = vst [vmem:[#allocation2 + $0x258] sm:$0xff] %v830
        %863 = vst [vmem:[#allocation2 + $0x260] sm:$0xff] %v831
        %864 = vst [vmem:[#allocation2 + $0x268] sm:$0xff] %v832
        %865 = vst [vmem:[#allocation2 + $0x270] sm:$0xff] %v833
        %866 = vst [vmem:[#allocation2 + $0x278] sm:$0xff] %v834
        %867 = vst [vmem:[#allocation2 + $0x280] sm:$0xff] %v835
        %868 = vst [vmem:[#allocation2 + $0x288] sm:$0xff] %v836
        %869 = vst [vmem:[#allocation2 + $0x290] sm:$0xff] %v837
        %870 = vst [vmem:[#allocation2 + $0x298] sm:$0xff] %v838
        %871 = vst [vmem:[#allocation2 + $0x2a0] sm:$0xff] %v839
        %872 = vst [vmem:[#allocation2 + $0x2a8] sm:$0xff] %v840
        %873 = vst [vmem:[#allocation2 + $0x2b0] sm:$0xff] %v841
        %874 = vst [vmem:[#allocation2 + $0x2b8] sm:$0xff] %v842
        %875 = vst [vmem:[#allocation2 + $0x2c0] sm:$0xff] %v843
        %876 = vst [vmem:[#allocation2 + $0x2c8] sm:$0xff] %v844
        %877 = vst [vmem:[#allocation2 + $0x2d0] sm:$0xff] %v845
        %878 = vst [vmem:[#allocation2 + $0x2d8] sm:$0xff] %v846
        %879 = vst [vmem:[#allocation2 + $0x2e0] sm:$0xff] %v847
        %880 = vst [vmem:[#allocation2 + $0x2e8] sm:$0xff] %v848
        %881 = vst [vmem:[#allocation2 + $0x2f0] sm:$0xff] %v849
        %882 = vst [vmem:[#allocation2 + $0x2f8] sm:$0xff] %v850
        %v883 = vld [vmem:[#allocation3] sm:$0xff]
        %v884 = vld [vmem:[#allocation3 + $0x8] sm:$0xff]
        %v885 = vld [vmem:[#allocation3 + $0x10] sm:$0xff]
        %v886 = vld [vmem:[#allocation3 + $0x18] sm:$0xff]
        %v887 = vld [vmem:[#allocation3 + $0x20] sm:$0xff]
        %v888 = vld [vmem:[#allocation3 + $0x28] sm:$0xff]
        %v889 = vld [vmem:[#allocation3 + $0x30] sm:$0xff]
        %v890 = vld [vmem:[#allocation3 + $0x38] sm:$0xff]
        %v891 = vld [vmem:[#allocation3 + $0x40] sm:$0xff]
        %v892 = vld [vmem:[#allocation3 + $0x48] sm:$0xff]
        %v893 = vld [vmem:[#allocation3 + $0x50] sm:$0xff]
        %v894 = vld [vmem:[#allocation3 + $0x58] sm:$0xff]
        %v895 = vld [vmem:[#allocation3 + $0x60] sm:$0xff]
        %v896 = vld [vmem:[#allocation3 + $0x68] sm:$0xff]
        %v897 = vld [vmem:[#allocation3 + $0x70] sm:$0xff]
        %v898 = vld [vmem:[#allocation3 + $0x78] sm:$0xff]
        %v899 = vld [vmem:[#allocation3 + $0x80] sm:$0xff]
        %v900 = vld [vmem:[#allocation3 + $0x88] sm:$0xff]
        %v901 = vld [vmem:[#allocation3 + $0x90] sm:$0xff]
        %v902 = vld [vmem:[#allocation3 + $0x98] sm:$0xff]
        %v903 = vld [vmem:[#allocation3 + $0xa0] sm:$0xff]
        %v904 = vld [vmem:[#allocation3 + $0xa8] sm:$0xff]
        %v905 = vld [vmem:[#allocation3 + $0xb0] sm:$0xff]
        %v906 = vld [vmem:[#allocation3 + $0xb8] sm:$0xff]
        %v907 = vld [vmem:[#allocation3 + $0xc0] sm:$0xff]
        %v908 = vld [vmem:[#allocation3 + $0xc8] sm:$0xff]
        %v909 = vld [vmem:[#allocation3 + $0xd0] sm:$0xff]
        %v910 = vld [vmem:[#allocation3 + $0xd8] sm:$0xff]
        %v911 = vld [vmem:[#allocation3 + $0xe0] sm:$0xff]
        %v912 = vld [vmem:[#allocation3 + $0xe8] sm:$0xff]
        %v913 = vld [vmem:[#allocation3 + $0xf0] sm:$0xff]
        %v914 = vld [vmem:[#allocation3 + $0xf8] sm:$0xff]
        %v915 = vld [vmem:[#allocation3 + $0x100] sm:$0xff]
        %v916 = vld [vmem:[#allocation3 + $0x108] sm:$0xff]
        %v917 = vld [vmem:[#allocation3 + $0x110] sm:$0xff]
        %v918 = vld [vmem:[#allocation3 + $0x118] sm:$0xff]
        %v919 = vld [vmem:[#allocation3 + $0x120] sm:$0xff]
        %v920 = vld [vmem:[#allocation3 + $0x128] sm:$0xff]
        %v921 = vld [vmem:[#allocation3 + $0x130] sm:$0xff]
        %v922 = vld [vmem:[#allocation3 + $0x138] sm:$0xff]
        %v923 = vld [vmem:[#allocation3 + $0x140] sm:$0xff]
        %v924 = vld [vmem:[#allocation3 + $0x148] sm:$0xff]
        %v925 = vld [vmem:[#allocation3 + $0x150] sm:$0xff]
        %v926 = vld [vmem:[#allocation3 + $0x158] sm:$0xff]
        %v927 = vld [vmem:[#allocation3 + $0x160] sm:$0xff]
        %v928 = vld [vmem:[#allocation3 + $0x168] sm:$0xff]
        %v929 = vld [vmem:[#allocation3 + $0x170] sm:$0xff]
        %v930 = vld [vmem:[#allocation3 + $0x178] sm:$0xff]
        %v931 = vld [vmem:[#allocation3 + $0x180] sm:$0xff]
        %v932 = vld [vmem:[#allocation3 + $0x188] sm:$0xff]
        %v933 = vld [vmem:[#allocation3 + $0x190] sm:$0xff]
        %v934 = vld [vmem:[#allocation3 + $0x198] sm:$0xff]
        %v935 = vld [vmem:[#allocation3 + $0x1a0] sm:$0xff]
        %v936 = vld [vmem:[#allocation3 + $0x1a8] sm:$0xff]
        %v937 = vld [vmem:[#allocation3 + $0x1b0] sm:$0xff]
        %v938 = vld [vmem:[#allocation3 + $0x1b8] sm:$0xff]
        %v939 = vld [vmem:[#allocation3 + $0x1c0] sm:$0xff]
        %v940 = vld [vmem:[#allocation3 + $0x1c8] sm:$0xff]
        %v941 = vld [vmem:[#allocation3 + $0x1d0] sm:$0xff]
        %v942 = vld [vmem:[#allocation3 + $0x1d8] sm:$0xff]
        %v943 = vld [vmem:[#allocation3 + $0x1e0] sm:$0xff]
        %v944 = vld [vmem:[#allocation3 + $0x1e8] sm:$0xff]
        %v945 = vld [vmem:[#allocation3 + $0x1f0] sm:$0xff]
        %v946 = vld [vmem:[#allocation3 + $0x1f8] sm:$0xff]
        %v947 = vld [vmem:[#allocation3 + $0x200] sm:$0xff]
        %v948 = vld [vmem:[#allocation3 + $0x208] sm:$0xff]
        %v949 = vld [vmem:[#allocation3 + $0x210] sm:$0xff]
        %v950 = vld [vmem:[#allocation3 + $0x218] sm:$0xff]
        %v951 = vld [vmem:[#allocation3 + $0x220] sm:$0xff]
        %v952 = vld [vmem:[#allocation3 + $0x228] sm:$0xff]
        %v953 = vld [vmem:[#allocation3 + $0x230] sm:$0xff]
        %v954 = vld [vmem:[#allocation3 + $0x238] sm:$0xff]
        %v955 = vld [vmem:[#allocation3 + $0x240] sm:$0xff]
        %v956 = vld [vmem:[#allocation3 + $0x248] sm:$0xff]
        %v957 = vld [vmem:[#allocation3 + $0x250] sm:$0xff]
        %v958 = vld [vmem:[#allocation3 + $0x258] sm:$0xff]
        %v959 = vld [vmem:[#allocation3 + $0x260] sm:$0xff]
        %v960 = vld [vmem:[#allocation3 + $0x268] sm:$0xff]
        %v961 = vld [vmem:[#allocation3 + $0x270] sm:$0xff]
        %v962 = vld [vmem:[#allocation3 + $0x278] sm:$0xff]
        %v963 = vld [vmem:[#allocation3 + $0x280] sm:$0xff]
        %v964 = vld [vmem:[#allocation3 + $0x288] sm:$0xff]
        %v965 = vld [vmem:[#allocation3 + $0x290] sm:$0xff]
        %v966 = vld [vmem:[#allocation3 + $0x298] sm:$0xff]
        %v967 = vld [vmem:[#allocation3 + $0x2a0] sm:$0xff]
        %v968 = vld [vmem:[#allocation3 + $0x2a8] sm:$0xff]
        %v969 = vld [vmem:[#allocation3 + $0x2b0] sm:$0xff]
        %v970 = vld [vmem:[#allocation3 + $0x2b8] sm:$0xff]
        %v971 = vld [vmem:[#allocation3 + $0x2c0] sm:$0xff]
        %v972 = vld [vmem:[#allocation3 + $0x2c8] sm:$0xff]
        %v973 = vld [vmem:[#allocation3 + $0x2d0] sm:$0xff]
        %v974 = vld [vmem:[#allocation3 + $0x2d8] sm:$0xff]
        %v975 = vld [vmem:[#allocation3 + $0x2e0] sm:$0xff]
        %v976 = vld [vmem:[#allocation3 + $0x2e8] sm:$0xff]
        %v977 = vld [vmem:[#allocation3 + $0x2f0] sm:$0xff]
        %v978 = vld [vmem:[#allocation3 + $0x2f8] sm:$0xff]
        %v979 = vld [vmem:[#allocation3 + $0x300] sm:$0xff]
        %v980 = vld [vmem:[#allocation3 + $0x308] sm:$0xff]
        %v981 = vld [vmem:[#allocation3 + $0x310] sm:$0xff]
        %v982 = vld [vmem:[#allocation3 + $0x318] sm:$0xff]
        %v983 = vld [vmem:[#allocation3 + $0x320] sm:$0xff]
        %v984 = vld [vmem:[#allocation3 + $0x328] sm:$0xff]
        %v985 = vld [vmem:[#allocation3 + $0x330] sm:$0xff]
        %v986 = vld [vmem:[#allocation3 + $0x338] sm:$0xff]
        %v987 = vld [vmem:[#allocation3 + $0x340] sm:$0xff]
        %v988 = vld [vmem:[#allocation3 + $0x348] sm:$0xff]
        %v989 = vld [vmem:[#allocation3 + $0x350] sm:$0xff]
        %v990 = vld [vmem:[#allocation3 + $0x358] sm:$0xff]
        %v991 = vld [vmem:[#allocation3 + $0x360] sm:$0xff]
        %v992 = vld [vmem:[#allocation3 + $0x368] sm:$0xff]
        %v993 = vld [vmem:[#allocation3 + $0x370] sm:$0xff]
        %v994 = vld [vmem:[#allocation3 + $0x378] sm:$0xff]
        %v995 = vld [vmem:[#allocation3 + $0x380] sm:$0xff]
        %v996 = vld [vmem:[#allocation3 + $0x388] sm:$0xff]
        %v997 = vld [vmem:[#allocation3 + $0x390] sm:$0xff]
        %v998 = vld [vmem:[#allocation3 + $0x398] sm:$0xff]
        %v999 = vld [vmem:[#allocation3 + $0x3a0] sm:$0xff]
        %v1000 = vld [vmem:[#allocation3 + $0x3a8] sm:$0xff]
        %v1001 = vld [vmem:[#allocation3 + $0x3b0] sm:$0xff]
        %v1002 = vld [vmem:[#allocation3 + $0x3b8] sm:$0xff]
        %v1003 = vld [vmem:[#allocation3 + $0x3c0] sm:$0xff]
        %v1004 = vld [vmem:[#allocation3 + $0x3c8] sm:$0xff]
        %v1005 = vld [vmem:[#allocation3 + $0x3d0] sm:$0xff]
        %v1006 = vld [vmem:[#allocation3 + $0x3d8] sm:$0xff]
        %v1007 = vld [vmem:[#allocation3 + $0x3e0] sm:$0xff]
        %v1008 = vld [vmem:[#allocation3 + $0x3e8] sm:$0xff]
        %v1009 = vld [vmem:[#allocation3 + $0x3f0] sm:$0xff]
        %v1010 = vld [vmem:[#allocation3 + $0x3f8] sm:$0xff]
        %v1011 = vld [vmem:[#allocation3 + $0x400] sm:$0xff]
        %v1012 = vld [vmem:[#allocation3 + $0x408] sm:$0xff]
        %v1013 = vld [vmem:[#allocation3 + $0x410] sm:$0xff]
        %v1014 = vld [vmem:[#allocation3 + $0x418] sm:$0xff]
        %v1015 = vld [vmem:[#allocation3 + $0x420] sm:$0xff]
        %v1016 = vld [vmem:[#allocation3 + $0x428] sm:$0xff]
        %v1017 = vld [vmem:[#allocation3 + $0x430] sm:$0xff]
        %v1018 = vld [vmem:[#allocation3 + $0x438] sm:$0xff]
        %v1019 = vld [vmem:[#allocation3 + $0x440] sm:$0xff]
        %v1020 = vld [vmem:[#allocation3 + $0x448] sm:$0xff]
        %v1021 = vld [vmem:[#allocation3 + $0x450] sm:$0xff]
        %v1022 = vld [vmem:[#allocation3 + $0x458] sm:$0xff]
        %v1023 = vld [vmem:[#allocation3 + $0x460] sm:$0xff]
        %v1024 = vld [vmem:[#allocation3 + $0x468] sm:$0xff]
        %v1025 = vld [vmem:[#allocation3 + $0x470] sm:$0xff]
        %v1026 = vld [vmem:[#allocation3 + $0x478] sm:$0xff]
        %v1027 = vld [vmem:[#allocation3 + $0x480] sm:$0xff]
        %v1028 = vld [vmem:[#allocation3 + $0x488] sm:$0xff]
        %v1029 = vld [vmem:[#allocation3 + $0x490] sm:$0xff]
        %v1030 = vld [vmem:[#allocation3 + $0x498] sm:$0xff]
        %v1031 = vld [vmem:[#allocation3 + $0x4a0] sm:$0xff]
        %v1032 = vld [vmem:[#allocation3 + $0x4a8] sm:$0xff]
        %v1033 = vld [vmem:[#allocation3 + $0x4b0] sm:$0xff]
        %v1034 = vld [vmem:[#allocation3 + $0x4b8] sm:$0xff]
        %v1035 = vld [vmem:[#allocation3 + $0x4c0] sm:$0xff]
        %v1036 = vld [vmem:[#allocation3 + $0x4c8] sm:$0xff]
        %v1037 = vld [vmem:[#allocation3 + $0x4d0] sm:$0xff]
        %v1038 = vld [vmem:[#allocation3 + $0x4d8] sm:$0xff]
        %v1039 = vld [vmem:[#allocation3 + $0x4e0] sm:$0xff]
        %v1040 = vld [vmem:[#allocation3 + $0x4e8] sm:$0xff]
        %v1041 = vld [vmem:[#allocation3 + $0x4f0] sm:$0xff]
        %v1042 = vld [vmem:[#allocation3 + $0x4f8] sm:$0xff]
        %v1043 = vld [vmem:[#allocation3 + $0x500] sm:$0xff]
        %v1044 = vld [vmem:[#allocation3 + $0x508] sm:$0xff]
        %v1045 = vld [vmem:[#allocation3 + $0x510] sm:$0xff]
        %v1046 = vld [vmem:[#allocation3 + $0x518] sm:$0xff]
        %v1047 = vld [vmem:[#allocation3 + $0x520] sm:$0xff]
        %v1048 = vld [vmem:[#allocation3 + $0x528] sm:$0xff]
        %v1049 = vld [vmem:[#allocation3 + $0x530] sm:$0xff]
        %v1050 = vld [vmem:[#allocation3 + $0x538] sm:$0xff]
        %v1051 = vld [vmem:[#allocation3 + $0x540] sm:$0xff]
        %v1052 = vld [vmem:[#allocation3 + $0x548] sm:$0xff]
        %v1053 = vld [vmem:[#allocation3 + $0x550] sm:$0xff]
        %v1054 = vld [vmem:[#allocation3 + $0x558] sm:$0xff]
        %v1055 = vld [vmem:[#allocation3 + $0x560] sm:$0xff]
        %v1056 = vld [vmem:[#allocation3 + $0x568] sm:$0xff]
        %v1057 = vld [vmem:[#allocation3 + $0x570] sm:$0xff]
        %v1058 = vld [vmem:[#allocation3 + $0x578] sm:$0xff]
        %v1059 = vld [vmem:[#allocation3 + $0x580] sm:$0xff]
        %v1060 = vld [vmem:[#allocation3 + $0x588] sm:$0xff]
        %v1061 = vld [vmem:[#allocation3 + $0x590] sm:$0xff]
        %v1062 = vld [vmem:[#allocation3 + $0x598] sm:$0xff]
        %v1063 = vld [vmem:[#allocation3 + $0x5a0] sm:$0xff]
        %v1064 = vld [vmem:[#allocation3 + $0x5a8] sm:$0xff]
        %v1065 = vld [vmem:[#allocation3 + $0x5b0] sm:$0xff]
        %v1066 = vld [vmem:[#allocation3 + $0x5b8] sm:$0xff]
        %v1067 = vld [vmem:[#allocation3 + $0x5c0] sm:$0xff]
        %v1068 = vld [vmem:[#allocation3 + $0x5c8] sm:$0xff]
        %v1069 = vld [vmem:[#allocation3 + $0x5d0] sm:$0xff]
        %v1070 = vld [vmem:[#allocation3 + $0x5d8] sm:$0xff]
        %v1071 = vld [vmem:[#allocation3 + $0x5e0] sm:$0xff]
        %v1072 = vld [vmem:[#allocation3 + $0x5e8] sm:$0xff]
        %v1073 = vld [vmem:[#allocation3 + $0x5f0] sm:$0xff]
        %v1074 = vld [vmem:[#allocation3 + $0x5f8] sm:$0xff]
        %v1075 = vld [vmem:[#allocation2] sm:$0xff]
        %v1076 = vld [vmem:[#allocation2 + $0x8] sm:$0xff]
        %v1077 = vld [vmem:[#allocation2 + $0x10] sm:$0xff]
        %v1078 = vld [vmem:[#allocation2 + $0x18] sm:$0xff]
        %v1079 = vld [vmem:[#allocation2 + $0x20] sm:$0xff]
        %v1080 = vld [vmem:[#allocation2 + $0x28] sm:$0xff]
        %v1081 = vld [vmem:[#allocation2 + $0x30] sm:$0xff]
        %v1082 = vld [vmem:[#allocation2 + $0x38] sm:$0xff]
        %v1083 = vld [vmem:[#allocation2 + $0x40] sm:$0xff]
        %v1084 = vld [vmem:[#allocation2 + $0x48] sm:$0xff]
        %v1085 = vld [vmem:[#allocation2 + $0x50] sm:$0xff]
        %v1086 = vld [vmem:[#allocation2 + $0x58] sm:$0xff]
        %v1087 = vld [vmem:[#allocation2 + $0x60] sm:$0xff]
        %v1088 = vld [vmem:[#allocation2 + $0x68] sm:$0xff]
        %v1089 = vld [vmem:[#allocation2 + $0x70] sm:$0xff]
        %v1090 = vld [vmem:[#allocation2 + $0x78] sm:$0xff]
        %v1091 = vld [vmem:[#allocation2 + $0x80] sm:$0xff]
        %v1092 = vld [vmem:[#allocation2 + $0x88] sm:$0xff]
        %v1093 = vld [vmem:[#allocation2 + $0x90] sm:$0xff]
        %v1094 = vld [vmem:[#allocation2 + $0x98] sm:$0xff]
        %v1095 = vld [vmem:[#allocation2 + $0xa0] sm:$0xff]
        %v1096 = vld [vmem:[#allocation2 + $0xa8] sm:$0xff]
        %v1097 = vld [vmem:[#allocation2 + $0xb0] sm:$0xff]
        %v1098 = vld [vmem:[#allocation2 + $0xb8] sm:$0xff]
        %v1099 = vld [vmem:[#allocation2 + $0xc0] sm:$0xff]
        %v1100 = vld [vmem:[#allocation2 + $0xc8] sm:$0xff]
        %v1101 = vld [vmem:[#allocation2 + $0xd0] sm:$0xff]
        %v1102 = vld [vmem:[#allocation2 + $0xd8] sm:$0xff]
        %v1103 = vld [vmem:[#allocation2 + $0xe0] sm:$0xff]
        %v1104 = vld [vmem:[#allocation2 + $0xe8] sm:$0xff]
        %v1105 = vld [vmem:[#allocation2 + $0xf0] sm:$0xff]
        %v1106 = vld [vmem:[#allocation2 + $0xf8] sm:$0xff]
        %v1107 = vld [vmem:[#allocation2 + $0x100] sm:$0xff]
        %v1108 = vld [vmem:[#allocation2 + $0x108] sm:$0xff]
        %v1109 = vld [vmem:[#allocation2 + $0x110] sm:$0xff]
        %v1110 = vld [vmem:[#allocation2 + $0x118] sm:$0xff]
        %v1111 = vld [vmem:[#allocation2 + $0x120] sm:$0xff]
        %v1112 = vld [vmem:[#allocation2 + $0x128] sm:$0xff]
        %v1113 = vld [vmem:[#allocation2 + $0x130] sm:$0xff]
        %v1114 = vld [vmem:[#allocation2 + $0x138] sm:$0xff]
        %v1115 = vld [vmem:[#allocation2 + $0x140] sm:$0xff]
        %v1116 = vld [vmem:[#allocation2 + $0x148] sm:$0xff]
        %v1117 = vld [vmem:[#allocation2 + $0x150] sm:$0xff]
        %v1118 = vld [vmem:[#allocation2 + $0x158] sm:$0xff]
        %v1119 = vld [vmem:[#allocation2 + $0x160] sm:$0xff]
        %v1120 = vld [vmem:[#allocation2 + $0x168] sm:$0xff]
        %v1121 = vld [vmem:[#allocation2 + $0x170] sm:$0xff]
        %v1122 = vld [vmem:[#allocation2 + $0x178] sm:$0xff]
        %v1123 = vld [vmem:[#allocation2 + $0x180] sm:$0xff]
        %v1124 = vld [vmem:[#allocation2 + $0x188] sm:$0xff]
        %v1125 = vld [vmem:[#allocation2 + $0x190] sm:$0xff]
        %v1126 = vld [vmem:[#allocation2 + $0x198] sm:$0xff]
        %v1127 = vld [vmem:[#allocation2 + $0x1a0] sm:$0xff]
        %v1128 = vld [vmem:[#allocation2 + $0x1a8] sm:$0xff]
        %v1129 = vld [vmem:[#allocation2 + $0x1b0] sm:$0xff]
        %v1130 = vld [vmem:[#allocation2 + $0x1b8] sm:$0xff]
        %v1131 = vld [vmem:[#allocation2 + $0x1c0] sm:$0xff]
        %v1132 = vld [vmem:[#allocation2 + $0x1c8] sm:$0xff]
        %v1133 = vld [vmem:[#allocation2 + $0x1d0] sm:$0xff]
        %v1134 = vld [vmem:[#allocation2 + $0x1d8] sm:$0xff]
        %v1135 = vld [vmem:[#allocation2 + $0x1e0] sm:$0xff]
        %v1136 = vld [vmem:[#allocation2 + $0x1e8] sm:$0xff]
        %v1137 = vld [vmem:[#allocation2 + $0x1f0] sm:$0xff]
        %v1138 = vld [vmem:[#allocation2 + $0x1f8] sm:$0xff]
        %v1139 = vld [vmem:[#allocation2 + $0x200] sm:$0xff]
        %v1140 = vld [vmem:[#allocation2 + $0x208] sm:$0xff]
        %v1141 = vld [vmem:[#allocation2 + $0x210] sm:$0xff]
        %v1142 = vld [vmem:[#allocation2 + $0x218] sm:$0xff]
        %v1143 = vld [vmem:[#allocation2 + $0x220] sm:$0xff]
        %v1144 = vld [vmem:[#allocation2 + $0x228] sm:$0xff]
        %v1145 = vld [vmem:[#allocation2 + $0x230] sm:$0xff]
        %v1146 = vld [vmem:[#allocation2 + $0x238] sm:$0xff]
        %v1147 = vld [vmem:[#allocation2 + $0x240] sm:$0xff]
        %v1148 = vld [vmem:[#allocation2 + $0x248] sm:$0xff]
        %v1149 = vld [vmem:[#allocation2 + $0x250] sm:$0xff]
        %v1150 = vld [vmem:[#allocation2 + $0x258] sm:$0xff]
        %v1151 = vld [vmem:[#allocation2 + $0x260] sm:$0xff]
        %v1152 = vld [vmem:[#allocation2 + $0x268] sm:$0xff]
        %v1153 = vld [vmem:[#allocation2 + $0x270] sm:$0xff]
        %v1154 = vld [vmem:[#allocation2 + $0x278] sm:$0xff]
        %v1155 = vld [vmem:[#allocation2 + $0x280] sm:$0xff]
        %v1156 = vld [vmem:[#allocation2 + $0x288] sm:$0xff]
        %v1157 = vld [vmem:[#allocation2 + $0x290] sm:$0xff]
        %v1158 = vld [vmem:[#allocation2 + $0x298] sm:$0xff]
        %v1159 = vld [vmem:[#allocation2 + $0x2a0] sm:$0xff]
        %v1160 = vld [vmem:[#allocation2 + $0x2a8] sm:$0xff]
        %v1161 = vld [vmem:[#allocation2 + $0x2b0] sm:$0xff]
        %v1162 = vld [vmem:[#allocation2 + $0x2b8] sm:$0xff]
        %v1163 = vld [vmem:[#allocation2 + $0x2c0] sm:$0xff]
        %v1164 = vld [vmem:[#allocation2 + $0x2c8] sm:$0xff]
        %v1165 = vld [vmem:[#allocation2 + $0x2d0] sm:$0xff]
        %v1166 = vld [vmem:[#allocation2 + $0x2d8] sm:$0xff]
        %v1167 = vld [vmem:[#allocation2 + $0x2e0] sm:$0xff]
        %v1168 = vld [vmem:[#allocation2 + $0x2e8] sm:$0xff]
        %v1169 = vld [vmem:[#allocation2 + $0x2f0] sm:$0xff]
        %v1170 = vld [vmem:[#allocation2 + $0x2f8] sm:$0xff]
        %v1171 = vld [vmem:[%s1] sm:$0xff]
        %v1172 = vld [vmem:[%s1 + $0x8] sm:$0xff]
        %v1173 = vld [vmem:[%s1 + $0x10] sm:$0xff]
        %v1174 = vld [vmem:[%s1 + $0x18] sm:$0xff]
        %v1175 = vld [vmem:[%s1 + $0x20] sm:$0xff]
        %v1176 = vld [vmem:[%s1 + $0x28] sm:$0xff]
        %v1177 = vld [vmem:[%s1 + $0x30] sm:$0xff]
        %v1178 = vld [vmem:[%s1 + $0x38] sm:$0xff]
        %v1179 = vld [vmem:[%s1 + $0x40] sm:$0xff]
        %v1180 = vld [vmem:[%s1 + $0x48] sm:$0xff]
        %v1181 = vld [vmem:[%s1 + $0x50] sm:$0xff]
        %v1182 = vld [vmem:[%s1 + $0x58] sm:$0xff]
        %v1183 = vld [vmem:[%s1 + $0x60] sm:$0xff]
        %v1184 = vld [vmem:[%s1 + $0x68] sm:$0xff]
        %v1185 = vld [vmem:[%s1 + $0x70] sm:$0xff]
        %v1186 = vld [vmem:[%s1 + $0x78] sm:$0xff]
        %v1187 = vld [vmem:[%s1 + $0x80] sm:$0xff]
        %v1188 = vld [vmem:[%s1 + $0x88] sm:$0xff]
        %v1189 = vld [vmem:[%s1 + $0x90] sm:$0xff]
        %v1190 = vld [vmem:[%s1 + $0x98] sm:$0xff]
        %v1191 = vld [vmem:[%s1 + $0xa0] sm:$0xff]
        %v1192 = vld [vmem:[%s1 + $0xa8] sm:$0xff]
        %v1193 = vld [vmem:[%s1 + $0xb0] sm:$0xff]
        %v1194 = vld [vmem:[%s1 + $0xb8] sm:$0xff]
        %v1195 = vld [vmem:[%s1 + $0xc0] sm:$0xff]
        %v1196 = vld [vmem:[%s1 + $0xc8] sm:$0xff]
        %v1197 = vld [vmem:[%s1 + $0xd0] sm:$0xff]
        %v1198 = vld [vmem:[%s1 + $0xd8] sm:$0xff]
        %v1199 = vld [vmem:[%s1 + $0xe0] sm:$0xff]
        %v1200 = vld [vmem:[%s1 + $0xe8] sm:$0xff]
        %v1201 = vld [vmem:[%s1 + $0xf0] sm:$0xff]
        %v1202 = vld [vmem:[%s1 + $0xf8] sm:$0xff]
        %1204 = vset.pattern.permute.xlu0 0
        %1205 = vperm.xlu0 %1204, %v1171
        %v1206 = vpop.permute.xlu0 %1205
        %1209 = vset.pattern.permute.xlu0 0
        %1210 = vperm.xlu0 %1209, %v1172
        %v1211 = vpop.permute.xlu0 %1210
        %1214 = vset.pattern.permute.xlu0 0
        %1215 = vperm.xlu0 %1214, %v1173
        %v1216 = vpop.permute.xlu0 %1215
        %1219 = vset.pattern.permute.xlu0 0
        %1220 = vperm.xlu0 %1219, %v1174
        %v1221 = vpop.permute.xlu0 %1220
        %1224 = vset.pattern.permute.xlu0 0
        %1225 = vperm.xlu0 %1224, %v1175
        %v1226 = vpop.permute.xlu0 %1225
        %1229 = vset.pattern.permute.xlu0 0
        %1230 = vperm.xlu0 %1229, %v1176
        %v1231 = vpop.permute.xlu0 %1230
        %1234 = vset.pattern.permute.xlu0 0
        %1235 = vperm.xlu0 %1234, %v1177
        %v1236 = vpop.permute.xlu0 %1235
        %1239 = vset.pattern.permute.xlu0 0
        %1240 = vperm.xlu0 %1239, %v1178
        %v1241 = vpop.permute.xlu0 %1240
        %1244 = vset.pattern.permute.xlu0 0
        %1245 = vperm.xlu0 %1244, %v1179
        %v1246 = vpop.permute.xlu0 %1245
        %1249 = vset.pattern.permute.xlu0 0
        %1250 = vperm.xlu0 %1249, %v1180
        %v1251 = vpop.permute.xlu0 %1250
        %1254 = vset.pattern.permute.xlu0 0
        %1255 = vperm.xlu0 %1254, %v1181
        %v1256 = vpop.permute.xlu0 %1255
        %1259 = vset.pattern.permute.xlu0 0
        %1260 = vperm.xlu0 %1259, %v1182
        %v1261 = vpop.permute.xlu0 %1260
        %1264 = vset.pattern.permute.xlu0 0
        %1265 = vperm.xlu0 %1264, %v1183
        %v1266 = vpop.permute.xlu0 %1265
        %1269 = vset.pattern.permute.xlu0 0
        %1270 = vperm.xlu0 %1269, %v1184
        %v1271 = vpop.permute.xlu0 %1270
        %1274 = vset.pattern.permute.xlu0 0
        %1275 = vperm.xlu0 %1274, %v1185
        %v1276 = vpop.permute.xlu0 %1275
        %1279 = vset.pattern.permute.xlu0 0
        %1280 = vperm.xlu0 %1279, %v1186
        %v1281 = vpop.permute.xlu0 %1280
        %1284 = vset.pattern.permute.xlu0 0
        %1285 = vperm.xlu0 %1284, %v1187
        %v1286 = vpop.permute.xlu0 %1285
        %1289 = vset.pattern.permute.xlu0 0
        %1290 = vperm.xlu0 %1289, %v1188
        %v1291 = vpop.permute.xlu0 %1290
        %1294 = vset.pattern.permute.xlu0 0
        %1295 = vperm.xlu0 %1294, %v1189
        %v1296 = vpop.permute.xlu0 %1295
        %1299 = vset.pattern.permute.xlu0 0
        %1300 = vperm.xlu0 %1299, %v1190
        %v1301 = vpop.permute.xlu0 %1300
        %1304 = vset.pattern.permute.xlu0 0
        %1305 = vperm.xlu0 %1304, %v1191
        %v1306 = vpop.permute.xlu0 %1305
        %1309 = vset.pattern.permute.xlu0 0
        %1310 = vperm.xlu0 %1309, %v1192
        %v1311 = vpop.permute.xlu0 %1310
        %1314 = vset.pattern.permute.xlu0 0
        %1315 = vperm.xlu0 %1314, %v1193
        %v1316 = vpop.permute.xlu0 %1315
        %1319 = vset.pattern.permute.xlu0 0
        %1320 = vperm.xlu0 %1319, %v1194
        %v1321 = vpop.permute.xlu0 %1320
        %1324 = vset.pattern.permute.xlu0 0
        %1325 = vperm.xlu0 %1324, %v1195
        %v1326 = vpop.permute.xlu0 %1325
        %1329 = vset.pattern.permute.xlu0 0
        %1330 = vperm.xlu0 %1329, %v1196
        %v1331 = vpop.permute.xlu0 %1330
        %1334 = vset.pattern.permute.xlu0 0
        %1335 = vperm.xlu0 %1334, %v1197
        %v1336 = vpop.permute.xlu0 %1335
        %1339 = vset.pattern.permute.xlu0 0
        %1340 = vperm.xlu0 %1339, %v1198
        %v1341 = vpop.permute.xlu0 %1340
        %1344 = vset.pattern.permute.xlu0 0
        %1345 = vperm.xlu0 %1344, %v1199
        %v1346 = vpop.permute.xlu0 %1345
        %1349 = vset.pattern.permute.xlu0 0
        %1350 = vperm.xlu0 %1349, %v1200
        %v1351 = vpop.permute.xlu0 %1350
        %1354 = vset.pattern.permute.xlu0 0
        %1355 = vperm.xlu0 %1354, %v1201
        %v1356 = vpop.permute.xlu0 %1355
        %1359 = vset.pattern.permute.xlu0 0
        %1360 = vperm.xlu0 %1359, %v1202
        %v1361 = vpop.permute.xlu0 %1360
        %1363 = vmatpush.msra.mxu0 %v1090
        %1364 = vmatpush.msra.mxu0 %v1089
        %1365 = vmatpush.msra.mxu0 %v1088
        %1366 = vmatpush.msra.mxu0 %v1087
        %1367 = vmatpush.msra.mxu0 %v1086
        %1368 = vmatpush.msra.mxu0 %v1085
        %1369 = vmatpush.msra.mxu0 %v1084
        %1370 = vmatpush.msra.mxu0 %v1083
        %1371 = vmatpush.msra.mxu0 %v1082
        %1372 = vmatpush.msra.mxu0 %v1081
        %1373 = vmatpush.msra.mxu0 %v1080
        %1374 = vmatpush.msra.mxu0 %v1079
        %1375 = vmatpush.msra.mxu0 %v1078
        %1376 = vmatpush.msra.mxu0 %v1077
        %1377 = vmatpush.msra.mxu0 %v1076
        %1378 = vmatpush.msra.mxu0 %v1075
        %1379 = vmatmul.f32.gmra.mxu0 %v883
        %v1380 = vpop.f32.mrf.mxu0
        %v1381 = vadd.f32 %v1206, %v1380
        %1382 = vmatmul.f32.gmra.mxu0 %v889
        %v1383 = vpop.f32.mrf.mxu0
        %v1384 = vadd.f32 %v1211, %v1383
        %1385 = vmatmul.f32.gmra.mxu0 %v895
        %v1386 = vpop.f32.mrf.mxu0
        %v1387 = vadd.f32 %v1216, %v1386
        %1388 = vmatmul.f32.gmra.mxu0 %v901
        %v1389 = vpop.f32.mrf.mxu0
        %v1390 = vadd.f32 %v1221, %v1389
        %1391 = vmatmul.f32.gmra.mxu0 %v907
        %v1392 = vpop.f32.mrf.mxu0
        %v1393 = vadd.f32 %v1226, %v1392
        %1394 = vmatmul.f32.gmra.mxu0 %v913
        %v1395 = vpop.f32.mrf.mxu0
        %v1396 = vadd.f32 %v1231, %v1395
        %1397 = vmatmul.f32.gmra.mxu0 %v919
        %v1398 = vpop.f32.mrf.mxu0
        %v1399 = vadd.f32 %v1236, %v1398
        %1400 = vmatmul.f32.gmra.mxu0 %v925
        %v1401 = vpop.f32.mrf.mxu0
        %v1402 = vadd.f32 %v1241, %v1401
        %1403 = vmatmul.f32.gmra.mxu0 %v931
        %v1404 = vpop.f32.mrf.mxu0
        %v1405 = vadd.f32 %v1246, %v1404
        %1406 = vmatmul.f32.gmra.mxu0 %v937
        %v1407 = vpop.f32.mrf.mxu0
        %v1408 = vadd.f32 %v1251, %v1407
        %1409 = vmatmul.f32.gmra.mxu0 %v943
        %v1410 = vpop.f32.mrf.mxu0
        %v1411 = vadd.f32 %v1256, %v1410
        %1412 = vmatmul.f32.gmra.mxu0 %v949
        %v1413 = vpop.f32.mrf.mxu0
        %v1414 = vadd.f32 %v1261, %v1413
        %1415 = vmatmul.f32.gmra.mxu0 %v955
        %v1416 = vpop.f32.mrf.mxu0
        %v1417 = vadd.f32 %v1266, %v1416
        %1418 = vmatmul.f32.gmra.mxu0 %v961
        %v1419 = vpop.f32.mrf.mxu0
        %v1420 = vadd.f32 %v1271, %v1419
        %1421 = vmatmul.f32.gmra.mxu0 %v967
        %v1422 = vpop.f32.mrf.mxu0
        %v1423 = vadd.f32 %v1276, %v1422
        %1424 = vmatmul.f32.gmra.mxu0 %v973
        %v1425 = vpop.f32.mrf.mxu0
        %v1426 = vadd.f32 %v1281, %v1425
        %1427 = vmatmul.f32.gmra.mxu0 %v979
        %v1428 = vpop.f32.mrf.mxu0
        %v1429 = vadd.f32 %v1286, %v1428
        %1430 = vmatmul.f32.gmra.mxu0 %v985
        %v1431 = vpop.f32.mrf.mxu0
        %v1432 = vadd.f32 %v1291, %v1431
        %1433 = vmatmul.f32.gmra.mxu0 %v991
        %v1434 = vpop.f32.mrf.mxu0
        %v1435 = vadd.f32 %v1296, %v1434
        %1436 = vmatmul.f32.gmra.mxu0 %v997
        %v1437 = vpop.f32.mrf.mxu0
        %v1438 = vadd.f32 %v1301, %v1437
        %1439 = vmatmul.f32.gmra.mxu0 %v1003
        %v1440 = vpop.f32.mrf.mxu0
        %v1441 = vadd.f32 %v1306, %v1440
        %1442 = vmatmul.f32.gmra.mxu0 %v1009
        %v1443 = vpop.f32.mrf.mxu0
        %v1444 = vadd.f32 %v1311, %v1443
        %1445 = vmatmul.f32.gmra.mxu0 %v1015
        %v1446 = vpop.f32.mrf.mxu0
        %v1447 = vadd.f32 %v1316, %v1446
        %1448 = vmatmul.f32.gmra.mxu0 %v1021
        %v1449 = vpop.f32.mrf.mxu0
        %v1450 = vadd.f32 %v1321, %v1449
        %1451 = vmatmul.f32.gmra.mxu0 %v1027
        %v1452 = vpop.f32.mrf.mxu0
        %v1453 = vadd.f32 %v1326, %v1452
        %1454 = vmatmul.f32.gmra.mxu0 %v1033
        %v1455 = vpop.f32.mrf.mxu0
        %v1456 = vadd.f32 %v1331, %v1455
        %1457 = vmatmul.f32.gmra.mxu0 %v1039
        %v1458 = vpop.f32.mrf.mxu0
        %v1459 = vadd.f32 %v1336, %v1458
        %1460 = vmatmul.f32.gmra.mxu0 %v1045
        %v1461 = vpop.f32.mrf.mxu0
        %v1462 = vadd.f32 %v1341, %v1461
        %1463 = vmatmul.f32.gmra.mxu0 %v1051
        %v1464 = vpop.f32.mrf.mxu0
        %v1465 = vadd.f32 %v1346, %v1464
        %1466 = vmatmul.f32.gmra.mxu0 %v1057
        %v1467 = vpop.f32.mrf.mxu0
        %v1468 = vadd.f32 %v1351, %v1467
        %1469 = vmatmul.f32.gmra.mxu0 %v1063
        %v1470 = vpop.f32.mrf.mxu0
        %v1471 = vadd.f32 %v1356, %v1470
        %1472 = vmatmul.f32.gmra.mxu0 %v1069
        %v1473 = vpop.f32.mrf.mxu0
        %v1474 = vadd.f32 %v1361, %v1473
        %1475 = vdwg.mxu0
        %1476 = vmatpush.msra.mxu0 %v1106
        %1477 = vmatpush.msra.mxu0 %v1105
        %1478 = vmatpush.msra.mxu0 %v1104
        %1479 = vmatpush.msra.mxu0 %v1103
        %1480 = vmatpush.msra.mxu0 %v1102
        %1481 = vmatpush.msra.mxu0 %v1101
        %1482 = vmatpush.msra.mxu0 %v1100
        %1483 = vmatpush.msra.mxu0 %v1099
        %1484 = vmatpush.msra.mxu0 %v1098
        %1485 = vmatpush.msra.mxu0 %v1097
        %1486 = vmatpush.msra.mxu0 %v1096
        %1487 = vmatpush.msra.mxu0 %v1095
        %1488 = vmatpush.msra.mxu0 %v1094
        %1489 = vmatpush.msra.mxu0 %v1093
        %1490 = vmatpush.msra.mxu0 %v1092
        %1491 = vmatpush.msra.mxu0 %v1091
        %1492 = vmatmul.f32.gmra.mxu0 %v884
        %v1493 = vpop.f32.mrf.mxu0
        %v1494 = vadd.f32 %v1381, %v1493
        %1495 = vmatmul.f32.gmra.mxu0 %v890
        %v1496 = vpop.f32.mrf.mxu0
        %v1497 = vadd.f32 %v1384, %v1496
        %1498 = vmatmul.f32.gmra.mxu0 %v896
        %v1499 = vpop.f32.mrf.mxu0
        %v1500 = vadd.f32 %v1387, %v1499
        %1501 = vmatmul.f32.gmra.mxu0 %v902
        %v1502 = vpop.f32.mrf.mxu0
        %v1503 = vadd.f32 %v1390, %v1502
        %1504 = vmatmul.f32.gmra.mxu0 %v908
        %v1505 = vpop.f32.mrf.mxu0
        %v1506 = vadd.f32 %v1393, %v1505
        %1507 = vmatmul.f32.gmra.mxu0 %v914
        %v1508 = vpop.f32.mrf.mxu0
        %v1509 = vadd.f32 %v1396, %v1508
        %1510 = vmatmul.f32.gmra.mxu0 %v920
        %v1511 = vpop.f32.mrf.mxu0
        %v1512 = vadd.f32 %v1399, %v1511
        %1513 = vmatmul.f32.gmra.mxu0 %v926
        %v1514 = vpop.f32.mrf.mxu0
        %v1515 = vadd.f32 %v1402, %v1514
        %1516 = vmatmul.f32.gmra.mxu0 %v932
        %v1517 = vpop.f32.mrf.mxu0
        %v1518 = vadd.f32 %v1405, %v1517
        %1519 = vmatmul.f32.gmra.mxu0 %v938
        %v1520 = vpop.f32.mrf.mxu0
        %v1521 = vadd.f32 %v1408, %v1520
        %1522 = vmatmul.f32.gmra.mxu0 %v944
        %v1523 = vpop.f32.mrf.mxu0
        %v1524 = vadd.f32 %v1411, %v1523
        %1525 = vmatmul.f32.gmra.mxu0 %v950
        %v1526 = vpop.f32.mrf.mxu0
        %v1527 = vadd.f32 %v1414, %v1526
        %1528 = vmatmul.f32.gmra.mxu0 %v956
        %v1529 = vpop.f32.mrf.mxu0
        %v1530 = vadd.f32 %v1417, %v1529
        %1531 = vmatmul.f32.gmra.mxu0 %v962
        %v1532 = vpop.f32.mrf.mxu0
        %v1533 = vadd.f32 %v1420, %v1532
        %1534 = vmatmul.f32.gmra.mxu0 %v968
        %v1535 = vpop.f32.mrf.mxu0
        %v1536 = vadd.f32 %v1423, %v1535
        %1537 = vmatmul.f32.gmra.mxu0 %v974
        %v1538 = vpop.f32.mrf.mxu0
        %v1539 = vadd.f32 %v1426, %v1538
        %1540 = vmatmul.f32.gmra.mxu0 %v980
        %v1541 = vpop.f32.mrf.mxu0
        %v1542 = vadd.f32 %v1429, %v1541
        %1543 = vmatmul.f32.gmra.mxu0 %v986
        %v1544 = vpop.f32.mrf.mxu0
        %v1545 = vadd.f32 %v1432, %v1544
        %1546 = vmatmul.f32.gmra.mxu0 %v992
        %v1547 = vpop.f32.mrf.mxu0
        %v1548 = vadd.f32 %v1435, %v1547
        %1549 = vmatmul.f32.gmra.mxu0 %v998
        %v1550 = vpop.f32.mrf.mxu0
        %v1551 = vadd.f32 %v1438, %v1550
        %1552 = vmatmul.f32.gmra.mxu0 %v1004
        %v1553 = vpop.f32.mrf.mxu0
        %v1554 = vadd.f32 %v1441, %v1553
        %1555 = vmatmul.f32.gmra.mxu0 %v1010
        %v1556 = vpop.f32.mrf.mxu0
        %v1557 = vadd.f32 %v1444, %v1556
        %1558 = vmatmul.f32.gmra.mxu0 %v1016
        %v1559 = vpop.f32.mrf.mxu0
        %v1560 = vadd.f32 %v1447, %v1559
        %1561 = vmatmul.f32.gmra.mxu0 %v1022
        %v1562 = vpop.f32.mrf.mxu0
        %v1563 = vadd.f32 %v1450, %v1562
        %1564 = vmatmul.f32.gmra.mxu0 %v1028
        %v1565 = vpop.f32.mrf.mxu0
        %v1566 = vadd.f32 %v1453, %v1565
        %1567 = vmatmul.f32.gmra.mxu0 %v1034
        %v1568 = vpop.f32.mrf.mxu0
        %v1569 = vadd.f32 %v1456, %v1568
        %1570 = vmatmul.f32.gmra.mxu0 %v1040
        %v1571 = vpop.f32.mrf.mxu0
        %v1572 = vadd.f32 %v1459, %v1571
        %1573 = vmatmul.f32.gmra.mxu0 %v1046
        %v1574 = vpop.f32.mrf.mxu0
        %v1575 = vadd.f32 %v1462, %v1574
        %1576 = vmatmul.f32.gmra.mxu0 %v1052
        %v1577 = vpop.f32.mrf.mxu0
        %v1578 = vadd.f32 %v1465, %v1577
        %1579 = vmatmul.f32.gmra.mxu0 %v1058
        %v1580 = vpop.f32.mrf.mxu0
        %v1581 = vadd.f32 %v1468, %v1580
        %1582 = vmatmul.f32.gmra.mxu0 %v1064
        %v1583 = vpop.f32.mrf.mxu0
        %v1584 = vadd.f32 %v1471, %v1583
        %1585 = vmatmul.f32.gmra.mxu0 %v1070
        %v1586 = vpop.f32.mrf.mxu0
        %v1587 = vadd.f32 %v1474, %v1586
        %1588 = vdwg.mxu0
        %1589 = vmatpush.msra.mxu0 %v1122
        %1590 = vmatpush.msra.mxu0 %v1121
        %1591 = vmatpush.msra.mxu0 %v1120
        %1592 = vmatpush.msra.mxu0 %v1119
        %1593 = vmatpush.msra.mxu0 %v1118
        %1594 = vmatpush.msra.mxu0 %v1117
        %1595 = vmatpush.msra.mxu0 %v1116
        %1596 = vmatpush.msra.mxu0 %v1115
        %1597 = vmatpush.msra.mxu0 %v1114
        %1598 = vmatpush.msra.mxu0 %v1113
        %1599 = vmatpush.msra.mxu0 %v1112
        %1600 = vmatpush.msra.mxu0 %v1111
        %1601 = vmatpush.msra.mxu0 %v1110
        %1602 = vmatpush.msra.mxu0 %v1109
        %1603 = vmatpush.msra.mxu0 %v1108
        %1604 = vmatpush.msra.mxu0 %v1107
        %1605 = vmatmul.f32.gmra.mxu0 %v885
        %v1606 = vpop.f32.mrf.mxu0
        %v1607 = vadd.f32 %v1494, %v1606
        %1608 = vmatmul.f32.gmra.mxu0 %v891
        %v1609 = vpop.f32.mrf.mxu0
        %v1610 = vadd.f32 %v1497, %v1609
        %1611 = vmatmul.f32.gmra.mxu0 %v897
        %v1612 = vpop.f32.mrf.mxu0
        %v1613 = vadd.f32 %v1500, %v1612
        %1614 = vmatmul.f32.gmra.mxu0 %v903
        %v1615 = vpop.f32.mrf.mxu0
        %v1616 = vadd.f32 %v1503, %v1615
        %1617 = vmatmul.f32.gmra.mxu0 %v909
        %v1618 = vpop.f32.mrf.mxu0
        %v1619 = vadd.f32 %v1506, %v1618
        %1620 = vmatmul.f32.gmra.mxu0 %v915
        %v1621 = vpop.f32.mrf.mxu0
        %v1622 = vadd.f32 %v1509, %v1621
        %1623 = vmatmul.f32.gmra.mxu0 %v921
        %v1624 = vpop.f32.mrf.mxu0
        %v1625 = vadd.f32 %v1512, %v1624
        %1626 = vmatmul.f32.gmra.mxu0 %v927
        %v1627 = vpop.f32.mrf.mxu0
        %v1628 = vadd.f32 %v1515, %v1627
        %1629 = vmatmul.f32.gmra.mxu0 %v933
        %v1630 = vpop.f32.mrf.mxu0
        %v1631 = vadd.f32 %v1518, %v1630
        %1632 = vmatmul.f32.gmra.mxu0 %v939
        %v1633 = vpop.f32.mrf.mxu0
        %v1634 = vadd.f32 %v1521, %v1633
        %1635 = vmatmul.f32.gmra.mxu0 %v945
        %v1636 = vpop.f32.mrf.mxu0
        %v1637 = vadd.f32 %v1524, %v1636
        %1638 = vmatmul.f32.gmra.mxu0 %v951
        %v1639 = vpop.f32.mrf.mxu0
        %v1640 = vadd.f32 %v1527, %v1639
        %1641 = vmatmul.f32.gmra.mxu0 %v957
        %v1642 = vpop.f32.mrf.mxu0
        %v1643 = vadd.f32 %v1530, %v1642
        %1644 = vmatmul.f32.gmra.mxu0 %v963
        %v1645 = vpop.f32.mrf.mxu0
        %v1646 = vadd.f32 %v1533, %v1645
        %1647 = vmatmul.f32.gmra.mxu0 %v969
        %v1648 = vpop.f32.mrf.mxu0
        %v1649 = vadd.f32 %v1536, %v1648
        %1650 = vmatmul.f32.gmra.mxu0 %v975
        %v1651 = vpop.f32.mrf.mxu0
        %v1652 = vadd.f32 %v1539, %v1651
        %1653 = vmatmul.f32.gmra.mxu0 %v981
        %v1654 = vpop.f32.mrf.mxu0
        %v1655 = vadd.f32 %v1542, %v1654
        %1656 = vmatmul.f32.gmra.mxu0 %v987
        %v1657 = vpop.f32.mrf.mxu0
        %v1658 = vadd.f32 %v1545, %v1657
        %1659 = vmatmul.f32.gmra.mxu0 %v993
        %v1660 = vpop.f32.mrf.mxu0
        %v1661 = vadd.f32 %v1548, %v1660
        %1662 = vmatmul.f32.gmra.mxu0 %v999
        %v1663 = vpop.f32.mrf.mxu0
        %v1664 = vadd.f32 %v1551, %v1663
        %1665 = vmatmul.f32.gmra.mxu0 %v1005
        %v1666 = vpop.f32.mrf.mxu0
        %v1667 = vadd.f32 %v1554, %v1666
        %1668 = vmatmul.f32.gmra.mxu0 %v1011
        %v1669 = vpop.f32.mrf.mxu0
        %v1670 = vadd.f32 %v1557, %v1669
        %1671 = vmatmul.f32.gmra.mxu0 %v1017
        %v1672 = vpop.f32.mrf.mxu0
        %v1673 = vadd.f32 %v1560, %v1672
        %1674 = vmatmul.f32.gmra.mxu0 %v1023
        %v1675 = vpop.f32.mrf.mxu0
        %v1676 = vadd.f32 %v1563, %v1675
        %1677 = vmatmul.f32.gmra.mxu0 %v1029
        %v1678 = vpop.f32.mrf.mxu0
        %v1679 = vadd.f32 %v1566, %v1678
        %1680 = vmatmul.f32.gmra.mxu0 %v1035
        %v1681 = vpop.f32.mrf.mxu0
        %v1682 = vadd.f32 %v1569, %v1681
        %1683 = vmatmul.f32.gmra.mxu0 %v1041
        %v1684 = vpop.f32.mrf.mxu0
        %v1685 = vadd.f32 %v1572, %v1684
        %1686 = vmatmul.f32.gmra.mxu0 %v1047
        %v1687 = vpop.f32.mrf.mxu0
        %v1688 = vadd.f32 %v1575, %v1687
        %1689 = vmatmul.f32.gmra.mxu0 %v1053
        %v1690 = vpop.f32.mrf.mxu0
        %v1691 = vadd.f32 %v1578, %v1690
        %1692 = vmatmul.f32.gmra.mxu0 %v1059
        %v1693 = vpop.f32.mrf.mxu0
        %v1694 = vadd.f32 %v1581, %v1693
        %1695 = vmatmul.f32.gmra.mxu0 %v1065
        %v1696 = vpop.f32.mrf.mxu0
        %v1697 = vadd.f32 %v1584, %v1696
        %1698 = vmatmul.f32.gmra.mxu0 %v1071
        %v1699 = vpop.f32.mrf.mxu0
        %v1700 = vadd.f32 %v1587, %v1699
        %1701 = vdwg.mxu0
        %1702 = vmatpush.msra.mxu0 %v1138
        %1703 = vmatpush.msra.mxu0 %v1137
        %1704 = vmatpush.msra.mxu0 %v1136
        %1705 = vmatpush.msra.mxu0 %v1135
        %1706 = vmatpush.msra.mxu0 %v1134
        %1707 = vmatpush.msra.mxu0 %v1133
        %1708 = vmatpush.msra.mxu0 %v1132
        %1709 = vmatpush.msra.mxu0 %v1131
        %1710 = vmatpush.msra.mxu0 %v1130
        %1711 = vmatpush.msra.mxu0 %v1129
        %1712 = vmatpush.msra.mxu0 %v1128
        %1713 = vmatpush.msra.mxu0 %v1127
        %1714 = vmatpush.msra.mxu0 %v1126
        %1715 = vmatpush.msra.mxu0 %v1125
        %1716 = vmatpush.msra.mxu0 %v1124
        %1717 = vmatpush.msra.mxu0 %v1123
        %1718 = vmatmul.f32.gmra.mxu0 %v886
        %v1719 = vpop.f32.mrf.mxu0
        %v1720 = vadd.f32 %v1607, %v1719
        %1721 = vmatmul.f32.gmra.mxu0 %v892
        %v1722 = vpop.f32.mrf.mxu0
        %v1723 = vadd.f32 %v1610, %v1722
        %1724 = vmatmul.f32.gmra.mxu0 %v898
        %v1725 = vpop.f32.mrf.mxu0
        %v1726 = vadd.f32 %v1613, %v1725
        %1727 = vmatmul.f32.gmra.mxu0 %v904
        %v1728 = vpop.f32.mrf.mxu0
        %v1729 = vadd.f32 %v1616, %v1728
        %1730 = vmatmul.f32.gmra.mxu0 %v910
        %v1731 = vpop.f32.mrf.mxu0
        %v1732 = vadd.f32 %v1619, %v1731
        %1733 = vmatmul.f32.gmra.mxu0 %v916
        %v1734 = vpop.f32.mrf.mxu0
        %v1735 = vadd.f32 %v1622, %v1734
        %1736 = vmatmul.f32.gmra.mxu0 %v922
        %v1737 = vpop.f32.mrf.mxu0
        %v1738 = vadd.f32 %v1625, %v1737
        %1739 = vmatmul.f32.gmra.mxu0 %v928
        %v1740 = vpop.f32.mrf.mxu0
        %v1741 = vadd.f32 %v1628, %v1740
        %1742 = vmatmul.f32.gmra.mxu0 %v934
        %v1743 = vpop.f32.mrf.mxu0
        %v1744 = vadd.f32 %v1631, %v1743
        %1745 = vmatmul.f32.gmra.mxu0 %v940
        %v1746 = vpop.f32.mrf.mxu0
        %v1747 = vadd.f32 %v1634, %v1746
        %1748 = vmatmul.f32.gmra.mxu0 %v946
        %v1749 = vpop.f32.mrf.mxu0
        %v1750 = vadd.f32 %v1637, %v1749
        %1751 = vmatmul.f32.gmra.mxu0 %v952
        %v1752 = vpop.f32.mrf.mxu0
        %v1753 = vadd.f32 %v1640, %v1752
        %1754 = vmatmul.f32.gmra.mxu0 %v958
        %v1755 = vpop.f32.mrf.mxu0
        %v1756 = vadd.f32 %v1643, %v1755
        %1757 = vmatmul.f32.gmra.mxu0 %v964
        %v1758 = vpop.f32.mrf.mxu0
        %v1759 = vadd.f32 %v1646, %v1758
        %1760 = vmatmul.f32.gmra.mxu0 %v970
        %v1761 = vpop.f32.mrf.mxu0
        %v1762 = vadd.f32 %v1649, %v1761
        %1763 = vmatmul.f32.gmra.mxu0 %v976
        %v1764 = vpop.f32.mrf.mxu0
        %v1765 = vadd.f32 %v1652, %v1764
        %1766 = vmatmul.f32.gmra.mxu0 %v982
        %v1767 = vpop.f32.mrf.mxu0
        %v1768 = vadd.f32 %v1655, %v1767
        %1769 = vmatmul.f32.gmra.mxu0 %v988
        %v1770 = vpop.f32.mrf.mxu0
        %v1771 = vadd.f32 %v1658, %v1770
        %1772 = vmatmul.f32.gmra.mxu0 %v994
        %v1773 = vpop.f32.mrf.mxu0
        %v1774 = vadd.f32 %v1661, %v1773
        %1775 = vmatmul.f32.gmra.mxu0 %v1000
        %v1776 = vpop.f32.mrf.mxu0
        %v1777 = vadd.f32 %v1664, %v1776
        %1778 = vmatmul.f32.gmra.mxu0 %v1006
        %v1779 = vpop.f32.mrf.mxu0
        %v1780 = vadd.f32 %v1667, %v1779
        %1781 = vmatmul.f32.gmra.mxu0 %v1012
        %v1782 = vpop.f32.mrf.mxu0
        %v1783 = vadd.f32 %v1670, %v1782
        %1784 = vmatmul.f32.gmra.mxu0 %v1018
        %v1785 = vpop.f32.mrf.mxu0
        %v1786 = vadd.f32 %v1673, %v1785
        %1787 = vmatmul.f32.gmra.mxu0 %v1024
        %v1788 = vpop.f32.mrf.mxu0
        %v1789 = vadd.f32 %v1676, %v1788
        %1790 = vmatmul.f32.gmra.mxu0 %v1030
        %v1791 = vpop.f32.mrf.mxu0
        %v1792 = vadd.f32 %v1679, %v1791
        %1793 = vmatmul.f32.gmra.mxu0 %v1036
        %v1794 = vpop.f32.mrf.mxu0
        %v1795 = vadd.f32 %v1682, %v1794
        %1796 = vmatmul.f32.gmra.mxu0 %v1042
        %v1797 = vpop.f32.mrf.mxu0
        %v1798 = vadd.f32 %v1685, %v1797
        %1799 = vmatmul.f32.gmra.mxu0 %v1048
        %v1800 = vpop.f32.mrf.mxu0
        %v1801 = vadd.f32 %v1688, %v1800
        %1802 = vmatmul.f32.gmra.mxu0 %v1054
        %v1803 = vpop.f32.mrf.mxu0
        %v1804 = vadd.f32 %v1691, %v1803
        %1805 = vmatmul.f32.gmra.mxu0 %v1060
        %v1806 = vpop.f32.mrf.mxu0
        %v1807 = vadd.f32 %v1694, %v1806
        %1808 = vmatmul.f32.gmra.mxu0 %v1066
        %v1809 = vpop.f32.mrf.mxu0
        %v1810 = vadd.f32 %v1697, %v1809
        %1811 = vmatmul.f32.gmra.mxu0 %v1072
        %v1812 = vpop.f32.mrf.mxu0
        %v1813 = vadd.f32 %v1700, %v1812
        %1814 = vdwg.mxu0
        %1815 = vmatpush.msra.mxu0 %v1154
        %1816 = vmatpush.msra.mxu0 %v1153
        %1817 = vmatpush.msra.mxu0 %v1152
        %1818 = vmatpush.msra.mxu0 %v1151
        %1819 = vmatpush.msra.mxu0 %v1150
        %1820 = vmatpush.msra.mxu0 %v1149
        %1821 = vmatpush.msra.mxu0 %v1148
        %1822 = vmatpush.msra.mxu0 %v1147
        %1823 = vmatpush.msra.mxu0 %v1146
        %1824 = vmatpush.msra.mxu0 %v1145
        %1825 = vmatpush.msra.mxu0 %v1144
        %1826 = vmatpush.msra.mxu0 %v1143
        %1827 = vmatpush.msra.mxu0 %v1142
        %1828 = vmatpush.msra.mxu0 %v1141
        %1829 = vmatpush.msra.mxu0 %v1140
        %1830 = vmatpush.msra.mxu0 %v1139
        %1831 = vmatmul.f32.gmra.mxu0 %v887
        %v1832 = vpop.f32.mrf.mxu0
        %v1833 = vadd.f32 %v1720, %v1832
        %1834 = vmatmul.f32.gmra.mxu0 %v893
        %v1835 = vpop.f32.mrf.mxu0
        %v1836 = vadd.f32 %v1723, %v1835
        %1837 = vmatmul.f32.gmra.mxu0 %v899
        %v1838 = vpop.f32.mrf.mxu0
        %v1839 = vadd.f32 %v1726, %v1838
        %1840 = vmatmul.f32.gmra.mxu0 %v905
        %v1841 = vpop.f32.mrf.mxu0
        %v1842 = vadd.f32 %v1729, %v1841
        %1843 = vmatmul.f32.gmra.mxu0 %v911
        %v1844 = vpop.f32.mrf.mxu0
        %v1845 = vadd.f32 %v1732, %v1844
        %1846 = vmatmul.f32.gmra.mxu0 %v917
        %v1847 = vpop.f32.mrf.mxu0
        %v1848 = vadd.f32 %v1735, %v1847
        %1849 = vmatmul.f32.gmra.mxu0 %v923
        %v1850 = vpop.f32.mrf.mxu0
        %v1851 = vadd.f32 %v1738, %v1850
        %1852 = vmatmul.f32.gmra.mxu0 %v929
        %v1853 = vpop.f32.mrf.mxu0
        %v1854 = vadd.f32 %v1741, %v1853
        %1855 = vmatmul.f32.gmra.mxu0 %v935
        %v1856 = vpop.f32.mrf.mxu0
        %v1857 = vadd.f32 %v1744, %v1856
        %1858 = vmatmul.f32.gmra.mxu0 %v941
        %v1859 = vpop.f32.mrf.mxu0
        %v1860 = vadd.f32 %v1747, %v1859
        %1861 = vmatmul.f32.gmra.mxu0 %v947
        %v1862 = vpop.f32.mrf.mxu0
        %v1863 = vadd.f32 %v1750, %v1862
        %1864 = vmatmul.f32.gmra.mxu0 %v953
        %v1865 = vpop.f32.mrf.mxu0
        %v1866 = vadd.f32 %v1753, %v1865
        %1867 = vmatmul.f32.gmra.mxu0 %v959
        %v1868 = vpop.f32.mrf.mxu0
        %v1869 = vadd.f32 %v1756, %v1868
        %1870 = vmatmul.f32.gmra.mxu0 %v965
        %v1871 = vpop.f32.mrf.mxu0
        %v1872 = vadd.f32 %v1759, %v1871
        %1873 = vmatmul.f32.gmra.mxu0 %v971
        %v1874 = vpop.f32.mrf.mxu0
        %v1875 = vadd.f32 %v1762, %v1874
        %1876 = vmatmul.f32.gmra.mxu0 %v977
        %v1877 = vpop.f32.mrf.mxu0
        %v1878 = vadd.f32 %v1765, %v1877
        %1879 = vmatmul.f32.gmra.mxu0 %v983
        %v1880 = vpop.f32.mrf.mxu0
        %v1881 = vadd.f32 %v1768, %v1880
        %1882 = vmatmul.f32.gmra.mxu0 %v989
        %v1883 = vpop.f32.mrf.mxu0
        %v1884 = vadd.f32 %v1771, %v1883
        %1885 = vmatmul.f32.gmra.mxu0 %v995
        %v1886 = vpop.f32.mrf.mxu0
        %v1887 = vadd.f32 %v1774, %v1886
        %1888 = vmatmul.f32.gmra.mxu0 %v1001
        %v1889 = vpop.f32.mrf.mxu0
        %v1890 = vadd.f32 %v1777, %v1889
        %1891 = vmatmul.f32.gmra.mxu0 %v1007
        %v1892 = vpop.f32.mrf.mxu0
        %v1893 = vadd.f32 %v1780, %v1892
        %1894 = vmatmul.f32.gmra.mxu0 %v1013
        %v1895 = vpop.f32.mrf.mxu0
        %v1896 = vadd.f32 %v1783, %v1895
        %1897 = vmatmul.f32.gmra.mxu0 %v1019
        %v1898 = vpop.f32.mrf.mxu0
        %v1899 = vadd.f32 %v1786, %v1898
        %1900 = vmatmul.f32.gmra.mxu0 %v1025
        %v1901 = vpop.f32.mrf.mxu0
        %v1902 = vadd.f32 %v1789, %v1901
        %1903 = vmatmul.f32.gmra.mxu0 %v1031
        %v1904 = vpop.f32.mrf.mxu0
        %v1905 = vadd.f32 %v1792, %v1904
        %1906 = vmatmul.f32.gmra.mxu0 %v1037
        %v1907 = vpop.f32.mrf.mxu0
        %v1908 = vadd.f32 %v1795, %v1907
        %1909 = vmatmul.f32.gmra.mxu0 %v1043
        %v1910 = vpop.f32.mrf.mxu0
        %v1911 = vadd.f32 %v1798, %v1910
        %1912 = vmatmul.f32.gmra.mxu0 %v1049
        %v1913 = vpop.f32.mrf.mxu0
        %v1914 = vadd.f32 %v1801, %v1913
        %1915 = vmatmul.f32.gmra.mxu0 %v1055
        %v1916 = vpop.f32.mrf.mxu0
        %v1917 = vadd.f32 %v1804, %v1916
        %1918 = vmatmul.f32.gmra.mxu0 %v1061
        %v1919 = vpop.f32.mrf.mxu0
        %v1920 = vadd.f32 %v1807, %v1919
        %1921 = vmatmul.f32.gmra.mxu0 %v1067
        %v1922 = vpop.f32.mrf.mxu0
        %v1923 = vadd.f32 %v1810, %v1922
        %1924 = vmatmul.f32.gmra.mxu0 %v1073
        %v1925 = vpop.f32.mrf.mxu0
        %v1926 = vadd.f32 %v1813, %v1925
        %1927 = vdwg.mxu0
        %1928 = vmatpush.msra.mxu0 %v1170
        %1929 = vmatpush.msra.mxu0 %v1169
        %1930 = vmatpush.msra.mxu0 %v1168
        %1931 = vmatpush.msra.mxu0 %v1167
        %1932 = vmatpush.msra.mxu0 %v1166
        %1933 = vmatpush.msra.mxu0 %v1165
        %1934 = vmatpush.msra.mxu0 %v1164
        %1935 = vmatpush.msra.mxu0 %v1163
        %1936 = vmatpush.msra.mxu0 %v1162
        %1937 = vmatpush.msra.mxu0 %v1161
        %1938 = vmatpush.msra.mxu0 %v1160
        %1939 = vmatpush.msra.mxu0 %v1159
        %1940 = vmatpush.msra.mxu0 %v1158
        %1941 = vmatpush.msra.mxu0 %v1157
        %1942 = vmatpush.msra.mxu0 %v1156
        %1943 = vmatpush.msra.mxu0 %v1155
        %1944 = vmatmul.f32.gmra.mxu0 %v888
        %v1945 = vpop.f32.mrf.mxu0
        %v1946 = vadd.f32 %v1833, %v1945
        %1947 = vmatmul.f32.gmra.mxu0 %v894
        %v1948 = vpop.f32.mrf.mxu0
        %v1949 = vadd.f32 %v1836, %v1948
        %1950 = vmatmul.f32.gmra.mxu0 %v900
        %v1951 = vpop.f32.mrf.mxu0
        %v1952 = vadd.f32 %v1839, %v1951
        %1953 = vmatmul.f32.gmra.mxu0 %v906
        %v1954 = vpop.f32.mrf.mxu0
        %v1955 = vadd.f32 %v1842, %v1954
        %1956 = vmatmul.f32.gmra.mxu0 %v912
        %v1957 = vpop.f32.mrf.mxu0
        %v1958 = vadd.f32 %v1845, %v1957
        %1959 = vmatmul.f32.gmra.mxu0 %v918
        %v1960 = vpop.f32.mrf.mxu0
        %v1961 = vadd.f32 %v1848, %v1960
        %1962 = vmatmul.f32.gmra.mxu0 %v924
        %v1963 = vpop.f32.mrf.mxu0
        %v1964 = vadd.f32 %v1851, %v1963
        %1965 = vmatmul.f32.gmra.mxu0 %v930
        %v1966 = vpop.f32.mrf.mxu0
        %v1967 = vadd.f32 %v1854, %v1966
        %1968 = vmatmul.f32.gmra.mxu0 %v936
        %v1969 = vpop.f32.mrf.mxu0
        %v1970 = vadd.f32 %v1857, %v1969
        %1971 = vmatmul.f32.gmra.mxu0 %v942
        %v1972 = vpop.f32.mrf.mxu0
        %v1973 = vadd.f32 %v1860, %v1972
        %1974 = vmatmul.f32.gmra.mxu0 %v948
        %v1975 = vpop.f32.mrf.mxu0
        %v1976 = vadd.f32 %v1863, %v1975
        %1977 = vmatmul.f32.gmra.mxu0 %v954
        %v1978 = vpop.f32.mrf.mxu0
        %v1979 = vadd.f32 %v1866, %v1978
        %1980 = vmatmul.f32.gmra.mxu0 %v960
        %v1981 = vpop.f32.mrf.mxu0
        %v1982 = vadd.f32 %v1869, %v1981
        %1983 = vmatmul.f32.gmra.mxu0 %v966
        %v1984 = vpop.f32.mrf.mxu0
        %v1985 = vadd.f32 %v1872, %v1984
        %1986 = vmatmul.f32.gmra.mxu0 %v972
        %v1987 = vpop.f32.mrf.mxu0
        %v1988 = vadd.f32 %v1875, %v1987
        %1989 = vmatmul.f32.gmra.mxu0 %v978
        %v1990 = vpop.f32.mrf.mxu0
        %v1991 = vadd.f32 %v1878, %v1990
        %1992 = vmatmul.f32.gmra.mxu0 %v984
        %v1993 = vpop.f32.mrf.mxu0
        %v1994 = vadd.f32 %v1881, %v1993
        %1995 = vmatmul.f32.gmra.mxu0 %v990
        %v1996 = vpop.f32.mrf.mxu0
        %v1997 = vadd.f32 %v1884, %v1996
        %1998 = vmatmul.f32.gmra.mxu0 %v996
        %v1999 = vpop.f32.mrf.mxu0
        %v2000 = vadd.f32 %v1887, %v1999
        %2001 = vmatmul.f32.gmra.mxu0 %v1002
        %v2002 = vpop.f32.mrf.mxu0
        %v2003 = vadd.f32 %v1890, %v2002
        %2004 = vmatmul.f32.gmra.mxu0 %v1008
        %v2005 = vpop.f32.mrf.mxu0
        %v2006 = vadd.f32 %v1893, %v2005
        %2007 = vmatmul.f32.gmra.mxu0 %v1014
        %v2008 = vpop.f32.mrf.mxu0
        %v2009 = vadd.f32 %v1896, %v2008
        %2010 = vmatmul.f32.gmra.mxu0 %v1020
        %v2011 = vpop.f32.mrf.mxu0
        %v2012 = vadd.f32 %v1899, %v2011
        %2013 = vmatmul.f32.gmra.mxu0 %v1026
        %v2014 = vpop.f32.mrf.mxu0
        %v2015 = vadd.f32 %v1902, %v2014
        %2016 = vmatmul.f32.gmra.mxu0 %v1032
        %v2017 = vpop.f32.mrf.mxu0
        %v2018 = vadd.f32 %v1905, %v2017
        %2019 = vmatmul.f32.gmra.mxu0 %v1038
        %v2020 = vpop.f32.mrf.mxu0
        %v2021 = vadd.f32 %v1908, %v2020
        %2022 = vmatmul.f32.gmra.mxu0 %v1044
        %v2023 = vpop.f32.mrf.mxu0
        %v2024 = vadd.f32 %v1911, %v2023
        %2025 = vmatmul.f32.gmra.mxu0 %v1050
        %v2026 = vpop.f32.mrf.mxu0
        %v2027 = vadd.f32 %v1914, %v2026
        %2028 = vmatmul.f32.gmra.mxu0 %v1056
        %v2029 = vpop.f32.mrf.mxu0
        %v2030 = vadd.f32 %v1917, %v2029
        %2031 = vmatmul.f32.gmra.mxu0 %v1062
        %v2032 = vpop.f32.mrf.mxu0
        %v2033 = vadd.f32 %v1920, %v2032
        %2034 = vmatmul.f32.gmra.mxu0 %v1068
        %v2035 = vpop.f32.mrf.mxu0
        %v2036 = vadd.f32 %v1923, %v2035
        %2037 = vmatmul.f32.gmra.mxu0 %v1074
        %v2038 = vpop.f32.mrf.mxu0
        %v2039 = vadd.f32 %v1926, %v2038
        %2040 = vdwg.mxu0
        %2041 = vmax.xlane.f32.xlu0 %v1946
        %v2042 = vpop.xlane.xlu0 %2041
        %2043 = vmax.xlane.f32.xlu0 %v1949
        %v2044 = vpop.xlane.xlu0 %2043
        %2045 = vmax.xlane.f32.xlu0 %v1952
        %v2046 = vpop.xlane.xlu0 %2045
        %2047 = vmax.xlane.f32.xlu0 %v1955
        %v2048 = vpop.xlane.xlu0 %2047
        %2049 = vmax.xlane.f32.xlu0 %v1958
        %v2050 = vpop.xlane.xlu0 %2049
        %2051 = vmax.xlane.f32.xlu0 %v1961
        %v2052 = vpop.xlane.xlu0 %2051
        %2053 = vmax.xlane.f32.xlu0 %v1964
        %v2054 = vpop.xlane.xlu0 %2053
        %2055 = vmax.xlane.f32.xlu0 %v1967
        %v2056 = vpop.xlane.xlu0 %2055
        %2057 = vmax.xlane.f32.xlu0 %v1970
        %v2058 = vpop.xlane.xlu0 %2057
        %2059 = vmax.xlane.f32.xlu0 %v1973
        %v2060 = vpop.xlane.xlu0 %2059
        %2061 = vmax.xlane.f32.xlu0 %v1976
        %v2062 = vpop.xlane.xlu0 %2061
        %2063 = vmax.xlane.f32.xlu0 %v1979
        %v2064 = vpop.xlane.xlu0 %2063
        %2065 = vmax.xlane.f32.xlu0 %v1982
        %v2066 = vpop.xlane.xlu0 %2065
        %2067 = vmax.xlane.f32.xlu0 %v1985
        %v2068 = vpop.xlane.xlu0 %2067
        %2069 = vmax.xlane.f32.xlu0 %v1988
        %v2070 = vpop.xlane.xlu0 %2069
        %2071 = vmax.xlane.f32.xlu0 %v1991
        %v2072 = vpop.xlane.xlu0 %2071
        %2073 = vmax.xlane.f32.xlu0 %v1994
        %v2074 = vpop.xlane.xlu0 %2073
        %2075 = vmax.xlane.f32.xlu0 %v1997
        %v2076 = vpop.xlane.xlu0 %2075
        %2077 = vmax.xlane.f32.xlu0 %v2000
        %v2078 = vpop.xlane.xlu0 %2077
        %2079 = vmax.xlane.f32.xlu0 %v2003
        %v2080 = vpop.xlane.xlu0 %2079
        %2081 = vmax.xlane.f32.xlu0 %v2006
        %v2082 = vpop.xlane.xlu0 %2081
        %2083 = vmax.xlane.f32.xlu0 %v2009
        %v2084 = vpop.xlane.xlu0 %2083
        %2085 = vmax.xlane.f32.xlu0 %v2012
        %v2086 = vpop.xlane.xlu0 %2085
        %2087 = vmax.xlane.f32.xlu0 %v2015
        %v2088 = vpop.xlane.xlu0 %2087
        %2089 = vmax.xlane.f32.xlu0 %v2018
        %v2090 = vpop.xlane.xlu0 %2089
        %2091 = vmax.xlane.f32.xlu0 %v2021
        %v2092 = vpop.xlane.xlu0 %2091
        %2093 = vmax.xlane.f32.xlu0 %v2024
        %v2094 = vpop.xlane.xlu0 %2093
        %2095 = vmax.xlane.f32.xlu0 %v2027
        %v2096 = vpop.xlane.xlu0 %2095
        %2097 = vmax.xlane.f32.xlu0 %v2030
        %v2098 = vpop.xlane.xlu0 %2097
        %2099 = vmax.xlane.f32.xlu0 %v2033
        %v2100 = vpop.xlane.xlu0 %2099
        %2101 = vmax.xlane.f32.xlu0 %v2036
        %v2102 = vpop.xlane.xlu0 %2101
        %2103 = vmax.xlane.f32.xlu0 %v2039
        %v2104 = vpop.xlane.xlu0 %2103
        %v2105 = vsub.f32 %v1946, %v2042
        %v2106 = vsub.f32 %v1949, %v2044
        %v2107 = vsub.f32 %v1952, %v2046
        %v2108 = vsub.f32 %v1955, %v2048
        %v2109 = vsub.f32 %v1958, %v2050
        %v2110 = vsub.f32 %v1961, %v2052
        %v2111 = vsub.f32 %v1964, %v2054
        %v2112 = vsub.f32 %v1967, %v2056
        %v2113 = vsub.f32 %v1970, %v2058
        %v2114 = vsub.f32 %v1973, %v2060
        %v2115 = vsub.f32 %v1976, %v2062
        %v2116 = vsub.f32 %v1979, %v2064
        %v2117 = vsub.f32 %v1982, %v2066
        %v2118 = vsub.f32 %v1985, %v2068
        %v2119 = vsub.f32 %v1988, %v2070
        %v2120 = vsub.f32 %v1991, %v2072
        %v2121 = vsub.f32 %v1994, %v2074
        %v2122 = vsub.f32 %v1997, %v2076
        %v2123 = vsub.f32 %v2000, %v2078
        %v2124 = vsub.f32 %v2003, %v2080
        %v2125 = vsub.f32 %v2006, %v2082
        %v2126 = vsub.f32 %v2009, %v2084
        %v2127 = vsub.f32 %v2012, %v2086
        %v2128 = vsub.f32 %v2015, %v2088
        %v2129 = vsub.f32 %v2018, %v2090
        %v2130 = vsub.f32 %v2021, %v2092
        %v2131 = vsub.f32 %v2024, %v2094
        %v2132 = vsub.f32 %v2027, %v2096
        %v2133 = vsub.f32 %v2030, %v2098
        %v2134 = vsub.f32 %v2033, %v2100
        %v2135 = vsub.f32 %v2036, %v2102
        %v2136 = vsub.f32 %v2039, %v2104
        %v2137 = vmul.f32 %v2105, 1.442695
        %v2138 = vpow.pop %v2137
        %v2139 = vmul.f32 %v2106, 1.442695
        %v2140 = vpow.pop %v2139
        %v2141 = vmul.f32 %v2107, 1.442695
        %v2142 = vpow.pop %v2141
        %v2143 = vmul.f32 %v2108, 1.442695
        %v2144 = vpow.pop %v2143
        %v2145 = vmul.f32 %v2109, 1.442695
        %v2146 = vpow.pop %v2145
        %v2147 = vmul.f32 %v2110, 1.442695
        %v2148 = vpow.pop %v2147
        %v2149 = vmul.f32 %v2111, 1.442695
        %v2150 = vpow.pop %v2149
        %v2151 = vmul.f32 %v2112, 1.442695
        %v2152 = vpow.pop %v2151
        %v2153 = vmul.f32 %v2113, 1.442695
        %v2154 = vpow.pop %v2153
        %v2155 = vmul.f32 %v2114, 1.442695
        %v2156 = vpow.pop %v2155
        %v2157 = vmul.f32 %v2115, 1.442695
        %v2158 = vpow.pop %v2157
        %v2159 = vmul.f32 %v2116, 1.442695
        %v2160 = vpow.pop %v2159
        %v2161 = vmul.f32 %v2117, 1.442695
        %v2162 = vpow.pop %v2161
        %v2163 = vmul.f32 %v2118, 1.442695
        %v2164 = vpow.pop %v2163
        %v2165 = vmul.f32 %v2119, 1.442695
        %v2166 = vpow.pop %v2165
        %v2167 = vmul.f32 %v2120, 1.442695
        %v2168 = vpow.pop %v2167
        %v2169 = vmul.f32 %v2121, 1.442695
        %v2170 = vpow.pop %v2169
        %v2171 = vmul.f32 %v2122, 1.442695
        %v2172 = vpow.pop %v2171
        %v2173 = vmul.f32 %v2123, 1.442695
        %v2174 = vpow.pop %v2173
        %v2175 = vmul.f32 %v2124, 1.442695
        %v2176 = vpow.pop %v2175
        %v2177 = vmul.f32 %v2125, 1.442695
        %v2178 = vpow.pop %v2177
        %v2179 = vmul.f32 %v2126, 1.442695
        %v2180 = vpow.pop %v2179
        %v2181 = vmul.f32 %v2127, 1.442695
        %v2182 = vpow.pop %v2181
        %v2183 = vmul.f32 %v2128, 1.442695
        %v2184 = vpow.pop %v2183
        %v2185 = vmul.f32 %v2129, 1.442695
        %v2186 = vpow.pop %v2185
        %v2187 = vmul.f32 %v2130, 1.442695
        %v2188 = vpow.pop %v2187
        %v2189 = vmul.f32 %v2131, 1.442695
        %v2190 = vpow.pop %v2189
        %v2191 = vmul.f32 %v2132, 1.442695
        %v2192 = vpow.pop %v2191
        %v2193 = vmul.f32 %v2133, 1.442695
        %v2194 = vpow.pop %v2193
        %v2195 = vmul.f32 %v2134, 1.442695
        %v2196 = vpow.pop %v2195
        %v2197 = vmul.f32 %v2135, 1.442695
        %v2198 = vpow.pop %v2197
        %v2199 = vmul.f32 %v2136, 1.442695
        %v2200 = vpow.pop %v2199
        %2201 = vadd.xlane.f32.xlu0 %v2138
        %v2202 = vpop.xlane.xlu0 %2201
        %2203 = vadd.xlane.f32.xlu0 %v2140
        %v2204 = vpop.xlane.xlu0 %2203
        %2205 = vadd.xlane.f32.xlu0 %v2142
        %v2206 = vpop.xlane.xlu0 %2205
        %2207 = vadd.xlane.f32.xlu0 %v2144
        %v2208 = vpop.xlane.xlu0 %2207
        %2209 = vadd.xlane.f32.xlu0 %v2146
        %v2210 = vpop.xlane.xlu0 %2209
        %2211 = vadd.xlane.f32.xlu0 %v2148
        %v2212 = vpop.xlane.xlu0 %2211
        %2213 = vadd.xlane.f32.xlu0 %v2150
        %v2214 = vpop.xlane.xlu0 %2213
        %2215 = vadd.xlane.f32.xlu0 %v2152
        %v2216 = vpop.xlane.xlu0 %2215
        %2217 = vadd.xlane.f32.xlu0 %v2154
        %v2218 = vpop.xlane.xlu0 %2217
        %2219 = vadd.xlane.f32.xlu0 %v2156
        %v2220 = vpop.xlane.xlu0 %2219
        %2221 = vadd.xlane.f32.xlu0 %v2158
        %v2222 = vpop.xlane.xlu0 %2221
        %2223 = vadd.xlane.f32.xlu0 %v2160
        %v2224 = vpop.xlane.xlu0 %2223
        %2225 = vadd.xlane.f32.xlu0 %v2162
        %v2226 = vpop.xlane.xlu0 %2225
        %2227 = vadd.xlane.f32.xlu0 %v2164
        %v2228 = vpop.xlane.xlu0 %2227
        %2229 = vadd.xlane.f32.xlu0 %v2166
        %v2230 = vpop.xlane.xlu0 %2229
        %2231 = vadd.xlane.f32.xlu0 %v2168
        %v2232 = vpop.xlane.xlu0 %2231
        %2233 = vadd.xlane.f32.xlu0 %v2170
        %v2234 = vpop.xlane.xlu0 %2233
        %2235 = vadd.xlane.f32.xlu0 %v2172
        %v2236 = vpop.xlane.xlu0 %2235
        %2237 = vadd.xlane.f32.xlu0 %v2174
        %v2238 = vpop.xlane.xlu0 %2237
        %2239 = vadd.xlane.f32.xlu0 %v2176
        %v2240 = vpop.xlane.xlu0 %2239
        %2241 = vadd.xlane.f32.xlu0 %v2178
        %v2242 = vpop.xlane.xlu0 %2241
        %2243 = vadd.xlane.f32.xlu0 %v2180
        %v2244 = vpop.xlane.xlu0 %2243
        %2245 = vadd.xlane.f32.xlu0 %v2182
        %v2246 = vpop.xlane.xlu0 %2245
        %2247 = vadd.xlane.f32.xlu0 %v2184
        %v2248 = vpop.xlane.xlu0 %2247
        %2249 = vadd.xlane.f32.xlu0 %v2186
        %v2250 = vpop.xlane.xlu0 %2249
        %2251 = vadd.xlane.f32.xlu0 %v2188
        %v2252 = vpop.xlane.xlu0 %2251
        %2253 = vadd.xlane.f32.xlu0 %v2190
        %v2254 = vpop.xlane.xlu0 %2253
        %2255 = vadd.xlane.f32.xlu0 %v2192
        %v2256 = vpop.xlane.xlu0 %2255
        %2257 = vadd.xlane.f32.xlu0 %v2194
        %v2258 = vpop.xlane.xlu0 %2257
        %2259 = vadd.xlane.f32.xlu0 %v2196
        %v2260 = vpop.xlane.xlu0 %2259
        %2261 = vadd.xlane.f32.xlu0 %v2198
        %v2262 = vpop.xlane.xlu0 %2261
        %2263 = vadd.xlane.f32.xlu0 %v2200
        %v2264 = vpop.xlane.xlu0 %2263
        %v2265 = vrcp.pop %v2202
        %v2266 = vrcp.pop %v2204
        %v2267 = vrcp.pop %v2206
        %v2268 = vrcp.pop %v2208
        %v2269 = vrcp.pop %v2210
        %v2270 = vrcp.pop %v2212
        %v2271 = vrcp.pop %v2214
        %v2272 = vrcp.pop %v2216
        %v2273 = vrcp.pop %v2218
        %v2274 = vrcp.pop %v2220
        %v2275 = vrcp.pop %v2222
        %v2276 = vrcp.pop %v2224
        %v2277 = vrcp.pop %v2226
        %v2278 = vrcp.pop %v2228
        %v2279 = vrcp.pop %v2230
        %v2280 = vrcp.pop %v2232
        %v2281 = vrcp.pop %v2234
        %v2282 = vrcp.pop %v2236
        %v2283 = vrcp.pop %v2238
        %v2284 = vrcp.pop %v2240
        %v2285 = vrcp.pop %v2242
        %v2286 = vrcp.pop %v2244
        %v2287 = vrcp.pop %v2246
        %v2288 = vrcp.pop %v2248
        %v2289 = vrcp.pop %v2250
        %v2290 = vrcp.pop %v2252
        %v2291 = vrcp.pop %v2254
        %v2292 = vrcp.pop %v2256
        %v2293 = vrcp.pop %v2258
        %v2294 = vrcp.pop %v2260
        %v2295 = vrcp.pop %v2262
        %v2296 = vrcp.pop %v2264
        %v2297 = vmul.f32 %v2138, %v2265
        %v2298 = vmul.f32 %v2140, %v2266
        %v2299 = vmul.f32 %v2142, %v2267
        %v2300 = vmul.f32 %v2144, %v2268
        %v2301 = vmul.f32 %v2146, %v2269
        %v2302 = vmul.f32 %v2148, %v2270
        %v2303 = vmul.f32 %v2150, %v2271
        %v2304 = vmul.f32 %v2152, %v2272
        %v2305 = vmul.f32 %v2154, %v2273
        %v2306 = vmul.f32 %v2156, %v2274
        %v2307 = vmul.f32 %v2158, %v2275
        %v2308 = vmul.f32 %v2160, %v2276
        %v2309 = vmul.f32 %v2162, %v2277
        %v2310 = vmul.f32 %v2164, %v2278
        %v2311 = vmul.f32 %v2166, %v2279
        %v2312 = vmul.f32 %v2168, %v2280
        %v2313 = vmul.f32 %v2170, %v2281
        %v2314 = vmul.f32 %v2172, %v2282
        %v2315 = vmul.f32 %v2174, %v2283
        %v2316 = vmul.f32 %v2176, %v2284
        %v2317 = vmul.f32 %v2178, %v2285
        %v2318 = vmul.f32 %v2180, %v2286
        %v2319 = vmul.f32 %v2182, %v2287
        %v2320 = vmul.f32 %v2184, %v2288
        %v2321 = vmul.f32 %v2186, %v2289
        %v2322 = vmul.f32 %v2188, %v2290
        %v2323 = vmul.f32 %v2190, %v2291
        %v2324 = vmul.f32 %v2192, %v2292
        %v2325 = vmul.f32 %v2194, %v2293
        %v2326 = vmul.f32 %v2196, %v2294
        %v2327 = vmul.f32 %v2198, %v2295
        %v2328 = vmul.f32 %v2200, %v2296
        %v2329 = vld [vmem:[%s685] sm:$0xff]
        %v2330 = vld [vmem:[%s685 + $0x8] sm:$0xff]
        %v2331 = vld [vmem:[%s685 + $0x10] sm:$0xff]
        %v2332 = vld [vmem:[%s685 + $0x18] sm:$0xff]
        %v2333 = vld [vmem:[%s685 + $0x20] sm:$0xff]
        %v2334 = vld [vmem:[%s685 + $0x28] sm:$0xff]
        %v2335 = vld [vmem:[%s685 + $0x30] sm:$0xff]
        %v2336 = vld [vmem:[%s685 + $0x38] sm:$0xff]
        %v2337 = vld [vmem:[%s685 + $0x40] sm:$0xff]
        %v2338 = vld [vmem:[%s685 + $0x48] sm:$0xff]
        %v2339 = vld [vmem:[%s685 + $0x50] sm:$0xff]
        %v2340 = vld [vmem:[%s685 + $0x58] sm:$0xff]
        %v2341 = vld [vmem:[%s685 + $0x60] sm:$0xff]
        %v2342 = vld [vmem:[%s685 + $0x68] sm:$0xff]
        %v2343 = vld [vmem:[%s685 + $0x70] sm:$0xff]
        %v2344 = vld [vmem:[%s685 + $0x78] sm:$0xff]
        %2345 = vmatpush.msra.mxu0 %v2344
        %2346 = vmatpush.msra.mxu0 %v2343
        %2347 = vmatpush.msra.mxu0 %v2342
        %2348 = vmatpush.msra.mxu0 %v2341
        %2349 = vmatpush.msra.mxu0 %v2340
        %2350 = vmatpush.msra.mxu0 %v2339
        %2351 = vmatpush.msra.mxu0 %v2338
        %2352 = vmatpush.msra.mxu0 %v2337
        %2353 = vmatpush.msra.mxu0 %v2336
        %2354 = vmatpush.msra.mxu0 %v2335
        %2355 = vmatpush.msra.mxu0 %v2334
        %2356 = vmatpush.msra.mxu0 %v2333
        %2357 = vmatpush.msra.mxu0 %v2332
        %2358 = vmatpush.msra.mxu0 %v2331
        %2359 = vmatpush.msra.mxu0 %v2330
        %2360 = vmatpush.msra.mxu0 %v2329
        %2361 = vmatmul.f32.gmra.mxu0 %v2297
        %v2362 = vpop.f32.mrf.mxu0
        %v2363 = vadd.f32 0.0, %v2362
        %2364 = vmatmul.f32.gmra.mxu0 %v2298
        %v2365 = vpop.f32.mrf.mxu0
        %v2366 = vadd.f32 0.0, %v2365
        %2367 = vmatmul.f32.gmra.mxu0 %v2299
        %v2368 = vpop.f32.mrf.mxu0
        %v2369 = vadd.f32 0.0, %v2368
        %2370 = vmatmul.f32.gmra.mxu0 %v2300
        %v2371 = vpop.f32.mrf.mxu0
        %v2372 = vadd.f32 0.0, %v2371
        %2373 = vmatmul.f32.gmra.mxu0 %v2301
        %v2374 = vpop.f32.mrf.mxu0
        %v2375 = vadd.f32 0.0, %v2374
        %2376 = vmatmul.f32.gmra.mxu0 %v2302
        %v2377 = vpop.f32.mrf.mxu0
        %v2378 = vadd.f32 0.0, %v2377
        %2379 = vmatmul.f32.gmra.mxu0 %v2303
        %v2380 = vpop.f32.mrf.mxu0
        %v2381 = vadd.f32 0.0, %v2380
        %2382 = vmatmul.f32.gmra.mxu0 %v2304
        %v2383 = vpop.f32.mrf.mxu0
        %v2384 = vadd.f32 0.0, %v2383
        %2385 = vdwg.mxu0
        %v2386 = vld [vmem:[%s3] sm:$0xff]
        %v2387 = vld [vmem:[%s3 + $0x8] sm:$0xff]
        %v2388 = vld [vmem:[%s3 + $0x10] sm:$0xff]
        %v2389 = vld [vmem:[%s3 + $0x18] sm:$0xff]
        %s2390 = scalar_lea.vmem %s685, 128
        %v2391 = vld [vmem:[%s2390] sm:$0xff]
        %v2392 = vld [vmem:[%s2390 + $0x8] sm:$0xff]
        %v2393 = vld [vmem:[%s2390 + $0x10] sm:$0xff]
        %v2394 = vld [vmem:[%s2390 + $0x18] sm:$0xff]
        %v2395 = vld [vmem:[%s2390 + $0x20] sm:$0xff]
        %v2396 = vld [vmem:[%s2390 + $0x28] sm:$0xff]
        %v2397 = vld [vmem:[%s2390 + $0x30] sm:$0xff]
        %v2398 = vld [vmem:[%s2390 + $0x38] sm:$0xff]
        %v2399 = vld [vmem:[%s2390 + $0x40] sm:$0xff]
        %v2400 = vld [vmem:[%s2390 + $0x48] sm:$0xff]
        %v2401 = vld [vmem:[%s2390 + $0x50] sm:$0xff]
        %v2402 = vld [vmem:[%s2390 + $0x58] sm:$0xff]
        %v2403 = vld [vmem:[%s2390 + $0x60] sm:$0xff]
        %v2404 = vld [vmem:[%s2390 + $0x68] sm:$0xff]
        %v2405 = vld [vmem:[%s2390 + $0x70] sm:$0xff]
        %v2406 = vld [vmem:[%s2390 + $0x78] sm:$0xff]
        %2407 = vmatpush.msra.mxu0 %v2406
        %2408 = vmatpush.msra.mxu0 %v2405
        %2409 = vmatpush.msra.mxu0 %v2404
        %2410 = vmatpush.msra.mxu0 %v2403
        %2411 = vmatpush.msra.mxu0 %v2402
        %2412 = vmatpush.msra.mxu0 %v2401
        %2413 = vmatpush.msra.mxu0 %v2400
        %2414 = vmatpush.msra.mxu0 %v2399
        %2415 = vmatpush.msra.mxu0 %v2398
        %2416 = vmatpush.msra.mxu0 %v2397
        %2417 = vmatpush.msra.mxu0 %v2396
        %2418 = vmatpush.msra.mxu0 %v2395
        %2419 = vmatpush.msra.mxu0 %v2394
        %2420 = vmatpush.msra.mxu0 %v2393
        %2421 = vmatpush.msra.mxu0 %v2392
        %2422 = vmatpush.msra.mxu0 %v2391
        %2423 = vmatmul.f32.gmra.mxu0 %v2305
        %v2424 = vpop.f32.mrf.mxu0
        %v2425 = vadd.f32 0.0, %v2424
        %2426 = vmatmul.f32.gmra.mxu0 %v2306
        %v2427 = vpop.f32.mrf.mxu0
        %v2428 = vadd.f32 0.0, %v2427
        %2429 = vmatmul.f32.gmra.mxu0 %v2307
        %v2430 = vpop.f32.mrf.mxu0
        %v2431 = vadd.f32 0.0, %v2430
        %2432 = vmatmul.f32.gmra.mxu0 %v2308
        %v2433 = vpop.f32.mrf.mxu0
        %v2434 = vadd.f32 0.0, %v2433
        %2435 = vmatmul.f32.gmra.mxu0 %v2309
        %v2436 = vpop.f32.mrf.mxu0
        %v2437 = vadd.f32 0.0, %v2436
        %2438 = vmatmul.f32.gmra.mxu0 %v2310
        %v2439 = vpop.f32.mrf.mxu0
        %v2440 = vadd.f32 0.0, %v2439
        %2441 = vmatmul.f32.gmra.mxu0 %v2311
        %v2442 = vpop.f32.mrf.mxu0
        %v2443 = vadd.f32 0.0, %v2442
        %2444 = vmatmul.f32.gmra.mxu0 %v2312
        %v2445 = vpop.f32.mrf.mxu0
        %v2446 = vadd.f32 0.0, %v2445
        %2447 = vdwg.mxu0
        %v2448 = vld [vmem:[%s3 + $0x20] sm:$0xff]
        %v2449 = vld [vmem:[%s3 + $0x28] sm:$0xff]
        %v2450 = vld [vmem:[%s3 + $0x30] sm:$0xff]
        %v2451 = vld [vmem:[%s3 + $0x38] sm:$0xff]
        %vm2452 = vcmask 261120
        %v2454 = vsel %vm2452, %v2425, 0
        %v2457 = vsel %vm2452, %v2428, 0
        %v2460 = vsel %vm2452, %v2431, 0
        %v2463 = vsel %vm2452, %v2434, 0
        %v2466 = vsel %vm2452, %v2437, 0
        %v2469 = vsel %vm2452, %v2440, 0
        %v2472 = vsel %vm2452, %v2443, 0
        %v2475 = vsel %vm2452, %v2446, 0
        %2477 = vmatpush.msra.mxu0 0.0
        %2478 = vmatpush.msra.mxu0 0.0
        %2479 = vmatpush.msra.mxu0 0.0
        %2480 = vmatpush.msra.mxu0 0.0
        %2481 = vmatpush.msra.mxu0 0.0
        %2482 = vmatpush.msra.mxu0 0.0
        %2483 = vmatpush.msra.mxu0 0.0
        %2484 = vmatpush.msra.mxu0 0.0
        %2485 = vmatpush.msra.mxu0 0.0
        %2486 = vmatpush.msra.mxu0 0.0
        %2487 = vmatpush.msra.mxu0 0.0
        %2488 = vmatpush.msra.mxu0 0.0
        %2489 = vmatpush.msra.mxu0 %v2451
        %2490 = vmatpush.msra.mxu0 %v2450
        %2491 = vmatpush.msra.mxu0 %v2449
        %2492 = vmatpush.msra.mxu0 %v2448
        %2493 = vmatmul.f32.gmra.mxu0 %v2454
        %v2494 = vpop.f32.mrf.mxu0
        %v2495 = vadd.f32 0.0, %v2494
        %2496 = vmatmul.f32.gmra.mxu0 %v2457
        %v2497 = vpop.f32.mrf.mxu0
        %v2498 = vadd.f32 0.0, %v2497
        %2499 = vmatmul.f32.gmra.mxu0 %v2460
        %v2500 = vpop.f32.mrf.mxu0
        %v2501 = vadd.f32 0.0, %v2500
        %2502 = vmatmul.f32.gmra.mxu0 %v2463
        %v2503 = vpop.f32.mrf.mxu0
        %v2504 = vadd.f32 0.0, %v2503
        %2505 = vmatmul.f32.gmra.mxu0 %v2466
        %v2506 = vpop.f32.mrf.mxu0
        %v2507 = vadd.f32 0.0, %v2506
        %2508 = vmatmul.f32.gmra.mxu0 %v2469
        %v2509 = vpop.f32.mrf.mxu0
        %v2510 = vadd.f32 0.0, %v2509
        %2511 = vmatmul.f32.gmra.mxu0 %v2472
        %v2512 = vpop.f32.mrf.mxu0
        %v2513 = vadd.f32 0.0, %v2512
        %2514 = vmatmul.f32.gmra.mxu0 %v2475
        %v2515 = vpop.f32.mrf.mxu0
        %v2516 = vadd.f32 0.0, %v2515
        %2517 = vdwg.mxu0
        %v2519 = vsel %vm2452, %v2363, 0
        %v2522 = vsel %vm2452, %v2366, 0
        %v2525 = vsel %vm2452, %v2369, 0
        %v2528 = vsel %vm2452, %v2372, 0
        %v2531 = vsel %vm2452, %v2375, 0
        %v2534 = vsel %vm2452, %v2378, 0
        %v2537 = vsel %vm2452, %v2381, 0
        %v2540 = vsel %vm2452, %v2384, 0
        %2542 = vmatpush.msra.mxu0 0.0
        %2543 = vmatpush.msra.mxu0 0.0
        %2544 = vmatpush.msra.mxu0 0.0
        %2545 = vmatpush.msra.mxu0 0.0
        %2546 = vmatpush.msra.mxu0 0.0
        %2547 = vmatpush.msra.mxu0 0.0
        %2548 = vmatpush.msra.mxu0 0.0
        %2549 = vmatpush.msra.mxu0 0.0
        %2550 = vmatpush.msra.mxu0 0.0
        %2551 = vmatpush.msra.mxu0 0.0
        %2552 = vmatpush.msra.mxu0 0.0
        %2553 = vmatpush.msra.mxu0 0.0
        %2554 = vmatpush.msra.mxu0 %v2389
        %2555 = vmatpush.msra.mxu0 %v2388
        %2556 = vmatpush.msra.mxu0 %v2387
        %2557 = vmatpush.msra.mxu0 %v2386
        %2558 = vmatmul.f32.gmra.mxu0 %v2519
        %v2559 = vpop.f32.mrf.mxu0
        %v2560 = vadd.f32 %v2495, %v2559
        %2561 = vmatmul.f32.gmra.mxu0 %v2522
        %v2562 = vpop.f32.mrf.mxu0
        %v2563 = vadd.f32 %v2498, %v2562
        %2564 = vmatmul.f32.gmra.mxu0 %v2525
        %v2565 = vpop.f32.mrf.mxu0
        %v2566 = vadd.f32 %v2501, %v2565
        %2567 = vmatmul.f32.gmra.mxu0 %v2528
        %v2568 = vpop.f32.mrf.mxu0
        %v2569 = vadd.f32 %v2504, %v2568
        %2570 = vmatmul.f32.gmra.mxu0 %v2531
        %v2571 = vpop.f32.mrf.mxu0
        %v2572 = vadd.f32 %v2507, %v2571
        %2573 = vmatmul.f32.gmra.mxu0 %v2534
        %v2574 = vpop.f32.mrf.mxu0
        %v2575 = vadd.f32 %v2510, %v2574
        %2576 = vmatmul.f32.gmra.mxu0 %v2537
        %v2577 = vpop.f32.mrf.mxu0
        %v2578 = vadd.f32 %v2513, %v2577
        %2579 = vmatmul.f32.gmra.mxu0 %v2540
        %v2580 = vpop.f32.mrf.mxu0
        %v2581 = vadd.f32 %v2516, %v2580
        %2582 = vdwg.mxu0
        %s2583 = scalar_lea.vmem %s685, 256
        %v2584 = vld [vmem:[%s2583] sm:$0xff]
        %v2585 = vld [vmem:[%s2583 + $0x8] sm:$0xff]
        %v2586 = vld [vmem:[%s2583 + $0x10] sm:$0xff]
        %v2587 = vld [vmem:[%s2583 + $0x18] sm:$0xff]
        %v2588 = vld [vmem:[%s2583 + $0x20] sm:$0xff]
        %v2589 = vld [vmem:[%s2583 + $0x28] sm:$0xff]
        %v2590 = vld [vmem:[%s2583 + $0x30] sm:$0xff]
        %v2591 = vld [vmem:[%s2583 + $0x38] sm:$0xff]
        %v2592 = vld [vmem:[%s2583 + $0x40] sm:$0xff]
        %v2593 = vld [vmem:[%s2583 + $0x48] sm:$0xff]
        %v2594 = vld [vmem:[%s2583 + $0x50] sm:$0xff]
        %v2595 = vld [vmem:[%s2583 + $0x58] sm:$0xff]
        %v2596 = vld [vmem:[%s2583 + $0x60] sm:$0xff]
        %v2597 = vld [vmem:[%s2583 + $0x68] sm:$0xff]
        %v2598 = vld [vmem:[%s2583 + $0x70] sm:$0xff]
        %v2599 = vld [vmem:[%s2583 + $0x78] sm:$0xff]
        %2600 = vmatpush.msra.mxu0 %v2599
        %2601 = vmatpush.msra.mxu0 %v2598
        %2602 = vmatpush.msra.mxu0 %v2597
        %2603 = vmatpush.msra.mxu0 %v2596
        %2604 = vmatpush.msra.mxu0 %v2595
        %2605 = vmatpush.msra.mxu0 %v2594
        %2606 = vmatpush.msra.mxu0 %v2593
        %2607 = vmatpush.msra.mxu0 %v2592
        %2608 = vmatpush.msra.mxu0 %v2591
        %2609 = vmatpush.msra.mxu0 %v2590
        %2610 = vmatpush.msra.mxu0 %v2589
        %2611 = vmatpush.msra.mxu0 %v2588
        %2612 = vmatpush.msra.mxu0 %v2587
        %2613 = vmatpush.msra.mxu0 %v2586
        %2614 = vmatpush.msra.mxu0 %v2585
        %2615 = vmatpush.msra.mxu0 %v2584
        %2616 = vmatmul.f32.gmra.mxu0 %v2313
        %v2617 = vpop.f32.mrf.mxu0
        %v2618 = vadd.f32 0.0, %v2617
        %2619 = vmatmul.f32.gmra.mxu0 %v2314
        %v2620 = vpop.f32.mrf.mxu0
        %v2621 = vadd.f32 0.0, %v2620
        %2622 = vmatmul.f32.gmra.mxu0 %v2315
        %v2623 = vpop.f32.mrf.mxu0
        %v2624 = vadd.f32 0.0, %v2623
        %2625 = vmatmul.f32.gmra.mxu0 %v2316
        %v2626 = vpop.f32.mrf.mxu0
        %v2627 = vadd.f32 0.0, %v2626
        %2628 = vmatmul.f32.gmra.mxu0 %v2317
        %v2629 = vpop.f32.mrf.mxu0
        %v2630 = vadd.f32 0.0, %v2629
        %2631 = vmatmul.f32.gmra.mxu0 %v2318
        %v2632 = vpop.f32.mrf.mxu0
        %v2633 = vadd.f32 0.0, %v2632
        %2634 = vmatmul.f32.gmra.mxu0 %v2319
        %v2635 = vpop.f32.mrf.mxu0
        %v2636 = vadd.f32 0.0, %v2635
        %2637 = vmatmul.f32.gmra.mxu0 %v2320
        %v2638 = vpop.f32.mrf.mxu0
        %v2639 = vadd.f32 0.0, %v2638
        %2640 = vdwg.mxu0
        %v2641 = vld [vmem:[%s3 + $0x40] sm:$0xff]
        %v2642 = vld [vmem:[%s3 + $0x48] sm:$0xff]
        %v2643 = vld [vmem:[%s3 + $0x50] sm:$0xff]
        %v2644 = vld [vmem:[%s3 + $0x58] sm:$0xff]
        %v2646 = vsel %vm2452, %v2618, 0
        %v2649 = vsel %vm2452, %v2621, 0
        %v2652 = vsel %vm2452, %v2624, 0
        %v2655 = vsel %vm2452, %v2627, 0
        %v2658 = vsel %vm2452, %v2630, 0
        %v2661 = vsel %vm2452, %v2633, 0
        %v2664 = vsel %vm2452, %v2636, 0
        %v2667 = vsel %vm2452, %v2639, 0
        %2669 = vmatpush.msra.mxu0 0.0
        %2670 = vmatpush.msra.mxu0 0.0
        %2671 = vmatpush.msra.mxu0 0.0
        %2672 = vmatpush.msra.mxu0 0.0
        %2673 = vmatpush.msra.mxu0 0.0
        %2674 = vmatpush.msra.mxu0 0.0
        %2675 = vmatpush.msra.mxu0 0.0
        %2676 = vmatpush.msra.mxu0 0.0
        %2677 = vmatpush.msra.mxu0 0.0
        %2678 = vmatpush.msra.mxu0 0.0
        %2679 = vmatpush.msra.mxu0 0.0
        %2680 = vmatpush.msra.mxu0 0.0
        %2681 = vmatpush.msra.mxu0 %v2644
        %2682 = vmatpush.msra.mxu0 %v2643
        %2683 = vmatpush.msra.mxu0 %v2642
        %2684 = vmatpush.msra.mxu0 %v2641
        %2685 = vmatmul.f32.gmra.mxu0 %v2646
        %v2686 = vpop.f32.mrf.mxu0
        %v2687 = vadd.f32 0.0, %v2686
        %2688 = vmatmul.f32.gmra.mxu0 %v2649
        %v2689 = vpop.f32.mrf.mxu0
        %v2690 = vadd.f32 0.0, %v2689
        %2691 = vmatmul.f32.gmra.mxu0 %v2652
        %v2692 = vpop.f32.mrf.mxu0
        %v2693 = vadd.f32 0.0, %v2692
        %2694 = vmatmul.f32.gmra.mxu0 %v2655
        %v2695 = vpop.f32.mrf.mxu0
        %v2696 = vadd.f32 0.0, %v2695
        %2697 = vmatmul.f32.gmra.mxu0 %v2658
        %v2698 = vpop.f32.mrf.mxu0
        %v2699 = vadd.f32 0.0, %v2698
        %2700 = vmatmul.f32.gmra.mxu0 %v2661
        %v2701 = vpop.f32.mrf.mxu0
        %v2702 = vadd.f32 0.0, %v2701
        %2703 = vmatmul.f32.gmra.mxu0 %v2664
        %v2704 = vpop.f32.mrf.mxu0
        %v2705 = vadd.f32 0.0, %v2704
        %2706 = vmatmul.f32.gmra.mxu0 %v2667
        %v2707 = vpop.f32.mrf.mxu0
        %v2708 = vadd.f32 0.0, %v2707
        %2709 = vdwg.mxu0
        %v2710 = vadd.f32 %v2560, %v2687
        %v2711 = vadd.f32 %v2563, %v2690
        %v2712 = vadd.f32 %v2566, %v2693
        %v2713 = vadd.f32 %v2569, %v2696
        %v2714 = vadd.f32 %v2572, %v2699
        %v2715 = vadd.f32 %v2575, %v2702
        %v2716 = vadd.f32 %v2578, %v2705
        %v2717 = vadd.f32 %v2581, %v2708
        %s2718 = scalar_lea.vmem %s685, 384
        %v2719 = vld [vmem:[%s2718] sm:$0xff]
        %v2720 = vld [vmem:[%s2718 + $0x8] sm:$0xff]
        %v2721 = vld [vmem:[%s2718 + $0x10] sm:$0xff]
        %v2722 = vld [vmem:[%s2718 + $0x18] sm:$0xff]
        %v2723 = vld [vmem:[%s2718 + $0x20] sm:$0xff]
        %v2724 = vld [vmem:[%s2718 + $0x28] sm:$0xff]
        %v2725 = vld [vmem:[%s2718 + $0x30] sm:$0xff]
        %v2726 = vld [vmem:[%s2718 + $0x38] sm:$0xff]
        %v2727 = vld [vmem:[%s2718 + $0x40] sm:$0xff]
        %v2728 = vld [vmem:[%s2718 + $0x48] sm:$0xff]
        %v2729 = vld [vmem:[%s2718 + $0x50] sm:$0xff]
        %v2730 = vld [vmem:[%s2718 + $0x58] sm:$0xff]
        %v2731 = vld [vmem:[%s2718 + $0x60] sm:$0xff]
        %v2732 = vld [vmem:[%s2718 + $0x68] sm:$0xff]
        %v2733 = vld [vmem:[%s2718 + $0x70] sm:$0xff]
        %v2734 = vld [vmem:[%s2718 + $0x78] sm:$0xff]
        %2735 = vmatpush.msra.mxu0 %v2734
        %2736 = vmatpush.msra.mxu0 %v2733
        %2737 = vmatpush.msra.mxu0 %v2732
        %2738 = vmatpush.msra.mxu0 %v2731
        %2739 = vmatpush.msra.mxu0 %v2730
        %2740 = vmatpush.msra.mxu0 %v2729
        %2741 = vmatpush.msra.mxu0 %v2728
        %2742 = vmatpush.msra.mxu0 %v2727
        %2743 = vmatpush.msra.mxu0 %v2726
        %2744 = vmatpush.msra.mxu0 %v2725
        %2745 = vmatpush.msra.mxu0 %v2724
        %2746 = vmatpush.msra.mxu0 %v2723
        %2747 = vmatpush.msra.mxu0 %v2722
        %2748 = vmatpush.msra.mxu0 %v2721
        %2749 = vmatpush.msra.mxu0 %v2720
        %2750 = vmatpush.msra.mxu0 %v2719
        %2751 = vmatmul.f32.gmra.mxu0 %v2321
        %v2752 = vpop.f32.mrf.mxu0
        %v2753 = vadd.f32 0.0, %v2752
        %2754 = vmatmul.f32.gmra.mxu0 %v2322
        %v2755 = vpop.f32.mrf.mxu0
        %v2756 = vadd.f32 0.0, %v2755
        %2757 = vmatmul.f32.gmra.mxu0 %v2323
        %v2758 = vpop.f32.mrf.mxu0
        %v2759 = vadd.f32 0.0, %v2758
        %2760 = vmatmul.f32.gmra.mxu0 %v2324
        %v2761 = vpop.f32.mrf.mxu0
        %v2762 = vadd.f32 0.0, %v2761
        %2763 = vmatmul.f32.gmra.mxu0 %v2325
        %v2764 = vpop.f32.mrf.mxu0
        %v2765 = vadd.f32 0.0, %v2764
        %2766 = vmatmul.f32.gmra.mxu0 %v2326
        %v2767 = vpop.f32.mrf.mxu0
        %v2768 = vadd.f32 0.0, %v2767
        %2769 = vmatmul.f32.gmra.mxu0 %v2327
        %v2770 = vpop.f32.mrf.mxu0
        %v2771 = vadd.f32 0.0, %v2770
        %2772 = vmatmul.f32.gmra.mxu0 %v2328
        %v2773 = vpop.f32.mrf.mxu0
        %v2774 = vadd.f32 0.0, %v2773
        %2775 = vdwg.mxu0
        %v2776 = vld [vmem:[%s3 + $0x60] sm:$0xff]
        %v2777 = vld [vmem:[%s3 + $0x68] sm:$0xff]
        %v2778 = vld [vmem:[%s3 + $0x70] sm:$0xff]
        %v2779 = vld [vmem:[%s3 + $0x78] sm:$0xff]
        %v2781 = vsel %vm2452, %v2753, 0
        %v2784 = vsel %vm2452, %v2756, 0
        %v2787 = vsel %vm2452, %v2759, 0
        %v2790 = vsel %vm2452, %v2762, 0
        %v2793 = vsel %vm2452, %v2765, 0
        %v2796 = vsel %vm2452, %v2768, 0
        %v2799 = vsel %vm2452, %v2771, 0
        %v2802 = vsel %vm2452, %v2774, 0
        %2804 = vmatpush.msra.mxu0 0.0
        %2805 = vmatpush.msra.mxu0 0.0
        %2806 = vmatpush.msra.mxu0 0.0
        %2807 = vmatpush.msra.mxu0 0.0
        %2808 = vmatpush.msra.mxu0 0.0
        %2809 = vmatpush.msra.mxu0 0.0
        %2810 = vmatpush.msra.mxu0 0.0
        %2811 = vmatpush.msra.mxu0 0.0
        %2812 = vmatpush.msra.mxu0 0.0
        %2813 = vmatpush.msra.mxu0 0.0
        %2814 = vmatpush.msra.mxu0 0.0
        %2815 = vmatpush.msra.mxu0 0.0
        %2816 = vmatpush.msra.mxu0 %v2779
        %2817 = vmatpush.msra.mxu0 %v2778
        %2818 = vmatpush.msra.mxu0 %v2777
        %2819 = vmatpush.msra.mxu0 %v2776
        %2820 = vmatmul.f32.gmra.mxu0 %v2781
        %v2821 = vpop.f32.mrf.mxu0
        %v2822 = vadd.f32 0.0, %v2821
        %2823 = vmatmul.f32.gmra.mxu0 %v2784
        %v2824 = vpop.f32.mrf.mxu0
        %v2825 = vadd.f32 0.0, %v2824
        %2826 = vmatmul.f32.gmra.mxu0 %v2787
        %v2827 = vpop.f32.mrf.mxu0
        %v2828 = vadd.f32 0.0, %v2827
        %2829 = vmatmul.f32.gmra.mxu0 %v2790
        %v2830 = vpop.f32.mrf.mxu0
        %v2831 = vadd.f32 0.0, %v2830
        %2832 = vmatmul.f32.gmra.mxu0 %v2793
        %v2833 = vpop.f32.mrf.mxu0
        %v2834 = vadd.f32 0.0, %v2833
        %2835 = vmatmul.f32.gmra.mxu0 %v2796
        %v2836 = vpop.f32.mrf.mxu0
        %v2837 = vadd.f32 0.0, %v2836
        %2838 = vmatmul.f32.gmra.mxu0 %v2799
        %v2839 = vpop.f32.mrf.mxu0
        %v2840 = vadd.f32 0.0, %v2839
        %2841 = vmatmul.f32.gmra.mxu0 %v2802
        %v2842 = vpop.f32.mrf.mxu0
        %v2843 = vadd.f32 0.0, %v2842
        %2844 = vdwg.mxu0
        %v2845 = vadd.f32 %v2710, %v2822
        %v2846 = vadd.f32 %v2711, %v2825
        %v2847 = vadd.f32 %v2712, %v2828
        %v2848 = vadd.f32 %v2713, %v2831
        %v2849 = vadd.f32 %v2714, %v2834
        %v2850 = vadd.f32 %v2715, %v2837
        %v2851 = vadd.f32 %v2716, %v2840
        %v2852 = vadd.f32 %v2717, %v2843
        %v2853 = vld [vmem:[%s4] sm:$0x1]
        %v2855 = vperm.slane %v2853, 0
        %v2857 = vadd.f32 %v2845, %v2855
        %v2858 = vadd.f32 %v2846, %v2855
        %v2859 = vadd.f32 %v2847, %v2855
        %v2860 = vadd.f32 %v2848, %v2855
        %v2861 = vadd.f32 %v2849, %v2855
        %v2862 = vadd.f32 %v2850, %v2855
        %v2863 = vadd.f32 %v2851, %v2855
        %v2864 = vadd.f32 %v2852, %v2855
        %v2865 = vld [vmem:[%s690] sm:$0xff]
        %v2866 = vld [vmem:[%s690 + $0x8] sm:$0xff]
        %v2867 = vld [vmem:[%s690 + $0x10] sm:$0xff]
        %v2868 = vld [vmem:[%s690 + $0x18] sm:$0xff]
        %v2869 = vld [vmem:[%s690 + $0x20] sm:$0xff]
        %v2870 = vld [vmem:[%s690 + $0x28] sm:$0xff]
        %v2871 = vld [vmem:[%s690 + $0x30] sm:$0xff]
        %v2872 = vld [vmem:[%s690 + $0x38] sm:$0xff]
        %v2873 = vld [vmem:[%s690 + $0x40] sm:$0xff]
        %v2874 = vld [vmem:[%s690 + $0x48] sm:$0xff]
        %v2875 = vld [vmem:[%s690 + $0x50] sm:$0xff]
        %v2876 = vld [vmem:[%s690 + $0x58] sm:$0xff]
        %v2877 = vld [vmem:[%s690 + $0x60] sm:$0xff]
        %v2878 = vld [vmem:[%s690 + $0x68] sm:$0xff]
        %v2879 = vld [vmem:[%s690 + $0x70] sm:$0xff]
        %v2880 = vld [vmem:[%s690 + $0x78] sm:$0xff]
        %v2881 = vld [vmem:[%s690 + $0x80] sm:$0xff]
        %v2882 = vld [vmem:[%s690 + $0x88] sm:$0xff]
        %v2883 = vld [vmem:[%s690 + $0x90] sm:$0xff]
        %v2884 = vld [vmem:[%s690 + $0x98] sm:$0xff]
        %v2885 = vld [vmem:[%s690 + $0xa0] sm:$0xff]
        %v2886 = vld [vmem:[%s690 + $0xa8] sm:$0xff]
        %v2887 = vld [vmem:[%s690 + $0xb0] sm:$0xff]
        %v2888 = vld [vmem:[%s690 + $0xb8] sm:$0xff]
        %v2889 = vld [vmem:[%s690 + $0xc0] sm:$0xff]
        %v2890 = vld [vmem:[%s690 + $0xc8] sm:$0xff]
        %v2891 = vld [vmem:[%s690 + $0xd0] sm:$0xff]
        %v2892 = vld [vmem:[%s690 + $0xd8] sm:$0xff]
        %v2893 = vld [vmem:[%s690 + $0xe0] sm:$0xff]
        %v2894 = vld [vmem:[%s690 + $0xe8] sm:$0xff]
        %v2895 = vld [vmem:[%s690 + $0xf0] sm:$0xff]
        %v2896 = vld [vmem:[%s690 + $0xf8] sm:$0xff]
        %v2897 = vld [vmem:[%s5] sm:$0xff]
        %v2898 = vld [vmem:[%s5 + $0x8] sm:$0xff]
        %v2899 = vld [vmem:[%s5 + $0x10] sm:$0xff]
        %v2900 = vld [vmem:[%s5 + $0x18] sm:$0xff]
        %v2901 = vld [vmem:[%s5 + $0x20] sm:$0xff]
        %v2902 = vld [vmem:[%s5 + $0x28] sm:$0xff]
        %v2903 = vld [vmem:[%s5 + $0x30] sm:$0xff]
        %v2904 = vld [vmem:[%s5 + $0x38] sm:$0xff]
        %v2905 = vld [vmem:[%s5 + $0x40] sm:$0xff]
        %v2906 = vld [vmem:[%s5 + $0x48] sm:$0xff]
        %v2907 = vld [vmem:[%s5 + $0x50] sm:$0xff]
        %v2908 = vld [vmem:[%s5 + $0x58] sm:$0xff]
        %v2909 = vld [vmem:[%s5 + $0x60] sm:$0xff]
        %v2910 = vld [vmem:[%s5 + $0x68] sm:$0xff]
        %v2911 = vld [vmem:[%s5 + $0x70] sm:$0xff]
        %v2912 = vld [vmem:[%s5 + $0x78] sm:$0xff]
        %v2913 = vld [vmem:[%s5 + $0x80] sm:$0xff]
        %v2914 = vld [vmem:[%s5 + $0x88] sm:$0xff]
        %v2915 = vld [vmem:[%s5 + $0x90] sm:$0xff]
        %v2916 = vld [vmem:[%s5 + $0x98] sm:$0xff]
        %v2917 = vld [vmem:[%s5 + $0xa0] sm:$0xff]
        %v2918 = vld [vmem:[%s5 + $0xa8] sm:$0xff]
        %v2919 = vld [vmem:[%s5 + $0xb0] sm:$0xff]
        %v2920 = vld [vmem:[%s5 + $0xb8] sm:$0xff]
        %v2921 = vld [vmem:[%s5 + $0xc0] sm:$0xff]
        %v2922 = vld [vmem:[%s5 + $0xc8] sm:$0xff]
        %v2923 = vld [vmem:[%s5 + $0xd0] sm:$0xff]
        %v2924 = vld [vmem:[%s5 + $0xd8] sm:$0xff]
        %v2925 = vld [vmem:[%s5 + $0xe0] sm:$0xff]
        %v2926 = vld [vmem:[%s5 + $0xe8] sm:$0xff]
        %v2927 = vld [vmem:[%s5 + $0xf0] sm:$0xff]
        %v2928 = vld [vmem:[%s5 + $0xf8] sm:$0xff]
        %vm2929 = vcmask 523264
        %v2931 = vsel %vm2929, %v2897, 0
        %v2934 = vsel %vm2929, %v2898, 0
        %v2937 = vsel %vm2929, %v2899, 0
        %v2940 = vsel %vm2929, %v2900, 0
        %v2943 = vsel %vm2929, %v2901, 0
        %v2946 = vsel %vm2929, %v2902, 0
        %v2949 = vsel %vm2929, %v2903, 0
        %v2952 = vsel %vm2929, %v2904, 0
        %v2955 = vsel %vm2929, %v2905, 0
        %v2958 = vsel %vm2929, %v2906, 0
        %v2961 = vsel %vm2929, %v2907, 0
        %v2964 = vsel %vm2929, %v2908, 0
        %v2967 = vsel %vm2929, %v2909, 0
        %v2970 = vsel %vm2929, %v2910, 0
        %v2973 = vsel %vm2929, %v2911, 0
        %v2976 = vsel %vm2929, %v2912, 0
        %v2979 = vsel %vm2929, %v2913, 0
        %v2982 = vsel %vm2929, %v2914, 0
        %v2985 = vsel %vm2929, %v2915, 0
        %v2988 = vsel %vm2929, %v2916, 0
        %v2991 = vsel %vm2929, %v2917, 0
        %v2994 = vsel %vm2929, %v2918, 0
        %v2997 = vsel %vm2929, %v2919, 0
        %v3000 = vsel %vm2929, %v2920, 0
        %v3003 = vsel %vm2929, %v2921, 0
        %v3006 = vsel %vm2929, %v2922, 0
        %v3009 = vsel %vm2929, %v2923, 0
        %v3012 = vsel %vm2929, %v2924, 0
        %v3015 = vsel %vm2929, %v2925, 0
        %v3018 = vsel %vm2929, %v2926, 0
        %v3021 = vsel %vm2929, %v2927, 0
        %v3024 = vsel %vm2929, %v2928, 0
        %3026 = vmatpush.msra.mxu0 0.0
        %3027 = vmatpush.msra.mxu0 0.0
        %3028 = vmatpush.msra.mxu0 0.0
        %3029 = vmatpush.msra.mxu0 0.0
        %3030 = vmatpush.msra.mxu0 0.0
        %3031 = vmatpush.msra.mxu0 0.0
        %3032 = vmatpush.msra.mxu0 0.0
        %3033 = vmatpush.msra.mxu0 0.0
        %3034 = vmatpush.msra.mxu0 %v2864
        %3035 = vmatpush.msra.mxu0 %v2863
        %3036 = vmatpush.msra.mxu0 %v2862
        %3037 = vmatpush.msra.mxu0 %v2861
        %3038 = vmatpush.msra.mxu0 %v2860
        %3039 = vmatpush.msra.mxu0 %v2859
        %3040 = vmatpush.msra.mxu0 %v2858
        %3041 = vmatpush.msra.mxu0 %v2857
        %3042 = vmatmul.f32.gmra.mxu0 %v2931
        %v3043 = vpop.f32.mrf.mxu0
        %v3044 = vadd.f32 0.0, %v3043
        %3045 = vmatmul.f32.gmra.mxu0 %v2934
        %v3046 = vpop.f32.mrf.mxu0
        %v3047 = vadd.f32 0.0, %v3046
        %3048 = vmatmul.f32.gmra.mxu0 %v2937
        %v3049 = vpop.f32.mrf.mxu0
        %v3050 = vadd.f32 0.0, %v3049
        %3051 = vmatmul.f32.gmra.mxu0 %v2940
        %v3052 = vpop.f32.mrf.mxu0
        %v3053 = vadd.f32 0.0, %v3052
        %3054 = vmatmul.f32.gmra.mxu0 %v2943
        %v3055 = vpop.f32.mrf.mxu0
        %v3056 = vadd.f32 0.0, %v3055
        %3057 = vmatmul.f32.gmra.mxu0 %v2946
        %v3058 = vpop.f32.mrf.mxu0
        %v3059 = vadd.f32 0.0, %v3058
        %3060 = vmatmul.f32.gmra.mxu0 %v2949
        %v3061 = vpop.f32.mrf.mxu0
        %v3062 = vadd.f32 0.0, %v3061
        %3063 = vmatmul.f32.gmra.mxu0 %v2952
        %v3064 = vpop.f32.mrf.mxu0
        %v3065 = vadd.f32 0.0, %v3064
        %3066 = vmatmul.f32.gmra.mxu0 %v2955
        %v3067 = vpop.f32.mrf.mxu0
        %v3068 = vadd.f32 0.0, %v3067
        %3069 = vmatmul.f32.gmra.mxu0 %v2958
        %v3070 = vpop.f32.mrf.mxu0
        %v3071 = vadd.f32 0.0, %v3070
        %3072 = vmatmul.f32.gmra.mxu0 %v2961
        %v3073 = vpop.f32.mrf.mxu0
        %v3074 = vadd.f32 0.0, %v3073
        %3075 = vmatmul.f32.gmra.mxu0 %v2964
        %v3076 = vpop.f32.mrf.mxu0
        %v3077 = vadd.f32 0.0, %v3076
        %3078 = vmatmul.f32.gmra.mxu0 %v2967
        %v3079 = vpop.f32.mrf.mxu0
        %v3080 = vadd.f32 0.0, %v3079
        %3081 = vmatmul.f32.gmra.mxu0 %v2970
        %v3082 = vpop.f32.mrf.mxu0
        %v3083 = vadd.f32 0.0, %v3082
        %3084 = vmatmul.f32.gmra.mxu0 %v2973
        %v3085 = vpop.f32.mrf.mxu0
        %v3086 = vadd.f32 0.0, %v3085
        %3087 = vmatmul.f32.gmra.mxu0 %v2976
        %v3088 = vpop.f32.mrf.mxu0
        %v3089 = vadd.f32 0.0, %v3088
        %3090 = vmatmul.f32.gmra.mxu0 %v2979
        %v3091 = vpop.f32.mrf.mxu0
        %v3092 = vadd.f32 0.0, %v3091
        %3093 = vmatmul.f32.gmra.mxu0 %v2982
        %v3094 = vpop.f32.mrf.mxu0
        %v3095 = vadd.f32 0.0, %v3094
        %3096 = vmatmul.f32.gmra.mxu0 %v2985
        %v3097 = vpop.f32.mrf.mxu0
        %v3098 = vadd.f32 0.0, %v3097
        %3099 = vmatmul.f32.gmra.mxu0 %v2988
        %v3100 = vpop.f32.mrf.mxu0
        %v3101 = vadd.f32 0.0, %v3100
        %3102 = vmatmul.f32.gmra.mxu0 %v2991
        %v3103 = vpop.f32.mrf.mxu0
        %v3104 = vadd.f32 0.0, %v3103
        %3105 = vmatmul.f32.gmra.mxu0 %v2994
        %v3106 = vpop.f32.mrf.mxu0
        %v3107 = vadd.f32 0.0, %v3106
        %3108 = vmatmul.f32.gmra.mxu0 %v2997
        %v3109 = vpop.f32.mrf.mxu0
        %v3110 = vadd.f32 0.0, %v3109
        %3111 = vmatmul.f32.gmra.mxu0 %v3000
        %v3112 = vpop.f32.mrf.mxu0
        %v3113 = vadd.f32 0.0, %v3112
        %3114 = vmatmul.f32.gmra.mxu0 %v3003
        %v3115 = vpop.f32.mrf.mxu0
        %v3116 = vadd.f32 0.0, %v3115
        %3117 = vmatmul.f32.gmra.mxu0 %v3006
        %v3118 = vpop.f32.mrf.mxu0
        %v3119 = vadd.f32 0.0, %v3118
        %3120 = vmatmul.f32.gmra.mxu0 %v3009
        %v3121 = vpop.f32.mrf.mxu0
        %v3122 = vadd.f32 0.0, %v3121
        %3123 = vmatmul.f32.gmra.mxu0 %v3012
        %v3124 = vpop.f32.mrf.mxu0
        %v3125 = vadd.f32 0.0, %v3124
        %3126 = vmatmul.f32.gmra.mxu0 %v3015
        %v3127 = vpop.f32.mrf.mxu0
        %v3128 = vadd.f32 0.0, %v3127
        %3129 = vmatmul.f32.gmra.mxu0 %v3018
        %v3130 = vpop.f32.mrf.mxu0
        %v3131 = vadd.f32 0.0, %v3130
        %3132 = vmatmul.f32.gmra.mxu0 %v3021
        %v3133 = vpop.f32.mrf.mxu0
        %v3134 = vadd.f32 0.0, %v3133
        %3135 = vmatmul.f32.gmra.mxu0 %v3024
        %v3136 = vpop.f32.mrf.mxu0
        %v3137 = vadd.f32 0.0, %v3136
        %3138 = vdwg.mxu0
        %v3139 = vadd.f32 %v2865, %v3044
        %v3140 = vadd.f32 %v2866, %v3047
        %v3141 = vadd.f32 %v2867, %v3050
        %v3142 = vadd.f32 %v2868, %v3053
        %v3143 = vadd.f32 %v2869, %v3056
        %v3144 = vadd.f32 %v2870, %v3059
        %v3145 = vadd.f32 %v2871, %v3062
        %v3146 = vadd.f32 %v2872, %v3065
        %v3147 = vadd.f32 %v2873, %v3068
        %v3148 = vadd.f32 %v2874, %v3071
        %v3149 = vadd.f32 %v2875, %v3074
        %v3150 = vadd.f32 %v2876, %v3077
        %v3151 = vadd.f32 %v2877, %v3080
        %v3152 = vadd.f32 %v2878, %v3083
        %v3153 = vadd.f32 %v2879, %v3086
        %v3154 = vadd.f32 %v2880, %v3089
        %v3155 = vadd.f32 %v2881, %v3092
        %v3156 = vadd.f32 %v2882, %v3095
        %v3157 = vadd.f32 %v2883, %v3098
        %v3158 = vadd.f32 %v2884, %v3101
        %v3159 = vadd.f32 %v2885, %v3104
        %v3160 = vadd.f32 %v2886, %v3107
        %v3161 = vadd.f32 %v2887, %v3110
        %v3162 = vadd.f32 %v2888, %v3113
        %v3163 = vadd.f32 %v2889, %v3116
        %v3164 = vadd.f32 %v2890, %v3119
        %v3165 = vadd.f32 %v2891, %v3122
        %v3166 = vadd.f32 %v2892, %v3125
        %v3167 = vadd.f32 %v2893, %v3128
        %v3168 = vadd.f32 %v2894, %v3131
        %v3169 = vadd.f32 %v2895, %v3134
        %v3170 = vadd.f32 %v2896, %v3137
        %3171 = vadd.xlane.f32.xlu0 %v3139
        %v3172 = vpop.xlane.xlu0 %3171
        %3173 = vadd.xlane.f32.xlu0 %v3140
        %v3174 = vpop.xlane.xlu0 %3173
        %3175 = vadd.xlane.f32.xlu0 %v3141
        %v3176 = vpop.xlane.xlu0 %3175
        %3177 = vadd.xlane.f32.xlu0 %v3142
        %v3178 = vpop.xlane.xlu0 %3177
        %3179 = vadd.xlane.f32.xlu0 %v3143
        %v3180 = vpop.xlane.xlu0 %3179
        %3181 = vadd.xlane.f32.xlu0 %v3144
        %v3182 = vpop.xlane.xlu0 %3181
        %3183 = vadd.xlane.f32.xlu0 %v3145
        %v3184 = vpop.xlane.xlu0 %3183
        %3185 = vadd.xlane.f32.xlu0 %v3146
        %v3186 = vpop.xlane.xlu0 %3185
        %3187 = vadd.xlane.f32.xlu0 %v3147
        %v3188 = vpop.xlane.xlu0 %3187
        %3189 = vadd.xlane.f32.xlu0 %v3148
        %v3190 = vpop.xlane.xlu0 %3189
        %3191 = vadd.xlane.f32.xlu0 %v3149
        %v3192 = vpop.xlane.xlu0 %3191
        %3193 = vadd.xlane.f32.xlu0 %v3150
        %v3194 = vpop.xlane.xlu0 %3193
        %3195 = vadd.xlane.f32.xlu0 %v3151
        %v3196 = vpop.xlane.xlu0 %3195
        %3197 = vadd.xlane.f32.xlu0 %v3152
        %v3198 = vpop.xlane.xlu0 %3197
        %3199 = vadd.xlane.f32.xlu0 %v3153
        %v3200 = vpop.xlane.xlu0 %3199
        %3201 = vadd.xlane.f32.xlu0 %v3154
        %v3202 = vpop.xlane.xlu0 %3201
        %3203 = vadd.xlane.f32.xlu0 %v3155
        %v3204 = vpop.xlane.xlu0 %3203
        %3205 = vadd.xlane.f32.xlu0 %v3156
        %v3206 = vpop.xlane.xlu0 %3205
        %3207 = vadd.xlane.f32.xlu0 %v3157
        %v3208 = vpop.xlane.xlu0 %3207
        %3209 = vadd.xlane.f32.xlu0 %v3158
        %v3210 = vpop.xlane.xlu0 %3209
        %3211 = vadd.xlane.f32.xlu0 %v3159
        %v3212 = vpop.xlane.xlu0 %3211
        %3213 = vadd.xlane.f32.xlu0 %v3160
        %v3214 = vpop.xlane.xlu0 %3213
        %3215 = vadd.xlane.f32.xlu0 %v3161
        %v3216 = vpop.xlane.xlu0 %3215
        %3217 = vadd.xlane.f32.xlu0 %v3162
        %v3218 = vpop.xlane.xlu0 %3217
        %3219 = vadd.xlane.f32.xlu0 %v3163
        %v3220 = vpop.xlane.xlu0 %3219
        %3221 = vadd.xlane.f32.xlu0 %v3164
        %v3222 = vpop.xlane.xlu0 %3221
        %3223 = vadd.xlane.f32.xlu0 %v3165
        %v3224 = vpop.xlane.xlu0 %3223
        %3225 = vadd.xlane.f32.xlu0 %v3166
        %v3226 = vpop.xlane.xlu0 %3225
        %3227 = vadd.xlane.f32.xlu0 %v3167
        %v3228 = vpop.xlane.xlu0 %3227
        %3229 = vadd.xlane.f32.xlu0 %v3168
        %v3230 = vpop.xlane.xlu0 %3229
        %3231 = vadd.xlane.f32.xlu0 %v3169
        %v3232 = vpop.xlane.xlu0 %3231
        %3233 = vadd.xlane.f32.xlu0 %v3170
        %v3234 = vpop.xlane.xlu0 %3233
        %v3235 = vrcp.pop 128.0
        %v3236 = vmul.f32 128.0, %v3235
        %v3237 = vsub.f32 1.0, %v3236
        %v3238 = vmul.f32 %v3235, %v3237
        %v3239 = vadd.f32 %v3235, %v3238
        %vm3240 = vweird.f32 %v3235
        %v3241 = vsel %vm3240, %v3235, %v3239
        %v3242 = vmul.f32 %v3172, %v3241
        %v3243 = vmul.f32 %v3174, %v3241
        %v3244 = vmul.f32 %v3176, %v3241
        %v3245 = vmul.f32 %v3178, %v3241
        %v3246 = vmul.f32 %v3180, %v3241
        %v3247 = vmul.f32 %v3182, %v3241
        %v3248 = vmul.f32 %v3184, %v3241
        %v3249 = vmul.f32 %v3186, %v3241
        %v3250 = vmul.f32 %v3188, %v3241
        %v3251 = vmul.f32 %v3190, %v3241
        %v3252 = vmul.f32 %v3192, %v3241
        %v3253 = vmul.f32 %v3194, %v3241
        %v3254 = vmul.f32 %v3196, %v3241
        %v3255 = vmul.f32 %v3198, %v3241
        %v3256 = vmul.f32 %v3200, %v3241
        %v3257 = vmul.f32 %v3202, %v3241
        %v3258 = vmul.f32 %v3204, %v3241
        %v3259 = vmul.f32 %v3206, %v3241
        %v3260 = vmul.f32 %v3208, %v3241
        %v3261 = vmul.f32 %v3210, %v3241
        %v3262 = vmul.f32 %v3212, %v3241
        %v3263 = vmul.f32 %v3214, %v3241
        %v3264 = vmul.f32 %v3216, %v3241
        %v3265 = vmul.f32 %v3218, %v3241
        %v3266 = vmul.f32 %v3220, %v3241
        %v3267 = vmul.f32 %v3222, %v3241
        %v3268 = vmul.f32 %v3224, %v3241
        %v3269 = vmul.f32 %v3226, %v3241
        %v3270 = vmul.f32 %v3228, %v3241
        %v3271 = vmul.f32 %v3230, %v3241
        %v3272 = vmul.f32 %v3232, %v3241
        %v3273 = vmul.f32 %v3234, %v3241
        %v3274 = vsub.f32 %v3139, %v3242
        %v3275 = vsub.f32 %v3140, %v3243
        %v3276 = vsub.f32 %v3141, %v3244
        %v3277 = vsub.f32 %v3142, %v3245
        %v3278 = vsub.f32 %v3143, %v3246
        %v3279 = vsub.f32 %v3144, %v3247
        %v3280 = vsub.f32 %v3145, %v3248
        %v3281 = vsub.f32 %v3146, %v3249
        %v3282 = vsub.f32 %v3147, %v3250
        %v3283 = vsub.f32 %v3148, %v3251
        %v3284 = vsub.f32 %v3149, %v3252
        %v3285 = vsub.f32 %v3150, %v3253
        %v3286 = vsub.f32 %v3151, %v3254
        %v3287 = vsub.f32 %v3152, %v3255
        %v3288 = vsub.f32 %v3153, %v3256
        %v3289 = vsub.f32 %v3154, %v3257
        %v3290 = vsub.f32 %v3155, %v3258
        %v3291 = vsub.f32 %v3156, %v3259
        %v3292 = vsub.f32 %v3157, %v3260
        %v3293 = vsub.f32 %v3158, %v3261
        %v3294 = vsub.f32 %v3159, %v3262
        %v3295 = vsub.f32 %v3160, %v3263
        %v3296 = vsub.f32 %v3161, %v3264
        %v3297 = vsub.f32 %v3162, %v3265
        %v3298 = vsub.f32 %v3163, %v3266
        %v3299 = vsub.f32 %v3164, %v3267
        %v3300 = vsub.f32 %v3165, %v3268
        %v3301 = vsub.f32 %v3166, %v3269
        %v3302 = vsub.f32 %v3167, %v3270
        %v3303 = vsub.f32 %v3168, %v3271
        %v3304 = vsub.f32 %v3169, %v3272
        %v3305 = vsub.f32 %v3170, %v3273
        %v3306 = vmul.f32 %v3274, %v3274
        %v3307 = vmul.f32 %v3275, %v3275
        %v3308 = vmul.f32 %v3276, %v3276
        %v3309 = vmul.f32 %v3277, %v3277
        %v3310 = vmul.f32 %v3278, %v3278
        %v3311 = vmul.f32 %v3279, %v3279
        %v3312 = vmul.f32 %v3280, %v3280
        %v3313 = vmul.f32 %v3281, %v3281
        %v3314 = vmul.f32 %v3282, %v3282
        %v3315 = vmul.f32 %v3283, %v3283
        %v3316 = vmul.f32 %v3284, %v3284
        %v3317 = vmul.f32 %v3285, %v3285
        %v3318 = vmul.f32 %v3286, %v3286
        %v3319 = vmul.f32 %v3287, %v3287
        %v3320 = vmul.f32 %v3288, %v3288
        %v3321 = vmul.f32 %v3289, %v3289
        %v3322 = vmul.f32 %v3290, %v3290
        %v3323 = vmul.f32 %v3291, %v3291
        %v3324 = vmul.f32 %v3292, %v3292
        %v3325 = vmul.f32 %v3293, %v3293
        %v3326 = vmul.f32 %v3294, %v3294
        %v3327 = vmul.f32 %v3295, %v3295
        %v3328 = vmul.f32 %v3296, %v3296
        %v3329 = vmul.f32 %v3297, %v3297
        %v3330 = vmul.f32 %v3298, %v3298
        %v3331 = vmul.f32 %v3299, %v3299
        %v3332 = vmul.f32 %v3300, %v3300
        %v3333 = vmul.f32 %v3301, %v3301
        %v3334 = vmul.f32 %v3302, %v3302
        %v3335 = vmul.f32 %v3303, %v3303
        %v3336 = vmul.f32 %v3304, %v3304
        %v3337 = vmul.f32 %v3305, %v3305
        %3338 = vadd.xlane.f32.xlu0 %v3306
        %v3339 = vpop.xlane.xlu0 %3338
        %3340 = vadd.xlane.f32.xlu0 %v3307
        %v3341 = vpop.xlane.xlu0 %3340
        %3342 = vadd.xlane.f32.xlu0 %v3308
        %v3343 = vpop.xlane.xlu0 %3342
        %3344 = vadd.xlane.f32.xlu0 %v3309
        %v3345 = vpop.xlane.xlu0 %3344
        %3346 = vadd.xlane.f32.xlu0 %v3310
        %v3347 = vpop.xlane.xlu0 %3346
        %3348 = vadd.xlane.f32.xlu0 %v3311
        %v3349 = vpop.xlane.xlu0 %3348
        %3350 = vadd.xlane.f32.xlu0 %v3312
        %v3351 = vpop.xlane.xlu0 %3350
        %3352 = vadd.xlane.f32.xlu0 %v3313
        %v3353 = vpop.xlane.xlu0 %3352
        %3354 = vadd.xlane.f32.xlu0 %v3314
        %v3355 = vpop.xlane.xlu0 %3354
        %3356 = vadd.xlane.f32.xlu0 %v3315
        %v3357 = vpop.xlane.xlu0 %3356
        %3358 = vadd.xlane.f32.xlu0 %v3316
        %v3359 = vpop.xlane.xlu0 %3358
        %3360 = vadd.xlane.f32.xlu0 %v3317
        %v3361 = vpop.xlane.xlu0 %3360
        %3362 = vadd.xlane.f32.xlu0 %v3318
        %v3363 = vpop.xlane.xlu0 %3362
        %3364 = vadd.xlane.f32.xlu0 %v3319
        %v3365 = vpop.xlane.xlu0 %3364
        %3366 = vadd.xlane.f32.xlu0 %v3320
        %v3367 = vpop.xlane.xlu0 %3366
        %3368 = vadd.xlane.f32.xlu0 %v3321
        %v3369 = vpop.xlane.xlu0 %3368
        %3370 = vadd.xlane.f32.xlu0 %v3322
        %v3371 = vpop.xlane.xlu0 %3370
        %3372 = vadd.xlane.f32.xlu0 %v3323
        %v3373 = vpop.xlane.xlu0 %3372
        %3374 = vadd.xlane.f32.xlu0 %v3324
        %v3375 = vpop.xlane.xlu0 %3374
        %3376 = vadd.xlane.f32.xlu0 %v3325
        %v3377 = vpop.xlane.xlu0 %3376
        %3378 = vadd.xlane.f32.xlu0 %v3326
        %v3379 = vpop.xlane.xlu0 %3378
        %3380 = vadd.xlane.f32.xlu0 %v3327
        %v3381 = vpop.xlane.xlu0 %3380
        %3382 = vadd.xlane.f32.xlu0 %v3328
        %v3383 = vpop.xlane.xlu0 %3382
        %3384 = vadd.xlane.f32.xlu0 %v3329
        %v3385 = vpop.xlane.xlu0 %3384
        %3386 = vadd.xlane.f32.xlu0 %v3330
        %v3387 = vpop.xlane.xlu0 %3386
        %3388 = vadd.xlane.f32.xlu0 %v3331
        %v3389 = vpop.xlane.xlu0 %3388
        %3390 = vadd.xlane.f32.xlu0 %v3332
        %v3391 = vpop.xlane.xlu0 %3390
        %3392 = vadd.xlane.f32.xlu0 %v3333
        %v3393 = vpop.xlane.xlu0 %3392
        %3394 = vadd.xlane.f32.xlu0 %v3334
        %v3395 = vpop.xlane.xlu0 %3394
        %3396 = vadd.xlane.f32.xlu0 %v3335
        %v3397 = vpop.xlane.xlu0 %3396
        %3398 = vadd.xlane.f32.xlu0 %v3336
        %v3399 = vpop.xlane.xlu0 %3398
        %3400 = vadd.xlane.f32.xlu0 %v3337
        %v3401 = vpop.xlane.xlu0 %3400
        %v3402 = vmul.f32 %v3339, %v3241
        %v3403 = vmul.f32 %v3341, %v3241
        %v3404 = vmul.f32 %v3343, %v3241
        %v3405 = vmul.f32 %v3345, %v3241
        %v3406 = vmul.f32 %v3347, %v3241
        %v3407 = vmul.f32 %v3349, %v3241
        %v3408 = vmul.f32 %v3351, %v3241
        %v3409 = vmul.f32 %v3353, %v3241
        %v3410 = vmul.f32 %v3355, %v3241
        %v3411 = vmul.f32 %v3357, %v3241
        %v3412 = vmul.f32 %v3359, %v3241
        %v3413 = vmul.f32 %v3361, %v3241
        %v3414 = vmul.f32 %v3363, %v3241
        %v3415 = vmul.f32 %v3365, %v3241
        %v3416 = vmul.f32 %v3367, %v3241
        %v3417 = vmul.f32 %v3369, %v3241
        %v3418 = vmul.f32 %v3371, %v3241
        %v3419 = vmul.f32 %v3373, %v3241
        %v3420 = vmul.f32 %v3375, %v3241
        %v3421 = vmul.f32 %v3377, %v3241
        %v3422 = vmul.f32 %v3379, %v3241
        %v3423 = vmul.f32 %v3381, %v3241
        %v3424 = vmul.f32 %v3383, %v3241
        %v3425 = vmul.f32 %v3385, %v3241
        %v3426 = vmul.f32 %v3387, %v3241
        %v3427 = vmul.f32 %v3389, %v3241
        %v3428 = vmul.f32 %v3391, %v3241
        %v3429 = vmul.f32 %v3393, %v3241
        %v3430 = vmul.f32 %v3395, %v3241
        %v3431 = vmul.f32 %v3397, %v3241
        %v3432 = vmul.f32 %v3399, %v3241
        %v3433 = vmul.f32 %v3401, %v3241
        %v3434 = vadd.f32 %v3402, 1e-05
        %v3435 = vadd.f32 %v3403, 1e-05
        %v3436 = vadd.f32 %v3404, 1e-05
        %v3437 = vadd.f32 %v3405, 1e-05
        %v3438 = vadd.f32 %v3406, 1e-05
        %v3439 = vadd.f32 %v3407, 1e-05
        %v3440 = vadd.f32 %v3408, 1e-05
        %v3441 = vadd.f32 %v3409, 1e-05
        %v3442 = vadd.f32 %v3410, 1e-05
        %v3443 = vadd.f32 %v3411, 1e-05
        %v3444 = vadd.f32 %v3412, 1e-05
        %v3445 = vadd.f32 %v3413, 1e-05
        %v3446 = vadd.f32 %v3414, 1e-05
        %v3447 = vadd.f32 %v3415, 1e-05
        %v3448 = vadd.f32 %v3416, 1e-05
        %v3449 = vadd.f32 %v3417, 1e-05
        %v3450 = vadd.f32 %v3418, 1e-05
        %v3451 = vadd.f32 %v3419, 1e-05
        %v3452 = vadd.f32 %v3420, 1e-05
        %v3453 = vadd.f32 %v3421, 1e-05
        %v3454 = vadd.f32 %v3422, 1e-05
        %v3455 = vadd.f32 %v3423, 1e-05
        %v3456 = vadd.f32 %v3424, 1e-05
        %v3457 = vadd.f32 %v3425, 1e-05
        %v3458 = vadd.f32 %v3426, 1e-05
        %v3459 = vadd.f32 %v3427, 1e-05
        %v3460 = vadd.f32 %v3428, 1e-05
        %v3461 = vadd.f32 %v3429, 1e-05
        %v3462 = vadd.f32 %v3430, 1e-05
        %v3463 = vadd.f32 %v3431, 1e-05
        %v3464 = vadd.f32 %v3432, 1e-05
        %v3465 = vadd.f32 %v3433, 1e-05
        %v3466 = vrsqrt.pop %v3434
        %v3467 = vmul.f32 %v3466, %v3434
        %v3468 = vmul.f32 %v3467, %v3466
        %v3469 = vmul.f32 0.5, %v3468
        %v3470 = vsub.f32 1.5, %v3469
        %v3471 = vmul.f32 %v3466, %v3470
        %vm3472 = vweird.f32 %v3434
        %vm3473 = vweird.f32 %v3466
        %vm3474 = vmor %vm3472, %vm3473
        %v3475 = vsel %vm3474, %v3466, %v3471
        %v3476 = vrsqrt.pop %v3435
        %v3477 = vmul.f32 %v3476, %v3435
        %v3478 = vmul.f32 %v3477, %v3476
        %v3479 = vmul.f32 0.5, %v3478
        %v3480 = vsub.f32 1.5, %v3479
        %v3481 = vmul.f32 %v3476, %v3480
        %vm3482 = vweird.f32 %v3435
        %vm3483 = vweird.f32 %v3476
        %vm3484 = vmor %vm3482, %vm3483
        %v3485 = vsel %vm3484, %v3476, %v3481
        %v3486 = vrsqrt.pop %v3436
        %v3487 = vmul.f32 %v3486, %v3436
        %v3488 = vmul.f32 %v3487, %v3486
        %v3489 = vmul.f32 0.5, %v3488
        %v3490 = vsub.f32 1.5, %v3489
        %v3491 = vmul.f32 %v3486, %v3490
        %vm3492 = vweird.f32 %v3436
        %vm3493 = vweird.f32 %v3486
        %vm3494 = vmor %vm3492, %vm3493
        %v3495 = vsel %vm3494, %v3486, %v3491
        %v3496 = vrsqrt.pop %v3437
        %v3497 = vmul.f32 %v3496, %v3437
        %v3498 = vmul.f32 %v3497, %v3496
        %v3499 = vmul.f32 0.5, %v3498
        %v3500 = vsub.f32 1.5, %v3499
        %v3501 = vmul.f32 %v3496, %v3500
        %vm3502 = vweird.f32 %v3437
        %vm3503 = vweird.f32 %v3496
        %vm3504 = vmor %vm3502, %vm3503
        %v3505 = vsel %vm3504, %v3496, %v3501
        %v3506 = vrsqrt.pop %v3438
        %v3507 = vmul.f32 %v3506, %v3438
        %v3508 = vmul.f32 %v3507, %v3506
        %v3509 = vmul.f32 0.5, %v3508
        %v3510 = vsub.f32 1.5, %v3509
        %v3511 = vmul.f32 %v3506, %v3510
        %vm3512 = vweird.f32 %v3438
        %vm3513 = vweird.f32 %v3506
        %vm3514 = vmor %vm3512, %vm3513
        %v3515 = vsel %vm3514, %v3506, %v3511
        %v3516 = vrsqrt.pop %v3439
        %v3517 = vmul.f32 %v3516, %v3439
        %v3518 = vmul.f32 %v3517, %v3516
        %v3519 = vmul.f32 0.5, %v3518
        %v3520 = vsub.f32 1.5, %v3519
        %v3521 = vmul.f32 %v3516, %v3520
        %vm3522 = vweird.f32 %v3439
        %vm3523 = vweird.f32 %v3516
        %vm3524 = vmor %vm3522, %vm3523
        %v3525 = vsel %vm3524, %v3516, %v3521
        %v3526 = vrsqrt.pop %v3440
        %v3527 = vmul.f32 %v3526, %v3440
        %v3528 = vmul.f32 %v3527, %v3526
        %v3529 = vmul.f32 0.5, %v3528
        %v3530 = vsub.f32 1.5, %v3529
        %v3531 = vmul.f32 %v3526, %v3530
        %vm3532 = vweird.f32 %v3440
        %vm3533 = vweird.f32 %v3526
        %vm3534 = vmor %vm3532, %vm3533
        %v3535 = vsel %vm3534, %v3526, %v3531
        %v3536 = vrsqrt.pop %v3441
        %v3537 = vmul.f32 %v3536, %v3441
        %v3538 = vmul.f32 %v3537, %v3536
        %v3539 = vmul.f32 0.5, %v3538
        %v3540 = vsub.f32 1.5, %v3539
        %v3541 = vmul.f32 %v3536, %v3540
        %vm3542 = vweird.f32 %v3441
        %vm3543 = vweird.f32 %v3536
        %vm3544 = vmor %vm3542, %vm3543
        %v3545 = vsel %vm3544, %v3536, %v3541
        %v3546 = vrsqrt.pop %v3442
        %v3547 = vmul.f32 %v3546, %v3442
        %v3548 = vmul.f32 %v3547, %v3546
        %v3549 = vmul.f32 0.5, %v3548
        %v3550 = vsub.f32 1.5, %v3549
        %v3551 = vmul.f32 %v3546, %v3550
        %vm3552 = vweird.f32 %v3442
        %vm3553 = vweird.f32 %v3546
        %vm3554 = vmor %vm3552, %vm3553
        %v3555 = vsel %vm3554, %v3546, %v3551
        %v3556 = vrsqrt.pop %v3443
        %v3557 = vmul.f32 %v3556, %v3443
        %v3558 = vmul.f32 %v3557, %v3556
        %v3559 = vmul.f32 0.5, %v3558
        %v3560 = vsub.f32 1.5, %v3559
        %v3561 = vmul.f32 %v3556, %v3560
        %vm3562 = vweird.f32 %v3443
        %vm3563 = vweird.f32 %v3556
        %vm3564 = vmor %vm3562, %vm3563
        %v3565 = vsel %vm3564, %v3556, %v3561
        %v3566 = vrsqrt.pop %v3444
        %v3567 = vmul.f32 %v3566, %v3444
        %v3568 = vmul.f32 %v3567, %v3566
        %v3569 = vmul.f32 0.5, %v3568
        %v3570 = vsub.f32 1.5, %v3569
        %v3571 = vmul.f32 %v3566, %v3570
        %vm3572 = vweird.f32 %v3444
        %vm3573 = vweird.f32 %v3566
        %vm3574 = vmor %vm3572, %vm3573
        %v3575 = vsel %vm3574, %v3566, %v3571
        %v3576 = vrsqrt.pop %v3445
        %v3577 = vmul.f32 %v3576, %v3445
        %v3578 = vmul.f32 %v3577, %v3576
        %v3579 = vmul.f32 0.5, %v3578
        %v3580 = vsub.f32 1.5, %v3579
        %v3581 = vmul.f32 %v3576, %v3580
        %vm3582 = vweird.f32 %v3445
        %vm3583 = vweird.f32 %v3576
        %vm3584 = vmor %vm3582, %vm3583
        %v3585 = vsel %vm3584, %v3576, %v3581
        %v3586 = vrsqrt.pop %v3446
        %v3587 = vmul.f32 %v3586, %v3446
        %v3588 = vmul.f32 %v3587, %v3586
        %v3589 = vmul.f32 0.5, %v3588
        %v3590 = vsub.f32 1.5, %v3589
        %v3591 = vmul.f32 %v3586, %v3590
        %vm3592 = vweird.f32 %v3446
        %vm3593 = vweird.f32 %v3586
        %vm3594 = vmor %vm3592, %vm3593
        %v3595 = vsel %vm3594, %v3586, %v3591
        %v3596 = vrsqrt.pop %v3447
        %v3597 = vmul.f32 %v3596, %v3447
        %v3598 = vmul.f32 %v3597, %v3596
        %v3599 = vmul.f32 0.5, %v3598
        %v3600 = vsub.f32 1.5, %v3599
        %v3601 = vmul.f32 %v3596, %v3600
        %vm3602 = vweird.f32 %v3447
        %vm3603 = vweird.f32 %v3596
        %vm3604 = vmor %vm3602, %vm3603
        %v3605 = vsel %vm3604, %v3596, %v3601
        %v3606 = vrsqrt.pop %v3448
        %v3607 = vmul.f32 %v3606, %v3448
        %v3608 = vmul.f32 %v3607, %v3606
        %v3609 = vmul.f32 0.5, %v3608
        %v3610 = vsub.f32 1.5, %v3609
        %v3611 = vmul.f32 %v3606, %v3610
        %vm3612 = vweird.f32 %v3448
        %vm3613 = vweird.f32 %v3606
        %vm3614 = vmor %vm3612, %vm3613
        %v3615 = vsel %vm3614, %v3606, %v3611
        %v3616 = vrsqrt.pop %v3449
        %v3617 = vmul.f32 %v3616, %v3449
        %v3618 = vmul.f32 %v3617, %v3616
        %v3619 = vmul.f32 0.5, %v3618
        %v3620 = vsub.f32 1.5, %v3619
        %v3621 = vmul.f32 %v3616, %v3620
        %vm3622 = vweird.f32 %v3449
        %vm3623 = vweird.f32 %v3616
        %vm3624 = vmor %vm3622, %vm3623
        %v3625 = vsel %vm3624, %v3616, %v3621
        %v3626 = vrsqrt.pop %v3450
        %v3627 = vmul.f32 %v3626, %v3450
        %v3628 = vmul.f32 %v3627, %v3626
        %v3629 = vmul.f32 0.5, %v3628
        %v3630 = vsub.f32 1.5, %v3629
        %v3631 = vmul.f32 %v3626, %v3630
        %vm3632 = vweird.f32 %v3450
        %vm3633 = vweird.f32 %v3626
        %vm3634 = vmor %vm3632, %vm3633
        %v3635 = vsel %vm3634, %v3626, %v3631
        %v3636 = vrsqrt.pop %v3451
        %v3637 = vmul.f32 %v3636, %v3451
        %v3638 = vmul.f32 %v3637, %v3636
        %v3639 = vmul.f32 0.5, %v3638
        %v3640 = vsub.f32 1.5, %v3639
        %v3641 = vmul.f32 %v3636, %v3640
        %vm3642 = vweird.f32 %v3451
        %vm3643 = vweird.f32 %v3636
        %vm3644 = vmor %vm3642, %vm3643
        %v3645 = vsel %vm3644, %v3636, %v3641
        %v3646 = vrsqrt.pop %v3452
        %v3647 = vmul.f32 %v3646, %v3452
        %v3648 = vmul.f32 %v3647, %v3646
        %v3649 = vmul.f32 0.5, %v3648
        %v3650 = vsub.f32 1.5, %v3649
        %v3651 = vmul.f32 %v3646, %v3650
        %vm3652 = vweird.f32 %v3452
        %vm3653 = vweird.f32 %v3646
        %vm3654 = vmor %vm3652, %vm3653
        %v3655 = vsel %vm3654, %v3646, %v3651
        %v3656 = vrsqrt.pop %v3453
        %v3657 = vmul.f32 %v3656, %v3453
        %v3658 = vmul.f32 %v3657, %v3656
        %v3659 = vmul.f32 0.5, %v3658
        %v3660 = vsub.f32 1.5, %v3659
        %v3661 = vmul.f32 %v3656, %v3660
        %vm3662 = vweird.f32 %v3453
        %vm3663 = vweird.f32 %v3656
        %vm3664 = vmor %vm3662, %vm3663
        %v3665 = vsel %vm3664, %v3656, %v3661
        %v3666 = vrsqrt.pop %v3454
        %v3667 = vmul.f32 %v3666, %v3454
        %v3668 = vmul.f32 %v3667, %v3666
        %v3669 = vmul.f32 0.5, %v3668
        %v3670 = vsub.f32 1.5, %v3669
        %v3671 = vmul.f32 %v3666, %v3670
        %vm3672 = vweird.f32 %v3454
        %vm3673 = vweird.f32 %v3666
        %vm3674 = vmor %vm3672, %vm3673
        %v3675 = vsel %vm3674, %v3666, %v3671
        %v3676 = vrsqrt.pop %v3455
        %v3677 = vmul.f32 %v3676, %v3455
        %v3678 = vmul.f32 %v3677, %v3676
        %v3679 = vmul.f32 0.5, %v3678
        %v3680 = vsub.f32 1.5, %v3679
        %v3681 = vmul.f32 %v3676, %v3680
        %vm3682 = vweird.f32 %v3455
        %vm3683 = vweird.f32 %v3676
        %vm3684 = vmor %vm3682, %vm3683
        %v3685 = vsel %vm3684, %v3676, %v3681
        %v3686 = vrsqrt.pop %v3456
        %v3687 = vmul.f32 %v3686, %v3456
        %v3688 = vmul.f32 %v3687, %v3686
        %v3689 = vmul.f32 0.5, %v3688
        %v3690 = vsub.f32 1.5, %v3689
        %v3691 = vmul.f32 %v3686, %v3690
        %vm3692 = vweird.f32 %v3456
        %vm3693 = vweird.f32 %v3686
        %vm3694 = vmor %vm3692, %vm3693
        %v3695 = vsel %vm3694, %v3686, %v3691
        %v3696 = vrsqrt.pop %v3457
        %v3697 = vmul.f32 %v3696, %v3457
        %v3698 = vmul.f32 %v3697, %v3696
        %v3699 = vmul.f32 0.5, %v3698
        %v3700 = vsub.f32 1.5, %v3699
        %v3701 = vmul.f32 %v3696, %v3700
        %vm3702 = vweird.f32 %v3457
        %vm3703 = vweird.f32 %v3696
        %vm3704 = vmor %vm3702, %vm3703
        %v3705 = vsel %vm3704, %v3696, %v3701
        %v3706 = vrsqrt.pop %v3458
        %v3707 = vmul.f32 %v3706, %v3458
        %v3708 = vmul.f32 %v3707, %v3706
        %v3709 = vmul.f32 0.5, %v3708
        %v3710 = vsub.f32 1.5, %v3709
        %v3711 = vmul.f32 %v3706, %v3710
        %vm3712 = vweird.f32 %v3458
        %vm3713 = vweird.f32 %v3706
        %vm3714 = vmor %vm3712, %vm3713
        %v3715 = vsel %vm3714, %v3706, %v3711
        %v3716 = vrsqrt.pop %v3459
        %v3717 = vmul.f32 %v3716, %v3459
        %v3718 = vmul.f32 %v3717, %v3716
        %v3719 = vmul.f32 0.5, %v3718
        %v3720 = vsub.f32 1.5, %v3719
        %v3721 = vmul.f32 %v3716, %v3720
        %vm3722 = vweird.f32 %v3459
        %vm3723 = vweird.f32 %v3716
        %vm3724 = vmor %vm3722, %vm3723
        %v3725 = vsel %vm3724, %v3716, %v3721
        %v3726 = vrsqrt.pop %v3460
        %v3727 = vmul.f32 %v3726, %v3460
        %v3728 = vmul.f32 %v3727, %v3726
        %v3729 = vmul.f32 0.5, %v3728
        %v3730 = vsub.f32 1.5, %v3729
        %v3731 = vmul.f32 %v3726, %v3730
        %vm3732 = vweird.f32 %v3460
        %vm3733 = vweird.f32 %v3726
        %vm3734 = vmor %vm3732, %vm3733
        %v3735 = vsel %vm3734, %v3726, %v3731
        %v3736 = vrsqrt.pop %v3461
        %v3737 = vmul.f32 %v3736, %v3461
        %v3738 = vmul.f32 %v3737, %v3736
        %v3739 = vmul.f32 0.5, %v3738
        %v3740 = vsub.f32 1.5, %v3739
        %v3741 = vmul.f32 %v3736, %v3740
        %vm3742 = vweird.f32 %v3461
        %vm3743 = vweird.f32 %v3736
        %vm3744 = vmor %vm3742, %vm3743
        %v3745 = vsel %vm3744, %v3736, %v3741
        %v3746 = vrsqrt.pop %v3462
        %v3747 = vmul.f32 %v3746, %v3462
        %v3748 = vmul.f32 %v3747, %v3746
        %v3749 = vmul.f32 0.5, %v3748
        %v3750 = vsub.f32 1.5, %v3749
        %v3751 = vmul.f32 %v3746, %v3750
        %vm3752 = vweird.f32 %v3462
        %vm3753 = vweird.f32 %v3746
        %vm3754 = vmor %vm3752, %vm3753
        %v3755 = vsel %vm3754, %v3746, %v3751
        %v3756 = vrsqrt.pop %v3463
        %v3757 = vmul.f32 %v3756, %v3463
        %v3758 = vmul.f32 %v3757, %v3756
        %v3759 = vmul.f32 0.5, %v3758
        %v3760 = vsub.f32 1.5, %v3759
        %v3761 = vmul.f32 %v3756, %v3760
        %vm3762 = vweird.f32 %v3463
        %vm3763 = vweird.f32 %v3756
        %vm3764 = vmor %vm3762, %vm3763
        %v3765 = vsel %vm3764, %v3756, %v3761
        %v3766 = vrsqrt.pop %v3464
        %v3767 = vmul.f32 %v3766, %v3464
        %v3768 = vmul.f32 %v3767, %v3766
        %v3769 = vmul.f32 0.5, %v3768
        %v3770 = vsub.f32 1.5, %v3769
        %v3771 = vmul.f32 %v3766, %v3770
        %vm3772 = vweird.f32 %v3464
        %vm3773 = vweird.f32 %v3766
        %vm3774 = vmor %vm3772, %vm3773
        %v3775 = vsel %vm3774, %v3766, %v3771
        %v3776 = vrsqrt.pop %v3465
        %v3777 = vmul.f32 %v3776, %v3465
        %v3778 = vmul.f32 %v3777, %v3776
        %v3779 = vmul.f32 0.5, %v3778
        %v3780 = vsub.f32 1.5, %v3779
        %v3781 = vmul.f32 %v3776, %v3780
        %vm3782 = vweird.f32 %v3465
        %vm3783 = vweird.f32 %v3776
        %vm3784 = vmor %vm3782, %vm3783
        %v3785 = vsel %vm3784, %v3776, %v3781
        %v3786 = vmul.f32 %v3274, %v3475
        %v3787 = vmul.f32 %v3275, %v3485
        %v3788 = vmul.f32 %v3276, %v3495
        %v3789 = vmul.f32 %v3277, %v3505
        %v3790 = vmul.f32 %v3278, %v3515
        %v3791 = vmul.f32 %v3279, %v3525
        %v3792 = vmul.f32 %v3280, %v3535
        %v3793 = vmul.f32 %v3281, %v3545
        %v3794 = vmul.f32 %v3282, %v3555
        %v3795 = vmul.f32 %v3283, %v3565
        %v3796 = vmul.f32 %v3284, %v3575
        %v3797 = vmul.f32 %v3285, %v3585
        %v3798 = vmul.f32 %v3286, %v3595
        %v3799 = vmul.f32 %v3287, %v3605
        %v3800 = vmul.f32 %v3288, %v3615
        %v3801 = vmul.f32 %v3289, %v3625
        %v3802 = vmul.f32 %v3290, %v3635
        %v3803 = vmul.f32 %v3291, %v3645
        %v3804 = vmul.f32 %v3292, %v3655
        %v3805 = vmul.f32 %v3293, %v3665
        %v3806 = vmul.f32 %v3294, %v3675
        %v3807 = vmul.f32 %v3295, %v3685
        %v3808 = vmul.f32 %v3296, %v3695
        %v3809 = vmul.f32 %v3297, %v3705
        %v3810 = vmul.f32 %v3298, %v3715
        %v3811 = vmul.f32 %v3299, %v3725
        %v3812 = vmul.f32 %v3300, %v3735
        %v3813 = vmul.f32 %v3301, %v3745
        %v3814 = vmul.f32 %v3302, %v3755
        %v3815 = vmul.f32 %v3303, %v3765
        %v3816 = vmul.f32 %v3304, %v3775
        %v3817 = vmul.f32 %v3305, %v3785
        %v3818 = vld [vmem:[%s7] sm:$0x1]
        %v3820 = vperm.slane %v3818, 0
        %v3822 = vmul.f32 %v3786, %v3820
        %v3823 = vmul.f32 %v3787, %v3820
        %v3824 = vmul.f32 %v3788, %v3820
        %v3825 = vmul.f32 %v3789, %v3820
        %v3826 = vmul.f32 %v3790, %v3820
        %v3827 = vmul.f32 %v3791, %v3820
        %v3828 = vmul.f32 %v3792, %v3820
        %v3829 = vmul.f32 %v3793, %v3820
        %v3830 = vmul.f32 %v3794, %v3820
        %v3831 = vmul.f32 %v3795, %v3820
        %v3832 = vmul.f32 %v3796, %v3820
        %v3833 = vmul.f32 %v3797, %v3820
        %v3834 = vmul.f32 %v3798, %v3820
        %v3835 = vmul.f32 %v3799, %v3820
        %v3836 = vmul.f32 %v3800, %v3820
        %v3837 = vmul.f32 %v3801, %v3820
        %v3838 = vmul.f32 %v3802, %v3820
        %v3839 = vmul.f32 %v3803, %v3820
        %v3840 = vmul.f32 %v3804, %v3820
        %v3841 = vmul.f32 %v3805, %v3820
        %v3842 = vmul.f32 %v3806, %v3820
        %v3843 = vmul.f32 %v3807, %v3820
        %v3844 = vmul.f32 %v3808, %v3820
        %v3845 = vmul.f32 %v3809, %v3820
        %v3846 = vmul.f32 %v3810, %v3820
        %v3847 = vmul.f32 %v3811, %v3820
        %v3848 = vmul.f32 %v3812, %v3820
        %v3849 = vmul.f32 %v3813, %v3820
        %v3850 = vmul.f32 %v3814, %v3820
        %v3851 = vmul.f32 %v3815, %v3820
        %v3852 = vmul.f32 %v3816, %v3820
        %v3853 = vmul.f32 %v3817, %v3820
        %v3854 = vld [vmem:[%s8] sm:$0x1]
        %v3856 = vperm.slane %v3854, 0
        %v3858 = vadd.f32 %v3822, %v3856
        %v3859 = vadd.f32 %v3823, %v3856
        %v3860 = vadd.f32 %v3824, %v3856
        %v3861 = vadd.f32 %v3825, %v3856
        %v3862 = vadd.f32 %v3826, %v3856
        %v3863 = vadd.f32 %v3827, %v3856
        %v3864 = vadd.f32 %v3828, %v3856
        %v3865 = vadd.f32 %v3829, %v3856
        %v3866 = vadd.f32 %v3830, %v3856
        %v3867 = vadd.f32 %v3831, %v3856
        %v3868 = vadd.f32 %v3832, %v3856
        %v3869 = vadd.f32 %v3833, %v3856
        %v3870 = vadd.f32 %v3834, %v3856
        %v3871 = vadd.f32 %v3835, %v3856
        %v3872 = vadd.f32 %v3836, %v3856
        %v3873 = vadd.f32 %v3837, %v3856
        %v3874 = vadd.f32 %v3838, %v3856
        %v3875 = vadd.f32 %v3839, %v3856
        %v3876 = vadd.f32 %v3840, %v3856
        %v3877 = vadd.f32 %v3841, %v3856
        %v3878 = vadd.f32 %v3842, %v3856
        %v3879 = vadd.f32 %v3843, %v3856
        %v3880 = vadd.f32 %v3844, %v3856
        %v3881 = vadd.f32 %v3845, %v3856
        %v3882 = vadd.f32 %v3846, %v3856
        %v3883 = vadd.f32 %v3847, %v3856
        %v3884 = vadd.f32 %v3848, %v3856
        %v3885 = vadd.f32 %v3849, %v3856
        %v3886 = vadd.f32 %v3850, %v3856
        %v3887 = vadd.f32 %v3851, %v3856
        %v3888 = vadd.f32 %v3852, %v3856
        %v3889 = vadd.f32 %v3853, %v3856
        %v3890 = vld [vmem:[%s9] sm:$0xff]
        %v3891 = vld [vmem:[%s9 + $0x8] sm:$0xff]
        %v3892 = vld [vmem:[%s9 + $0x10] sm:$0xff]
        %v3893 = vld [vmem:[%s9 + $0x18] sm:$0xff]
        %v3894 = vld [vmem:[%s9 + $0x20] sm:$0xff]
        %v3895 = vld [vmem:[%s9 + $0x28] sm:$0xff]
        %v3896 = vld [vmem:[%s9 + $0x30] sm:$0xff]
        %v3897 = vld [vmem:[%s9 + $0x38] sm:$0xff]
        %v3898 = vld [vmem:[%s9 + $0x40] sm:$0xff]
        %v3899 = vld [vmem:[%s9 + $0x48] sm:$0xff]
        %v3900 = vld [vmem:[%s9 + $0x50] sm:$0xff]
        %v3901 = vld [vmem:[%s9 + $0x58] sm:$0xff]
        %v3902 = vld [vmem:[%s9 + $0x60] sm:$0xff]
        %v3903 = vld [vmem:[%s9 + $0x68] sm:$0xff]
        %v3904 = vld [vmem:[%s9 + $0x70] sm:$0xff]
        %v3905 = vld [vmem:[%s9 + $0x78] sm:$0xff]
        %v3906 = vld [vmem:[%s9 + $0x80] sm:$0xff]
        %v3907 = vld [vmem:[%s9 + $0x88] sm:$0xff]
        %v3908 = vld [vmem:[%s9 + $0x90] sm:$0xff]
        %v3909 = vld [vmem:[%s9 + $0x98] sm:$0xff]
        %v3910 = vld [vmem:[%s9 + $0xa0] sm:$0xff]
        %v3911 = vld [vmem:[%s9 + $0xa8] sm:$0xff]
        %v3912 = vld [vmem:[%s9 + $0xb0] sm:$0xff]
        %v3913 = vld [vmem:[%s9 + $0xb8] sm:$0xff]
        %v3914 = vld [vmem:[%s9 + $0xc0] sm:$0xff]
        %v3915 = vld [vmem:[%s9 + $0xc8] sm:$0xff]
        %v3916 = vld [vmem:[%s9 + $0xd0] sm:$0xff]
        %v3917 = vld [vmem:[%s9 + $0xd8] sm:$0xff]
        %v3918 = vld [vmem:[%s9 + $0xe0] sm:$0xff]
        %v3919 = vld [vmem:[%s9 + $0xe8] sm:$0xff]
        %v3920 = vld [vmem:[%s9 + $0xf0] sm:$0xff]
        %v3921 = vld [vmem:[%s9 + $0xf8] sm:$0xff]
        %v3922 = vld [vmem:[%s9 + $0x100] sm:$0xff]
        %v3923 = vld [vmem:[%s9 + $0x108] sm:$0xff]
        %v3924 = vld [vmem:[%s9 + $0x110] sm:$0xff]
        %v3925 = vld [vmem:[%s9 + $0x118] sm:$0xff]
        %v3926 = vld [vmem:[%s9 + $0x120] sm:$0xff]
        %v3927 = vld [vmem:[%s9 + $0x128] sm:$0xff]
        %v3928 = vld [vmem:[%s9 + $0x130] sm:$0xff]
        %v3929 = vld [vmem:[%s9 + $0x138] sm:$0xff]
        %v3930 = vld [vmem:[%s9 + $0x140] sm:$0xff]
        %v3931 = vld [vmem:[%s9 + $0x148] sm:$0xff]
        %v3932 = vld [vmem:[%s9 + $0x150] sm:$0xff]
        %v3933 = vld [vmem:[%s9 + $0x158] sm:$0xff]
        %v3934 = vld [vmem:[%s9 + $0x160] sm:$0xff]
        %v3935 = vld [vmem:[%s9 + $0x168] sm:$0xff]
        %v3936 = vld [vmem:[%s9 + $0x170] sm:$0xff]
        %v3937 = vld [vmem:[%s9 + $0x178] sm:$0xff]
        %v3938 = vld [vmem:[%s9 + $0x180] sm:$0xff]
        %v3939 = vld [vmem:[%s9 + $0x188] sm:$0xff]
        %v3940 = vld [vmem:[%s9 + $0x190] sm:$0xff]
        %v3941 = vld [vmem:[%s9 + $0x198] sm:$0xff]
        %v3942 = vld [vmem:[%s9 + $0x1a0] sm:$0xff]
        %v3943 = vld [vmem:[%s9 + $0x1a8] sm:$0xff]
        %v3944 = vld [vmem:[%s9 + $0x1b0] sm:$0xff]
        %v3945 = vld [vmem:[%s9 + $0x1b8] sm:$0xff]
        %v3946 = vld [vmem:[%s9 + $0x1c0] sm:$0xff]
        %v3947 = vld [vmem:[%s9 + $0x1c8] sm:$0xff]
        %v3948 = vld [vmem:[%s9 + $0x1d0] sm:$0xff]
        %v3949 = vld [vmem:[%s9 + $0x1d8] sm:$0xff]
        %v3950 = vld [vmem:[%s9 + $0x1e0] sm:$0xff]
        %v3951 = vld [vmem:[%s9 + $0x1e8] sm:$0xff]
        %v3952 = vld [vmem:[%s9 + $0x1f0] sm:$0xff]
        %v3953 = vld [vmem:[%s9 + $0x1f8] sm:$0xff]
        %v3954 = vld [vmem:[%s10] sm:$0xf]
        %v3956 = vperm.slane %v3954, 0
        %v3957 = vperm.slane %v3954, 1
        %v3958 = vperm.slane %v3954, 2
        %v3959 = vperm.slane %v3954, 3
        %3964 = vmatpush.msra.mxu0 %v3950
        %3965 = vmatpush.msra.mxu0 %v3946
        %3966 = vmatpush.msra.mxu0 %v3942
        %3967 = vmatpush.msra.mxu0 %v3938
        %3968 = vmatpush.msra.mxu0 %v3934
        %3969 = vmatpush.msra.mxu0 %v3930
        %3970 = vmatpush.msra.mxu0 %v3926
        %3971 = vmatpush.msra.mxu0 %v3922
        %3972 = vmatpush.msra.mxu0 %v3918
        %3973 = vmatpush.msra.mxu0 %v3914
        %3974 = vmatpush.msra.mxu0 %v3910
        %3975 = vmatpush.msra.mxu0 %v3906
        %3976 = vmatpush.msra.mxu0 %v3902
        %3977 = vmatpush.msra.mxu0 %v3898
        %3978 = vmatpush.msra.mxu0 %v3894
        %3979 = vmatpush.msra.mxu0 %v3890
        %3980 = vmatmul.f32.gmra.mxu0 %v3858
        %v3981 = vpop.f32.mrf.mxu0
        %v3982 = vadd.f32 %v3956, %v3981
        %3983 = vmatmul.f32.gmra.mxu0 %v3859
        %v3984 = vpop.f32.mrf.mxu0
        %v3985 = vadd.f32 %v3956, %v3984
        %3986 = vmatmul.f32.gmra.mxu0 %v3860
        %v3987 = vpop.f32.mrf.mxu0
        %v3988 = vadd.f32 %v3956, %v3987
        %3989 = vmatmul.f32.gmra.mxu0 %v3861
        %v3990 = vpop.f32.mrf.mxu0
        %v3991 = vadd.f32 %v3956, %v3990
        %3992 = vmatmul.f32.gmra.mxu0 %v3862
        %v3993 = vpop.f32.mrf.mxu0
        %v3994 = vadd.f32 %v3956, %v3993
        %3995 = vmatmul.f32.gmra.mxu0 %v3863
        %v3996 = vpop.f32.mrf.mxu0
        %v3997 = vadd.f32 %v3956, %v3996
        %3998 = vmatmul.f32.gmra.mxu0 %v3864
        %v3999 = vpop.f32.mrf.mxu0
        %v4000 = vadd.f32 %v3956, %v3999
        %4001 = vmatmul.f32.gmra.mxu0 %v3865
        %v4002 = vpop.f32.mrf.mxu0
        %v4003 = vadd.f32 %v3956, %v4002
        %4004 = vmatmul.f32.gmra.mxu0 %v3866
        %v4005 = vpop.f32.mrf.mxu0
        %v4006 = vadd.f32 %v3956, %v4005
        %4007 = vmatmul.f32.gmra.mxu0 %v3867
        %v4008 = vpop.f32.mrf.mxu0
        %v4009 = vadd.f32 %v3956, %v4008
        %4010 = vmatmul.f32.gmra.mxu0 %v3868
        %v4011 = vpop.f32.mrf.mxu0
        %v4012 = vadd.f32 %v3956, %v4011
        %4013 = vmatmul.f32.gmra.mxu0 %v3869
        %v4014 = vpop.f32.mrf.mxu0
        %v4015 = vadd.f32 %v3956, %v4014
        %4016 = vmatmul.f32.gmra.mxu0 %v3870
        %v4017 = vpop.f32.mrf.mxu0
        %v4018 = vadd.f32 %v3956, %v4017
        %4019 = vmatmul.f32.gmra.mxu0 %v3871
        %v4020 = vpop.f32.mrf.mxu0
        %v4021 = vadd.f32 %v3956, %v4020
        %4022 = vmatmul.f32.gmra.mxu0 %v3872
        %v4023 = vpop.f32.mrf.mxu0
        %v4024 = vadd.f32 %v3956, %v4023
        %4025 = vmatmul.f32.gmra.mxu0 %v3873
        %v4026 = vpop.f32.mrf.mxu0
        %v4027 = vadd.f32 %v3956, %v4026
        %4028 = vmatmul.f32.gmra.mxu0 %v3874
        %v4029 = vpop.f32.mrf.mxu0
        %v4030 = vadd.f32 %v3956, %v4029
        %4031 = vmatmul.f32.gmra.mxu0 %v3875
        %v4032 = vpop.f32.mrf.mxu0
        %v4033 = vadd.f32 %v3956, %v4032
        %4034 = vmatmul.f32.gmra.mxu0 %v3876
        %v4035 = vpop.f32.mrf.mxu0
        %v4036 = vadd.f32 %v3956, %v4035
        %4037 = vmatmul.f32.gmra.mxu0 %v3877
        %v4038 = vpop.f32.mrf.mxu0
        %v4039 = vadd.f32 %v3956, %v4038
        %4040 = vmatmul.f32.gmra.mxu0 %v3878
        %v4041 = vpop.f32.mrf.mxu0
        %v4042 = vadd.f32 %v3956, %v4041
        %4043 = vmatmul.f32.gmra.mxu0 %v3879
        %v4044 = vpop.f32.mrf.mxu0
        %v4045 = vadd.f32 %v3956, %v4044
        %4046 = vmatmul.f32.gmra.mxu0 %v3880
        %v4047 = vpop.f32.mrf.mxu0
        %v4048 = vadd.f32 %v3956, %v4047
        %4049 = vmatmul.f32.gmra.mxu0 %v3881
        %v4050 = vpop.f32.mrf.mxu0
        %v4051 = vadd.f32 %v3956, %v4050
        %4052 = vmatmul.f32.gmra.mxu0 %v3882
        %v4053 = vpop.f32.mrf.mxu0
        %v4054 = vadd.f32 %v3956, %v4053
        %4055 = vmatmul.f32.gmra.mxu0 %v3883
        %v4056 = vpop.f32.mrf.mxu0
        %v4057 = vadd.f32 %v3956, %v4056
        %4058 = vmatmul.f32.gmra.mxu0 %v3884
        %v4059 = vpop.f32.mrf.mxu0
        %v4060 = vadd.f32 %v3956, %v4059
        %4061 = vmatmul.f32.gmra.mxu0 %v3885
        %v4062 = vpop.f32.mrf.mxu0
        %v4063 = vadd.f32 %v3956, %v4062
        %4064 = vmatmul.f32.gmra.mxu0 %v3886
        %v4065 = vpop.f32.mrf.mxu0
        %v4066 = vadd.f32 %v3956, %v4065
        %4067 = vmatmul.f32.gmra.mxu0 %v3887
        %v4068 = vpop.f32.mrf.mxu0
        %v4069 = vadd.f32 %v3956, %v4068
        %4070 = vmatmul.f32.gmra.mxu0 %v3888
        %v4071 = vpop.f32.mrf.mxu0
        %v4072 = vadd.f32 %v3956, %v4071
        %4073 = vmatmul.f32.gmra.mxu0 %v3889
        %v4074 = vpop.f32.mrf.mxu0
        %v4075 = vadd.f32 %v3956, %v4074
        %4076 = vdwg.mxu0
        %4077 = vmatpush.msra.mxu0 %v3951
        %4078 = vmatpush.msra.mxu0 %v3947
        %4079 = vmatpush.msra.mxu0 %v3943
        %4080 = vmatpush.msra.mxu0 %v3939
        %4081 = vmatpush.msra.mxu0 %v3935
        %4082 = vmatpush.msra.mxu0 %v3931
        %4083 = vmatpush.msra.mxu0 %v3927
        %4084 = vmatpush.msra.mxu0 %v3923
        %4085 = vmatpush.msra.mxu0 %v3919
        %4086 = vmatpush.msra.mxu0 %v3915
        %4087 = vmatpush.msra.mxu0 %v3911
        %4088 = vmatpush.msra.mxu0 %v3907
        %4089 = vmatpush.msra.mxu0 %v3903
        %4090 = vmatpush.msra.mxu0 %v3899
        %4091 = vmatpush.msra.mxu0 %v3895
        %4092 = vmatpush.msra.mxu0 %v3891
        %4093 = vmatmul.f32.gmra.mxu0 %v3858
        %v4094 = vpop.f32.mrf.mxu0
        %v4095 = vadd.f32 %v3957, %v4094
        %4096 = vmatmul.f32.gmra.mxu0 %v3859
        %v4097 = vpop.f32.mrf.mxu0
        %v4098 = vadd.f32 %v3957, %v4097
        %4099 = vmatmul.f32.gmra.mxu0 %v3860
        %v4100 = vpop.f32.mrf.mxu0
        %v4101 = vadd.f32 %v3957, %v4100
        %4102 = vmatmul.f32.gmra.mxu0 %v3861
        %v4103 = vpop.f32.mrf.mxu0
        %v4104 = vadd.f32 %v3957, %v4103
        %4105 = vmatmul.f32.gmra.mxu0 %v3862
        %v4106 = vpop.f32.mrf.mxu0
        %v4107 = vadd.f32 %v3957, %v4106
        %4108 = vmatmul.f32.gmra.mxu0 %v3863
        %v4109 = vpop.f32.mrf.mxu0
        %v4110 = vadd.f32 %v3957, %v4109
        %4111 = vmatmul.f32.gmra.mxu0 %v3864
        %v4112 = vpop.f32.mrf.mxu0
        %v4113 = vadd.f32 %v3957, %v4112
        %4114 = vmatmul.f32.gmra.mxu0 %v3865
        %v4115 = vpop.f32.mrf.mxu0
        %v4116 = vadd.f32 %v3957, %v4115
        %4117 = vmatmul.f32.gmra.mxu0 %v3866
        %v4118 = vpop.f32.mrf.mxu0
        %v4119 = vadd.f32 %v3957, %v4118
        %4120 = vmatmul.f32.gmra.mxu0 %v3867
        %v4121 = vpop.f32.mrf.mxu0
        %v4122 = vadd.f32 %v3957, %v4121
        %4123 = vmatmul.f32.gmra.mxu0 %v3868
        %v4124 = vpop.f32.mrf.mxu0
        %v4125 = vadd.f32 %v3957, %v4124
        %4126 = vmatmul.f32.gmra.mxu0 %v3869
        %v4127 = vpop.f32.mrf.mxu0
        %v4128 = vadd.f32 %v3957, %v4127
        %4129 = vmatmul.f32.gmra.mxu0 %v3870
        %v4130 = vpop.f32.mrf.mxu0
        %v4131 = vadd.f32 %v3957, %v4130
        %4132 = vmatmul.f32.gmra.mxu0 %v3871
        %v4133 = vpop.f32.mrf.mxu0
        %v4134 = vadd.f32 %v3957, %v4133
        %4135 = vmatmul.f32.gmra.mxu0 %v3872
        %v4136 = vpop.f32.mrf.mxu0
        %v4137 = vadd.f32 %v3957, %v4136
        %4138 = vmatmul.f32.gmra.mxu0 %v3873
        %v4139 = vpop.f32.mrf.mxu0
        %v4140 = vadd.f32 %v3957, %v4139
        %4141 = vmatmul.f32.gmra.mxu0 %v3874
        %v4142 = vpop.f32.mrf.mxu0
        %v4143 = vadd.f32 %v3957, %v4142
        %4144 = vmatmul.f32.gmra.mxu0 %v3875
        %v4145 = vpop.f32.mrf.mxu0
        %v4146 = vadd.f32 %v3957, %v4145
        %4147 = vmatmul.f32.gmra.mxu0 %v3876
        %v4148 = vpop.f32.mrf.mxu0
        %v4149 = vadd.f32 %v3957, %v4148
        %4150 = vmatmul.f32.gmra.mxu0 %v3877
        %v4151 = vpop.f32.mrf.mxu0
        %v4152 = vadd.f32 %v3957, %v4151
        %4153 = vmatmul.f32.gmra.mxu0 %v3878
        %v4154 = vpop.f32.mrf.mxu0
        %v4155 = vadd.f32 %v3957, %v4154
        %4156 = vmatmul.f32.gmra.mxu0 %v3879
        %v4157 = vpop.f32.mrf.mxu0
        %v4158 = vadd.f32 %v3957, %v4157
        %4159 = vmatmul.f32.gmra.mxu0 %v3880
        %v4160 = vpop.f32.mrf.mxu0
        %v4161 = vadd.f32 %v3957, %v4160
        %4162 = vmatmul.f32.gmra.mxu0 %v3881
        %v4163 = vpop.f32.mrf.mxu0
        %v4164 = vadd.f32 %v3957, %v4163
        %4165 = vmatmul.f32.gmra.mxu0 %v3882
        %v4166 = vpop.f32.mrf.mxu0
        %v4167 = vadd.f32 %v3957, %v4166
        %4168 = vmatmul.f32.gmra.mxu0 %v3883
        %v4169 = vpop.f32.mrf.mxu0
        %v4170 = vadd.f32 %v3957, %v4169
        %4171 = vmatmul.f32.gmra.mxu0 %v3884
        %v4172 = vpop.f32.mrf.mxu0
        %v4173 = vadd.f32 %v3957, %v4172
        %4174 = vmatmul.f32.gmra.mxu0 %v3885
        %v4175 = vpop.f32.mrf.mxu0
        %v4176 = vadd.f32 %v3957, %v4175
        %4177 = vmatmul.f32.gmra.mxu0 %v3886
        %v4178 = vpop.f32.mrf.mxu0
        %v4179 = vadd.f32 %v3957, %v4178
        %4180 = vmatmul.f32.gmra.mxu0 %v3887
        %v4181 = vpop.f32.mrf.mxu0
        %v4182 = vadd.f32 %v3957, %v4181
        %4183 = vmatmul.f32.gmra.mxu0 %v3888
        %v4184 = vpop.f32.mrf.mxu0
        %v4185 = vadd.f32 %v3957, %v4184
        %4186 = vmatmul.f32.gmra.mxu0 %v3889
        %v4187 = vpop.f32.mrf.mxu0
        %v4188 = vadd.f32 %v3957, %v4187
        %4189 = vdwg.mxu0
        %4190 = vmatpush.msra.mxu0 %v3952
        %4191 = vmatpush.msra.mxu0 %v3948
        %4192 = vmatpush.msra.mxu0 %v3944
        %4193 = vmatpush.msra.mxu0 %v3940
        %4194 = vmatpush.msra.mxu0 %v3936
        %4195 = vmatpush.msra.mxu0 %v3932
        %4196 = vmatpush.msra.mxu0 %v3928
        %4197 = vmatpush.msra.mxu0 %v3924
        %4198 = vmatpush.msra.mxu0 %v3920
        %4199 = vmatpush.msra.mxu0 %v3916
        %4200 = vmatpush.msra.mxu0 %v3912
        %4201 = vmatpush.msra.mxu0 %v3908
        %4202 = vmatpush.msra.mxu0 %v3904
        %4203 = vmatpush.msra.mxu0 %v3900
        %4204 = vmatpush.msra.mxu0 %v3896
        %4205 = vmatpush.msra.mxu0 %v3892
        %4206 = vmatmul.f32.gmra.mxu0 %v3858
        %v4207 = vpop.f32.mrf.mxu0
        %v4208 = vadd.f32 %v3958, %v4207
        %4209 = vmatmul.f32.gmra.mxu0 %v3859
        %v4210 = vpop.f32.mrf.mxu0
        %v4211 = vadd.f32 %v3958, %v4210
        %4212 = vmatmul.f32.gmra.mxu0 %v3860
        %v4213 = vpop.f32.mrf.mxu0
        %v4214 = vadd.f32 %v3958, %v4213
        %4215 = vmatmul.f32.gmra.mxu0 %v3861
        %v4216 = vpop.f32.mrf.mxu0
        %v4217 = vadd.f32 %v3958, %v4216
        %4218 = vmatmul.f32.gmra.mxu0 %v3862
        %v4219 = vpop.f32.mrf.mxu0
        %v4220 = vadd.f32 %v3958, %v4219
        %4221 = vmatmul.f32.gmra.mxu0 %v3863
        %v4222 = vpop.f32.mrf.mxu0
        %v4223 = vadd.f32 %v3958, %v4222
        %4224 = vmatmul.f32.gmra.mxu0 %v3864
        %v4225 = vpop.f32.mrf.mxu0
        %v4226 = vadd.f32 %v3958, %v4225
        %4227 = vmatmul.f32.gmra.mxu0 %v3865
        %v4228 = vpop.f32.mrf.mxu0
        %v4229 = vadd.f32 %v3958, %v4228
        %4230 = vmatmul.f32.gmra.mxu0 %v3866
        %v4231 = vpop.f32.mrf.mxu0
        %v4232 = vadd.f32 %v3958, %v4231
        %4233 = vmatmul.f32.gmra.mxu0 %v3867
        %v4234 = vpop.f32.mrf.mxu0
        %v4235 = vadd.f32 %v3958, %v4234
        %4236 = vmatmul.f32.gmra.mxu0 %v3868
        %v4237 = vpop.f32.mrf.mxu0
        %v4238 = vadd.f32 %v3958, %v4237
        %4239 = vmatmul.f32.gmra.mxu0 %v3869
        %v4240 = vpop.f32.mrf.mxu0
        %v4241 = vadd.f32 %v3958, %v4240
        %4242 = vmatmul.f32.gmra.mxu0 %v3870
        %v4243 = vpop.f32.mrf.mxu0
        %v4244 = vadd.f32 %v3958, %v4243
        %4245 = vmatmul.f32.gmra.mxu0 %v3871
        %v4246 = vpop.f32.mrf.mxu0
        %v4247 = vadd.f32 %v3958, %v4246
        %4248 = vmatmul.f32.gmra.mxu0 %v3872
        %v4249 = vpop.f32.mrf.mxu0
        %v4250 = vadd.f32 %v3958, %v4249
        %4251 = vmatmul.f32.gmra.mxu0 %v3873
        %v4252 = vpop.f32.mrf.mxu0
        %v4253 = vadd.f32 %v3958, %v4252
        %4254 = vmatmul.f32.gmra.mxu0 %v3874
        %v4255 = vpop.f32.mrf.mxu0
        %v4256 = vadd.f32 %v3958, %v4255
        %4257 = vmatmul.f32.gmra.mxu0 %v3875
        %v4258 = vpop.f32.mrf.mxu0
        %v4259 = vadd.f32 %v3958, %v4258
        %4260 = vmatmul.f32.gmra.mxu0 %v3876
        %v4261 = vpop.f32.mrf.mxu0
        %v4262 = vadd.f32 %v3958, %v4261
        %4263 = vmatmul.f32.gmra.mxu0 %v3877
        %v4264 = vpop.f32.mrf.mxu0
        %v4265 = vadd.f32 %v3958, %v4264
        %4266 = vmatmul.f32.gmra.mxu0 %v3878
        %v4267 = vpop.f32.mrf.mxu0
        %v4268 = vadd.f32 %v3958, %v4267
        %4269 = vmatmul.f32.gmra.mxu0 %v3879
        %v4270 = vpop.f32.mrf.mxu0
        %v4271 = vadd.f32 %v3958, %v4270
        %4272 = vmatmul.f32.gmra.mxu0 %v3880
        %v4273 = vpop.f32.mrf.mxu0
        %v4274 = vadd.f32 %v3958, %v4273
        %4275 = vmatmul.f32.gmra.mxu0 %v3881
        %v4276 = vpop.f32.mrf.mxu0
        %v4277 = vadd.f32 %v3958, %v4276
        %4278 = vmatmul.f32.gmra.mxu0 %v3882
        %v4279 = vpop.f32.mrf.mxu0
        %v4280 = vadd.f32 %v3958, %v4279
        %4281 = vmatmul.f32.gmra.mxu0 %v3883
        %v4282 = vpop.f32.mrf.mxu0
        %v4283 = vadd.f32 %v3958, %v4282
        %4284 = vmatmul.f32.gmra.mxu0 %v3884
        %v4285 = vpop.f32.mrf.mxu0
        %v4286 = vadd.f32 %v3958, %v4285
        %4287 = vmatmul.f32.gmra.mxu0 %v3885
        %v4288 = vpop.f32.mrf.mxu0
        %v4289 = vadd.f32 %v3958, %v4288
        %4290 = vmatmul.f32.gmra.mxu0 %v3886
        %v4291 = vpop.f32.mrf.mxu0
        %v4292 = vadd.f32 %v3958, %v4291
        %4293 = vmatmul.f32.gmra.mxu0 %v3887
        %v4294 = vpop.f32.mrf.mxu0
        %v4295 = vadd.f32 %v3958, %v4294
        %4296 = vmatmul.f32.gmra.mxu0 %v3888
        %v4297 = vpop.f32.mrf.mxu0
        %v4298 = vadd.f32 %v3958, %v4297
        %4299 = vmatmul.f32.gmra.mxu0 %v3889
        %v4300 = vpop.f32.mrf.mxu0
        %v4301 = vadd.f32 %v3958, %v4300
        %4302 = vdwg.mxu0
        %4303 = vmatpush.msra.mxu0 %v3953
        %4304 = vmatpush.msra.mxu0 %v3949
        %4305 = vmatpush.msra.mxu0 %v3945
        %4306 = vmatpush.msra.mxu0 %v3941
        %4307 = vmatpush.msra.mxu0 %v3937
        %4308 = vmatpush.msra.mxu0 %v3933
        %4309 = vmatpush.msra.mxu0 %v3929
        %4310 = vmatpush.msra.mxu0 %v3925
        %4311 = vmatpush.msra.mxu0 %v3921
        %4312 = vmatpush.msra.mxu0 %v3917
        %4313 = vmatpush.msra.mxu0 %v3913
        %4314 = vmatpush.msra.mxu0 %v3909
        %4315 = vmatpush.msra.mxu0 %v3905
        %4316 = vmatpush.msra.mxu0 %v3901
        %4317 = vmatpush.msra.mxu0 %v3897
        %4318 = vmatpush.msra.mxu0 %v3893
        %4319 = vmatmul.f32.gmra.mxu0 %v3858
        %v4320 = vpop.f32.mrf.mxu0
        %v4321 = vadd.f32 %v3959, %v4320
        %4322 = vmatmul.f32.gmra.mxu0 %v3859
        %v4323 = vpop.f32.mrf.mxu0
        %v4324 = vadd.f32 %v3959, %v4323
        %4325 = vmatmul.f32.gmra.mxu0 %v3860
        %v4326 = vpop.f32.mrf.mxu0
        %v4327 = vadd.f32 %v3959, %v4326
        %4328 = vmatmul.f32.gmra.mxu0 %v3861
        %v4329 = vpop.f32.mrf.mxu0
        %v4330 = vadd.f32 %v3959, %v4329
        %4331 = vmatmul.f32.gmra.mxu0 %v3862
        %v4332 = vpop.f32.mrf.mxu0
        %v4333 = vadd.f32 %v3959, %v4332
        %4334 = vmatmul.f32.gmra.mxu0 %v3863
        %v4335 = vpop.f32.mrf.mxu0
        %v4336 = vadd.f32 %v3959, %v4335
        %4337 = vmatmul.f32.gmra.mxu0 %v3864
        %v4338 = vpop.f32.mrf.mxu0
        %v4339 = vadd.f32 %v3959, %v4338
        %4340 = vmatmul.f32.gmra.mxu0 %v3865
        %v4341 = vpop.f32.mrf.mxu0
        %v4342 = vadd.f32 %v3959, %v4341
        %4343 = vmatmul.f32.gmra.mxu0 %v3866
        %v4344 = vpop.f32.mrf.mxu0
        %v4345 = vadd.f32 %v3959, %v4344
        %4346 = vmatmul.f32.gmra.mxu0 %v3867
        %v4347 = vpop.f32.mrf.mxu0
        %v4348 = vadd.f32 %v3959, %v4347
        %4349 = vmatmul.f32.gmra.mxu0 %v3868
        %v4350 = vpop.f32.mrf.mxu0
        %v4351 = vadd.f32 %v3959, %v4350
        %4352 = vmatmul.f32.gmra.mxu0 %v3869
        %v4353 = vpop.f32.mrf.mxu0
        %v4354 = vadd.f32 %v3959, %v4353
        %4355 = vmatmul.f32.gmra.mxu0 %v3870
        %v4356 = vpop.f32.mrf.mxu0
        %v4357 = vadd.f32 %v3959, %v4356
        %4358 = vmatmul.f32.gmra.mxu0 %v3871
        %v4359 = vpop.f32.mrf.mxu0
        %v4360 = vadd.f32 %v3959, %v4359
        %4361 = vmatmul.f32.gmra.mxu0 %v3872
        %v4362 = vpop.f32.mrf.mxu0
        %v4363 = vadd.f32 %v3959, %v4362
        %4364 = vmatmul.f32.gmra.mxu0 %v3873
        %v4365 = vpop.f32.mrf.mxu0
        %v4366 = vadd.f32 %v3959, %v4365
        %4367 = vmatmul.f32.gmra.mxu0 %v3874
        %v4368 = vpop.f32.mrf.mxu0
        %v4369 = vadd.f32 %v3959, %v4368
        %4370 = vmatmul.f32.gmra.mxu0 %v3875
        %v4371 = vpop.f32.mrf.mxu0
        %v4372 = vadd.f32 %v3959, %v4371
        %4373 = vmatmul.f32.gmra.mxu0 %v3876
        %v4374 = vpop.f32.mrf.mxu0
        %v4375 = vadd.f32 %v3959, %v4374
        %4376 = vmatmul.f32.gmra.mxu0 %v3877
        %v4377 = vpop.f32.mrf.mxu0
        %v4378 = vadd.f32 %v3959, %v4377
        %4379 = vmatmul.f32.gmra.mxu0 %v3878
        %v4380 = vpop.f32.mrf.mxu0
        %v4381 = vadd.f32 %v3959, %v4380
        %4382 = vmatmul.f32.gmra.mxu0 %v3879
        %v4383 = vpop.f32.mrf.mxu0
        %v4384 = vadd.f32 %v3959, %v4383
        %4385 = vmatmul.f32.gmra.mxu0 %v3880
        %v4386 = vpop.f32.mrf.mxu0
        %v4387 = vadd.f32 %v3959, %v4386
        %4388 = vmatmul.f32.gmra.mxu0 %v3881
        %v4389 = vpop.f32.mrf.mxu0
        %v4390 = vadd.f32 %v3959, %v4389
        %4391 = vmatmul.f32.gmra.mxu0 %v3882
        %v4392 = vpop.f32.mrf.mxu0
        %v4393 = vadd.f32 %v3959, %v4392
        %4394 = vmatmul.f32.gmra.mxu0 %v3883
        %v4395 = vpop.f32.mrf.mxu0
        %v4396 = vadd.f32 %v3959, %v4395
        %4397 = vmatmul.f32.gmra.mxu0 %v3884
        %v4398 = vpop.f32.mrf.mxu0
        %v4399 = vadd.f32 %v3959, %v4398
        %4400 = vmatmul.f32.gmra.mxu0 %v3885
        %v4401 = vpop.f32.mrf.mxu0
        %v4402 = vadd.f32 %v3959, %v4401
        %4403 = vmatmul.f32.gmra.mxu0 %v3886
        %v4404 = vpop.f32.mrf.mxu0
        %v4405 = vadd.f32 %v3959, %v4404
        %4406 = vmatmul.f32.gmra.mxu0 %v3887
        %v4407 = vpop.f32.mrf.mxu0
        %v4408 = vadd.f32 %v3959, %v4407
        %4409 = vmatmul.f32.gmra.mxu0 %v3888
        %v4410 = vpop.f32.mrf.mxu0
        %v4411 = vadd.f32 %v3959, %v4410
        %4412 = vmatmul.f32.gmra.mxu0 %v3889
        %v4413 = vpop.f32.mrf.mxu0
        %v4414 = vadd.f32 %v3959, %v4413
        %4415 = vdwg.mxu0
        %v4416 = vmul.f32 %v3982, 0.5
        %v4417 = vmul.f32 %v4095, 0.5
        %v4418 = vmul.f32 %v4208, 0.5
        %v4419 = vmul.f32 %v4321, 0.5
        %v4420 = vmul.f32 %v3985, 0.5
        %v4421 = vmul.f32 %v4098, 0.5
        %v4422 = vmul.f32 %v4211, 0.5
        %v4423 = vmul.f32 %v4324, 0.5
        %v4424 = vmul.f32 %v3988, 0.5
        %v4425 = vmul.f32 %v4101, 0.5
        %v4426 = vmul.f32 %v4214, 0.5
        %v4427 = vmul.f32 %v4327, 0.5
        %v4428 = vmul.f32 %v3991, 0.5
        %v4429 = vmul.f32 %v4104, 0.5
        %v4430 = vmul.f32 %v4217, 0.5
        %v4431 = vmul.f32 %v4330, 0.5
        %v4432 = vmul.f32 %v3994, 0.5
        %v4433 = vmul.f32 %v4107, 0.5
        %v4434 = vmul.f32 %v4220, 0.5
        %v4435 = vmul.f32 %v4333, 0.5
        %v4436 = vmul.f32 %v3997, 0.5
        %v4437 = vmul.f32 %v4110, 0.5
        %v4438 = vmul.f32 %v4223, 0.5
        %v4439 = vmul.f32 %v4336, 0.5
        %v4440 = vmul.f32 %v4000, 0.5
        %v4441 = vmul.f32 %v4113, 0.5
        %v4442 = vmul.f32 %v4226, 0.5
        %v4443 = vmul.f32 %v4339, 0.5
        %v4444 = vmul.f32 %v4003, 0.5
        %v4445 = vmul.f32 %v4116, 0.5
        %v4446 = vmul.f32 %v4229, 0.5
        %v4447 = vmul.f32 %v4342, 0.5
        %v4448 = vmul.f32 %v4006, 0.5
        %v4449 = vmul.f32 %v4119, 0.5
        %v4450 = vmul.f32 %v4232, 0.5
        %v4451 = vmul.f32 %v4345, 0.5
        %v4452 = vmul.f32 %v4009, 0.5
        %v4453 = vmul.f32 %v4122, 0.5
        %v4454 = vmul.f32 %v4235, 0.5
        %v4455 = vmul.f32 %v4348, 0.5
        %v4456 = vmul.f32 %v4012, 0.5
        %v4457 = vmul.f32 %v4125, 0.5
        %v4458 = vmul.f32 %v4238, 0.5
        %v4459 = vmul.f32 %v4351, 0.5
        %v4460 = vmul.f32 %v4015, 0.5
        %v4461 = vmul.f32 %v4128, 0.5
        %v4462 = vmul.f32 %v4241, 0.5
        %v4463 = vmul.f32 %v4354, 0.5
        %v4464 = vmul.f32 %v4018, 0.5
        %v4465 = vmul.f32 %v4131, 0.5
        %v4466 = vmul.f32 %v4244, 0.5
        %v4467 = vmul.f32 %v4357, 0.5
        %v4468 = vmul.f32 %v4021, 0.5
        %v4469 = vmul.f32 %v4134, 0.5
        %v4470 = vmul.f32 %v4247, 0.5
        %v4471 = vmul.f32 %v4360, 0.5
        %v4472 = vmul.f32 %v4024, 0.5
        %v4473 = vmul.f32 %v4137, 0.5
        %v4474 = vmul.f32 %v4250, 0.5
        %v4475 = vmul.f32 %v4363, 0.5
        %v4476 = vmul.f32 %v4027, 0.5
        %v4477 = vmul.f32 %v4140, 0.5
        %v4478 = vmul.f32 %v4253, 0.5
        %v4479 = vmul.f32 %v4366, 0.5
        %v4480 = vmul.f32 %v4030, 0.5
        %v4481 = vmul.f32 %v4143, 0.5
        %v4482 = vmul.f32 %v4256, 0.5
        %v4483 = vmul.f32 %v4369, 0.5
        %v4484 = vmul.f32 %v4033, 0.5
        %v4485 = vmul.f32 %v4146, 0.5
        %v4486 = vmul.f32 %v4259, 0.5
        %v4487 = vmul.f32 %v4372, 0.5
        %v4488 = vmul.f32 %v4036, 0.5
        %v4489 = vmul.f32 %v4149, 0.5
        %v4490 = vmul.f32 %v4262, 0.5
        %v4491 = vmul.f32 %v4375, 0.5
        %v4492 = vmul.f32 %v4039, 0.5
        %v4493 = vmul.f32 %v4152, 0.5
        %v4494 = vmul.f32 %v4265, 0.5
        %v4495 = vmul.f32 %v4378, 0.5
        %v4496 = vmul.f32 %v4042, 0.5
        %v4497 = vmul.f32 %v4155, 0.5
        %v4498 = vmul.f32 %v4268, 0.5
        %v4499 = vmul.f32 %v4381, 0.5
        %v4500 = vmul.f32 %v4045, 0.5
        %v4501 = vmul.f32 %v4158, 0.5
        %v4502 = vmul.f32 %v4271, 0.5
        %v4503 = vmul.f32 %v4384, 0.5
        %v4504 = vmul.f32 %v4048, 0.5
        %v4505 = vmul.f32 %v4161, 0.5
        %v4506 = vmul.f32 %v4274, 0.5
        %v4507 = vmul.f32 %v4387, 0.5
        %v4508 = vmul.f32 %v4051, 0.5
        %v4509 = vmul.f32 %v4164, 0.5
        %v4510 = vmul.f32 %v4277, 0.5
        %v4511 = vmul.f32 %v4390, 0.5
        %v4512 = vmul.f32 %v4054, 0.5
        %v4513 = vmul.f32 %v4167, 0.5
        %v4514 = vmul.f32 %v4280, 0.5
        %v4515 = vmul.f32 %v4393, 0.5
        %v4516 = vmul.f32 %v4057, 0.5
        %v4517 = vmul.f32 %v4170, 0.5
        %v4518 = vmul.f32 %v4283, 0.5
        %v4519 = vmul.f32 %v4396, 0.5
        %v4520 = vmul.f32 %v4060, 0.5
        %v4521 = vmul.f32 %v4173, 0.5
        %v4522 = vmul.f32 %v4286, 0.5
        %v4523 = vmul.f32 %v4399, 0.5
        %v4524 = vmul.f32 %v4063, 0.5
        %v4525 = vmul.f32 %v4176, 0.5
        %v4526 = vmul.f32 %v4289, 0.5
        %v4527 = vmul.f32 %v4402, 0.5
        %v4528 = vmul.f32 %v4066, 0.5
        %v4529 = vmul.f32 %v4179, 0.5
        %v4530 = vmul.f32 %v4292, 0.5
        %v4531 = vmul.f32 %v4405, 0.5
        %v4532 = vmul.f32 %v4069, 0.5
        %v4533 = vmul.f32 %v4182, 0.5
        %v4534 = vmul.f32 %v4295, 0.5
        %v4535 = vmul.f32 %v4408, 0.5
        %v4536 = vmul.f32 %v4072, 0.5
        %v4537 = vmul.f32 %v4185, 0.5
        %v4538 = vmul.f32 %v4298, 0.5
        %v4539 = vmul.f32 %v4411, 0.5
        %v4540 = vmul.f32 %v4075, 0.5
        %v4541 = vmul.f32 %v4188, 0.5
        %v4542 = vmul.f32 %v4301, 0.5
        %v4543 = vmul.f32 %v4414, 0.5
        %v4544 = vmul.f32 %v3982, 0.70710677
        %v4545 = vmul.f32 %v4095, 0.70710677
        %v4546 = vmul.f32 %v4208, 0.70710677
        %v4547 = vmul.f32 %v4321, 0.70710677
        %v4548 = vmul.f32 %v3985, 0.70710677
        %v4549 = vmul.f32 %v4098, 0.70710677
        %v4550 = vmul.f32 %v4211, 0.70710677
        %v4551 = vmul.f32 %v4324, 0.70710677
        %v4552 = vmul.f32 %v3988, 0.70710677
        %v4553 = vmul.f32 %v4101, 0.70710677
        %v4554 = vmul.f32 %v4214, 0.70710677
        %v4555 = vmul.f32 %v4327, 0.70710677
        %v4556 = vmul.f32 %v3991, 0.70710677
        %v4557 = vmul.f32 %v4104, 0.70710677
        %v4558 = vmul.f32 %v4217, 0.70710677
        %v4559 = vmul.f32 %v4330, 0.70710677
        %v4560 = vmul.f32 %v3994, 0.70710677
        %v4561 = vmul.f32 %v4107, 0.70710677
        %v4562 = vmul.f32 %v4220, 0.70710677
        %v4563 = vmul.f32 %v4333, 0.70710677
        %v4564 = vmul.f32 %v3997, 0.70710677
        %v4565 = vmul.f32 %v4110, 0.70710677
        %v4566 = vmul.f32 %v4223, 0.70710677
        %v4567 = vmul.f32 %v4336, 0.70710677
        %v4568 = vmul.f32 %v4000, 0.70710677
        %v4569 = vmul.f32 %v4113, 0.70710677
        %v4570 = vmul.f32 %v4226, 0.70710677
        %v4571 = vmul.f32 %v4339, 0.70710677
        %v4572 = vmul.f32 %v4003, 0.70710677
        %v4573 = vmul.f32 %v4116, 0.70710677
        %v4574 = vmul.f32 %v4229, 0.70710677
        %v4575 = vmul.f32 %v4342, 0.70710677
        %v4576 = vmul.f32 %v4006, 0.70710677
        %v4577 = vmul.f32 %v4119, 0.70710677
        %v4578 = vmul.f32 %v4232, 0.70710677
        %v4579 = vmul.f32 %v4345, 0.70710677
        %v4580 = vmul.f32 %v4009, 0.70710677
        %v4581 = vmul.f32 %v4122, 0.70710677
        %v4582 = vmul.f32 %v4235, 0.70710677
        %v4583 = vmul.f32 %v4348, 0.70710677
        %v4584 = vmul.f32 %v4012, 0.70710677
        %v4585 = vmul.f32 %v4125, 0.70710677
        %v4586 = vmul.f32 %v4238, 0.70710677
        %v4587 = vmul.f32 %v4351, 0.70710677
        %v4588 = vmul.f32 %v4015, 0.70710677
        %v4589 = vmul.f32 %v4128, 0.70710677
        %v4590 = vmul.f32 %v4241, 0.70710677
        %v4591 = vmul.f32 %v4354, 0.70710677
        %v4592 = vmul.f32 %v4018, 0.70710677
        %v4593 = vmul.f32 %v4131, 0.70710677
        %v4594 = vmul.f32 %v4244, 0.70710677
        %v4595 = vmul.f32 %v4357, 0.70710677
        %v4596 = vmul.f32 %v4021, 0.70710677
        %v4597 = vmul.f32 %v4134, 0.70710677
        %v4598 = vmul.f32 %v4247, 0.70710677
        %v4599 = vmul.f32 %v4360, 0.70710677
        %v4600 = vmul.f32 %v4024, 0.70710677
        %v4601 = vmul.f32 %v4137, 0.70710677
        %v4602 = vmul.f32 %v4250, 0.70710677
        %v4603 = vmul.f32 %v4363, 0.70710677
        %v4604 = vmul.f32 %v4027, 0.70710677
        %v4605 = vmul.f32 %v4140, 0.70710677
        %v4606 = vmul.f32 %v4253, 0.70710677
        %v4607 = vmul.f32 %v4366, 0.70710677
        %v4608 = vmul.f32 %v4030, 0.70710677
        %v4609 = vmul.f32 %v4143, 0.70710677
        %v4610 = vmul.f32 %v4256, 0.70710677
        %v4611 = vmul.f32 %v4369, 0.70710677
        %v4612 = vmul.f32 %v4033, 0.70710677
        %v4613 = vmul.f32 %v4146, 0.70710677
        %v4614 = vmul.f32 %v4259, 0.70710677
        %v4615 = vmul.f32 %v4372, 0.70710677
        %v4616 = vmul.f32 %v4036, 0.70710677
        %v4617 = vmul.f32 %v4149, 0.70710677
        %v4618 = vmul.f32 %v4262, 0.70710677
        %v4619 = vmul.f32 %v4375, 0.70710677
        %v4620 = vmul.f32 %v4039, 0.70710677
        %v4621 = vmul.f32 %v4152, 0.70710677
        %v4622 = vmul.f32 %v4265, 0.70710677
        %v4623 = vmul.f32 %v4378, 0.70710677
        %v4624 = vmul.f32 %v4042, 0.70710677
        %v4625 = vmul.f32 %v4155, 0.70710677
        %v4626 = vmul.f32 %v4268, 0.70710677
        %v4627 = vmul.f32 %v4381, 0.70710677
        %v4628 = vmul.f32 %v4045, 0.70710677
        %v4629 = vmul.f32 %v4158, 0.70710677
        %v4630 = vmul.f32 %v4271, 0.70710677
        %v4631 = vmul.f32 %v4384, 0.70710677
        %v4632 = vmul.f32 %v4048, 0.70710677
        %v4633 = vmul.f32 %v4161, 0.70710677
        %v4634 = vmul.f32 %v4274, 0.70710677
        %v4635 = vmul.f32 %v4387, 0.70710677
        %v4636 = vmul.f32 %v4051, 0.70710677
        %v4637 = vmul.f32 %v4164, 0.70710677
        %v4638 = vmul.f32 %v4277, 0.70710677
        %v4639 = vmul.f32 %v4390, 0.70710677
        %v4640 = vmul.f32 %v4054, 0.70710677
        %v4641 = vmul.f32 %v4167, 0.70710677
        %v4642 = vmul.f32 %v4280, 0.70710677
        %v4643 = vmul.f32 %v4393, 0.70710677
        %v4644 = vmul.f32 %v4057, 0.70710677
        %v4645 = vmul.f32 %v4170, 0.70710677
        %v4646 = vmul.f32 %v4283, 0.70710677
        %v4647 = vmul.f32 %v4396, 0.70710677
        %v4648 = vmul.f32 %v4060, 0.70710677
        %v4649 = vmul.f32 %v4173, 0.70710677
        %v4650 = vmul.f32 %v4286, 0.70710677
        %v4651 = vmul.f32 %v4399, 0.70710677
        %v4652 = vmul.f32 %v4063, 0.70710677
        %v4653 = vmul.f32 %v4176, 0.70710677
        %v4654 = vmul.f32 %v4289, 0.70710677
        %v4655 = vmul.f32 %v4402, 0.70710677
        %v4656 = vmul.f32 %v4066, 0.70710677
        %v4657 = vmul.f32 %v4179, 0.70710677
        %v4658 = vmul.f32 %v4292, 0.70710677
        %v4659 = vmul.f32 %v4405, 0.70710677
        %v4660 = vmul.f32 %v4069, 0.70710677
        %v4661 = vmul.f32 %v4182, 0.70710677
        %v4662 = vmul.f32 %v4295, 0.70710677
        %v4663 = vmul.f32 %v4408, 0.70710677
        %v4664 = vmul.f32 %v4072, 0.70710677
        %v4665 = vmul.f32 %v4185, 0.70710677
        %v4666 = vmul.f32 %v4298, 0.70710677
        %v4667 = vmul.f32 %v4411, 0.70710677
        %v4668 = vmul.f32 %v4075, 0.70710677
        %v4669 = vmul.f32 %v4188, 0.70710677
        %v4670 = vmul.f32 %v4301, 0.70710677
        %v4671 = vmul.f32 %v4414, 0.70710677
        %vm4672 = vcmp.ge.f32.partialorder %v4544, 0.0
        %vm4673 = vcmp.ge.f32.partialorder %v4545, 0.0
        %vm4674 = vcmp.ge.f32.partialorder %v4546, 0.0
        %vm4675 = vcmp.ge.f32.partialorder %v4547, 0.0
        %vm4676 = vcmp.ge.f32.partialorder %v4548, 0.0
        %vm4677 = vcmp.ge.f32.partialorder %v4549, 0.0
        %vm4678 = vcmp.ge.f32.partialorder %v4550, 0.0
        %vm4679 = vcmp.ge.f32.partialorder %v4551, 0.0
        %vm4680 = vcmp.ge.f32.partialorder %v4552, 0.0
        %vm4681 = vcmp.ge.f32.partialorder %v4553, 0.0
        %vm4682 = vcmp.ge.f32.partialorder %v4554, 0.0
        %vm4683 = vcmp.ge.f32.partialorder %v4555, 0.0
        %vm4684 = vcmp.ge.f32.partialorder %v4556, 0.0
        %vm4685 = vcmp.ge.f32.partialorder %v4557, 0.0
        %vm4686 = vcmp.ge.f32.partialorder %v4558, 0.0
        %vm4687 = vcmp.ge.f32.partialorder %v4559, 0.0
        %vm4688 = vcmp.ge.f32.partialorder %v4560, 0.0
        %vm4689 = vcmp.ge.f32.partialorder %v4561, 0.0
        %vm4690 = vcmp.ge.f32.partialorder %v4562, 0.0
        %vm4691 = vcmp.ge.f32.partialorder %v4563, 0.0
        %vm4692 = vcmp.ge.f32.partialorder %v4564, 0.0
        %vm4693 = vcmp.ge.f32.partialorder %v4565, 0.0
        %vm4694 = vcmp.ge.f32.partialorder %v4566, 0.0
        %vm4695 = vcmp.ge.f32.partialorder %v4567, 0.0
        %vm4696 = vcmp.ge.f32.partialorder %v4568, 0.0
        %vm4697 = vcmp.ge.f32.partialorder %v4569, 0.0
        %vm4698 = vcmp.ge.f32.partialorder %v4570, 0.0
        %vm4699 = vcmp.ge.f32.partialorder %v4571, 0.0
        %vm4700 = vcmp.ge.f32.partialorder %v4572, 0.0
        %vm4701 = vcmp.ge.f32.partialorder %v4573, 0.0
        %vm4702 = vcmp.ge.f32.partialorder %v4574, 0.0
        %vm4703 = vcmp.ge.f32.partialorder %v4575, 0.0
        %vm4704 = vcmp.ge.f32.partialorder %v4576, 0.0
        %vm4705 = vcmp.ge.f32.partialorder %v4577, 0.0
        %vm4706 = vcmp.ge.f32.partialorder %v4578, 0.0
        %vm4707 = vcmp.ge.f32.partialorder %v4579, 0.0
        %vm4708 = vcmp.ge.f32.partialorder %v4580, 0.0
        %vm4709 = vcmp.ge.f32.partialorder %v4581, 0.0
        %vm4710 = vcmp.ge.f32.partialorder %v4582, 0.0
        %vm4711 = vcmp.ge.f32.partialorder %v4583, 0.0
        %vm4712 = vcmp.ge.f32.partialorder %v4584, 0.0
        %vm4713 = vcmp.ge.f32.partialorder %v4585, 0.0
        %vm4714 = vcmp.ge.f32.partialorder %v4586, 0.0
        %vm4715 = vcmp.ge.f32.partialorder %v4587, 0.0
        %vm4716 = vcmp.ge.f32.partialorder %v4588, 0.0
        %vm4717 = vcmp.ge.f32.partialorder %v4589, 0.0
        %vm4718 = vcmp.ge.f32.partialorder %v4590, 0.0
        %vm4719 = vcmp.ge.f32.partialorder %v4591, 0.0
        %vm4720 = vcmp.ge.f32.partialorder %v4592, 0.0
        %vm4721 = vcmp.ge.f32.partialorder %v4593, 0.0
        %vm4722 = vcmp.ge.f32.partialorder %v4594, 0.0
        %vm4723 = vcmp.ge.f32.partialorder %v4595, 0.0
        %vm4724 = vcmp.ge.f32.partialorder %v4596, 0.0
        %vm4725 = vcmp.ge.f32.partialorder %v4597, 0.0
        %vm4726 = vcmp.ge.f32.partialorder %v4598, 0.0
        %vm4727 = vcmp.ge.f32.partialorder %v4599, 0.0
        %vm4728 = vcmp.ge.f32.partialorder %v4600, 0.0
        %vm4729 = vcmp.ge.f32.partialorder %v4601, 0.0
        %vm4730 = vcmp.ge.f32.partialorder %v4602, 0.0
        %vm4731 = vcmp.ge.f32.partialorder %v4603, 0.0
        %vm4732 = vcmp.ge.f32.partialorder %v4604, 0.0
        %vm4733 = vcmp.ge.f32.partialorder %v4605, 0.0
        %vm4734 = vcmp.ge.f32.partialorder %v4606, 0.0
        %vm4735 = vcmp.ge.f32.partialorder %v4607, 0.0
        %vm4736 = vcmp.ge.f32.partialorder %v4608, 0.0
        %vm4737 = vcmp.ge.f32.partialorder %v4609, 0.0
        %vm4738 = vcmp.ge.f32.partialorder %v4610, 0.0
        %vm4739 = vcmp.ge.f32.partialorder %v4611, 0.0
        %vm4740 = vcmp.ge.f32.partialorder %v4612, 0.0
        %vm4741 = vcmp.ge.f32.partialorder %v4613, 0.0
        %vm4742 = vcmp.ge.f32.partialorder %v4614, 0.0
        %vm4743 = vcmp.ge.f32.partialorder %v4615, 0.0
        %vm4744 = vcmp.ge.f32.partialorder %v4616, 0.0
        %vm4745 = vcmp.ge.f32.partialorder %v4617, 0.0
        %vm4746 = vcmp.ge.f32.partialorder %v4618, 0.0
        %vm4747 = vcmp.ge.f32.partialorder %v4619, 0.0
        %vm4748 = vcmp.ge.f32.partialorder %v4620, 0.0
        %vm4749 = vcmp.ge.f32.partialorder %v4621, 0.0
        %vm4750 = vcmp.ge.f32.partialorder %v4622, 0.0
        %vm4751 = vcmp.ge.f32.partialorder %v4623, 0.0
        %vm4752 = vcmp.ge.f32.partialorder %v4624, 0.0
        %vm4753 = vcmp.ge.f32.partialorder %v4625, 0.0
        %vm4754 = vcmp.ge.f32.partialorder %v4626, 0.0
        %vm4755 = vcmp.ge.f32.partialorder %v4627, 0.0
        %vm4756 = vcmp.ge.f32.partialorder %v4628, 0.0
        %vm4757 = vcmp.ge.f32.partialorder %v4629, 0.0
        %vm4758 = vcmp.ge.f32.partialorder %v4630, 0.0
        %vm4759 = vcmp.ge.f32.partialorder %v4631, 0.0
        %vm4760 = vcmp.ge.f32.partialorder %v4632, 0.0
        %vm4761 = vcmp.ge.f32.partialorder %v4633, 0.0
        %vm4762 = vcmp.ge.f32.partialorder %v4634, 0.0
        %vm4763 = vcmp.ge.f32.partialorder %v4635, 0.0
        %vm4764 = vcmp.ge.f32.partialorder %v4636, 0.0
        %vm4765 = vcmp.ge.f32.partialorder %v4637, 0.0
        %vm4766 = vcmp.ge.f32.partialorder %v4638, 0.0
        %vm4767 = vcmp.ge.f32.partialorder %v4639, 0.0
        %vm4768 = vcmp.ge.f32.partialorder %v4640, 0.0
        %vm4769 = vcmp.ge.f32.partialorder %v4641, 0.0
        %vm4770 = vcmp.ge.f32.partialorder %v4642, 0.0
        %vm4771 = vcmp.ge.f32.partialorder %v4643, 0.0
        %vm4772 = vcmp.ge.f32.partialorder %v4644, 0.0
        %vm4773 = vcmp.ge.f32.partialorder %v4645, 0.0
        %vm4774 = vcmp.ge.f32.partialorder %v4646, 0.0
        %vm4775 = vcmp.ge.f32.partialorder %v4647, 0.0
        %vm4776 = vcmp.ge.f32.partialorder %v4648, 0.0
        %vm4777 = vcmp.ge.f32.partialorder %v4649, 0.0
        %vm4778 = vcmp.ge.f32.partialorder %v4650, 0.0
        %vm4779 = vcmp.ge.f32.partialorder %v4651, 0.0
        %vm4780 = vcmp.ge.f32.partialorder %v4652, 0.0
        %vm4781 = vcmp.ge.f32.partialorder %v4653, 0.0
        %vm4782 = vcmp.ge.f32.partialorder %v4654, 0.0
        %vm4783 = vcmp.ge.f32.partialorder %v4655, 0.0
        %vm4784 = vcmp.ge.f32.partialorder %v4656, 0.0
        %vm4785 = vcmp.ge.f32.partialorder %v4657, 0.0
        %vm4786 = vcmp.ge.f32.partialorder %v4658, 0.0
        %vm4787 = vcmp.ge.f32.partialorder %v4659, 0.0
        %vm4788 = vcmp.ge.f32.partialorder %v4660, 0.0
        %vm4789 = vcmp.ge.f32.partialorder %v4661, 0.0
        %vm4790 = vcmp.ge.f32.partialorder %v4662, 0.0
        %vm4791 = vcmp.ge.f32.partialorder %v4663, 0.0
        %vm4792 = vcmp.ge.f32.partialorder %v4664, 0.0
        %vm4793 = vcmp.ge.f32.partialorder %v4665, 0.0
        %vm4794 = vcmp.ge.f32.partialorder %v4666, 0.0
        %vm4795 = vcmp.ge.f32.partialorder %v4667, 0.0
        %vm4796 = vcmp.ge.f32.partialorder %v4668, 0.0
        %vm4797 = vcmp.ge.f32.partialorder %v4669, 0.0
        %vm4798 = vcmp.ge.f32.partialorder %v4670, 0.0
        %vm4799 = vcmp.ge.f32.partialorder %v4671, 0.0
        %v4800 = vsel %vm4672, 1.0, -1.0
        %v4801 = vsel %vm4673, 1.0, -1.0
        %v4802 = vsel %vm4674, 1.0, -1.0
        %v4803 = vsel %vm4675, 1.0, -1.0
        %v4804 = vsel %vm4676, 1.0, -1.0
        %v4805 = vsel %vm4677, 1.0, -1.0
        %v4806 = vsel %vm4678, 1.0, -1.0
        %v4807 = vsel %vm4679, 1.0, -1.0
        %v4808 = vsel %vm4680, 1.0, -1.0
        %v4809 = vsel %vm4681, 1.0, -1.0
        %v4810 = vsel %vm4682, 1.0, -1.0
        %v4811 = vsel %vm4683, 1.0, -1.0
        %v4812 = vsel %vm4684, 1.0, -1.0
        %v4813 = vsel %vm4685, 1.0, -1.0
        %v4814 = vsel %vm4686, 1.0, -1.0
        %v4815 = vsel %vm4687, 1.0, -1.0
        %v4816 = vsel %vm4688, 1.0, -1.0
        %v4817 = vsel %vm4689, 1.0, -1.0
        %v4818 = vsel %vm4690, 1.0, -1.0
        %v4819 = vsel %vm4691, 1.0, -1.0
        %v4820 = vsel %vm4692, 1.0, -1.0
        %v4821 = vsel %vm4693, 1.0, -1.0
        %v4822 = vsel %vm4694, 1.0, -1.0
        %v4823 = vsel %vm4695, 1.0, -1.0
        %v4824 = vsel %vm4696, 1.0, -1.0
        %v4825 = vsel %vm4697, 1.0, -1.0
        %v4826 = vsel %vm4698, 1.0, -1.0
        %v4827 = vsel %vm4699, 1.0, -1.0
        %v4828 = vsel %vm4700, 1.0, -1.0
        %v4829 = vsel %vm4701, 1.0, -1.0
        %v4830 = vsel %vm4702, 1.0, -1.0
        %v4831 = vsel %vm4703, 1.0, -1.0
        %v4832 = vsel %vm4704, 1.0, -1.0
        %v4833 = vsel %vm4705, 1.0, -1.0
        %v4834 = vsel %vm4706, 1.0, -1.0
        %v4835 = vsel %vm4707, 1.0, -1.0
        %v4836 = vsel %vm4708, 1.0, -1.0
        %v4837 = vsel %vm4709, 1.0, -1.0
        %v4838 = vsel %vm4710, 1.0, -1.0
        %v4839 = vsel %vm4711, 1.0, -1.0
        %v4840 = vsel %vm4712, 1.0, -1.0
        %v4841 = vsel %vm4713, 1.0, -1.0
        %v4842 = vsel %vm4714, 1.0, -1.0
        %v4843 = vsel %vm4715, 1.0, -1.0
        %v4844 = vsel %vm4716, 1.0, -1.0
        %v4845 = vsel %vm4717, 1.0, -1.0
        %v4846 = vsel %vm4718, 1.0, -1.0
        %v4847 = vsel %vm4719, 1.0, -1.0
        %v4848 = vsel %vm4720, 1.0, -1.0
        %v4849 = vsel %vm4721, 1.0, -1.0
        %v4850 = vsel %vm4722, 1.0, -1.0
        %v4851 = vsel %vm4723, 1.0, -1.0
        %v4852 = vsel %vm4724, 1.0, -1.0
        %v4853 = vsel %vm4725, 1.0, -1.0
        %v4854 = vsel %vm4726, 1.0, -1.0
        %v4855 = vsel %vm4727, 1.0, -1.0
        %v4856 = vsel %vm4728, 1.0, -1.0
        %v4857 = vsel %vm4729, 1.0, -1.0
        %v4858 = vsel %vm4730, 1.0, -1.0
        %v4859 = vsel %vm4731, 1.0, -1.0
        %v4860 = vsel %vm4732, 1.0, -1.0
        %v4861 = vsel %vm4733, 1.0, -1.0
        %v4862 = vsel %vm4734, 1.0, -1.0
        %v4863 = vsel %vm4735, 1.0, -1.0
        %v4864 = vsel %vm4736, 1.0, -1.0
        %v4865 = vsel %vm4737, 1.0, -1.0
        %v4866 = vsel %vm4738, 1.0, -1.0
        %v4867 = vsel %vm4739, 1.0, -1.0
        %v4868 = vsel %vm4740, 1.0, -1.0
        %v4869 = vsel %vm4741, 1.0, -1.0
        %v4870 = vsel %vm4742, 1.0, -1.0
        %v4871 = vsel %vm4743, 1.0, -1.0
        %v4872 = vsel %vm4744, 1.0, -1.0
        %v4873 = vsel %vm4745, 1.0, -1.0
        %v4874 = vsel %vm4746, 1.0, -1.0
        %v4875 = vsel %vm4747, 1.0, -1.0
        %v4876 = vsel %vm4748, 1.0, -1.0
        %v4877 = vsel %vm4749, 1.0, -1.0
        %v4878 = vsel %vm4750, 1.0, -1.0
        %v4879 = vsel %vm4751, 1.0, -1.0
        %v4880 = vsel %vm4752, 1.0, -1.0
        %v4881 = vsel %vm4753, 1.0, -1.0
        %v4882 = vsel %vm4754, 1.0, -1.0
        %v4883 = vsel %vm4755, 1.0, -1.0
        %v4884 = vsel %vm4756, 1.0, -1.0
        %v4885 = vsel %vm4757, 1.0, -1.0
        %v4886 = vsel %vm4758, 1.0, -1.0
        %v4887 = vsel %vm4759, 1.0, -1.0
        %v4888 = vsel %vm4760, 1.0, -1.0
        %v4889 = vsel %vm4761, 1.0, -1.0
        %v4890 = vsel %vm4762, 1.0, -1.0
        %v4891 = vsel %vm4763, 1.0, -1.0
        %v4892 = vsel %vm4764, 1.0, -1.0
        %v4893 = vsel %vm4765, 1.0, -1.0
        %v4894 = vsel %vm4766, 1.0, -1.0
        %v4895 = vsel %vm4767, 1.0, -1.0
        %v4896 = vsel %vm4768, 1.0, -1.0
        %v4897 = vsel %vm4769, 1.0, -1.0
        %v4898 = vsel %vm4770, 1.0, -1.0
        %v4899 = vsel %vm4771, 1.0, -1.0
        %v4900 = vsel %vm4772, 1.0, -1.0
        %v4901 = vsel %vm4773, 1.0, -1.0
        %v4902 = vsel %vm4774, 1.0, -1.0
        %v4903 = vsel %vm4775, 1.0, -1.0
        %v4904 = vsel %vm4776, 1.0, -1.0
        %v4905 = vsel %vm4777, 1.0, -1.0
        %v4906 = vsel %vm4778, 1.0, -1.0
        %v4907 = vsel %vm4779, 1.0, -1.0
        %v4908 = vsel %vm4780, 1.0, -1.0
        %v4909 = vsel %vm4781, 1.0, -1.0
        %v4910 = vsel %vm4782, 1.0, -1.0
        %v4911 = vsel %vm4783, 1.0, -1.0
        %v4912 = vsel %vm4784, 1.0, -1.0
        %v4913 = vsel %vm4785, 1.0, -1.0
        %v4914 = vsel %vm4786, 1.0, -1.0
        %v4915 = vsel %vm4787, 1.0, -1.0
        %v4916 = vsel %vm4788, 1.0, -1.0
        %v4917 = vsel %vm4789, 1.0, -1.0
        %v4918 = vsel %vm4790, 1.0, -1.0
        %v4919 = vsel %vm4791, 1.0, -1.0
        %v4920 = vsel %vm4792, 1.0, -1.0
        %v4921 = vsel %vm4793, 1.0, -1.0
        %v4922 = vsel %vm4794, 1.0, -1.0
        %v4923 = vsel %vm4795, 1.0, -1.0
        %v4924 = vsel %vm4796, 1.0, -1.0
        %v4925 = vsel %vm4797, 1.0, -1.0
        %v4926 = vsel %vm4798, 1.0, -1.0
        %v4927 = vsel %vm4799, 1.0, -1.0
        %v4928 = vand.u32 2147483647, %v4544
        %v4929 = vand.u32 2147483647, %v4545
        %v4930 = vand.u32 2147483647, %v4546
        %v4931 = vand.u32 2147483647, %v4547
        %v4932 = vand.u32 2147483647, %v4548
        %v4933 = vand.u32 2147483647, %v4549
        %v4934 = vand.u32 2147483647, %v4550
        %v4935 = vand.u32 2147483647, %v4551
        %v4936 = vand.u32 2147483647, %v4552
        %v4937 = vand.u32 2147483647, %v4553
        %v4938 = vand.u32 2147483647, %v4554
        %v4939 = vand.u32 2147483647, %v4555
        %v4940 = vand.u32 2147483647, %v4556
        %v4941 = vand.u32 2147483647, %v4557
        %v4942 = vand.u32 2147483647, %v4558
        %v4943 = vand.u32 2147483647, %v4559
        %v4944 = vand.u32 2147483647, %v4560
        %v4945 = vand.u32 2147483647, %v4561
        %v4946 = vand.u32 2147483647, %v4562
        %v4947 = vand.u32 2147483647, %v4563
        %v4948 = vand.u32 2147483647, %v4564
        %v4949 = vand.u32 2147483647, %v4565
        %v4950 = vand.u32 2147483647, %v4566
        %v4951 = vand.u32 2147483647, %v4567
        %v4952 = vand.u32 2147483647, %v4568
        %v4953 = vand.u32 2147483647, %v4569
        %v4954 = vand.u32 2147483647, %v4570
        %v4955 = vand.u32 2147483647, %v4571
        %v4956 = vand.u32 2147483647, %v4572
        %v4957 = vand.u32 2147483647, %v4573
        %v4958 = vand.u32 2147483647, %v4574
        %v4959 = vand.u32 2147483647, %v4575
        %v4960 = vand.u32 2147483647, %v4576
        %v4961 = vand.u32 2147483647, %v4577
        %v4962 = vand.u32 2147483647, %v4578
        %v4963 = vand.u32 2147483647, %v4579
        %v4964 = vand.u32 2147483647, %v4580
        %v4965 = vand.u32 2147483647, %v4581
        %v4966 = vand.u32 2147483647, %v4582
        %v4967 = vand.u32 2147483647, %v4583
        %v4968 = vand.u32 2147483647, %v4584
        %v4969 = vand.u32 2147483647, %v4585
        %v4970 = vand.u32 2147483647, %v4586
        %v4971 = vand.u32 2147483647, %v4587
        %v4972 = vand.u32 2147483647, %v4588
        %v4973 = vand.u32 2147483647, %v4589
        %v4974 = vand.u32 2147483647, %v4590
        %v4975 = vand.u32 2147483647, %v4591
        %v4976 = vand.u32 2147483647, %v4592
        %v4977 = vand.u32 2147483647, %v4593
        %v4978 = vand.u32 2147483647, %v4594
        %v4979 = vand.u32 2147483647, %v4595
        %v4980 = vand.u32 2147483647, %v4596
        %v4981 = vand.u32 2147483647, %v4597
        %v4982 = vand.u32 2147483647, %v4598
        %v4983 = vand.u32 2147483647, %v4599
        %v4984 = vand.u32 2147483647, %v4600
        %v4985 = vand.u32 2147483647, %v4601
        %v4986 = vand.u32 2147483647, %v4602
        %v4987 = vand.u32 2147483647, %v4603
        %v4988 = vand.u32 2147483647, %v4604
        %v4989 = vand.u32 2147483647, %v4605
        %v4990 = vand.u32 2147483647, %v4606
        %v4991 = vand.u32 2147483647, %v4607
        %v4992 = vand.u32 2147483647, %v4608
        %v4993 = vand.u32 2147483647, %v4609
        %v4994 = vand.u32 2147483647, %v4610
        %v4995 = vand.u32 2147483647, %v4611
        %v4996 = vand.u32 2147483647, %v4612
        %v4997 = vand.u32 2147483647, %v4613
        %v4998 = vand.u32 2147483647, %v4614
        %v4999 = vand.u32 2147483647, %v4615
        %v5000 = vand.u32 2147483647, %v4616
        %v5001 = vand.u32 2147483647, %v4617
        %v5002 = vand.u32 2147483647, %v4618
        %v5003 = vand.u32 2147483647, %v4619
        %v5004 = vand.u32 2147483647, %v4620
        %v5005 = vand.u32 2147483647, %v4621
        %v5006 = vand.u32 2147483647, %v4622
        %v5007 = vand.u32 2147483647, %v4623
        %v5008 = vand.u32 2147483647, %v4624
        %v5009 = vand.u32 2147483647, %v4625
        %v5010 = vand.u32 2147483647, %v4626
        %v5011 = vand.u32 2147483647, %v4627
        %v5012 = vand.u32 2147483647, %v4628
        %v5013 = vand.u32 2147483647, %v4629
        %v5014 = vand.u32 2147483647, %v4630
        %v5015 = vand.u32 2147483647, %v4631
        %v5016 = vand.u32 2147483647, %v4632
        %v5017 = vand.u32 2147483647, %v4633
        %v5018 = vand.u32 2147483647, %v4634
        %v5019 = vand.u32 2147483647, %v4635
        %v5020 = vand.u32 2147483647, %v4636
        %v5021 = vand.u32 2147483647, %v4637
        %v5022 = vand.u32 2147483647, %v4638
        %v5023 = vand.u32 2147483647, %v4639
        %v5024 = vand.u32 2147483647, %v4640
        %v5025 = vand.u32 2147483647, %v4641
        %v5026 = vand.u32 2147483647, %v4642
        %v5027 = vand.u32 2147483647, %v4643
        %v5028 = vand.u32 2147483647, %v4644
        %v5029 = vand.u32 2147483647, %v4645
        %v5030 = vand.u32 2147483647, %v4646
        %v5031 = vand.u32 2147483647, %v4647
        %v5032 = vand.u32 2147483647, %v4648
        %v5033 = vand.u32 2147483647, %v4649
        %v5034 = vand.u32 2147483647, %v4650
        %v5035 = vand.u32 2147483647, %v4651
        %v5036 = vand.u32 2147483647, %v4652
        %v5037 = vand.u32 2147483647, %v4653
        %v5038 = vand.u32 2147483647, %v4654
        %v5039 = vand.u32 2147483647, %v4655
        %v5040 = vand.u32 2147483647, %v4656
        %v5041 = vand.u32 2147483647, %v4657
        %v5042 = vand.u32 2147483647, %v4658
        %v5043 = vand.u32 2147483647, %v4659
        %v5044 = vand.u32 2147483647, %v4660
        %v5045 = vand.u32 2147483647, %v4661
        %v5046 = vand.u32 2147483647, %v4662
        %v5047 = vand.u32 2147483647, %v4663
        %v5048 = vand.u32 2147483647, %v4664
        %v5049 = vand.u32 2147483647, %v4665
        %v5050 = vand.u32 2147483647, %v4666
        %v5051 = vand.u32 2147483647, %v4667
        %v5052 = vand.u32 2147483647, %v4668
        %v5053 = vand.u32 2147483647, %v4669
        %v5054 = vand.u32 2147483647, %v4670
        %v5055 = vand.u32 2147483647, %v4671
        %v5056 = vmul.f32 %v4928, 0.3275911
        %v5057 = vmul.f32 %v4929, 0.3275911
        %v5058 = vmul.f32 %v4930, 0.3275911
        %v5059 = vmul.f32 %v4931, 0.3275911
        %v5060 = vmul.f32 %v4932, 0.3275911
        %v5061 = vmul.f32 %v4933, 0.3275911
        %v5062 = vmul.f32 %v4934, 0.3275911
        %v5063 = vmul.f32 %v4935, 0.3275911
        %v5064 = vmul.f32 %v4936, 0.3275911
        %v5065 = vmul.f32 %v4937, 0.3275911
        %v5066 = vmul.f32 %v4938, 0.3275911
        %v5067 = vmul.f32 %v4939, 0.3275911
        %v5068 = vmul.f32 %v4940, 0.3275911
        %v5069 = vmul.f32 %v4941, 0.3275911
        %v5070 = vmul.f32 %v4942, 0.3275911
        %v5071 = vmul.f32 %v4943, 0.3275911
        %v5072 = vmul.f32 %v4944, 0.3275911
        %v5073 = vmul.f32 %v4945, 0.3275911
        %v5074 = vmul.f32 %v4946, 0.3275911
        %v5075 = vmul.f32 %v4947, 0.3275911
        %v5076 = vmul.f32 %v4948, 0.3275911
        %v5077 = vmul.f32 %v4949, 0.3275911
        %v5078 = vmul.f32 %v4950, 0.3275911
        %v5079 = vmul.f32 %v4951, 0.3275911
        %v5080 = vmul.f32 %v4952, 0.3275911
        %v5081 = vmul.f32 %v4953, 0.3275911
        %v5082 = vmul.f32 %v4954, 0.3275911
        %v5083 = vmul.f32 %v4955, 0.3275911
        %v5084 = vmul.f32 %v4956, 0.3275911
        %v5085 = vmul.f32 %v4957, 0.3275911
        %v5086 = vmul.f32 %v4958, 0.3275911
        %v5087 = vmul.f32 %v4959, 0.3275911
        %v5088 = vmul.f32 %v4960, 0.3275911
        %v5089 = vmul.f32 %v4961, 0.3275911
        %v5090 = vmul.f32 %v4962, 0.3275911
        %v5091 = vmul.f32 %v4963, 0.3275911
        %v5092 = vmul.f32 %v4964, 0.3275911
        %v5093 = vmul.f32 %v4965, 0.3275911
        %v5094 = vmul.f32 %v4966, 0.3275911
        %v5095 = vmul.f32 %v4967, 0.3275911
        %v5096 = vmul.f32 %v4968, 0.3275911
        %v5097 = vmul.f32 %v4969, 0.3275911
        %v5098 = vmul.f32 %v4970, 0.3275911
        %v5099 = vmul.f32 %v4971, 0.3275911
        %v5100 = vmul.f32 %v4972, 0.3275911
        %v5101 = vmul.f32 %v4973, 0.3275911
        %v5102 = vmul.f32 %v4974, 0.3275911
        %v5103 = vmul.f32 %v4975, 0.3275911
        %v5104 = vmul.f32 %v4976, 0.3275911
        %v5105 = vmul.f32 %v4977, 0.3275911
        %v5106 = vmul.f32 %v4978, 0.3275911
        %v5107 = vmul.f32 %v4979, 0.3275911
        %v5108 = vmul.f32 %v4980, 0.3275911
        %v5109 = vmul.f32 %v4981, 0.3275911
        %v5110 = vmul.f32 %v4982, 0.3275911
        %v5111 = vmul.f32 %v4983, 0.3275911
        %v5112 = vmul.f32 %v4984, 0.3275911
        %v5113 = vmul.f32 %v4985, 0.3275911
        %v5114 = vmul.f32 %v4986, 0.3275911
        %v5115 = vmul.f32 %v4987, 0.3275911
        %v5116 = vmul.f32 %v4988, 0.3275911
        %v5117 = vmul.f32 %v4989, 0.3275911
        %v5118 = vmul.f32 %v4990, 0.3275911
        %v5119 = vmul.f32 %v4991, 0.3275911
        %v5120 = vmul.f32 %v4992, 0.3275911
        %v5121 = vmul.f32 %v4993, 0.3275911
        %v5122 = vmul.f32 %v4994, 0.3275911
        %v5123 = vmul.f32 %v4995, 0.3275911
        %v5124 = vmul.f32 %v4996, 0.3275911
        %v5125 = vmul.f32 %v4997, 0.3275911
        %v5126 = vmul.f32 %v4998, 0.3275911
        %v5127 = vmul.f32 %v4999, 0.3275911
        %v5128 = vmul.f32 %v5000, 0.3275911
        %v5129 = vmul.f32 %v5001, 0.3275911
        %v5130 = vmul.f32 %v5002, 0.3275911
        %v5131 = vmul.f32 %v5003, 0.3275911
        %v5132 = vmul.f32 %v5004, 0.3275911
        %v5133 = vmul.f32 %v5005, 0.3275911
        %v5134 = vmul.f32 %v5006, 0.3275911
        %v5135 = vmul.f32 %v5007, 0.3275911
        %v5136 = vmul.f32 %v5008, 0.3275911
        %v5137 = vmul.f32 %v5009, 0.3275911
        %v5138 = vmul.f32 %v5010, 0.3275911
        %v5139 = vmul.f32 %v5011, 0.3275911
        %v5140 = vmul.f32 %v5012, 0.3275911
        %v5141 = vmul.f32 %v5013, 0.3275911
        %v5142 = vmul.f32 %v5014, 0.3275911
        %v5143 = vmul.f32 %v5015, 0.3275911
        %v5144 = vmul.f32 %v5016, 0.3275911
        %v5145 = vmul.f32 %v5017, 0.3275911
        %v5146 = vmul.f32 %v5018, 0.3275911
        %v5147 = vmul.f32 %v5019, 0.3275911
        %v5148 = vmul.f32 %v5020, 0.3275911
        %v5149 = vmul.f32 %v5021, 0.3275911
        %v5150 = vmul.f32 %v5022, 0.3275911
        %v5151 = vmul.f32 %v5023, 0.3275911
        %v5152 = vmul.f32 %v5024, 0.3275911
        %v5153 = vmul.f32 %v5025, 0.3275911
        %v5154 = vmul.f32 %v5026, 0.3275911
        %v5155 = vmul.f32 %v5027, 0.3275911
        %v5156 = vmul.f32 %v5028, 0.3275911
        %v5157 = vmul.f32 %v5029, 0.3275911
        %v5158 = vmul.f32 %v5030, 0.3275911
        %v5159 = vmul.f32 %v5031, 0.3275911
        %v5160 = vmul.f32 %v5032, 0.3275911
        %v5161 = vmul.f32 %v5033, 0.3275911
        %v5162 = vmul.f32 %v5034, 0.3275911
        %v5163 = vmul.f32 %v5035, 0.3275911
        %v5164 = vmul.f32 %v5036, 0.3275911
        %v5165 = vmul.f32 %v5037, 0.3275911
        %v5166 = vmul.f32 %v5038, 0.3275911
        %v5167 = vmul.f32 %v5039, 0.3275911
        %v5168 = vmul.f32 %v5040, 0.3275911
        %v5169 = vmul.f32 %v5041, 0.3275911
        %v5170 = vmul.f32 %v5042, 0.3275911
        %v5171 = vmul.f32 %v5043, 0.3275911
        %v5172 = vmul.f32 %v5044, 0.3275911
        %v5173 = vmul.f32 %v5045, 0.3275911
        %v5174 = vmul.f32 %v5046, 0.3275911
        %v5175 = vmul.f32 %v5047, 0.3275911
        %v5176 = vmul.f32 %v5048, 0.3275911
        %v5177 = vmul.f32 %v5049, 0.3275911
        %v5178 = vmul.f32 %v5050, 0.3275911
        %v5179 = vmul.f32 %v5051, 0.3275911
        %v5180 = vmul.f32 %v5052, 0.3275911
        %v5181 = vmul.f32 %v5053, 0.3275911
        %v5182 = vmul.f32 %v5054, 0.3275911
        %v5183 = vmul.f32 %v5055, 0.3275911
        %v5184 = vadd.f32 %v5056, 1.0
        %v5185 = vadd.f32 %v5057, 1.0
        %v5186 = vadd.f32 %v5058, 1.0
        %v5187 = vadd.f32 %v5059, 1.0
        %v5188 = vadd.f32 %v5060, 1.0
        %v5189 = vadd.f32 %v5061, 1.0
        %v5190 = vadd.f32 %v5062, 1.0
        %v5191 = vadd.f32 %v5063, 1.0
        %v5192 = vadd.f32 %v5064, 1.0
        %v5193 = vadd.f32 %v5065, 1.0
        %v5194 = vadd.f32 %v5066, 1.0
        %v5195 = vadd.f32 %v5067, 1.0
        %v5196 = vadd.f32 %v5068, 1.0
        %v5197 = vadd.f32 %v5069, 1.0
        %v5198 = vadd.f32 %v5070, 1.0
        %v5199 = vadd.f32 %v5071, 1.0
        %v5200 = vadd.f32 %v5072, 1.0
        %v5201 = vadd.f32 %v5073, 1.0
        %v5202 = vadd.f32 %v5074, 1.0
        %v5203 = vadd.f32 %v5075, 1.0
        %v5204 = vadd.f32 %v5076, 1.0
        %v5205 = vadd.f32 %v5077, 1.0
        %v5206 = vadd.f32 %v5078, 1.0
        %v5207 = vadd.f32 %v5079, 1.0
        %v5208 = vadd.f32 %v5080, 1.0
        %v5209 = vadd.f32 %v5081, 1.0
        %v5210 = vadd.f32 %v5082, 1.0
        %v5211 = vadd.f32 %v5083, 1.0
        %v5212 = vadd.f32 %v5084, 1.0
        %v5213 = vadd.f32 %v5085, 1.0
        %v5214 = vadd.f32 %v5086, 1.0
        %v5215 = vadd.f32 %v5087, 1.0
        %v5216 = vadd.f32 %v5088, 1.0
        %v5217 = vadd.f32 %v5089, 1.0
        %v5218 = vadd.f32 %v5090, 1.0
        %v5219 = vadd.f32 %v5091, 1.0
        %v5220 = vadd.f32 %v5092, 1.0
        %v5221 = vadd.f32 %v5093, 1.0
        %v5222 = vadd.f32 %v5094, 1.0
        %v5223 = vadd.f32 %v5095, 1.0
        %v5224 = vadd.f32 %v5096, 1.0
        %v5225 = vadd.f32 %v5097, 1.0
        %v5226 = vadd.f32 %v5098, 1.0
        %v5227 = vadd.f32 %v5099, 1.0
        %v5228 = vadd.f32 %v5100, 1.0
        %v5229 = vadd.f32 %v5101, 1.0
        %v5230 = vadd.f32 %v5102, 1.0
        %v5231 = vadd.f32 %v5103, 1.0
        %v5232 = vadd.f32 %v5104, 1.0
        %v5233 = vadd.f32 %v5105, 1.0
        %v5234 = vadd.f32 %v5106, 1.0
        %v5235 = vadd.f32 %v5107, 1.0
        %v5236 = vadd.f32 %v5108, 1.0
        %v5237 = vadd.f32 %v5109, 1.0
        %v5238 = vadd.f32 %v5110, 1.0
        %v5239 = vadd.f32 %v5111, 1.0
        %v5240 = vadd.f32 %v5112, 1.0
        %v5241 = vadd.f32 %v5113, 1.0
        %v5242 = vadd.f32 %v5114, 1.0
        %v5243 = vadd.f32 %v5115, 1.0
        %v5244 = vadd.f32 %v5116, 1.0
        %v5245 = vadd.f32 %v5117, 1.0
        %v5246 = vadd.f32 %v5118, 1.0
        %v5247 = vadd.f32 %v5119, 1.0
        %v5248 = vadd.f32 %v5120, 1.0
        %v5249 = vadd.f32 %v5121, 1.0
        %v5250 = vadd.f32 %v5122, 1.0
        %v5251 = vadd.f32 %v5123, 1.0
        %v5252 = vadd.f32 %v5124, 1.0
        %v5253 = vadd.f32 %v5125, 1.0
        %v5254 = vadd.f32 %v5126, 1.0
        %v5255 = vadd.f32 %v5127, 1.0
        %v5256 = vadd.f32 %v5128, 1.0
        %v5257 = vadd.f32 %v5129, 1.0
        %v5258 = vadd.f32 %v5130, 1.0
        %v5259 = vadd.f32 %v5131, 1.0
        %v5260 = vadd.f32 %v5132, 1.0
        %v5261 = vadd.f32 %v5133, 1.0
        %v5262 = vadd.f32 %v5134, 1.0
        %v5263 = vadd.f32 %v5135, 1.0
        %v5264 = vadd.f32 %v5136, 1.0
        %v5265 = vadd.f32 %v5137, 1.0
        %v5266 = vadd.f32 %v5138, 1.0
        %v5267 = vadd.f32 %v5139, 1.0
        %v5268 = vadd.f32 %v5140, 1.0
        %v5269 = vadd.f32 %v5141, 1.0
        %v5270 = vadd.f32 %v5142, 1.0
        %v5271 = vadd.f32 %v5143, 1.0
        %v5272 = vadd.f32 %v5144, 1.0
        %v5273 = vadd.f32 %v5145, 1.0
        %v5274 = vadd.f32 %v5146, 1.0
        %v5275 = vadd.f32 %v5147, 1.0
        %v5276 = vadd.f32 %v5148, 1.0
        %v5277 = vadd.f32 %v5149, 1.0
        %v5278 = vadd.f32 %v5150, 1.0
        %v5279 = vadd.f32 %v5151, 1.0
        %v5280 = vadd.f32 %v5152, 1.0
        %v5281 = vadd.f32 %v5153, 1.0
        %v5282 = vadd.f32 %v5154, 1.0
        %v5283 = vadd.f32 %v5155, 1.0
        %v5284 = vadd.f32 %v5156, 1.0
        %v5285 = vadd.f32 %v5157, 1.0
        %v5286 = vadd.f32 %v5158, 1.0
        %v5287 = vadd.f32 %v5159, 1.0
        %v5288 = vadd.f32 %v5160, 1.0
        %v5289 = vadd.f32 %v5161, 1.0
        %v5290 = vadd.f32 %v5162, 1.0
        %v5291 = vadd.f32 %v5163, 1.0
        %v5292 = vadd.f32 %v5164, 1.0
        %v5293 = vadd.f32 %v5165, 1.0
        %v5294 = vadd.f32 %v5166, 1.0
        %v5295 = vadd.f32 %v5167, 1.0
        %v5296 = vadd.f32 %v5168, 1.0
        %v5297 = vadd.f32 %v5169, 1.0
        %v5298 = vadd.f32 %v5170, 1.0
        %v5299 = vadd.f32 %v5171, 1.0
        %v5300 = vadd.f32 %v5172, 1.0
        %v5301 = vadd.f32 %v5173, 1.0
        %v5302 = vadd.f32 %v5174, 1.0
        %v5303 = vadd.f32 %v5175, 1.0
        %v5304 = vadd.f32 %v5176, 1.0
        %v5305 = vadd.f32 %v5177, 1.0
        %v5306 = vadd.f32 %v5178, 1.0
        %v5307 = vadd.f32 %v5179, 1.0
        %v5308 = vadd.f32 %v5180, 1.0
        %v5309 = vadd.f32 %v5181, 1.0
        %v5310 = vadd.f32 %v5182, 1.0
        %v5311 = vadd.f32 %v5183, 1.0
        %v5312 = vrcp.pop %v5184
        %v5313 = vmul.f32 %v5184, %v5312
        %v5314 = vsub.f32 1.0, %v5313
        %v5315 = vmul.f32 %v5312, %v5314
        %v5316 = vadd.f32 %v5312, %v5315
        %vm5317 = vweird.f32 %v5184
        %vm5318 = vweird.f32 %v5312
        %vm5319 = vmor %vm5317, %vm5318
        %v5320 = vsel %vm5319, %v5312, %v5316
        %v5321 = vand.u32 2147483647, %v5184
        %vm5322 = vcmp.eq.f32.partialorder %v5321, 8.507059e+37
        %v5323 = vand.u32 %v5184, 2147483648
        %v5324 = vor.u32 1.1754944e-38, %v5323
        %v5325 = vsel %vm5322, %v5324, %v5320
        %v5326 = vmul.f32 1.0, %v5325
        %v5327 = vrcp.pop %v5185
        %v5328 = vmul.f32 %v5185, %v5327
        %v5329 = vsub.f32 1.0, %v5328
        %v5330 = vmul.f32 %v5327, %v5329
        %v5331 = vadd.f32 %v5327, %v5330
        %vm5332 = vweird.f32 %v5185
        %vm5333 = vweird.f32 %v5327
        %vm5334 = vmor %vm5332, %vm5333
        %v5335 = vsel %vm5334, %v5327, %v5331
        %v5336 = vand.u32 2147483647, %v5185
        %vm5337 = vcmp.eq.f32.partialorder %v5336, 8.507059e+37
        %v5338 = vand.u32 %v5185, 2147483648
        %v5339 = vor.u32 1.1754944e-38, %v5338
        %v5340 = vsel %vm5337, %v5339, %v5335
        %v5341 = vmul.f32 1.0, %v5340
        %v5342 = vrcp.pop %v5186
        %v5343 = vmul.f32 %v5186, %v5342
        %v5344 = vsub.f32 1.0, %v5343
        %v5345 = vmul.f32 %v5342, %v5344
        %v5346 = vadd.f32 %v5342, %v5345
        %vm5347 = vweird.f32 %v5186
        %vm5348 = vweird.f32 %v5342
        %vm5349 = vmor %vm5347, %vm5348
        %v5350 = vsel %vm5349, %v5342, %v5346
        %v5351 = vand.u32 2147483647, %v5186
        %vm5352 = vcmp.eq.f32.partialorder %v5351, 8.507059e+37
        %v5353 = vand.u32 %v5186, 2147483648
        %v5354 = vor.u32 1.1754944e-38, %v5353
        %v5355 = vsel %vm5352, %v5354, %v5350
        %v5356 = vmul.f32 1.0, %v5355
        %v5357 = vrcp.pop %v5187
        %v5358 = vmul.f32 %v5187, %v5357
        %v5359 = vsub.f32 1.0, %v5358
        %v5360 = vmul.f32 %v5357, %v5359
        %v5361 = vadd.f32 %v5357, %v5360
        %vm5362 = vweird.f32 %v5187
        %vm5363 = vweird.f32 %v5357
        %vm5364 = vmor %vm5362, %vm5363
        %v5365 = vsel %vm5364, %v5357, %v5361
        %v5366 = vand.u32 2147483647, %v5187
        %vm5367 = vcmp.eq.f32.partialorder %v5366, 8.507059e+37
        %v5368 = vand.u32 %v5187, 2147483648
        %v5369 = vor.u32 1.1754944e-38, %v5368
        %v5370 = vsel %vm5367, %v5369, %v5365
        %v5371 = vmul.f32 1.0, %v5370
        %v5372 = vrcp.pop %v5188
        %v5373 = vmul.f32 %v5188, %v5372
        %v5374 = vsub.f32 1.0, %v5373
        %v5375 = vmul.f32 %v5372, %v5374
        %v5376 = vadd.f32 %v5372, %v5375
        %vm5377 = vweird.f32 %v5188
        %vm5378 = vweird.f32 %v5372
        %vm5379 = vmor %vm5377, %vm5378
        %v5380 = vsel %vm5379, %v5372, %v5376
        %v5381 = vand.u32 2147483647, %v5188
        %vm5382 = vcmp.eq.f32.partialorder %v5381, 8.507059e+37
        %v5383 = vand.u32 %v5188, 2147483648
        %v5384 = vor.u32 1.1754944e-38, %v5383
        %v5385 = vsel %vm5382, %v5384, %v5380
        %v5386 = vmul.f32 1.0, %v5385
        %v5387 = vrcp.pop %v5189
        %v5388 = vmul.f32 %v5189, %v5387
        %v5389 = vsub.f32 1.0, %v5388
        %v5390 = vmul.f32 %v5387, %v5389
        %v5391 = vadd.f32 %v5387, %v5390
        %vm5392 = vweird.f32 %v5189
        %vm5393 = vweird.f32 %v5387
        %vm5394 = vmor %vm5392, %vm5393
        %v5395 = vsel %vm5394, %v5387, %v5391
        %v5396 = vand.u32 2147483647, %v5189
        %vm5397 = vcmp.eq.f32.partialorder %v5396, 8.507059e+37
        %v5398 = vand.u32 %v5189, 2147483648
        %v5399 = vor.u32 1.1754944e-38, %v5398
        %v5400 = vsel %vm5397, %v5399, %v5395
        %v5401 = vmul.f32 1.0, %v5400
        %v5402 = vrcp.pop %v5190
        %v5403 = vmul.f32 %v5190, %v5402
        %v5404 = vsub.f32 1.0, %v5403
        %v5405 = vmul.f32 %v5402, %v5404
        %v5406 = vadd.f32 %v5402, %v5405
        %vm5407 = vweird.f32 %v5190
        %vm5408 = vweird.f32 %v5402
        %vm5409 = vmor %vm5407, %vm5408
        %v5410 = vsel %vm5409, %v5402, %v5406
        %v5411 = vand.u32 2147483647, %v5190
        %vm5412 = vcmp.eq.f32.partialorder %v5411, 8.507059e+37
        %v5413 = vand.u32 %v5190, 2147483648
        %v5414 = vor.u32 1.1754944e-38, %v5413
        %v5415 = vsel %vm5412, %v5414, %v5410
        %v5416 = vmul.f32 1.0, %v5415
        %v5417 = vrcp.pop %v5191
        %v5418 = vmul.f32 %v5191, %v5417
        %v5419 = vsub.f32 1.0, %v5418
        %v5420 = vmul.f32 %v5417, %v5419
        %v5421 = vadd.f32 %v5417, %v5420
        %vm5422 = vweird.f32 %v5191
        %vm5423 = vweird.f32 %v5417
        %vm5424 = vmor %vm5422, %vm5423
        %v5425 = vsel %vm5424, %v5417, %v5421
        %v5426 = vand.u32 2147483647, %v5191
        %vm5427 = vcmp.eq.f32.partialorder %v5426, 8.507059e+37
        %v5428 = vand.u32 %v5191, 2147483648
        %v5429 = vor.u32 1.1754944e-38, %v5428
        %v5430 = vsel %vm5427, %v5429, %v5425
        %v5431 = vmul.f32 1.0, %v5430
        %v5432 = vrcp.pop %v5192
        %v5433 = vmul.f32 %v5192, %v5432
        %v5434 = vsub.f32 1.0, %v5433
        %v5435 = vmul.f32 %v5432, %v5434
        %v5436 = vadd.f32 %v5432, %v5435
        %vm5437 = vweird.f32 %v5192
        %vm5438 = vweird.f32 %v5432
        %vm5439 = vmor %vm5437, %vm5438
        %v5440 = vsel %vm5439, %v5432, %v5436
        %v5441 = vand.u32 2147483647, %v5192
        %vm5442 = vcmp.eq.f32.partialorder %v5441, 8.507059e+37
        %v5443 = vand.u32 %v5192, 2147483648
        %v5444 = vor.u32 1.1754944e-38, %v5443
        %v5445 = vsel %vm5442, %v5444, %v5440
        %v5446 = vmul.f32 1.0, %v5445
        %v5447 = vrcp.pop %v5193
        %v5448 = vmul.f32 %v5193, %v5447
        %v5449 = vsub.f32 1.0, %v5448
        %v5450 = vmul.f32 %v5447, %v5449
        %v5451 = vadd.f32 %v5447, %v5450
        %vm5452 = vweird.f32 %v5193
        %vm5453 = vweird.f32 %v5447
        %vm5454 = vmor %vm5452, %vm5453
        %v5455 = vsel %vm5454, %v5447, %v5451
        %v5456 = vand.u32 2147483647, %v5193
        %vm5457 = vcmp.eq.f32.partialorder %v5456, 8.507059e+37
        %v5458 = vand.u32 %v5193, 2147483648
        %v5459 = vor.u32 1.1754944e-38, %v5458
        %v5460 = vsel %vm5457, %v5459, %v5455
        %v5461 = vmul.f32 1.0, %v5460
        %v5462 = vrcp.pop %v5194
        %v5463 = vmul.f32 %v5194, %v5462
        %v5464 = vsub.f32 1.0, %v5463
        %v5465 = vmul.f32 %v5462, %v5464
        %v5466 = vadd.f32 %v5462, %v5465
        %vm5467 = vweird.f32 %v5194
        %vm5468 = vweird.f32 %v5462
        %vm5469 = vmor %vm5467, %vm5468
        %v5470 = vsel %vm5469, %v5462, %v5466
        %v5471 = vand.u32 2147483647, %v5194
        %vm5472 = vcmp.eq.f32.partialorder %v5471, 8.507059e+37
        %v5473 = vand.u32 %v5194, 2147483648
        %v5474 = vor.u32 1.1754944e-38, %v5473
        %v5475 = vsel %vm5472, %v5474, %v5470
        %v5476 = vmul.f32 1.0, %v5475
        %v5477 = vrcp.pop %v5195
        %v5478 = vmul.f32 %v5195, %v5477
        %v5479 = vsub.f32 1.0, %v5478
        %v5480 = vmul.f32 %v5477, %v5479
        %v5481 = vadd.f32 %v5477, %v5480
        %vm5482 = vweird.f32 %v5195
        %vm5483 = vweird.f32 %v5477
        %vm5484 = vmor %vm5482, %vm5483
        %v5485 = vsel %vm5484, %v5477, %v5481
        %v5486 = vand.u32 2147483647, %v5195
        %vm5487 = vcmp.eq.f32.partialorder %v5486, 8.507059e+37
        %v5488 = vand.u32 %v5195, 2147483648
        %v5489 = vor.u32 1.1754944e-38, %v5488
        %v5490 = vsel %vm5487, %v5489, %v5485
        %v5491 = vmul.f32 1.0, %v5490
        %v5492 = vrcp.pop %v5196
        %v5493 = vmul.f32 %v5196, %v5492
        %v5494 = vsub.f32 1.0, %v5493
        %v5495 = vmul.f32 %v5492, %v5494
        %v5496 = vadd.f32 %v5492, %v5495
        %vm5497 = vweird.f32 %v5196
        %vm5498 = vweird.f32 %v5492
        %vm5499 = vmor %vm5497, %vm5498
        %v5500 = vsel %vm5499, %v5492, %v5496
        %v5501 = vand.u32 2147483647, %v5196
        %vm5502 = vcmp.eq.f32.partialorder %v5501, 8.507059e+37
        %v5503 = vand.u32 %v5196, 2147483648
        %v5504 = vor.u32 1.1754944e-38, %v5503
        %v5505 = vsel %vm5502, %v5504, %v5500
        %v5506 = vmul.f32 1.0, %v5505
        %v5507 = vrcp.pop %v5197
        %v5508 = vmul.f32 %v5197, %v5507
        %v5509 = vsub.f32 1.0, %v5508
        %v5510 = vmul.f32 %v5507, %v5509
        %v5511 = vadd.f32 %v5507, %v5510
        %vm5512 = vweird.f32 %v5197
        %vm5513 = vweird.f32 %v5507
        %vm5514 = vmor %vm5512, %vm5513
        %v5515 = vsel %vm5514, %v5507, %v5511
        %v5516 = vand.u32 2147483647, %v5197
        %vm5517 = vcmp.eq.f32.partialorder %v5516, 8.507059e+37
        %v5518 = vand.u32 %v5197, 2147483648
        %v5519 = vor.u32 1.1754944e-38, %v5518
        %v5520 = vsel %vm5517, %v5519, %v5515
        %v5521 = vmul.f32 1.0, %v5520
        %v5522 = vrcp.pop %v5198
        %v5523 = vmul.f32 %v5198, %v5522
        %v5524 = vsub.f32 1.0, %v5523
        %v5525 = vmul.f32 %v5522, %v5524
        %v5526 = vadd.f32 %v5522, %v5525
        %vm5527 = vweird.f32 %v5198
        %vm5528 = vweird.f32 %v5522
        %vm5529 = vmor %vm5527, %vm5528
        %v5530 = vsel %vm5529, %v5522, %v5526
        %v5531 = vand.u32 2147483647, %v5198
        %vm5532 = vcmp.eq.f32.partialorder %v5531, 8.507059e+37
        %v5533 = vand.u32 %v5198, 2147483648
        %v5534 = vor.u32 1.1754944e-38, %v5533
        %v5535 = vsel %vm5532, %v5534, %v5530
        %v5536 = vmul.f32 1.0, %v5535
        %v5537 = vrcp.pop %v5199
        %v5538 = vmul.f32 %v5199, %v5537
        %v5539 = vsub.f32 1.0, %v5538
        %v5540 = vmul.f32 %v5537, %v5539
        %v5541 = vadd.f32 %v5537, %v5540
        %vm5542 = vweird.f32 %v5199
        %vm5543 = vweird.f32 %v5537
        %vm5544 = vmor %vm5542, %vm5543
        %v5545 = vsel %vm5544, %v5537, %v5541
        %v5546 = vand.u32 2147483647, %v5199
        %vm5547 = vcmp.eq.f32.partialorder %v5546, 8.507059e+37
        %v5548 = vand.u32 %v5199, 2147483648
        %v5549 = vor.u32 1.1754944e-38, %v5548
        %v5550 = vsel %vm5547, %v5549, %v5545
        %v5551 = vmul.f32 1.0, %v5550
        %v5552 = vrcp.pop %v5200
        %v5553 = vmul.f32 %v5200, %v5552
        %v5554 = vsub.f32 1.0, %v5553
        %v5555 = vmul.f32 %v5552, %v5554
        %v5556 = vadd.f32 %v5552, %v5555
        %vm5557 = vweird.f32 %v5200
        %vm5558 = vweird.f32 %v5552
        %vm5559 = vmor %vm5557, %vm5558
        %v5560 = vsel %vm5559, %v5552, %v5556
        %v5561 = vand.u32 2147483647, %v5200
        %vm5562 = vcmp.eq.f32.partialorder %v5561, 8.507059e+37
        %v5563 = vand.u32 %v5200, 2147483648
        %v5564 = vor.u32 1.1754944e-38, %v5563
        %v5565 = vsel %vm5562, %v5564, %v5560
        %v5566 = vmul.f32 1.0, %v5565
        %v5567 = vrcp.pop %v5201
        %v5568 = vmul.f32 %v5201, %v5567
        %v5569 = vsub.f32 1.0, %v5568
        %v5570 = vmul.f32 %v5567, %v5569
        %v5571 = vadd.f32 %v5567, %v5570
        %vm5572 = vweird.f32 %v5201
        %vm5573 = vweird.f32 %v5567
        %vm5574 = vmor %vm5572, %vm5573
        %v5575 = vsel %vm5574, %v5567, %v5571
        %v5576 = vand.u32 2147483647, %v5201
        %vm5577 = vcmp.eq.f32.partialorder %v5576, 8.507059e+37
        %v5578 = vand.u32 %v5201, 2147483648
        %v5579 = vor.u32 1.1754944e-38, %v5578
        %v5580 = vsel %vm5577, %v5579, %v5575
        %v5581 = vmul.f32 1.0, %v5580
        %v5582 = vrcp.pop %v5202
        %v5583 = vmul.f32 %v5202, %v5582
        %v5584 = vsub.f32 1.0, %v5583
        %v5585 = vmul.f32 %v5582, %v5584
        %v5586 = vadd.f32 %v5582, %v5585
        %vm5587 = vweird.f32 %v5202
        %vm5588 = vweird.f32 %v5582
        %vm5589 = vmor %vm5587, %vm5588
        %v5590 = vsel %vm5589, %v5582, %v5586
        %v5591 = vand.u32 2147483647, %v5202
        %vm5592 = vcmp.eq.f32.partialorder %v5591, 8.507059e+37
        %v5593 = vand.u32 %v5202, 2147483648
        %v5594 = vor.u32 1.1754944e-38, %v5593
        %v5595 = vsel %vm5592, %v5594, %v5590
        %v5596 = vmul.f32 1.0, %v5595
        %v5597 = vrcp.pop %v5203
        %v5598 = vmul.f32 %v5203, %v5597
        %v5599 = vsub.f32 1.0, %v5598
        %v5600 = vmul.f32 %v5597, %v5599
        %v5601 = vadd.f32 %v5597, %v5600
        %vm5602 = vweird.f32 %v5203
        %vm5603 = vweird.f32 %v5597
        %vm5604 = vmor %vm5602, %vm5603
        %v5605 = vsel %vm5604, %v5597, %v5601
        %v5606 = vand.u32 2147483647, %v5203
        %vm5607 = vcmp.eq.f32.partialorder %v5606, 8.507059e+37
        %v5608 = vand.u32 %v5203, 2147483648
        %v5609 = vor.u32 1.1754944e-38, %v5608
        %v5610 = vsel %vm5607, %v5609, %v5605
        %v5611 = vmul.f32 1.0, %v5610
        %v5612 = vrcp.pop %v5204
        %v5613 = vmul.f32 %v5204, %v5612
        %v5614 = vsub.f32 1.0, %v5613
        %v5615 = vmul.f32 %v5612, %v5614
        %v5616 = vadd.f32 %v5612, %v5615
        %vm5617 = vweird.f32 %v5204
        %vm5618 = vweird.f32 %v5612
        %vm5619 = vmor %vm5617, %vm5618
        %v5620 = vsel %vm5619, %v5612, %v5616
        %v5621 = vand.u32 2147483647, %v5204
        %vm5622 = vcmp.eq.f32.partialorder %v5621, 8.507059e+37
        %v5623 = vand.u32 %v5204, 2147483648
        %v5624 = vor.u32 1.1754944e-38, %v5623
        %v5625 = vsel %vm5622, %v5624, %v5620
        %v5626 = vmul.f32 1.0, %v5625
        %v5627 = vrcp.pop %v5205
        %v5628 = vmul.f32 %v5205, %v5627
        %v5629 = vsub.f32 1.0, %v5628
        %v5630 = vmul.f32 %v5627, %v5629
        %v5631 = vadd.f32 %v5627, %v5630
        %vm5632 = vweird.f32 %v5205
        %vm5633 = vweird.f32 %v5627
        %vm5634 = vmor %vm5632, %vm5633
        %v5635 = vsel %vm5634, %v5627, %v5631
        %v5636 = vand.u32 2147483647, %v5205
        %vm5637 = vcmp.eq.f32.partialorder %v5636, 8.507059e+37
        %v5638 = vand.u32 %v5205, 2147483648
        %v5639 = vor.u32 1.1754944e-38, %v5638
        %v5640 = vsel %vm5637, %v5639, %v5635
        %v5641 = vmul.f32 1.0, %v5640
        %v5642 = vrcp.pop %v5206
        %v5643 = vmul.f32 %v5206, %v5642
        %v5644 = vsub.f32 1.0, %v5643
        %v5645 = vmul.f32 %v5642, %v5644
        %v5646 = vadd.f32 %v5642, %v5645
        %vm5647 = vweird.f32 %v5206
        %vm5648 = vweird.f32 %v5642
        %vm5649 = vmor %vm5647, %vm5648
        %v5650 = vsel %vm5649, %v5642, %v5646
        %v5651 = vand.u32 2147483647, %v5206
        %vm5652 = vcmp.eq.f32.partialorder %v5651, 8.507059e+37
        %v5653 = vand.u32 %v5206, 2147483648
        %v5654 = vor.u32 1.1754944e-38, %v5653
        %v5655 = vsel %vm5652, %v5654, %v5650
        %v5656 = vmul.f32 1.0, %v5655
        %v5657 = vrcp.pop %v5207
        %v5658 = vmul.f32 %v5207, %v5657
        %v5659 = vsub.f32 1.0, %v5658
        %v5660 = vmul.f32 %v5657, %v5659
        %v5661 = vadd.f32 %v5657, %v5660
        %vm5662 = vweird.f32 %v5207
        %vm5663 = vweird.f32 %v5657
        %vm5664 = vmor %vm5662, %vm5663
        %v5665 = vsel %vm5664, %v5657, %v5661
        %v5666 = vand.u32 2147483647, %v5207
        %vm5667 = vcmp.eq.f32.partialorder %v5666, 8.507059e+37
        %v5668 = vand.u32 %v5207, 2147483648
        %v5669 = vor.u32 1.1754944e-38, %v5668
        %v5670 = vsel %vm5667, %v5669, %v5665
        %v5671 = vmul.f32 1.0, %v5670
        %v5672 = vrcp.pop %v5208
        %v5673 = vmul.f32 %v5208, %v5672
        %v5674 = vsub.f32 1.0, %v5673
        %v5675 = vmul.f32 %v5672, %v5674
        %v5676 = vadd.f32 %v5672, %v5675
        %vm5677 = vweird.f32 %v5208
        %vm5678 = vweird.f32 %v5672
        %vm5679 = vmor %vm5677, %vm5678
        %v5680 = vsel %vm5679, %v5672, %v5676
        %v5681 = vand.u32 2147483647, %v5208
        %vm5682 = vcmp.eq.f32.partialorder %v5681, 8.507059e+37
        %v5683 = vand.u32 %v5208, 2147483648
        %v5684 = vor.u32 1.1754944e-38, %v5683
        %v5685 = vsel %vm5682, %v5684, %v5680
        %v5686 = vmul.f32 1.0, %v5685
        %v5687 = vrcp.pop %v5209
        %v5688 = vmul.f32 %v5209, %v5687
        %v5689 = vsub.f32 1.0, %v5688
        %v5690 = vmul.f32 %v5687, %v5689
        %v5691 = vadd.f32 %v5687, %v5690
        %vm5692 = vweird.f32 %v5209
        %vm5693 = vweird.f32 %v5687
        %vm5694 = vmor %vm5692, %vm5693
        %v5695 = vsel %vm5694, %v5687, %v5691
        %v5696 = vand.u32 2147483647, %v5209
        %vm5697 = vcmp.eq.f32.partialorder %v5696, 8.507059e+37
        %v5698 = vand.u32 %v5209, 2147483648
        %v5699 = vor.u32 1.1754944e-38, %v5698
        %v5700 = vsel %vm5697, %v5699, %v5695
        %v5701 = vmul.f32 1.0, %v5700
        %v5702 = vrcp.pop %v5210
        %v5703 = vmul.f32 %v5210, %v5702
        %v5704 = vsub.f32 1.0, %v5703
        %v5705 = vmul.f32 %v5702, %v5704
        %v5706 = vadd.f32 %v5702, %v5705
        %vm5707 = vweird.f32 %v5210
        %vm5708 = vweird.f32 %v5702
        %vm5709 = vmor %vm5707, %vm5708
        %v5710 = vsel %vm5709, %v5702, %v5706
        %v5711 = vand.u32 2147483647, %v5210
        %vm5712 = vcmp.eq.f32.partialorder %v5711, 8.507059e+37
        %v5713 = vand.u32 %v5210, 2147483648
        %v5714 = vor.u32 1.1754944e-38, %v5713
        %v5715 = vsel %vm5712, %v5714, %v5710
        %v5716 = vmul.f32 1.0, %v5715
        %v5717 = vrcp.pop %v5211
        %v5718 = vmul.f32 %v5211, %v5717
        %v5719 = vsub.f32 1.0, %v5718
        %v5720 = vmul.f32 %v5717, %v5719
        %v5721 = vadd.f32 %v5717, %v5720
        %vm5722 = vweird.f32 %v5211
        %vm5723 = vweird.f32 %v5717
        %vm5724 = vmor %vm5722, %vm5723
        %v5725 = vsel %vm5724, %v5717, %v5721
        %v5726 = vand.u32 2147483647, %v5211
        %vm5727 = vcmp.eq.f32.partialorder %v5726, 8.507059e+37
        %v5728 = vand.u32 %v5211, 2147483648
        %v5729 = vor.u32 1.1754944e-38, %v5728
        %v5730 = vsel %vm5727, %v5729, %v5725
        %v5731 = vmul.f32 1.0, %v5730
        %v5732 = vrcp.pop %v5212
        %v5733 = vmul.f32 %v5212, %v5732
        %v5734 = vsub.f32 1.0, %v5733
        %v5735 = vmul.f32 %v5732, %v5734
        %v5736 = vadd.f32 %v5732, %v5735
        %vm5737 = vweird.f32 %v5212
        %vm5738 = vweird.f32 %v5732
        %vm5739 = vmor %vm5737, %vm5738
        %v5740 = vsel %vm5739, %v5732, %v5736
        %v5741 = vand.u32 2147483647, %v5212
        %vm5742 = vcmp.eq.f32.partialorder %v5741, 8.507059e+37
        %v5743 = vand.u32 %v5212, 2147483648
        %v5744 = vor.u32 1.1754944e-38, %v5743
        %v5745 = vsel %vm5742, %v5744, %v5740
        %v5746 = vmul.f32 1.0, %v5745
        %v5747 = vrcp.pop %v5213
        %v5748 = vmul.f32 %v5213, %v5747
        %v5749 = vsub.f32 1.0, %v5748
        %v5750 = vmul.f32 %v5747, %v5749
        %v5751 = vadd.f32 %v5747, %v5750
        %vm5752 = vweird.f32 %v5213
        %vm5753 = vweird.f32 %v5747
        %vm5754 = vmor %vm5752, %vm5753
        %v5755 = vsel %vm5754, %v5747, %v5751
        %v5756 = vand.u32 2147483647, %v5213
        %vm5757 = vcmp.eq.f32.partialorder %v5756, 8.507059e+37
        %v5758 = vand.u32 %v5213, 2147483648
        %v5759 = vor.u32 1.1754944e-38, %v5758
        %v5760 = vsel %vm5757, %v5759, %v5755
        %v5761 = vmul.f32 1.0, %v5760
        %v5762 = vrcp.pop %v5214
        %v5763 = vmul.f32 %v5214, %v5762
        %v5764 = vsub.f32 1.0, %v5763
        %v5765 = vmul.f32 %v5762, %v5764
        %v5766 = vadd.f32 %v5762, %v5765
        %vm5767 = vweird.f32 %v5214
        %vm5768 = vweird.f32 %v5762
        %vm5769 = vmor %vm5767, %vm5768
        %v5770 = vsel %vm5769, %v5762, %v5766
        %v5771 = vand.u32 2147483647, %v5214
        %vm5772 = vcmp.eq.f32.partialorder %v5771, 8.507059e+37
        %v5773 = vand.u32 %v5214, 2147483648
        %v5774 = vor.u32 1.1754944e-38, %v5773
        %v5775 = vsel %vm5772, %v5774, %v5770
        %v5776 = vmul.f32 1.0, %v5775
        %v5777 = vrcp.pop %v5215
        %v5778 = vmul.f32 %v5215, %v5777
        %v5779 = vsub.f32 1.0, %v5778
        %v5780 = vmul.f32 %v5777, %v5779
        %v5781 = vadd.f32 %v5777, %v5780
        %vm5782 = vweird.f32 %v5215
        %vm5783 = vweird.f32 %v5777
        %vm5784 = vmor %vm5782, %vm5783
        %v5785 = vsel %vm5784, %v5777, %v5781
        %v5786 = vand.u32 2147483647, %v5215
        %vm5787 = vcmp.eq.f32.partialorder %v5786, 8.507059e+37
        %v5788 = vand.u32 %v5215, 2147483648
        %v5789 = vor.u32 1.1754944e-38, %v5788
        %v5790 = vsel %vm5787, %v5789, %v5785
        %v5791 = vmul.f32 1.0, %v5790
        %v5792 = vrcp.pop %v5216
        %v5793 = vmul.f32 %v5216, %v5792
        %v5794 = vsub.f32 1.0, %v5793
        %v5795 = vmul.f32 %v5792, %v5794
        %v5796 = vadd.f32 %v5792, %v5795
        %vm5797 = vweird.f32 %v5216
        %vm5798 = vweird.f32 %v5792
        %vm5799 = vmor %vm5797, %vm5798
        %v5800 = vsel %vm5799, %v5792, %v5796
        %v5801 = vand.u32 2147483647, %v5216
        %vm5802 = vcmp.eq.f32.partialorder %v5801, 8.507059e+37
        %v5803 = vand.u32 %v5216, 2147483648
        %v5804 = vor.u32 1.1754944e-38, %v5803
        %v5805 = vsel %vm5802, %v5804, %v5800
        %v5806 = vmul.f32 1.0, %v5805
        %v5807 = vrcp.pop %v5217
        %v5808 = vmul.f32 %v5217, %v5807
        %v5809 = vsub.f32 1.0, %v5808
        %v5810 = vmul.f32 %v5807, %v5809
        %v5811 = vadd.f32 %v5807, %v5810
        %vm5812 = vweird.f32 %v5217
        %vm5813 = vweird.f32 %v5807
        %vm5814 = vmor %vm5812, %vm5813
        %v5815 = vsel %vm5814, %v5807, %v5811
        %v5816 = vand.u32 2147483647, %v5217
        %vm5817 = vcmp.eq.f32.partialorder %v5816, 8.507059e+37
        %v5818 = vand.u32 %v5217, 2147483648
        %v5819 = vor.u32 1.1754944e-38, %v5818
        %v5820 = vsel %vm5817, %v5819, %v5815
        %v5821 = vmul.f32 1.0, %v5820
        %v5822 = vrcp.pop %v5218
        %v5823 = vmul.f32 %v5218, %v5822
        %v5824 = vsub.f32 1.0, %v5823
        %v5825 = vmul.f32 %v5822, %v5824
        %v5826 = vadd.f32 %v5822, %v5825
        %vm5827 = vweird.f32 %v5218
        %vm5828 = vweird.f32 %v5822
        %vm5829 = vmor %vm5827, %vm5828
        %v5830 = vsel %vm5829, %v5822, %v5826
        %v5831 = vand.u32 2147483647, %v5218
        %vm5832 = vcmp.eq.f32.partialorder %v5831, 8.507059e+37
        %v5833 = vand.u32 %v5218, 2147483648
        %v5834 = vor.u32 1.1754944e-38, %v5833
        %v5835 = vsel %vm5832, %v5834, %v5830
        %v5836 = vmul.f32 1.0, %v5835
        %v5837 = vrcp.pop %v5219
        %v5838 = vmul.f32 %v5219, %v5837
        %v5839 = vsub.f32 1.0, %v5838
        %v5840 = vmul.f32 %v5837, %v5839
        %v5841 = vadd.f32 %v5837, %v5840
        %vm5842 = vweird.f32 %v5219
        %vm5843 = vweird.f32 %v5837
        %vm5844 = vmor %vm5842, %vm5843
        %v5845 = vsel %vm5844, %v5837, %v5841
        %v5846 = vand.u32 2147483647, %v5219
        %vm5847 = vcmp.eq.f32.partialorder %v5846, 8.507059e+37
        %v5848 = vand.u32 %v5219, 2147483648
        %v5849 = vor.u32 1.1754944e-38, %v5848
        %v5850 = vsel %vm5847, %v5849, %v5845
        %v5851 = vmul.f32 1.0, %v5850
        %v5852 = vrcp.pop %v5220
        %v5853 = vmul.f32 %v5220, %v5852
        %v5854 = vsub.f32 1.0, %v5853
        %v5855 = vmul.f32 %v5852, %v5854
        %v5856 = vadd.f32 %v5852, %v5855
        %vm5857 = vweird.f32 %v5220
        %vm5858 = vweird.f32 %v5852
        %vm5859 = vmor %vm5857, %vm5858
        %v5860 = vsel %vm5859, %v5852, %v5856
        %v5861 = vand.u32 2147483647, %v5220
        %vm5862 = vcmp.eq.f32.partialorder %v5861, 8.507059e+37
        %v5863 = vand.u32 %v5220, 2147483648
        %v5864 = vor.u32 1.1754944e-38, %v5863
        %v5865 = vsel %vm5862, %v5864, %v5860
        %v5866 = vmul.f32 1.0, %v5865
        %v5867 = vrcp.pop %v5221
        %v5868 = vmul.f32 %v5221, %v5867
        %v5869 = vsub.f32 1.0, %v5868
        %v5870 = vmul.f32 %v5867, %v5869
        %v5871 = vadd.f32 %v5867, %v5870
        %vm5872 = vweird.f32 %v5221
        %vm5873 = vweird.f32 %v5867
        %vm5874 = vmor %vm5872, %vm5873
        %v5875 = vsel %vm5874, %v5867, %v5871
        %v5876 = vand.u32 2147483647, %v5221
        %vm5877 = vcmp.eq.f32.partialorder %v5876, 8.507059e+37
        %v5878 = vand.u32 %v5221, 2147483648
        %v5879 = vor.u32 1.1754944e-38, %v5878
        %v5880 = vsel %vm5877, %v5879, %v5875
        %v5881 = vmul.f32 1.0, %v5880
        %v5882 = vrcp.pop %v5222
        %v5883 = vmul.f32 %v5222, %v5882
        %v5884 = vsub.f32 1.0, %v5883
        %v5885 = vmul.f32 %v5882, %v5884
        %v5886 = vadd.f32 %v5882, %v5885
        %vm5887 = vweird.f32 %v5222
        %vm5888 = vweird.f32 %v5882
        %vm5889 = vmor %vm5887, %vm5888
        %v5890 = vsel %vm5889, %v5882, %v5886
        %v5891 = vand.u32 2147483647, %v5222
        %vm5892 = vcmp.eq.f32.partialorder %v5891, 8.507059e+37
        %v5893 = vand.u32 %v5222, 2147483648
        %v5894 = vor.u32 1.1754944e-38, %v5893
        %v5895 = vsel %vm5892, %v5894, %v5890
        %v5896 = vmul.f32 1.0, %v5895
        %v5897 = vrcp.pop %v5223
        %v5898 = vmul.f32 %v5223, %v5897
        %v5899 = vsub.f32 1.0, %v5898
        %v5900 = vmul.f32 %v5897, %v5899
        %v5901 = vadd.f32 %v5897, %v5900
        %vm5902 = vweird.f32 %v5223
        %vm5903 = vweird.f32 %v5897
        %vm5904 = vmor %vm5902, %vm5903
        %v5905 = vsel %vm5904, %v5897, %v5901
        %v5906 = vand.u32 2147483647, %v5223
        %vm5907 = vcmp.eq.f32.partialorder %v5906, 8.507059e+37
        %v5908 = vand.u32 %v5223, 2147483648
        %v5909 = vor.u32 1.1754944e-38, %v5908
        %v5910 = vsel %vm5907, %v5909, %v5905
        %v5911 = vmul.f32 1.0, %v5910
        %v5912 = vrcp.pop %v5224
        %v5913 = vmul.f32 %v5224, %v5912
        %v5914 = vsub.f32 1.0, %v5913
        %v5915 = vmul.f32 %v5912, %v5914
        %v5916 = vadd.f32 %v5912, %v5915
        %vm5917 = vweird.f32 %v5224
        %vm5918 = vweird.f32 %v5912
        %vm5919 = vmor %vm5917, %vm5918
        %v5920 = vsel %vm5919, %v5912, %v5916
        %v5921 = vand.u32 2147483647, %v5224
        %vm5922 = vcmp.eq.f32.partialorder %v5921, 8.507059e+37
        %v5923 = vand.u32 %v5224, 2147483648
        %v5924 = vor.u32 1.1754944e-38, %v5923
        %v5925 = vsel %vm5922, %v5924, %v5920
        %v5926 = vmul.f32 1.0, %v5925
        %v5927 = vrcp.pop %v5225
        %v5928 = vmul.f32 %v5225, %v5927
        %v5929 = vsub.f32 1.0, %v5928
        %v5930 = vmul.f32 %v5927, %v5929
        %v5931 = vadd.f32 %v5927, %v5930
        %vm5932 = vweird.f32 %v5225
        %vm5933 = vweird.f32 %v5927
        %vm5934 = vmor %vm5932, %vm5933
        %v5935 = vsel %vm5934, %v5927, %v5931
        %v5936 = vand.u32 2147483647, %v5225
        %vm5937 = vcmp.eq.f32.partialorder %v5936, 8.507059e+37
        %v5938 = vand.u32 %v5225, 2147483648
        %v5939 = vor.u32 1.1754944e-38, %v5938
        %v5940 = vsel %vm5937, %v5939, %v5935
        %v5941 = vmul.f32 1.0, %v5940
        %v5942 = vrcp.pop %v5226
        %v5943 = vmul.f32 %v5226, %v5942
        %v5944 = vsub.f32 1.0, %v5943
        %v5945 = vmul.f32 %v5942, %v5944
        %v5946 = vadd.f32 %v5942, %v5945
        %vm5947 = vweird.f32 %v5226
        %vm5948 = vweird.f32 %v5942
        %vm5949 = vmor %vm5947, %vm5948
        %v5950 = vsel %vm5949, %v5942, %v5946
        %v5951 = vand.u32 2147483647, %v5226
        %vm5952 = vcmp.eq.f32.partialorder %v5951, 8.507059e+37
        %v5953 = vand.u32 %v5226, 2147483648
        %v5954 = vor.u32 1.1754944e-38, %v5953
        %v5955 = vsel %vm5952, %v5954, %v5950
        %v5956 = vmul.f32 1.0, %v5955
        %v5957 = vrcp.pop %v5227
        %v5958 = vmul.f32 %v5227, %v5957
        %v5959 = vsub.f32 1.0, %v5958
        %v5960 = vmul.f32 %v5957, %v5959
        %v5961 = vadd.f32 %v5957, %v5960
        %vm5962 = vweird.f32 %v5227
        %vm5963 = vweird.f32 %v5957
        %vm5964 = vmor %vm5962, %vm5963
        %v5965 = vsel %vm5964, %v5957, %v5961
        %v5966 = vand.u32 2147483647, %v5227
        %vm5967 = vcmp.eq.f32.partialorder %v5966, 8.507059e+37
        %v5968 = vand.u32 %v5227, 2147483648
        %v5969 = vor.u32 1.1754944e-38, %v5968
        %v5970 = vsel %vm5967, %v5969, %v5965
        %v5971 = vmul.f32 1.0, %v5970
        %v5972 = vrcp.pop %v5228
        %v5973 = vmul.f32 %v5228, %v5972
        %v5974 = vsub.f32 1.0, %v5973
        %v5975 = vmul.f32 %v5972, %v5974
        %v5976 = vadd.f32 %v5972, %v5975
        %vm5977 = vweird.f32 %v5228
        %vm5978 = vweird.f32 %v5972
        %vm5979 = vmor %vm5977, %vm5978
        %v5980 = vsel %vm5979, %v5972, %v5976
        %v5981 = vand.u32 2147483647, %v5228
        %vm5982 = vcmp.eq.f32.partialorder %v5981, 8.507059e+37
        %v5983 = vand.u32 %v5228, 2147483648
        %v5984 = vor.u32 1.1754944e-38, %v5983
        %v5985 = vsel %vm5982, %v5984, %v5980
        %v5986 = vmul.f32 1.0, %v5985
        %v5987 = vrcp.pop %v5229
        %v5988 = vmul.f32 %v5229, %v5987
        %v5989 = vsub.f32 1.0, %v5988
        %v5990 = vmul.f32 %v5987, %v5989
        %v5991 = vadd.f32 %v5987, %v5990
        %vm5992 = vweird.f32 %v5229
        %vm5993 = vweird.f32 %v5987
        %vm5994 = vmor %vm5992, %vm5993
        %v5995 = vsel %vm5994, %v5987, %v5991
        %v5996 = vand.u32 2147483647, %v5229
        %vm5997 = vcmp.eq.f32.partialorder %v5996, 8.507059e+37
        %v5998 = vand.u32 %v5229, 2147483648
        %v5999 = vor.u32 1.1754944e-38, %v5998
        %v6000 = vsel %vm5997, %v5999, %v5995
        %v6001 = vmul.f32 1.0, %v6000
        %v6002 = vrcp.pop %v5230
        %v6003 = vmul.f32 %v5230, %v6002
        %v6004 = vsub.f32 1.0, %v6003
        %v6005 = vmul.f32 %v6002, %v6004
        %v6006 = vadd.f32 %v6002, %v6005
        %vm6007 = vweird.f32 %v5230
        %vm6008 = vweird.f32 %v6002
        %vm6009 = vmor %vm6007, %vm6008
        %v6010 = vsel %vm6009, %v6002, %v6006
        %v6011 = vand.u32 2147483647, %v5230
        %vm6012 = vcmp.eq.f32.partialorder %v6011, 8.507059e+37
        %v6013 = vand.u32 %v5230, 2147483648
        %v6014 = vor.u32 1.1754944e-38, %v6013
        %v6015 = vsel %vm6012, %v6014, %v6010
        %v6016 = vmul.f32 1.0, %v6015
        %v6017 = vrcp.pop %v5231
        %v6018 = vmul.f32 %v5231, %v6017
        %v6019 = vsub.f32 1.0, %v6018
        %v6020 = vmul.f32 %v6017, %v6019
        %v6021 = vadd.f32 %v6017, %v6020
        %vm6022 = vweird.f32 %v5231
        %vm6023 = vweird.f32 %v6017
        %vm6024 = vmor %vm6022, %vm6023
        %v6025 = vsel %vm6024, %v6017, %v6021
        %v6026 = vand.u32 2147483647, %v5231
        %vm6027 = vcmp.eq.f32.partialorder %v6026, 8.507059e+37
        %v6028 = vand.u32 %v5231, 2147483648
        %v6029 = vor.u32 1.1754944e-38, %v6028
        %v6030 = vsel %vm6027, %v6029, %v6025
        %v6031 = vmul.f32 1.0, %v6030
        %v6032 = vrcp.pop %v5232
        %v6033 = vmul.f32 %v5232, %v6032
        %v6034 = vsub.f32 1.0, %v6033
        %v6035 = vmul.f32 %v6032, %v6034
        %v6036 = vadd.f32 %v6032, %v6035
        %vm6037 = vweird.f32 %v5232
        %vm6038 = vweird.f32 %v6032
        %vm6039 = vmor %vm6037, %vm6038
        %v6040 = vsel %vm6039, %v6032, %v6036
        %v6041 = vand.u32 2147483647, %v5232
        %vm6042 = vcmp.eq.f32.partialorder %v6041, 8.507059e+37
        %v6043 = vand.u32 %v5232, 2147483648
        %v6044 = vor.u32 1.1754944e-38, %v6043
        %v6045 = vsel %vm6042, %v6044, %v6040
        %v6046 = vmul.f32 1.0, %v6045
        %v6047 = vrcp.pop %v5233
        %v6048 = vmul.f32 %v5233, %v6047
        %v6049 = vsub.f32 1.0, %v6048
        %v6050 = vmul.f32 %v6047, %v6049
        %v6051 = vadd.f32 %v6047, %v6050
        %vm6052 = vweird.f32 %v5233
        %vm6053 = vweird.f32 %v6047
        %vm6054 = vmor %vm6052, %vm6053
        %v6055 = vsel %vm6054, %v6047, %v6051
        %v6056 = vand.u32 2147483647, %v5233
        %vm6057 = vcmp.eq.f32.partialorder %v6056, 8.507059e+37
        %v6058 = vand.u32 %v5233, 2147483648
        %v6059 = vor.u32 1.1754944e-38, %v6058
        %v6060 = vsel %vm6057, %v6059, %v6055
        %v6061 = vmul.f32 1.0, %v6060
        %v6062 = vrcp.pop %v5234
        %v6063 = vmul.f32 %v5234, %v6062
        %v6064 = vsub.f32 1.0, %v6063
        %v6065 = vmul.f32 %v6062, %v6064
        %v6066 = vadd.f32 %v6062, %v6065
        %vm6067 = vweird.f32 %v5234
        %vm6068 = vweird.f32 %v6062
        %vm6069 = vmor %vm6067, %vm6068
        %v6070 = vsel %vm6069, %v6062, %v6066
        %v6071 = vand.u32 2147483647, %v5234
        %vm6072 = vcmp.eq.f32.partialorder %v6071, 8.507059e+37
        %v6073 = vand.u32 %v5234, 2147483648
        %v6074 = vor.u32 1.1754944e-38, %v6073
        %v6075 = vsel %vm6072, %v6074, %v6070
        %v6076 = vmul.f32 1.0, %v6075
        %v6077 = vrcp.pop %v5235
        %v6078 = vmul.f32 %v5235, %v6077
        %v6079 = vsub.f32 1.0, %v6078
        %v6080 = vmul.f32 %v6077, %v6079
        %v6081 = vadd.f32 %v6077, %v6080
        %vm6082 = vweird.f32 %v5235
        %vm6083 = vweird.f32 %v6077
        %vm6084 = vmor %vm6082, %vm6083
        %v6085 = vsel %vm6084, %v6077, %v6081
        %v6086 = vand.u32 2147483647, %v5235
        %vm6087 = vcmp.eq.f32.partialorder %v6086, 8.507059e+37
        %v6088 = vand.u32 %v5235, 2147483648
        %v6089 = vor.u32 1.1754944e-38, %v6088
        %v6090 = vsel %vm6087, %v6089, %v6085
        %v6091 = vmul.f32 1.0, %v6090
        %v6092 = vrcp.pop %v5236
        %v6093 = vmul.f32 %v5236, %v6092
        %v6094 = vsub.f32 1.0, %v6093
        %v6095 = vmul.f32 %v6092, %v6094
        %v6096 = vadd.f32 %v6092, %v6095
        %vm6097 = vweird.f32 %v5236
        %vm6098 = vweird.f32 %v6092
        %vm6099 = vmor %vm6097, %vm6098
        %v6100 = vsel %vm6099, %v6092, %v6096
        %v6101 = vand.u32 2147483647, %v5236
        %vm6102 = vcmp.eq.f32.partialorder %v6101, 8.507059e+37
        %v6103 = vand.u32 %v5236, 2147483648
        %v6104 = vor.u32 1.1754944e-38, %v6103
        %v6105 = vsel %vm6102, %v6104, %v6100
        %v6106 = vmul.f32 1.0, %v6105
        %v6107 = vrcp.pop %v5237
        %v6108 = vmul.f32 %v5237, %v6107
        %v6109 = vsub.f32 1.0, %v6108
        %v6110 = vmul.f32 %v6107, %v6109
        %v6111 = vadd.f32 %v6107, %v6110
        %vm6112 = vweird.f32 %v5237
        %vm6113 = vweird.f32 %v6107
        %vm6114 = vmor %vm6112, %vm6113
        %v6115 = vsel %vm6114, %v6107, %v6111
        %v6116 = vand.u32 2147483647, %v5237
        %vm6117 = vcmp.eq.f32.partialorder %v6116, 8.507059e+37
        %v6118 = vand.u32 %v5237, 2147483648
        %v6119 = vor.u32 1.1754944e-38, %v6118
        %v6120 = vsel %vm6117, %v6119, %v6115
        %v6121 = vmul.f32 1.0, %v6120
        %v6122 = vrcp.pop %v5238
        %v6123 = vmul.f32 %v5238, %v6122
        %v6124 = vsub.f32 1.0, %v6123
        %v6125 = vmul.f32 %v6122, %v6124
        %v6126 = vadd.f32 %v6122, %v6125
        %vm6127 = vweird.f32 %v5238
        %vm6128 = vweird.f32 %v6122
        %vm6129 = vmor %vm6127, %vm6128
        %v6130 = vsel %vm6129, %v6122, %v6126
        %v6131 = vand.u32 2147483647, %v5238
        %vm6132 = vcmp.eq.f32.partialorder %v6131, 8.507059e+37
        %v6133 = vand.u32 %v5238, 2147483648
        %v6134 = vor.u32 1.1754944e-38, %v6133
        %v6135 = vsel %vm6132, %v6134, %v6130
        %v6136 = vmul.f32 1.0, %v6135
        %v6137 = vrcp.pop %v5239
        %v6138 = vmul.f32 %v5239, %v6137
        %v6139 = vsub.f32 1.0, %v6138
        %v6140 = vmul.f32 %v6137, %v6139
        %v6141 = vadd.f32 %v6137, %v6140
        %vm6142 = vweird.f32 %v5239
        %vm6143 = vweird.f32 %v6137
        %vm6144 = vmor %vm6142, %vm6143
        %v6145 = vsel %vm6144, %v6137, %v6141
        %v6146 = vand.u32 2147483647, %v5239
        %vm6147 = vcmp.eq.f32.partialorder %v6146, 8.507059e+37
        %v6148 = vand.u32 %v5239, 2147483648
        %v6149 = vor.u32 1.1754944e-38, %v6148
        %v6150 = vsel %vm6147, %v6149, %v6145
        %v6151 = vmul.f32 1.0, %v6150
        %v6152 = vrcp.pop %v5240
        %v6153 = vmul.f32 %v5240, %v6152
        %v6154 = vsub.f32 1.0, %v6153
        %v6155 = vmul.f32 %v6152, %v6154
        %v6156 = vadd.f32 %v6152, %v6155
        %vm6157 = vweird.f32 %v5240
        %vm6158 = vweird.f32 %v6152
        %vm6159 = vmor %vm6157, %vm6158
        %v6160 = vsel %vm6159, %v6152, %v6156
        %v6161 = vand.u32 2147483647, %v5240
        %vm6162 = vcmp.eq.f32.partialorder %v6161, 8.507059e+37
        %v6163 = vand.u32 %v5240, 2147483648
        %v6164 = vor.u32 1.1754944e-38, %v6163
        %v6165 = vsel %vm6162, %v6164, %v6160
        %v6166 = vmul.f32 1.0, %v6165
        %v6167 = vrcp.pop %v5241
        %v6168 = vmul.f32 %v5241, %v6167
        %v6169 = vsub.f32 1.0, %v6168
        %v6170 = vmul.f32 %v6167, %v6169
        %v6171 = vadd.f32 %v6167, %v6170
        %vm6172 = vweird.f32 %v5241
        %vm6173 = vweird.f32 %v6167
        %vm6174 = vmor %vm6172, %vm6173
        %v6175 = vsel %vm6174, %v6167, %v6171
        %v6176 = vand.u32 2147483647, %v5241
        %vm6177 = vcmp.eq.f32.partialorder %v6176, 8.507059e+37
        %v6178 = vand.u32 %v5241, 2147483648
        %v6179 = vor.u32 1.1754944e-38, %v6178
        %v6180 = vsel %vm6177, %v6179, %v6175
        %v6181 = vmul.f32 1.0, %v6180
        %v6182 = vrcp.pop %v5242
        %v6183 = vmul.f32 %v5242, %v6182
        %v6184 = vsub.f32 1.0, %v6183
        %v6185 = vmul.f32 %v6182, %v6184
        %v6186 = vadd.f32 %v6182, %v6185
        %vm6187 = vweird.f32 %v5242
        %vm6188 = vweird.f32 %v6182
        %vm6189 = vmor %vm6187, %vm6188
        %v6190 = vsel %vm6189, %v6182, %v6186
        %v6191 = vand.u32 2147483647, %v5242
        %vm6192 = vcmp.eq.f32.partialorder %v6191, 8.507059e+37
        %v6193 = vand.u32 %v5242, 2147483648
        %v6194 = vor.u32 1.1754944e-38, %v6193
        %v6195 = vsel %vm6192, %v6194, %v6190
        %v6196 = vmul.f32 1.0, %v6195
        %v6197 = vrcp.pop %v5243
        %v6198 = vmul.f32 %v5243, %v6197
        %v6199 = vsub.f32 1.0, %v6198
        %v6200 = vmul.f32 %v6197, %v6199
        %v6201 = vadd.f32 %v6197, %v6200
        %vm6202 = vweird.f32 %v5243
        %vm6203 = vweird.f32 %v6197
        %vm6204 = vmor %vm6202, %vm6203
        %v6205 = vsel %vm6204, %v6197, %v6201
        %v6206 = vand.u32 2147483647, %v5243
        %vm6207 = vcmp.eq.f32.partialorder %v6206, 8.507059e+37
        %v6208 = vand.u32 %v5243, 2147483648
        %v6209 = vor.u32 1.1754944e-38, %v6208
        %v6210 = vsel %vm6207, %v6209, %v6205
        %v6211 = vmul.f32 1.0, %v6210
        %v6212 = vrcp.pop %v5244
        %v6213 = vmul.f32 %v5244, %v6212
        %v6214 = vsub.f32 1.0, %v6213
        %v6215 = vmul.f32 %v6212, %v6214
        %v6216 = vadd.f32 %v6212, %v6215
        %vm6217 = vweird.f32 %v5244
        %vm6218 = vweird.f32 %v6212
        %vm6219 = vmor %vm6217, %vm6218
        %v6220 = vsel %vm6219, %v6212, %v6216
        %v6221 = vand.u32 2147483647, %v5244
        %vm6222 = vcmp.eq.f32.partialorder %v6221, 8.507059e+37
        %v6223 = vand.u32 %v5244, 2147483648
        %v6224 = vor.u32 1.1754944e-38, %v6223
        %v6225 = vsel %vm6222, %v6224, %v6220
        %v6226 = vmul.f32 1.0, %v6225
        %v6227 = vrcp.pop %v5245
        %v6228 = vmul.f32 %v5245, %v6227
        %v6229 = vsub.f32 1.0, %v6228
        %v6230 = vmul.f32 %v6227, %v6229
        %v6231 = vadd.f32 %v6227, %v6230
        %vm6232 = vweird.f32 %v5245
        %vm6233 = vweird.f32 %v6227
        %vm6234 = vmor %vm6232, %vm6233
        %v6235 = vsel %vm6234, %v6227, %v6231
        %v6236 = vand.u32 2147483647, %v5245
        %vm6237 = vcmp.eq.f32.partialorder %v6236, 8.507059e+37
        %v6238 = vand.u32 %v5245, 2147483648
        %v6239 = vor.u32 1.1754944e-38, %v6238
        %v6240 = vsel %vm6237, %v6239, %v6235
        %v6241 = vmul.f32 1.0, %v6240
        %v6242 = vrcp.pop %v5246
        %v6243 = vmul.f32 %v5246, %v6242
        %v6244 = vsub.f32 1.0, %v6243
        %v6245 = vmul.f32 %v6242, %v6244
        %v6246 = vadd.f32 %v6242, %v6245
        %vm6247 = vweird.f32 %v5246
        %vm6248 = vweird.f32 %v6242
        %vm6249 = vmor %vm6247, %vm6248
        %v6250 = vsel %vm6249, %v6242, %v6246
        %v6251 = vand.u32 2147483647, %v5246
        %vm6252 = vcmp.eq.f32.partialorder %v6251, 8.507059e+37
        %v6253 = vand.u32 %v5246, 2147483648
        %v6254 = vor.u32 1.1754944e-38, %v6253
        %v6255 = vsel %vm6252, %v6254, %v6250
        %v6256 = vmul.f32 1.0, %v6255
        %v6257 = vrcp.pop %v5247
        %v6258 = vmul.f32 %v5247, %v6257
        %v6259 = vsub.f32 1.0, %v6258
        %v6260 = vmul.f32 %v6257, %v6259
        %v6261 = vadd.f32 %v6257, %v6260
        %vm6262 = vweird.f32 %v5247
        %vm6263 = vweird.f32 %v6257
        %vm6264 = vmor %vm6262, %vm6263
        %v6265 = vsel %vm6264, %v6257, %v6261
        %v6266 = vand.u32 2147483647, %v5247
        %vm6267 = vcmp.eq.f32.partialorder %v6266, 8.507059e+37
        %v6268 = vand.u32 %v5247, 2147483648
        %v6269 = vor.u32 1.1754944e-38, %v6268
        %v6270 = vsel %vm6267, %v6269, %v6265
        %v6271 = vmul.f32 1.0, %v6270
        %v6272 = vrcp.pop %v5248
        %v6273 = vmul.f32 %v5248, %v6272
        %v6274 = vsub.f32 1.0, %v6273
        %v6275 = vmul.f32 %v6272, %v6274
        %v6276 = vadd.f32 %v6272, %v6275
        %vm6277 = vweird.f32 %v5248
        %vm6278 = vweird.f32 %v6272
        %vm6279 = vmor %vm6277, %vm6278
        %v6280 = vsel %vm6279, %v6272, %v6276
        %v6281 = vand.u32 2147483647, %v5248
        %vm6282 = vcmp.eq.f32.partialorder %v6281, 8.507059e+37
        %v6283 = vand.u32 %v5248, 2147483648
        %v6284 = vor.u32 1.1754944e-38, %v6283
        %v6285 = vsel %vm6282, %v6284, %v6280
        %v6286 = vmul.f32 1.0, %v6285
        %v6287 = vrcp.pop %v5249
        %v6288 = vmul.f32 %v5249, %v6287
        %v6289 = vsub.f32 1.0, %v6288
        %v6290 = vmul.f32 %v6287, %v6289
        %v6291 = vadd.f32 %v6287, %v6290
        %vm6292 = vweird.f32 %v5249
        %vm6293 = vweird.f32 %v6287
        %vm6294 = vmor %vm6292, %vm6293
        %v6295 = vsel %vm6294, %v6287, %v6291
        %v6296 = vand.u32 2147483647, %v5249
        %vm6297 = vcmp.eq.f32.partialorder %v6296, 8.507059e+37
        %v6298 = vand.u32 %v5249, 2147483648
        %v6299 = vor.u32 1.1754944e-38, %v6298
        %v6300 = vsel %vm6297, %v6299, %v6295
        %v6301 = vmul.f32 1.0, %v6300
        %v6302 = vrcp.pop %v5250
        %v6303 = vmul.f32 %v5250, %v6302
        %v6304 = vsub.f32 1.0, %v6303
        %v6305 = vmul.f32 %v6302, %v6304
        %v6306 = vadd.f32 %v6302, %v6305
        %vm6307 = vweird.f32 %v5250
        %vm6308 = vweird.f32 %v6302
        %vm6309 = vmor %vm6307, %vm6308
        %v6310 = vsel %vm6309, %v6302, %v6306
        %v6311 = vand.u32 2147483647, %v5250
        %vm6312 = vcmp.eq.f32.partialorder %v6311, 8.507059e+37
        %v6313 = vand.u32 %v5250, 2147483648
        %v6314 = vor.u32 1.1754944e-38, %v6313
        %v6315 = vsel %vm6312, %v6314, %v6310
        %v6316 = vmul.f32 1.0, %v6315
        %v6317 = vrcp.pop %v5251
        %v6318 = vmul.f32 %v5251, %v6317
        %v6319 = vsub.f32 1.0, %v6318
        %v6320 = vmul.f32 %v6317, %v6319
        %v6321 = vadd.f32 %v6317, %v6320
        %vm6322 = vweird.f32 %v5251
        %vm6323 = vweird.f32 %v6317
        %vm6324 = vmor %vm6322, %vm6323
        %v6325 = vsel %vm6324, %v6317, %v6321
        %v6326 = vand.u32 2147483647, %v5251
        %vm6327 = vcmp.eq.f32.partialorder %v6326, 8.507059e+37
        %v6328 = vand.u32 %v5251, 2147483648
        %v6329 = vor.u32 1.1754944e-38, %v6328
        %v6330 = vsel %vm6327, %v6329, %v6325
        %v6331 = vmul.f32 1.0, %v6330
        %v6332 = vrcp.pop %v5252
        %v6333 = vmul.f32 %v5252, %v6332
        %v6334 = vsub.f32 1.0, %v6333
        %v6335 = vmul.f32 %v6332, %v6334
        %v6336 = vadd.f32 %v6332, %v6335
        %vm6337 = vweird.f32 %v5252
        %vm6338 = vweird.f32 %v6332
        %vm6339 = vmor %vm6337, %vm6338
        %v6340 = vsel %vm6339, %v6332, %v6336
        %v6341 = vand.u32 2147483647, %v5252
        %vm6342 = vcmp.eq.f32.partialorder %v6341, 8.507059e+37
        %v6343 = vand.u32 %v5252, 2147483648
        %v6344 = vor.u32 1.1754944e-38, %v6343
        %v6345 = vsel %vm6342, %v6344, %v6340
        %v6346 = vmul.f32 1.0, %v6345
        %v6347 = vrcp.pop %v5253
        %v6348 = vmul.f32 %v5253, %v6347
        %v6349 = vsub.f32 1.0, %v6348
        %v6350 = vmul.f32 %v6347, %v6349
        %v6351 = vadd.f32 %v6347, %v6350
        %vm6352 = vweird.f32 %v5253
        %vm6353 = vweird.f32 %v6347
        %vm6354 = vmor %vm6352, %vm6353
        %v6355 = vsel %vm6354, %v6347, %v6351
        %v6356 = vand.u32 2147483647, %v5253
        %vm6357 = vcmp.eq.f32.partialorder %v6356, 8.507059e+37
        %v6358 = vand.u32 %v5253, 2147483648
        %v6359 = vor.u32 1.1754944e-38, %v6358
        %v6360 = vsel %vm6357, %v6359, %v6355
        %v6361 = vmul.f32 1.0, %v6360
        %v6362 = vrcp.pop %v5254
        %v6363 = vmul.f32 %v5254, %v6362
        %v6364 = vsub.f32 1.0, %v6363
        %v6365 = vmul.f32 %v6362, %v6364
        %v6366 = vadd.f32 %v6362, %v6365
        %vm6367 = vweird.f32 %v5254
        %vm6368 = vweird.f32 %v6362
        %vm6369 = vmor %vm6367, %vm6368
        %v6370 = vsel %vm6369, %v6362, %v6366
        %v6371 = vand.u32 2147483647, %v5254
        %vm6372 = vcmp.eq.f32.partialorder %v6371, 8.507059e+37
        %v6373 = vand.u32 %v5254, 2147483648
        %v6374 = vor.u32 1.1754944e-38, %v6373
        %v6375 = vsel %vm6372, %v6374, %v6370
        %v6376 = vmul.f32 1.0, %v6375
        %v6377 = vrcp.pop %v5255
        %v6378 = vmul.f32 %v5255, %v6377
        %v6379 = vsub.f32 1.0, %v6378
        %v6380 = vmul.f32 %v6377, %v6379
        %v6381 = vadd.f32 %v6377, %v6380
        %vm6382 = vweird.f32 %v5255
        %vm6383 = vweird.f32 %v6377
        %vm6384 = vmor %vm6382, %vm6383
        %v6385 = vsel %vm6384, %v6377, %v6381
        %v6386 = vand.u32 2147483647, %v5255
        %vm6387 = vcmp.eq.f32.partialorder %v6386, 8.507059e+37
        %v6388 = vand.u32 %v5255, 2147483648
        %v6389 = vor.u32 1.1754944e-38, %v6388
        %v6390 = vsel %vm6387, %v6389, %v6385
        %v6391 = vmul.f32 1.0, %v6390
        %v6392 = vrcp.pop %v5256
        %v6393 = vmul.f32 %v5256, %v6392
        %v6394 = vsub.f32 1.0, %v6393
        %v6395 = vmul.f32 %v6392, %v6394
        %v6396 = vadd.f32 %v6392, %v6395
        %vm6397 = vweird.f32 %v5256
        %vm6398 = vweird.f32 %v6392
        %vm6399 = vmor %vm6397, %vm6398
        %v6400 = vsel %vm6399, %v6392, %v6396
        %v6401 = vand.u32 2147483647, %v5256
        %vm6402 = vcmp.eq.f32.partialorder %v6401, 8.507059e+37
        %v6403 = vand.u32 %v5256, 2147483648
        %v6404 = vor.u32 1.1754944e-38, %v6403
        %v6405 = vsel %vm6402, %v6404, %v6400
        %v6406 = vmul.f32 1.0, %v6405
        %v6407 = vrcp.pop %v5257
        %v6408 = vmul.f32 %v5257, %v6407
        %v6409 = vsub.f32 1.0, %v6408
        %v6410 = vmul.f32 %v6407, %v6409
        %v6411 = vadd.f32 %v6407, %v6410
        %vm6412 = vweird.f32 %v5257
        %vm6413 = vweird.f32 %v6407
        %vm6414 = vmor %vm6412, %vm6413
        %v6415 = vsel %vm6414, %v6407, %v6411
        %v6416 = vand.u32 2147483647, %v5257
        %vm6417 = vcmp.eq.f32.partialorder %v6416, 8.507059e+37
        %v6418 = vand.u32 %v5257, 2147483648
        %v6419 = vor.u32 1.1754944e-38, %v6418
        %v6420 = vsel %vm6417, %v6419, %v6415
        %v6421 = vmul.f32 1.0, %v6420
        %v6422 = vrcp.pop %v5258
        %v6423 = vmul.f32 %v5258, %v6422
        %v6424 = vsub.f32 1.0, %v6423
        %v6425 = vmul.f32 %v6422, %v6424
        %v6426 = vadd.f32 %v6422, %v6425
        %vm6427 = vweird.f32 %v5258
        %vm6428 = vweird.f32 %v6422
        %vm6429 = vmor %vm6427, %vm6428
        %v6430 = vsel %vm6429, %v6422, %v6426
        %v6431 = vand.u32 2147483647, %v5258
        %vm6432 = vcmp.eq.f32.partialorder %v6431, 8.507059e+37
        %v6433 = vand.u32 %v5258, 2147483648
        %v6434 = vor.u32 1.1754944e-38, %v6433
        %v6435 = vsel %vm6432, %v6434, %v6430
        %v6436 = vmul.f32 1.0, %v6435
        %v6437 = vrcp.pop %v5259
        %v6438 = vmul.f32 %v5259, %v6437
        %v6439 = vsub.f32 1.0, %v6438
        %v6440 = vmul.f32 %v6437, %v6439
        %v6441 = vadd.f32 %v6437, %v6440
        %vm6442 = vweird.f32 %v5259
        %vm6443 = vweird.f32 %v6437
        %vm6444 = vmor %vm6442, %vm6443
        %v6445 = vsel %vm6444, %v6437, %v6441
        %v6446 = vand.u32 2147483647, %v5259
        %vm6447 = vcmp.eq.f32.partialorder %v6446, 8.507059e+37
        %v6448 = vand.u32 %v5259, 2147483648
        %v6449 = vor.u32 1.1754944e-38, %v6448
        %v6450 = vsel %vm6447, %v6449, %v6445
        %v6451 = vmul.f32 1.0, %v6450
        %v6452 = vrcp.pop %v5260
        %v6453 = vmul.f32 %v5260, %v6452
        %v6454 = vsub.f32 1.0, %v6453
        %v6455 = vmul.f32 %v6452, %v6454
        %v6456 = vadd.f32 %v6452, %v6455
        %vm6457 = vweird.f32 %v5260
        %vm6458 = vweird.f32 %v6452
        %vm6459 = vmor %vm6457, %vm6458
        %v6460 = vsel %vm6459, %v6452, %v6456
        %v6461 = vand.u32 2147483647, %v5260
        %vm6462 = vcmp.eq.f32.partialorder %v6461, 8.507059e+37
        %v6463 = vand.u32 %v5260, 2147483648
        %v6464 = vor.u32 1.1754944e-38, %v6463
        %v6465 = vsel %vm6462, %v6464, %v6460
        %v6466 = vmul.f32 1.0, %v6465
        %v6467 = vrcp.pop %v5261
        %v6468 = vmul.f32 %v5261, %v6467
        %v6469 = vsub.f32 1.0, %v6468
        %v6470 = vmul.f32 %v6467, %v6469
        %v6471 = vadd.f32 %v6467, %v6470
        %vm6472 = vweird.f32 %v5261
        %vm6473 = vweird.f32 %v6467
        %vm6474 = vmor %vm6472, %vm6473
        %v6475 = vsel %vm6474, %v6467, %v6471
        %v6476 = vand.u32 2147483647, %v5261
        %vm6477 = vcmp.eq.f32.partialorder %v6476, 8.507059e+37
        %v6478 = vand.u32 %v5261, 2147483648
        %v6479 = vor.u32 1.1754944e-38, %v6478
        %v6480 = vsel %vm6477, %v6479, %v6475
        %v6481 = vmul.f32 1.0, %v6480
        %v6482 = vrcp.pop %v5262
        %v6483 = vmul.f32 %v5262, %v6482
        %v6484 = vsub.f32 1.0, %v6483
        %v6485 = vmul.f32 %v6482, %v6484
        %v6486 = vadd.f32 %v6482, %v6485
        %vm6487 = vweird.f32 %v5262
        %vm6488 = vweird.f32 %v6482
        %vm6489 = vmor %vm6487, %vm6488
        %v6490 = vsel %vm6489, %v6482, %v6486
        %v6491 = vand.u32 2147483647, %v5262
        %vm6492 = vcmp.eq.f32.partialorder %v6491, 8.507059e+37
        %v6493 = vand.u32 %v5262, 2147483648
        %v6494 = vor.u32 1.1754944e-38, %v6493
        %v6495 = vsel %vm6492, %v6494, %v6490
        %v6496 = vmul.f32 1.0, %v6495
        %v6497 = vrcp.pop %v5263
        %v6498 = vmul.f32 %v5263, %v6497
        %v6499 = vsub.f32 1.0, %v6498
        %v6500 = vmul.f32 %v6497, %v6499
        %v6501 = vadd.f32 %v6497, %v6500
        %vm6502 = vweird.f32 %v5263
        %vm6503 = vweird.f32 %v6497
        %vm6504 = vmor %vm6502, %vm6503
        %v6505 = vsel %vm6504, %v6497, %v6501
        %v6506 = vand.u32 2147483647, %v5263
        %vm6507 = vcmp.eq.f32.partialorder %v6506, 8.507059e+37
        %v6508 = vand.u32 %v5263, 2147483648
        %v6509 = vor.u32 1.1754944e-38, %v6508
        %v6510 = vsel %vm6507, %v6509, %v6505
        %v6511 = vmul.f32 1.0, %v6510
        %v6512 = vrcp.pop %v5264
        %v6513 = vmul.f32 %v5264, %v6512
        %v6514 = vsub.f32 1.0, %v6513
        %v6515 = vmul.f32 %v6512, %v6514
        %v6516 = vadd.f32 %v6512, %v6515
        %vm6517 = vweird.f32 %v5264
        %vm6518 = vweird.f32 %v6512
        %vm6519 = vmor %vm6517, %vm6518
        %v6520 = vsel %vm6519, %v6512, %v6516
        %v6521 = vand.u32 2147483647, %v5264
        %vm6522 = vcmp.eq.f32.partialorder %v6521, 8.507059e+37
        %v6523 = vand.u32 %v5264, 2147483648
        %v6524 = vor.u32 1.1754944e-38, %v6523
        %v6525 = vsel %vm6522, %v6524, %v6520
        %v6526 = vmul.f32 1.0, %v6525
        %v6527 = vrcp.pop %v5265
        %v6528 = vmul.f32 %v5265, %v6527
        %v6529 = vsub.f32 1.0, %v6528
        %v6530 = vmul.f32 %v6527, %v6529
        %v6531 = vadd.f32 %v6527, %v6530
        %vm6532 = vweird.f32 %v5265
        %vm6533 = vweird.f32 %v6527
        %vm6534 = vmor %vm6532, %vm6533
        %v6535 = vsel %vm6534, %v6527, %v6531
        %v6536 = vand.u32 2147483647, %v5265
        %vm6537 = vcmp.eq.f32.partialorder %v6536, 8.507059e+37
        %v6538 = vand.u32 %v5265, 2147483648
        %v6539 = vor.u32 1.1754944e-38, %v6538
        %v6540 = vsel %vm6537, %v6539, %v6535
        %v6541 = vmul.f32 1.0, %v6540
        %v6542 = vrcp.pop %v5266
        %v6543 = vmul.f32 %v5266, %v6542
        %v6544 = vsub.f32 1.0, %v6543
        %v6545 = vmul.f32 %v6542, %v6544
        %v6546 = vadd.f32 %v6542, %v6545
        %vm6547 = vweird.f32 %v5266
        %vm6548 = vweird.f32 %v6542
        %vm6549 = vmor %vm6547, %vm6548
        %v6550 = vsel %vm6549, %v6542, %v6546
        %v6551 = vand.u32 2147483647, %v5266
        %vm6552 = vcmp.eq.f32.partialorder %v6551, 8.507059e+37
        %v6553 = vand.u32 %v5266, 2147483648
        %v6554 = vor.u32 1.1754944e-38, %v6553
        %v6555 = vsel %vm6552, %v6554, %v6550
        %v6556 = vmul.f32 1.0, %v6555
        %v6557 = vrcp.pop %v5267
        %v6558 = vmul.f32 %v5267, %v6557
        %v6559 = vsub.f32 1.0, %v6558
        %v6560 = vmul.f32 %v6557, %v6559
        %v6561 = vadd.f32 %v6557, %v6560
        %vm6562 = vweird.f32 %v5267
        %vm6563 = vweird.f32 %v6557
        %vm6564 = vmor %vm6562, %vm6563
        %v6565 = vsel %vm6564, %v6557, %v6561
        %v6566 = vand.u32 2147483647, %v5267
        %vm6567 = vcmp.eq.f32.partialorder %v6566, 8.507059e+37
        %v6568 = vand.u32 %v5267, 2147483648
        %v6569 = vor.u32 1.1754944e-38, %v6568
        %v6570 = vsel %vm6567, %v6569, %v6565
        %v6571 = vmul.f32 1.0, %v6570
        %v6572 = vrcp.pop %v5268
        %v6573 = vmul.f32 %v5268, %v6572
        %v6574 = vsub.f32 1.0, %v6573
        %v6575 = vmul.f32 %v6572, %v6574
        %v6576 = vadd.f32 %v6572, %v6575
        %vm6577 = vweird.f32 %v5268
        %vm6578 = vweird.f32 %v6572
        %vm6579 = vmor %vm6577, %vm6578
        %v6580 = vsel %vm6579, %v6572, %v6576
        %v6581 = vand.u32 2147483647, %v5268
        %vm6582 = vcmp.eq.f32.partialorder %v6581, 8.507059e+37
        %v6583 = vand.u32 %v5268, 2147483648
        %v6584 = vor.u32 1.1754944e-38, %v6583
        %v6585 = vsel %vm6582, %v6584, %v6580
        %v6586 = vmul.f32 1.0, %v6585
        %v6587 = vrcp.pop %v5269
        %v6588 = vmul.f32 %v5269, %v6587
        %v6589 = vsub.f32 1.0, %v6588
        %v6590 = vmul.f32 %v6587, %v6589
        %v6591 = vadd.f32 %v6587, %v6590
        %vm6592 = vweird.f32 %v5269
        %vm6593 = vweird.f32 %v6587
        %vm6594 = vmor %vm6592, %vm6593
        %v6595 = vsel %vm6594, %v6587, %v6591
        %v6596 = vand.u32 2147483647, %v5269
        %vm6597 = vcmp.eq.f32.partialorder %v6596, 8.507059e+37
        %v6598 = vand.u32 %v5269, 2147483648
        %v6599 = vor.u32 1.1754944e-38, %v6598
        %v6600 = vsel %vm6597, %v6599, %v6595
        %v6601 = vmul.f32 1.0, %v6600
        %v6602 = vrcp.pop %v5270
        %v6603 = vmul.f32 %v5270, %v6602
        %v6604 = vsub.f32 1.0, %v6603
        %v6605 = vmul.f32 %v6602, %v6604
        %v6606 = vadd.f32 %v6602, %v6605
        %vm6607 = vweird.f32 %v5270
        %vm6608 = vweird.f32 %v6602
        %vm6609 = vmor %vm6607, %vm6608
        %v6610 = vsel %vm6609, %v6602, %v6606
        %v6611 = vand.u32 2147483647, %v5270
        %vm6612 = vcmp.eq.f32.partialorder %v6611, 8.507059e+37
        %v6613 = vand.u32 %v5270, 2147483648
        %v6614 = vor.u32 1.1754944e-38, %v6613
        %v6615 = vsel %vm6612, %v6614, %v6610
        %v6616 = vmul.f32 1.0, %v6615
        %v6617 = vrcp.pop %v5271
        %v6618 = vmul.f32 %v5271, %v6617
        %v6619 = vsub.f32 1.0, %v6618
        %v6620 = vmul.f32 %v6617, %v6619
        %v6621 = vadd.f32 %v6617, %v6620
        %vm6622 = vweird.f32 %v5271
        %vm6623 = vweird.f32 %v6617
        %vm6624 = vmor %vm6622, %vm6623
        %v6625 = vsel %vm6624, %v6617, %v6621
        %v6626 = vand.u32 2147483647, %v5271
        %vm6627 = vcmp.eq.f32.partialorder %v6626, 8.507059e+37
        %v6628 = vand.u32 %v5271, 2147483648
        %v6629 = vor.u32 1.1754944e-38, %v6628
        %v6630 = vsel %vm6627, %v6629, %v6625
        %v6631 = vmul.f32 1.0, %v6630
        %v6632 = vrcp.pop %v5272
        %v6633 = vmul.f32 %v5272, %v6632
        %v6634 = vsub.f32 1.0, %v6633
        %v6635 = vmul.f32 %v6632, %v6634
        %v6636 = vadd.f32 %v6632, %v6635
        %vm6637 = vweird.f32 %v5272
        %vm6638 = vweird.f32 %v6632
        %vm6639 = vmor %vm6637, %vm6638
        %v6640 = vsel %vm6639, %v6632, %v6636
        %v6641 = vand.u32 2147483647, %v5272
        %vm6642 = vcmp.eq.f32.partialorder %v6641, 8.507059e+37
        %v6643 = vand.u32 %v5272, 2147483648
        %v6644 = vor.u32 1.1754944e-38, %v6643
        %v6645 = vsel %vm6642, %v6644, %v6640
        %v6646 = vmul.f32 1.0, %v6645
        %v6647 = vrcp.pop %v5273
        %v6648 = vmul.f32 %v5273, %v6647
        %v6649 = vsub.f32 1.0, %v6648
        %v6650 = vmul.f32 %v6647, %v6649
        %v6651 = vadd.f32 %v6647, %v6650
        %vm6652 = vweird.f32 %v5273
        %vm6653 = vweird.f32 %v6647
        %vm6654 = vmor %vm6652, %vm6653
        %v6655 = vsel %vm6654, %v6647, %v6651
        %v6656 = vand.u32 2147483647, %v5273
        %vm6657 = vcmp.eq.f32.partialorder %v6656, 8.507059e+37
        %v6658 = vand.u32 %v5273, 2147483648
        %v6659 = vor.u32 1.1754944e-38, %v6658
        %v6660 = vsel %vm6657, %v6659, %v6655
        %v6661 = vmul.f32 1.0, %v6660
        %v6662 = vrcp.pop %v5274
        %v6663 = vmul.f32 %v5274, %v6662
        %v6664 = vsub.f32 1.0, %v6663
        %v6665 = vmul.f32 %v6662, %v6664
        %v6666 = vadd.f32 %v6662, %v6665
        %vm6667 = vweird.f32 %v5274
        %vm6668 = vweird.f32 %v6662
        %vm6669 = vmor %vm6667, %vm6668
        %v6670 = vsel %vm6669, %v6662, %v6666
        %v6671 = vand.u32 2147483647, %v5274
        %vm6672 = vcmp.eq.f32.partialorder %v6671, 8.507059e+37
        %v6673 = vand.u32 %v5274, 2147483648
        %v6674 = vor.u32 1.1754944e-38, %v6673
        %v6675 = vsel %vm6672, %v6674, %v6670
        %v6676 = vmul.f32 1.0, %v6675
        %v6677 = vrcp.pop %v5275
        %v6678 = vmul.f32 %v5275, %v6677
        %v6679 = vsub.f32 1.0, %v6678
        %v6680 = vmul.f32 %v6677, %v6679
        %v6681 = vadd.f32 %v6677, %v6680
        %vm6682 = vweird.f32 %v5275
        %vm6683 = vweird.f32 %v6677
        %vm6684 = vmor %vm6682, %vm6683
        %v6685 = vsel %vm6684, %v6677, %v6681
        %v6686 = vand.u32 2147483647, %v5275
        %vm6687 = vcmp.eq.f32.partialorder %v6686, 8.507059e+37
        %v6688 = vand.u32 %v5275, 2147483648
        %v6689 = vor.u32 1.1754944e-38, %v6688
        %v6690 = vsel %vm6687, %v6689, %v6685
        %v6691 = vmul.f32 1.0, %v6690
        %v6692 = vrcp.pop %v5276
        %v6693 = vmul.f32 %v5276, %v6692
        %v6694 = vsub.f32 1.0, %v6693
        %v6695 = vmul.f32 %v6692, %v6694
        %v6696 = vadd.f32 %v6692, %v6695
        %vm6697 = vweird.f32 %v5276
        %vm6698 = vweird.f32 %v6692
        %vm6699 = vmor %vm6697, %vm6698
        %v6700 = vsel %vm6699, %v6692, %v6696
        %v6701 = vand.u32 2147483647, %v5276
        %vm6702 = vcmp.eq.f32.partialorder %v6701, 8.507059e+37
        %v6703 = vand.u32 %v5276, 2147483648
        %v6704 = vor.u32 1.1754944e-38, %v6703
        %v6705 = vsel %vm6702, %v6704, %v6700
        %v6706 = vmul.f32 1.0, %v6705
        %v6707 = vrcp.pop %v5277
        %v6708 = vmul.f32 %v5277, %v6707
        %v6709 = vsub.f32 1.0, %v6708
        %v6710 = vmul.f32 %v6707, %v6709
        %v6711 = vadd.f32 %v6707, %v6710
        %vm6712 = vweird.f32 %v5277
        %vm6713 = vweird.f32 %v6707
        %vm6714 = vmor %vm6712, %vm6713
        %v6715 = vsel %vm6714, %v6707, %v6711
        %v6716 = vand.u32 2147483647, %v5277
        %vm6717 = vcmp.eq.f32.partialorder %v6716, 8.507059e+37
        %v6718 = vand.u32 %v5277, 2147483648
        %v6719 = vor.u32 1.1754944e-38, %v6718
        %v6720 = vsel %vm6717, %v6719, %v6715
        %v6721 = vmul.f32 1.0, %v6720
        %v6722 = vrcp.pop %v5278
        %v6723 = vmul.f32 %v5278, %v6722
        %v6724 = vsub.f32 1.0, %v6723
        %v6725 = vmul.f32 %v6722, %v6724
        %v6726 = vadd.f32 %v6722, %v6725
        %vm6727 = vweird.f32 %v5278
        %vm6728 = vweird.f32 %v6722
        %vm6729 = vmor %vm6727, %vm6728
        %v6730 = vsel %vm6729, %v6722, %v6726
        %v6731 = vand.u32 2147483647, %v5278
        %vm6732 = vcmp.eq.f32.partialorder %v6731, 8.507059e+37
        %v6733 = vand.u32 %v5278, 2147483648
        %v6734 = vor.u32 1.1754944e-38, %v6733
        %v6735 = vsel %vm6732, %v6734, %v6730
        %v6736 = vmul.f32 1.0, %v6735
        %v6737 = vrcp.pop %v5279
        %v6738 = vmul.f32 %v5279, %v6737
        %v6739 = vsub.f32 1.0, %v6738
        %v6740 = vmul.f32 %v6737, %v6739
        %v6741 = vadd.f32 %v6737, %v6740
        %vm6742 = vweird.f32 %v5279
        %vm6743 = vweird.f32 %v6737
        %vm6744 = vmor %vm6742, %vm6743
        %v6745 = vsel %vm6744, %v6737, %v6741
        %v6746 = vand.u32 2147483647, %v5279
        %vm6747 = vcmp.eq.f32.partialorder %v6746, 8.507059e+37
        %v6748 = vand.u32 %v5279, 2147483648
        %v6749 = vor.u32 1.1754944e-38, %v6748
        %v6750 = vsel %vm6747, %v6749, %v6745
        %v6751 = vmul.f32 1.0, %v6750
        %v6752 = vrcp.pop %v5280
        %v6753 = vmul.f32 %v5280, %v6752
        %v6754 = vsub.f32 1.0, %v6753
        %v6755 = vmul.f32 %v6752, %v6754
        %v6756 = vadd.f32 %v6752, %v6755
        %vm6757 = vweird.f32 %v5280
        %vm6758 = vweird.f32 %v6752
        %vm6759 = vmor %vm6757, %vm6758
        %v6760 = vsel %vm6759, %v6752, %v6756
        %v6761 = vand.u32 2147483647, %v5280
        %vm6762 = vcmp.eq.f32.partialorder %v6761, 8.507059e+37
        %v6763 = vand.u32 %v5280, 2147483648
        %v6764 = vor.u32 1.1754944e-38, %v6763
        %v6765 = vsel %vm6762, %v6764, %v6760
        %v6766 = vmul.f32 1.0, %v6765
        %v6767 = vrcp.pop %v5281
        %v6768 = vmul.f32 %v5281, %v6767
        %v6769 = vsub.f32 1.0, %v6768
        %v6770 = vmul.f32 %v6767, %v6769
        %v6771 = vadd.f32 %v6767, %v6770
        %vm6772 = vweird.f32 %v5281
        %vm6773 = vweird.f32 %v6767
        %vm6774 = vmor %vm6772, %vm6773
        %v6775 = vsel %vm6774, %v6767, %v6771
        %v6776 = vand.u32 2147483647, %v5281
        %vm6777 = vcmp.eq.f32.partialorder %v6776, 8.507059e+37
        %v6778 = vand.u32 %v5281, 2147483648
        %v6779 = vor.u32 1.1754944e-38, %v6778
        %v6780 = vsel %vm6777, %v6779, %v6775
        %v6781 = vmul.f32 1.0, %v6780
        %v6782 = vrcp.pop %v5282
        %v6783 = vmul.f32 %v5282, %v6782
        %v6784 = vsub.f32 1.0, %v6783
        %v6785 = vmul.f32 %v6782, %v6784
        %v6786 = vadd.f32 %v6782, %v6785
        %vm6787 = vweird.f32 %v5282
        %vm6788 = vweird.f32 %v6782
        %vm6789 = vmor %vm6787, %vm6788
        %v6790 = vsel %vm6789, %v6782, %v6786
        %v6791 = vand.u32 2147483647, %v5282
        %vm6792 = vcmp.eq.f32.partialorder %v6791, 8.507059e+37
        %v6793 = vand.u32 %v5282, 2147483648
        %v6794 = vor.u32 1.1754944e-38, %v6793
        %v6795 = vsel %vm6792, %v6794, %v6790
        %v6796 = vmul.f32 1.0, %v6795
        %v6797 = vrcp.pop %v5283
        %v6798 = vmul.f32 %v5283, %v6797
        %v6799 = vsub.f32 1.0, %v6798
        %v6800 = vmul.f32 %v6797, %v6799
        %v6801 = vadd.f32 %v6797, %v6800
        %vm6802 = vweird.f32 %v5283
        %vm6803 = vweird.f32 %v6797
        %vm6804 = vmor %vm6802, %vm6803
        %v6805 = vsel %vm6804, %v6797, %v6801
        %v6806 = vand.u32 2147483647, %v5283
        %vm6807 = vcmp.eq.f32.partialorder %v6806, 8.507059e+37
        %v6808 = vand.u32 %v5283, 2147483648
        %v6809 = vor.u32 1.1754944e-38, %v6808
        %v6810 = vsel %vm6807, %v6809, %v6805
        %v6811 = vmul.f32 1.0, %v6810
        %v6812 = vrcp.pop %v5284
        %v6813 = vmul.f32 %v5284, %v6812
        %v6814 = vsub.f32 1.0, %v6813
        %v6815 = vmul.f32 %v6812, %v6814
        %v6816 = vadd.f32 %v6812, %v6815
        %vm6817 = vweird.f32 %v5284
        %vm6818 = vweird.f32 %v6812
        %vm6819 = vmor %vm6817, %vm6818
        %v6820 = vsel %vm6819, %v6812, %v6816
        %v6821 = vand.u32 2147483647, %v5284
        %vm6822 = vcmp.eq.f32.partialorder %v6821, 8.507059e+37
        %v6823 = vand.u32 %v5284, 2147483648
        %v6824 = vor.u32 1.1754944e-38, %v6823
        %v6825 = vsel %vm6822, %v6824, %v6820
        %v6826 = vmul.f32 1.0, %v6825
        %v6827 = vrcp.pop %v5285
        %v6828 = vmul.f32 %v5285, %v6827
        %v6829 = vsub.f32 1.0, %v6828
        %v6830 = vmul.f32 %v6827, %v6829
        %v6831 = vadd.f32 %v6827, %v6830
        %vm6832 = vweird.f32 %v5285
        %vm6833 = vweird.f32 %v6827
        %vm6834 = vmor %vm6832, %vm6833
        %v6835 = vsel %vm6834, %v6827, %v6831
        %v6836 = vand.u32 2147483647, %v5285
        %vm6837 = vcmp.eq.f32.partialorder %v6836, 8.507059e+37
        %v6838 = vand.u32 %v5285, 2147483648
        %v6839 = vor.u32 1.1754944e-38, %v6838
        %v6840 = vsel %vm6837, %v6839, %v6835
        %v6841 = vmul.f32 1.0, %v6840
        %v6842 = vrcp.pop %v5286
        %v6843 = vmul.f32 %v5286, %v6842
        %v6844 = vsub.f32 1.0, %v6843
        %v6845 = vmul.f32 %v6842, %v6844
        %v6846 = vadd.f32 %v6842, %v6845
        %vm6847 = vweird.f32 %v5286
        %vm6848 = vweird.f32 %v6842
        %vm6849 = vmor %vm6847, %vm6848
        %v6850 = vsel %vm6849, %v6842, %v6846
        %v6851 = vand.u32 2147483647, %v5286
        %vm6852 = vcmp.eq.f32.partialorder %v6851, 8.507059e+37
        %v6853 = vand.u32 %v5286, 2147483648
        %v6854 = vor.u32 1.1754944e-38, %v6853
        %v6855 = vsel %vm6852, %v6854, %v6850
        %v6856 = vmul.f32 1.0, %v6855
        %v6857 = vrcp.pop %v5287
        %v6858 = vmul.f32 %v5287, %v6857
        %v6859 = vsub.f32 1.0, %v6858
        %v6860 = vmul.f32 %v6857, %v6859
        %v6861 = vadd.f32 %v6857, %v6860
        %vm6862 = vweird.f32 %v5287
        %vm6863 = vweird.f32 %v6857
        %vm6864 = vmor %vm6862, %vm6863
        %v6865 = vsel %vm6864, %v6857, %v6861
        %v6866 = vand.u32 2147483647, %v5287
        %vm6867 = vcmp.eq.f32.partialorder %v6866, 8.507059e+37
        %v6868 = vand.u32 %v5287, 2147483648
        %v6869 = vor.u32 1.1754944e-38, %v6868
        %v6870 = vsel %vm6867, %v6869, %v6865
        %v6871 = vmul.f32 1.0, %v6870
        %v6872 = vrcp.pop %v5288
        %v6873 = vmul.f32 %v5288, %v6872
        %v6874 = vsub.f32 1.0, %v6873
        %v6875 = vmul.f32 %v6872, %v6874
        %v6876 = vadd.f32 %v6872, %v6875
        %vm6877 = vweird.f32 %v5288
        %vm6878 = vweird.f32 %v6872
        %vm6879 = vmor %vm6877, %vm6878
        %v6880 = vsel %vm6879, %v6872, %v6876
        %v6881 = vand.u32 2147483647, %v5288
        %vm6882 = vcmp.eq.f32.partialorder %v6881, 8.507059e+37
        %v6883 = vand.u32 %v5288, 2147483648
        %v6884 = vor.u32 1.1754944e-38, %v6883
        %v6885 = vsel %vm6882, %v6884, %v6880
        %v6886 = vmul.f32 1.0, %v6885
        %v6887 = vrcp.pop %v5289
        %v6888 = vmul.f32 %v5289, %v6887
        %v6889 = vsub.f32 1.0, %v6888
        %v6890 = vmul.f32 %v6887, %v6889
        %v6891 = vadd.f32 %v6887, %v6890
        %vm6892 = vweird.f32 %v5289
        %vm6893 = vweird.f32 %v6887
        %vm6894 = vmor %vm6892, %vm6893
        %v6895 = vsel %vm6894, %v6887, %v6891
        %v6896 = vand.u32 2147483647, %v5289
        %vm6897 = vcmp.eq.f32.partialorder %v6896, 8.507059e+37
        %v6898 = vand.u32 %v5289, 2147483648
        %v6899 = vor.u32 1.1754944e-38, %v6898
        %v6900 = vsel %vm6897, %v6899, %v6895
        %v6901 = vmul.f32 1.0, %v6900
        %v6902 = vrcp.pop %v5290
        %v6903 = vmul.f32 %v5290, %v6902
        %v6904 = vsub.f32 1.0, %v6903
        %v6905 = vmul.f32 %v6902, %v6904
        %v6906 = vadd.f32 %v6902, %v6905
        %vm6907 = vweird.f32 %v5290
        %vm6908 = vweird.f32 %v6902
        %vm6909 = vmor %vm6907, %vm6908
        %v6910 = vsel %vm6909, %v6902, %v6906
        %v6911 = vand.u32 2147483647, %v5290
        %vm6912 = vcmp.eq.f32.partialorder %v6911, 8.507059e+37
        %v6913 = vand.u32 %v5290, 2147483648
        %v6914 = vor.u32 1.1754944e-38, %v6913
        %v6915 = vsel %vm6912, %v6914, %v6910
        %v6916 = vmul.f32 1.0, %v6915
        %v6917 = vrcp.pop %v5291
        %v6918 = vmul.f32 %v5291, %v6917
        %v6919 = vsub.f32 1.0, %v6918
        %v6920 = vmul.f32 %v6917, %v6919
        %v6921 = vadd.f32 %v6917, %v6920
        %vm6922 = vweird.f32 %v5291
        %vm6923 = vweird.f32 %v6917
        %vm6924 = vmor %vm6922, %vm6923
        %v6925 = vsel %vm6924, %v6917, %v6921
        %v6926 = vand.u32 2147483647, %v5291
        %vm6927 = vcmp.eq.f32.partialorder %v6926, 8.507059e+37
        %v6928 = vand.u32 %v5291, 2147483648
        %v6929 = vor.u32 1.1754944e-38, %v6928
        %v6930 = vsel %vm6927, %v6929, %v6925
        %v6931 = vmul.f32 1.0, %v6930
        %v6932 = vrcp.pop %v5292
        %v6933 = vmul.f32 %v5292, %v6932
        %v6934 = vsub.f32 1.0, %v6933
        %v6935 = vmul.f32 %v6932, %v6934
        %v6936 = vadd.f32 %v6932, %v6935
        %vm6937 = vweird.f32 %v5292
        %vm6938 = vweird.f32 %v6932
        %vm6939 = vmor %vm6937, %vm6938
        %v6940 = vsel %vm6939, %v6932, %v6936
        %v6941 = vand.u32 2147483647, %v5292
        %vm6942 = vcmp.eq.f32.partialorder %v6941, 8.507059e+37
        %v6943 = vand.u32 %v5292, 2147483648
        %v6944 = vor.u32 1.1754944e-38, %v6943
        %v6945 = vsel %vm6942, %v6944, %v6940
        %v6946 = vmul.f32 1.0, %v6945
        %v6947 = vrcp.pop %v5293
        %v6948 = vmul.f32 %v5293, %v6947
        %v6949 = vsub.f32 1.0, %v6948
        %v6950 = vmul.f32 %v6947, %v6949
        %v6951 = vadd.f32 %v6947, %v6950
        %vm6952 = vweird.f32 %v5293
        %vm6953 = vweird.f32 %v6947
        %vm6954 = vmor %vm6952, %vm6953
        %v6955 = vsel %vm6954, %v6947, %v6951
        %v6956 = vand.u32 2147483647, %v5293
        %vm6957 = vcmp.eq.f32.partialorder %v6956, 8.507059e+37
        %v6958 = vand.u32 %v5293, 2147483648
        %v6959 = vor.u32 1.1754944e-38, %v6958
        %v6960 = vsel %vm6957, %v6959, %v6955
        %v6961 = vmul.f32 1.0, %v6960
        %v6962 = vrcp.pop %v5294
        %v6963 = vmul.f32 %v5294, %v6962
        %v6964 = vsub.f32 1.0, %v6963
        %v6965 = vmul.f32 %v6962, %v6964
        %v6966 = vadd.f32 %v6962, %v6965
        %vm6967 = vweird.f32 %v5294
        %vm6968 = vweird.f32 %v6962
        %vm6969 = vmor %vm6967, %vm6968
        %v6970 = vsel %vm6969, %v6962, %v6966
        %v6971 = vand.u32 2147483647, %v5294
        %vm6972 = vcmp.eq.f32.partialorder %v6971, 8.507059e+37
        %v6973 = vand.u32 %v5294, 2147483648
        %v6974 = vor.u32 1.1754944e-38, %v6973
        %v6975 = vsel %vm6972, %v6974, %v6970
        %v6976 = vmul.f32 1.0, %v6975
        %v6977 = vrcp.pop %v5295
        %v6978 = vmul.f32 %v5295, %v6977
        %v6979 = vsub.f32 1.0, %v6978
        %v6980 = vmul.f32 %v6977, %v6979
        %v6981 = vadd.f32 %v6977, %v6980
        %vm6982 = vweird.f32 %v5295
        %vm6983 = vweird.f32 %v6977
        %vm6984 = vmor %vm6982, %vm6983
        %v6985 = vsel %vm6984, %v6977, %v6981
        %v6986 = vand.u32 2147483647, %v5295
        %vm6987 = vcmp.eq.f32.partialorder %v6986, 8.507059e+37
        %v6988 = vand.u32 %v5295, 2147483648
        %v6989 = vor.u32 1.1754944e-38, %v6988
        %v6990 = vsel %vm6987, %v6989, %v6985
        %v6991 = vmul.f32 1.0, %v6990
        %v6992 = vrcp.pop %v5296
        %v6993 = vmul.f32 %v5296, %v6992
        %v6994 = vsub.f32 1.0, %v6993
        %v6995 = vmul.f32 %v6992, %v6994
        %v6996 = vadd.f32 %v6992, %v6995
        %vm6997 = vweird.f32 %v5296
        %vm6998 = vweird.f32 %v6992
        %vm6999 = vmor %vm6997, %vm6998
        %v7000 = vsel %vm6999, %v6992, %v6996
        %v7001 = vand.u32 2147483647, %v5296
        %vm7002 = vcmp.eq.f32.partialorder %v7001, 8.507059e+37
        %v7003 = vand.u32 %v5296, 2147483648
        %v7004 = vor.u32 1.1754944e-38, %v7003
        %v7005 = vsel %vm7002, %v7004, %v7000
        %v7006 = vmul.f32 1.0, %v7005
        %v7007 = vrcp.pop %v5297
        %v7008 = vmul.f32 %v5297, %v7007
        %v7009 = vsub.f32 1.0, %v7008
        %v7010 = vmul.f32 %v7007, %v7009
        %v7011 = vadd.f32 %v7007, %v7010
        %vm7012 = vweird.f32 %v5297
        %vm7013 = vweird.f32 %v7007
        %vm7014 = vmor %vm7012, %vm7013
        %v7015 = vsel %vm7014, %v7007, %v7011
        %v7016 = vand.u32 2147483647, %v5297
        %vm7017 = vcmp.eq.f32.partialorder %v7016, 8.507059e+37
        %v7018 = vand.u32 %v5297, 2147483648
        %v7019 = vor.u32 1.1754944e-38, %v7018
        %v7020 = vsel %vm7017, %v7019, %v7015
        %v7021 = vmul.f32 1.0, %v7020
        %v7022 = vrcp.pop %v5298
        %v7023 = vmul.f32 %v5298, %v7022
        %v7024 = vsub.f32 1.0, %v7023
        %v7025 = vmul.f32 %v7022, %v7024
        %v7026 = vadd.f32 %v7022, %v7025
        %vm7027 = vweird.f32 %v5298
        %vm7028 = vweird.f32 %v7022
        %vm7029 = vmor %vm7027, %vm7028
        %v7030 = vsel %vm7029, %v7022, %v7026
        %v7031 = vand.u32 2147483647, %v5298
        %vm7032 = vcmp.eq.f32.partialorder %v7031, 8.507059e+37
        %v7033 = vand.u32 %v5298, 2147483648
        %v7034 = vor.u32 1.1754944e-38, %v7033
        %v7035 = vsel %vm7032, %v7034, %v7030
        %v7036 = vmul.f32 1.0, %v7035
        %v7037 = vrcp.pop %v5299
        %v7038 = vmul.f32 %v5299, %v7037
        %v7039 = vsub.f32 1.0, %v7038
        %v7040 = vmul.f32 %v7037, %v7039
        %v7041 = vadd.f32 %v7037, %v7040
        %vm7042 = vweird.f32 %v5299
        %vm7043 = vweird.f32 %v7037
        %vm7044 = vmor %vm7042, %vm7043
        %v7045 = vsel %vm7044, %v7037, %v7041
        %v7046 = vand.u32 2147483647, %v5299
        %vm7047 = vcmp.eq.f32.partialorder %v7046, 8.507059e+37
        %v7048 = vand.u32 %v5299, 2147483648
        %v7049 = vor.u32 1.1754944e-38, %v7048
        %v7050 = vsel %vm7047, %v7049, %v7045
        %v7051 = vmul.f32 1.0, %v7050
        %v7052 = vrcp.pop %v5300
        %v7053 = vmul.f32 %v5300, %v7052
        %v7054 = vsub.f32 1.0, %v7053
        %v7055 = vmul.f32 %v7052, %v7054
        %v7056 = vadd.f32 %v7052, %v7055
        %vm7057 = vweird.f32 %v5300
        %vm7058 = vweird.f32 %v7052
        %vm7059 = vmor %vm7057, %vm7058
        %v7060 = vsel %vm7059, %v7052, %v7056
        %v7061 = vand.u32 2147483647, %v5300
        %vm7062 = vcmp.eq.f32.partialorder %v7061, 8.507059e+37
        %v7063 = vand.u32 %v5300, 2147483648
        %v7064 = vor.u32 1.1754944e-38, %v7063
        %v7065 = vsel %vm7062, %v7064, %v7060
        %v7066 = vmul.f32 1.0, %v7065
        %v7067 = vrcp.pop %v5301
        %v7068 = vmul.f32 %v5301, %v7067
        %v7069 = vsub.f32 1.0, %v7068
        %v7070 = vmul.f32 %v7067, %v7069
        %v7071 = vadd.f32 %v7067, %v7070
        %vm7072 = vweird.f32 %v5301
        %vm7073 = vweird.f32 %v7067
        %vm7074 = vmor %vm7072, %vm7073
        %v7075 = vsel %vm7074, %v7067, %v7071
        %v7076 = vand.u32 2147483647, %v5301
        %vm7077 = vcmp.eq.f32.partialorder %v7076, 8.507059e+37
        %v7078 = vand.u32 %v5301, 2147483648
        %v7079 = vor.u32 1.1754944e-38, %v7078
        %v7080 = vsel %vm7077, %v7079, %v7075
        %v7081 = vmul.f32 1.0, %v7080
        %v7082 = vrcp.pop %v5302
        %v7083 = vmul.f32 %v5302, %v7082
        %v7084 = vsub.f32 1.0, %v7083
        %v7085 = vmul.f32 %v7082, %v7084
        %v7086 = vadd.f32 %v7082, %v7085
        %vm7087 = vweird.f32 %v5302
        %vm7088 = vweird.f32 %v7082
        %vm7089 = vmor %vm7087, %vm7088
        %v7090 = vsel %vm7089, %v7082, %v7086
        %v7091 = vand.u32 2147483647, %v5302
        %vm7092 = vcmp.eq.f32.partialorder %v7091, 8.507059e+37
        %v7093 = vand.u32 %v5302, 2147483648
        %v7094 = vor.u32 1.1754944e-38, %v7093
        %v7095 = vsel %vm7092, %v7094, %v7090
        %v7096 = vmul.f32 1.0, %v7095
        %v7097 = vrcp.pop %v5303
        %v7098 = vmul.f32 %v5303, %v7097
        %v7099 = vsub.f32 1.0, %v7098
        %v7100 = vmul.f32 %v7097, %v7099
        %v7101 = vadd.f32 %v7097, %v7100
        %vm7102 = vweird.f32 %v5303
        %vm7103 = vweird.f32 %v7097
        %vm7104 = vmor %vm7102, %vm7103
        %v7105 = vsel %vm7104, %v7097, %v7101
        %v7106 = vand.u32 2147483647, %v5303
        %vm7107 = vcmp.eq.f32.partialorder %v7106, 8.507059e+37
        %v7108 = vand.u32 %v5303, 2147483648
        %v7109 = vor.u32 1.1754944e-38, %v7108
        %v7110 = vsel %vm7107, %v7109, %v7105
        %v7111 = vmul.f32 1.0, %v7110
        %v7112 = vrcp.pop %v5304
        %v7113 = vmul.f32 %v5304, %v7112
        %v7114 = vsub.f32 1.0, %v7113
        %v7115 = vmul.f32 %v7112, %v7114
        %v7116 = vadd.f32 %v7112, %v7115
        %vm7117 = vweird.f32 %v5304
        %vm7118 = vweird.f32 %v7112
        %vm7119 = vmor %vm7117, %vm7118
        %v7120 = vsel %vm7119, %v7112, %v7116
        %v7121 = vand.u32 2147483647, %v5304
        %vm7122 = vcmp.eq.f32.partialorder %v7121, 8.507059e+37
        %v7123 = vand.u32 %v5304, 2147483648
        %v7124 = vor.u32 1.1754944e-38, %v7123
        %v7125 = vsel %vm7122, %v7124, %v7120
        %v7126 = vmul.f32 1.0, %v7125
        %v7127 = vrcp.pop %v5305
        %v7128 = vmul.f32 %v5305, %v7127
        %v7129 = vsub.f32 1.0, %v7128
        %v7130 = vmul.f32 %v7127, %v7129
        %v7131 = vadd.f32 %v7127, %v7130
        %vm7132 = vweird.f32 %v5305
        %vm7133 = vweird.f32 %v7127
        %vm7134 = vmor %vm7132, %vm7133
        %v7135 = vsel %vm7134, %v7127, %v7131
        %v7136 = vand.u32 2147483647, %v5305
        %vm7137 = vcmp.eq.f32.partialorder %v7136, 8.507059e+37
        %v7138 = vand.u32 %v5305, 2147483648
        %v7139 = vor.u32 1.1754944e-38, %v7138
        %v7140 = vsel %vm7137, %v7139, %v7135
        %v7141 = vmul.f32 1.0, %v7140
        %v7142 = vrcp.pop %v5306
        %v7143 = vmul.f32 %v5306, %v7142
        %v7144 = vsub.f32 1.0, %v7143
        %v7145 = vmul.f32 %v7142, %v7144
        %v7146 = vadd.f32 %v7142, %v7145
        %vm7147 = vweird.f32 %v5306
        %vm7148 = vweird.f32 %v7142
        %vm7149 = vmor %vm7147, %vm7148
        %v7150 = vsel %vm7149, %v7142, %v7146
        %v7151 = vand.u32 2147483647, %v5306
        %vm7152 = vcmp.eq.f32.partialorder %v7151, 8.507059e+37
        %v7153 = vand.u32 %v5306, 2147483648
        %v7154 = vor.u32 1.1754944e-38, %v7153
        %v7155 = vsel %vm7152, %v7154, %v7150
        %v7156 = vmul.f32 1.0, %v7155
        %v7157 = vrcp.pop %v5307
        %v7158 = vmul.f32 %v5307, %v7157
        %v7159 = vsub.f32 1.0, %v7158
        %v7160 = vmul.f32 %v7157, %v7159
        %v7161 = vadd.f32 %v7157, %v7160
        %vm7162 = vweird.f32 %v5307
        %vm7163 = vweird.f32 %v7157
        %vm7164 = vmor %vm7162, %vm7163
        %v7165 = vsel %vm7164, %v7157, %v7161
        %v7166 = vand.u32 2147483647, %v5307
        %vm7167 = vcmp.eq.f32.partialorder %v7166, 8.507059e+37
        %v7168 = vand.u32 %v5307, 2147483648
        %v7169 = vor.u32 1.1754944e-38, %v7168
        %v7170 = vsel %vm7167, %v7169, %v7165
        %v7171 = vmul.f32 1.0, %v7170
        %v7172 = vrcp.pop %v5308
        %v7173 = vmul.f32 %v5308, %v7172
        %v7174 = vsub.f32 1.0, %v7173
        %v7175 = vmul.f32 %v7172, %v7174
        %v7176 = vadd.f32 %v7172, %v7175
        %vm7177 = vweird.f32 %v5308
        %vm7178 = vweird.f32 %v7172
        %vm7179 = vmor %vm7177, %vm7178
        %v7180 = vsel %vm7179, %v7172, %v7176
        %v7181 = vand.u32 2147483647, %v5308
        %vm7182 = vcmp.eq.f32.partialorder %v7181, 8.507059e+37
        %v7183 = vand.u32 %v5308, 2147483648
        %v7184 = vor.u32 1.1754944e-38, %v7183
        %v7185 = vsel %vm7182, %v7184, %v7180
        %v7186 = vmul.f32 1.0, %v7185
        %v7187 = vrcp.pop %v5309
        %v7188 = vmul.f32 %v5309, %v7187
        %v7189 = vsub.f32 1.0, %v7188
        %v7190 = vmul.f32 %v7187, %v7189
        %v7191 = vadd.f32 %v7187, %v7190
        %vm7192 = vweird.f32 %v5309
        %vm7193 = vweird.f32 %v7187
        %vm7194 = vmor %vm7192, %vm7193
        %v7195 = vsel %vm7194, %v7187, %v7191
        %v7196 = vand.u32 2147483647, %v5309
        %vm7197 = vcmp.eq.f32.partialorder %v7196, 8.507059e+37
        %v7198 = vand.u32 %v5309, 2147483648
        %v7199 = vor.u32 1.1754944e-38, %v7198
        %v7200 = vsel %vm7197, %v7199, %v7195
        %v7201 = vmul.f32 1.0, %v7200
        %v7202 = vrcp.pop %v5310
        %v7203 = vmul.f32 %v5310, %v7202
        %v7204 = vsub.f32 1.0, %v7203
        %v7205 = vmul.f32 %v7202, %v7204
        %v7206 = vadd.f32 %v7202, %v7205
        %vm7207 = vweird.f32 %v5310
        %vm7208 = vweird.f32 %v7202
        %vm7209 = vmor %vm7207, %vm7208
        %v7210 = vsel %vm7209, %v7202, %v7206
        %v7211 = vand.u32 2147483647, %v5310
        %vm7212 = vcmp.eq.f32.partialorder %v7211, 8.507059e+37
        %v7213 = vand.u32 %v5310, 2147483648
        %v7214 = vor.u32 1.1754944e-38, %v7213
        %v7215 = vsel %vm7212, %v7214, %v7210
        %v7216 = vmul.f32 1.0, %v7215
        %v7217 = vrcp.pop %v5311
        %v7218 = vmul.f32 %v5311, %v7217
        %v7219 = vsub.f32 1.0, %v7218
        %v7220 = vmul.f32 %v7217, %v7219
        %v7221 = vadd.f32 %v7217, %v7220
        %vm7222 = vweird.f32 %v5311
        %vm7223 = vweird.f32 %v7217
        %vm7224 = vmor %vm7222, %vm7223
        %v7225 = vsel %vm7224, %v7217, %v7221
        %v7226 = vand.u32 2147483647, %v5311
        %vm7227 = vcmp.eq.f32.partialorder %v7226, 8.507059e+37
        %v7228 = vand.u32 %v5311, 2147483648
        %v7229 = vor.u32 1.1754944e-38, %v7228
        %v7230 = vsel %vm7227, %v7229, %v7225
        %v7231 = vmul.f32 1.0, %v7230
        %v7232 = vmul.f32 %v5326, 1.0614054
        %v7233 = vmul.f32 %v5341, 1.0614054
        %v7234 = vmul.f32 %v5356, 1.0614054
        %v7235 = vmul.f32 %v5371, 1.0614054
        %v7236 = vmul.f32 %v5386, 1.0614054
        %v7237 = vmul.f32 %v5401, 1.0614054
        %v7238 = vmul.f32 %v5416, 1.0614054
        %v7239 = vmul.f32 %v5431, 1.0614054
        %v7240 = vmul.f32 %v5446, 1.0614054
        %v7241 = vmul.f32 %v5461, 1.0614054
        %v7242 = vmul.f32 %v5476, 1.0614054
        %v7243 = vmul.f32 %v5491, 1.0614054
        %v7244 = vmul.f32 %v5506, 1.0614054
        %v7245 = vmul.f32 %v5521, 1.0614054
        %v7246 = vmul.f32 %v5536, 1.0614054
        %v7247 = vmul.f32 %v5551, 1.0614054
        %v7248 = vmul.f32 %v5566, 1.0614054
        %v7249 = vmul.f32 %v5581, 1.0614054
        %v7250 = vmul.f32 %v5596, 1.0614054
        %v7251 = vmul.f32 %v5611, 1.0614054
        %v7252 = vmul.f32 %v5626, 1.0614054
        %v7253 = vmul.f32 %v5641, 1.0614054
        %v7254 = vmul.f32 %v5656, 1.0614054
        %v7255 = vmul.f32 %v5671, 1.0614054
        %v7256 = vmul.f32 %v5686, 1.0614054
        %v7257 = vmul.f32 %v5701, 1.0614054
        %v7258 = vmul.f32 %v5716, 1.0614054
        %v7259 = vmul.f32 %v5731, 1.0614054
        %v7260 = vmul.f32 %v5746, 1.0614054
        %v7261 = vmul.f32 %v5761, 1.0614054
        %v7262 = vmul.f32 %v5776, 1.0614054
        %v7263 = vmul.f32 %v5791, 1.0614054
        %v7264 = vmul.f32 %v5806, 1.0614054
        %v7265 = vmul.f32 %v5821, 1.0614054
        %v7266 = vmul.f32 %v5836, 1.0614054
        %v7267 = vmul.f32 %v5851, 1.0614054
        %v7268 = vmul.f32 %v5866, 1.0614054
        %v7269 = vmul.f32 %v5881, 1.0614054
        %v7270 = vmul.f32 %v5896, 1.0614054
        %v7271 = vmul.f32 %v5911, 1.0614054
        %v7272 = vmul.f32 %v5926, 1.0614054
        %v7273 = vmul.f32 %v5941, 1.0614054
        %v7274 = vmul.f32 %v5956, 1.0614054
        %v7275 = vmul.f32 %v5971, 1.0614054
        %v7276 = vmul.f32 %v5986, 1.0614054
        %v7277 = vmul.f32 %v6001, 1.0614054
        %v7278 = vmul.f32 %v6016, 1.0614054
        %v7279 = vmul.f32 %v6031, 1.0614054
        %v7280 = vmul.f32 %v6046, 1.0614054
        %v7281 = vmul.f32 %v6061, 1.0614054
        %v7282 = vmul.f32 %v6076, 1.0614054
        %v7283 = vmul.f32 %v6091, 1.0614054
        %v7284 = vmul.f32 %v6106, 1.0614054
        %v7285 = vmul.f32 %v6121, 1.0614054
        %v7286 = vmul.f32 %v6136, 1.0614054
        %v7287 = vmul.f32 %v6151, 1.0614054
        %v7288 = vmul.f32 %v6166, 1.0614054
        %v7289 = vmul.f32 %v6181, 1.0614054
        %v7290 = vmul.f32 %v6196, 1.0614054
        %v7291 = vmul.f32 %v6211, 1.0614054
        %v7292 = vmul.f32 %v6226, 1.0614054
        %v7293 = vmul.f32 %v6241, 1.0614054
        %v7294 = vmul.f32 %v6256, 1.0614054
        %v7295 = vmul.f32 %v6271, 1.0614054
        %v7296 = vmul.f32 %v6286, 1.0614054
        %v7297 = vmul.f32 %v6301, 1.0614054
        %v7298 = vmul.f32 %v6316, 1.0614054
        %v7299 = vmul.f32 %v6331, 1.0614054
        %v7300 = vmul.f32 %v6346, 1.0614054
        %v7301 = vmul.f32 %v6361, 1.0614054
        %v7302 = vmul.f32 %v6376, 1.0614054
        %v7303 = vmul.f32 %v6391, 1.0614054
        %v7304 = vmul.f32 %v6406, 1.0614054
        %v7305 = vmul.f32 %v6421, 1.0614054
        %v7306 = vmul.f32 %v6436, 1.0614054
        %v7307 = vmul.f32 %v6451, 1.0614054
        %v7308 = vmul.f32 %v6466, 1.0614054
        %v7309 = vmul.f32 %v6481, 1.0614054
        %v7310 = vmul.f32 %v6496, 1.0614054
        %v7311 = vmul.f32 %v6511, 1.0614054
        %v7312 = vmul.f32 %v6526, 1.0614054
        %v7313 = vmul.f32 %v6541, 1.0614054
        %v7314 = vmul.f32 %v6556, 1.0614054
        %v7315 = vmul.f32 %v6571, 1.0614054
        %v7316 = vmul.f32 %v6586, 1.0614054
        %v7317 = vmul.f32 %v6601, 1.0614054
        %v7318 = vmul.f32 %v6616, 1.0614054
        %v7319 = vmul.f32 %v6631, 1.0614054
        %v7320 = vmul.f32 %v6646, 1.0614054
        %v7321 = vmul.f32 %v6661, 1.0614054
        %v7322 = vmul.f32 %v6676, 1.0614054
        %v7323 = vmul.f32 %v6691, 1.0614054
        %v7324 = vmul.f32 %v6706, 1.0614054
        %v7325 = vmul.f32 %v6721, 1.0614054
        %v7326 = vmul.f32 %v6736, 1.0614054
        %v7327 = vmul.f32 %v6751, 1.0614054
        %v7328 = vmul.f32 %v6766, 1.0614054
        %v7329 = vmul.f32 %v6781, 1.0614054
        %v7330 = vmul.f32 %v6796, 1.0614054
        %v7331 = vmul.f32 %v6811, 1.0614054
        %v7332 = vmul.f32 %v6826, 1.0614054
        %v7333 = vmul.f32 %v6841, 1.0614054
        %v7334 = vmul.f32 %v6856, 1.0614054
        %v7335 = vmul.f32 %v6871, 1.0614054
        %v7336 = vmul.f32 %v6886, 1.0614054
        %v7337 = vmul.f32 %v6901, 1.0614054
        %v7338 = vmul.f32 %v6916, 1.0614054
        %v7339 = vmul.f32 %v6931, 1.0614054
        %v7340 = vmul.f32 %v6946, 1.0614054
        %v7341 = vmul.f32 %v6961, 1.0614054
        %v7342 = vmul.f32 %v6976, 1.0614054
        %v7343 = vmul.f32 %v6991, 1.0614054
        %v7344 = vmul.f32 %v7006, 1.0614054
        %v7345 = vmul.f32 %v7021, 1.0614054
        %v7346 = vmul.f32 %v7036, 1.0614054
        %v7347 = vmul.f32 %v7051, 1.0614054
        %v7348 = vmul.f32 %v7066, 1.0614054
        %v7349 = vmul.f32 %v7081, 1.0614054
        %v7350 = vmul.f32 %v7096, 1.0614054
        %v7351 = vmul.f32 %v7111, 1.0614054
        %v7352 = vmul.f32 %v7126, 1.0614054
        %v7353 = vmul.f32 %v7141, 1.0614054
        %v7354 = vmul.f32 %v7156, 1.0614054
        %v7355 = vmul.f32 %v7171, 1.0614054
        %v7356 = vmul.f32 %v7186, 1.0614054
        %v7357 = vmul.f32 %v7201, 1.0614054
        %v7358 = vmul.f32 %v7216, 1.0614054
        %v7359 = vmul.f32 %v7231, 1.0614054
        %v7360 = vadd.f32 %v7232, -1.4531521
        %v7361 = vadd.f32 %v7233, -1.4531521
        %v7362 = vadd.f32 %v7234, -1.4531521
        %v7363 = vadd.f32 %v7235, -1.4531521
        %v7364 = vadd.f32 %v7236, -1.4531521
        %v7365 = vadd.f32 %v7237, -1.4531521
        %v7366 = vadd.f32 %v7238, -1.4531521
        %v7367 = vadd.f32 %v7239, -1.4531521
        %v7368 = vadd.f32 %v7240, -1.4531521
        %v7369 = vadd.f32 %v7241, -1.4531521
        %v7370 = vadd.f32 %v7242, -1.4531521
        %v7371 = vadd.f32 %v7243, -1.4531521
        %v7372 = vadd.f32 %v7244, -1.4531521
        %v7373 = vadd.f32 %v7245, -1.4531521
        %v7374 = vadd.f32 %v7246, -1.4531521
        %v7375 = vadd.f32 %v7247, -1.4531521
        %v7376 = vadd.f32 %v7248, -1.4531521
        %v7377 = vadd.f32 %v7249, -1.4531521
        %v7378 = vadd.f32 %v7250, -1.4531521
        %v7379 = vadd.f32 %v7251, -1.4531521
        %v7380 = vadd.f32 %v7252, -1.4531521
        %v7381 = vadd.f32 %v7253, -1.4531521
        %v7382 = vadd.f32 %v7254, -1.4531521
        %v7383 = vadd.f32 %v7255, -1.4531521
        %v7384 = vadd.f32 %v7256, -1.4531521
        %v7385 = vadd.f32 %v7257, -1.4531521
        %v7386 = vadd.f32 %v7258, -1.4531521
        %v7387 = vadd.f32 %v7259, -1.4531521
        %v7388 = vadd.f32 %v7260, -1.4531521
        %v7389 = vadd.f32 %v7261, -1.4531521
        %v7390 = vadd.f32 %v7262, -1.4531521
        %v7391 = vadd.f32 %v7263, -1.4531521
        %v7392 = vadd.f32 %v7264, -1.4531521
        %v7393 = vadd.f32 %v7265, -1.4531521
        %v7394 = vadd.f32 %v7266, -1.4531521
        %v7395 = vadd.f32 %v7267, -1.4531521
        %v7396 = vadd.f32 %v7268, -1.4531521
        %v7397 = vadd.f32 %v7269, -1.4531521
        %v7398 = vadd.f32 %v7270, -1.4531521
        %v7399 = vadd.f32 %v7271, -1.4531521
        %v7400 = vadd.f32 %v7272, -1.4531521
        %v7401 = vadd.f32 %v7273, -1.4531521
        %v7402 = vadd.f32 %v7274, -1.4531521
        %v7403 = vadd.f32 %v7275, -1.4531521
        %v7404 = vadd.f32 %v7276, -1.4531521
        %v7405 = vadd.f32 %v7277, -1.4531521
        %v7406 = vadd.f32 %v7278, -1.4531521
        %v7407 = vadd.f32 %v7279, -1.4531521
        %v7408 = vadd.f32 %v7280, -1.4531521
        %v7409 = vadd.f32 %v7281, -1.4531521
        %v7410 = vadd.f32 %v7282, -1.4531521
        %v7411 = vadd.f32 %v7283, -1.4531521
        %v7412 = vadd.f32 %v7284, -1.4531521
        %v7413 = vadd.f32 %v7285, -1.4531521
        %v7414 = vadd.f32 %v7286, -1.4531521
        %v7415 = vadd.f32 %v7287, -1.4531521
        %v7416 = vadd.f32 %v7288, -1.4531521
        %v7417 = vadd.f32 %v7289, -1.4531521
        %v7418 = vadd.f32 %v7290, -1.4531521
        %v7419 = vadd.f32 %v7291, -1.4531521
        %v7420 = vadd.f32 %v7292, -1.4531521
        %v7421 = vadd.f32 %v7293, -1.4531521
        %v7422 = vadd.f32 %v7294, -1.4531521
        %v7423 = vadd.f32 %v7295, -1.4531521
        %v7424 = vadd.f32 %v7296, -1.4531521
        %v7425 = vadd.f32 %v7297, -1.4531521
        %v7426 = vadd.f32 %v7298, -1.4531521
        %v7427 = vadd.f32 %v7299, -1.4531521
        %v7428 = vadd.f32 %v7300, -1.4531521
        %v7429 = vadd.f32 %v7301, -1.4531521
        %v7430 = vadd.f32 %v7302, -1.4531521
        %v7431 = vadd.f32 %v7303, -1.4531521
        %v7432 = vadd.f32 %v7304, -1.4531521
        %v7433 = vadd.f32 %v7305, -1.4531521
        %v7434 = vadd.f32 %v7306, -1.4531521
        %v7435 = vadd.f32 %v7307, -1.4531521
        %v7436 = vadd.f32 %v7308, -1.4531521
        %v7437 = vadd.f32 %v7309, -1.4531521
        %v7438 = vadd.f32 %v7310, -1.4531521
        %v7439 = vadd.f32 %v7311, -1.4531521
        %v7440 = vadd.f32 %v7312, -1.4531521
        %v7441 = vadd.f32 %v7313, -1.4531521
        %v7442 = vadd.f32 %v7314, -1.4531521
        %v7443 = vadd.f32 %v7315, -1.4531521
        %v7444 = vadd.f32 %v7316, -1.4531521
        %v7445 = vadd.f32 %v7317, -1.4531521
        %v7446 = vadd.f32 %v7318, -1.4531521
        %v7447 = vadd.f32 %v7319, -1.4531521
        %v7448 = vadd.f32 %v7320, -1.4531521
        %v7449 = vadd.f32 %v7321, -1.4531521
        %v7450 = vadd.f32 %v7322, -1.4531521
        %v7451 = vadd.f32 %v7323, -1.4531521
        %v7452 = vadd.f32 %v7324, -1.4531521
        %v7453 = vadd.f32 %v7325, -1.4531521
        %v7454 = vadd.f32 %v7326, -1.4531521
        %v7455 = vadd.f32 %v7327, -1.4531521
        %v7456 = vadd.f32 %v7328, -1.4531521
        %v7457 = vadd.f32 %v7329, -1.4531521
        %v7458 = vadd.f32 %v7330, -1.4531521
        %v7459 = vadd.f32 %v7331, -1.4531521
        %v7460 = vadd.f32 %v7332, -1.4531521
        %v7461 = vadd.f32 %v7333, -1.4531521
        %v7462 = vadd.f32 %v7334, -1.4531521
        %v7463 = vadd.f32 %v7335, -1.4531521
        %v7464 = vadd.f32 %v7336, -1.4531521
        %v7465 = vadd.f32 %v7337, -1.4531521
        %v7466 = vadd.f32 %v7338, -1.4531521
        %v7467 = vadd.f32 %v7339, -1.4531521
        %v7468 = vadd.f32 %v7340, -1.4531521
        %v7469 = vadd.f32 %v7341, -1.4531521
        %v7470 = vadd.f32 %v7342, -1.4531521
        %v7471 = vadd.f32 %v7343, -1.4531521
        %v7472 = vadd.f32 %v7344, -1.4531521
        %v7473 = vadd.f32 %v7345, -1.4531521
        %v7474 = vadd.f32 %v7346, -1.4531521
        %v7475 = vadd.f32 %v7347, -1.4531521
        %v7476 = vadd.f32 %v7348, -1.4531521
        %v7477 = vadd.f32 %v7349, -1.4531521
        %v7478 = vadd.f32 %v7350, -1.4531521
        %v7479 = vadd.f32 %v7351, -1.4531521
        %v7480 = vadd.f32 %v7352, -1.4531521
        %v7481 = vadd.f32 %v7353, -1.4531521
        %v7482 = vadd.f32 %v7354, -1.4531521
        %v7483 = vadd.f32 %v7355, -1.4531521
        %v7484 = vadd.f32 %v7356, -1.4531521
        %v7485 = vadd.f32 %v7357, -1.4531521
        %v7486 = vadd.f32 %v7358, -1.4531521
        %v7487 = vadd.f32 %v7359, -1.4531521
        %v7488 = vmul.f32 %v7360, %v5326
        %v7489 = vmul.f32 %v7361, %v5341
        %v7490 = vmul.f32 %v7362, %v5356
        %v7491 = vmul.f32 %v7363, %v5371
        %v7492 = vmul.f32 %v7364, %v5386
        %v7493 = vmul.f32 %v7365, %v5401
        %v7494 = vmul.f32 %v7366, %v5416
        %v7495 = vmul.f32 %v7367, %v5431
        %v7496 = vmul.f32 %v7368, %v5446
        %v7497 = vmul.f32 %v7369, %v5461
        %v7498 = vmul.f32 %v7370, %v5476
        %v7499 = vmul.f32 %v7371, %v5491
        %v7500 = vmul.f32 %v7372, %v5506
        %v7501 = vmul.f32 %v7373, %v5521
        %v7502 = vmul.f32 %v7374, %v5536
        %v7503 = vmul.f32 %v7375, %v5551
        %v7504 = vmul.f32 %v7376, %v5566
        %v7505 = vmul.f32 %v7377, %v5581
        %v7506 = vmul.f32 %v7378, %v5596
        %v7507 = vmul.f32 %v7379, %v5611
        %v7508 = vmul.f32 %v7380, %v5626
        %v7509 = vmul.f32 %v7381, %v5641
        %v7510 = vmul.f32 %v7382, %v5656
        %v7511 = vmul.f32 %v7383, %v5671
        %v7512 = vmul.f32 %v7384, %v5686
        %v7513 = vmul.f32 %v7385, %v5701
        %v7514 = vmul.f32 %v7386, %v5716
        %v7515 = vmul.f32 %v7387, %v5731
        %v7516 = vmul.f32 %v7388, %v5746
        %v7517 = vmul.f32 %v7389, %v5761
        %v7518 = vmul.f32 %v7390, %v5776
        %v7519 = vmul.f32 %v7391, %v5791
        %v7520 = vmul.f32 %v7392, %v5806
        %v7521 = vmul.f32 %v7393, %v5821
        %v7522 = vmul.f32 %v7394, %v5836
        %v7523 = vmul.f32 %v7395, %v5851
        %v7524 = vmul.f32 %v7396, %v5866
        %v7525 = vmul.f32 %v7397, %v5881
        %v7526 = vmul.f32 %v7398, %v5896
        %v7527 = vmul.f32 %v7399, %v5911
        %v7528 = vmul.f32 %v7400, %v5926
        %v7529 = vmul.f32 %v7401, %v5941
        %v7530 = vmul.f32 %v7402, %v5956
        %v7531 = vmul.f32 %v7403, %v5971
        %v7532 = vmul.f32 %v7404, %v5986
        %v7533 = vmul.f32 %v7405, %v6001
        %v7534 = vmul.f32 %v7406, %v6016
        %v7535 = vmul.f32 %v7407, %v6031
        %v7536 = vmul.f32 %v7408, %v6046
        %v7537 = vmul.f32 %v7409, %v6061
        %v7538 = vmul.f32 %v7410, %v6076
        %v7539 = vmul.f32 %v7411, %v6091
        %v7540 = vmul.f32 %v7412, %v6106
        %v7541 = vmul.f32 %v7413, %v6121
        %v7542 = vmul.f32 %v7414, %v6136
        %v7543 = vmul.f32 %v7415, %v6151
        %v7544 = vmul.f32 %v7416, %v6166
        %v7545 = vmul.f32 %v7417, %v6181
        %v7546 = vmul.f32 %v7418, %v6196
        %v7547 = vmul.f32 %v7419, %v6211
        %v7548 = vmul.f32 %v7420, %v6226
        %v7549 = vmul.f32 %v7421, %v6241
        %v7550 = vmul.f32 %v7422, %v6256
        %v7551 = vmul.f32 %v7423, %v6271
        %v7552 = vmul.f32 %v7424, %v6286
        %v7553 = vmul.f32 %v7425, %v6301
        %v7554 = vmul.f32 %v7426, %v6316
        %v7555 = vmul.f32 %v7427, %v6331
        %v7556 = vmul.f32 %v7428, %v6346
        %v7557 = vmul.f32 %v7429, %v6361
        %v7558 = vmul.f32 %v7430, %v6376
        %v7559 = vmul.f32 %v7431, %v6391
        %v7560 = vmul.f32 %v7432, %v6406
        %v7561 = vmul.f32 %v7433, %v6421
        %v7562 = vmul.f32 %v7434, %v6436
        %v7563 = vmul.f32 %v7435, %v6451
        %v7564 = vmul.f32 %v7436, %v6466
        %v7565 = vmul.f32 %v7437, %v6481
        %v7566 = vmul.f32 %v7438, %v6496
        %v7567 = vmul.f32 %v7439, %v6511
        %v7568 = vmul.f32 %v7440, %v6526
        %v7569 = vmul.f32 %v7441, %v6541
        %v7570 = vmul.f32 %v7442, %v6556
        %v7571 = vmul.f32 %v7443, %v6571
        %v7572 = vmul.f32 %v7444, %v6586
        %v7573 = vmul.f32 %v7445, %v6601
        %v7574 = vmul.f32 %v7446, %v6616
        %v7575 = vmul.f32 %v7447, %v6631
        %v7576 = vmul.f32 %v7448, %v6646
        %v7577 = vmul.f32 %v7449, %v6661
        %v7578 = vmul.f32 %v7450, %v6676
        %v7579 = vmul.f32 %v7451, %v6691
        %v7580 = vmul.f32 %v7452, %v6706
        %v7581 = vmul.f32 %v7453, %v6721
        %v7582 = vmul.f32 %v7454, %v6736
        %v7583 = vmul.f32 %v7455, %v6751
        %v7584 = vmul.f32 %v7456, %v6766
        %v7585 = vmul.f32 %v7457, %v6781
        %v7586 = vmul.f32 %v7458, %v6796
        %v7587 = vmul.f32 %v7459, %v6811
        %v7588 = vmul.f32 %v7460, %v6826
        %v7589 = vmul.f32 %v7461, %v6841
        %v7590 = vmul.f32 %v7462, %v6856
        %v7591 = vmul.f32 %v7463, %v6871
        %v7592 = vmul.f32 %v7464, %v6886
        %v7593 = vmul.f32 %v7465, %v6901
        %v7594 = vmul.f32 %v7466, %v6916
        %v7595 = vmul.f32 %v7467, %v6931
        %v7596 = vmul.f32 %v7468, %v6946
        %v7597 = vmul.f32 %v7469, %v6961
        %v7598 = vmul.f32 %v7470, %v6976
        %v7599 = vmul.f32 %v7471, %v6991
        %v7600 = vmul.f32 %v7472, %v7006
        %v7601 = vmul.f32 %v7473, %v7021
        %v7602 = vmul.f32 %v7474, %v7036
        %v7603 = vmul.f32 %v7475, %v7051
        %v7604 = vmul.f32 %v7476, %v7066
        %v7605 = vmul.f32 %v7477, %v7081
        %v7606 = vmul.f32 %v7478, %v7096
        %v7607 = vmul.f32 %v7479, %v7111
        %v7608 = vmul.f32 %v7480, %v7126
        %v7609 = vmul.f32 %v7481, %v7141
        %v7610 = vmul.f32 %v7482, %v7156
        %v7611 = vmul.f32 %v7483, %v7171
        %v7612 = vmul.f32 %v7484, %v7186
        %v7613 = vmul.f32 %v7485, %v7201
        %v7614 = vmul.f32 %v7486, %v7216
        %v7615 = vmul.f32 %v7487, %v7231
        %v7616 = vadd.f32 %v7488, 1.4214138
        %v7617 = vadd.f32 %v7489, 1.4214138
        %v7618 = vadd.f32 %v7490, 1.4214138
        %v7619 = vadd.f32 %v7491, 1.4214138
        %v7620 = vadd.f32 %v7492, 1.4214138
        %v7621 = vadd.f32 %v7493, 1.4214138
        %v7622 = vadd.f32 %v7494, 1.4214138
        %v7623 = vadd.f32 %v7495, 1.4214138
        %v7624 = vadd.f32 %v7496, 1.4214138
        %v7625 = vadd.f32 %v7497, 1.4214138
        %v7626 = vadd.f32 %v7498, 1.4214138
        %v7627 = vadd.f32 %v7499, 1.4214138
        %v7628 = vadd.f32 %v7500, 1.4214138
        %v7629 = vadd.f32 %v7501, 1.4214138
        %v7630 = vadd.f32 %v7502, 1.4214138
        %v7631 = vadd.f32 %v7503, 1.4214138
        %v7632 = vadd.f32 %v7504, 1.4214138
        %v7633 = vadd.f32 %v7505, 1.4214138
        %v7634 = vadd.f32 %v7506, 1.4214138
        %v7635 = vadd.f32 %v7507, 1.4214138
        %v7636 = vadd.f32 %v7508, 1.4214138
        %v7637 = vadd.f32 %v7509, 1.4214138
        %v7638 = vadd.f32 %v7510, 1.4214138
        %v7639 = vadd.f32 %v7511, 1.4214138
        %v7640 = vadd.f32 %v7512, 1.4214138
        %v7641 = vadd.f32 %v7513, 1.4214138
        %v7642 = vadd.f32 %v7514, 1.4214138
        %v7643 = vadd.f32 %v7515, 1.4214138
        %v7644 = vadd.f32 %v7516, 1.4214138
        %v7645 = vadd.f32 %v7517, 1.4214138
        %v7646 = vadd.f32 %v7518, 1.4214138
        %v7647 = vadd.f32 %v7519, 1.4214138
        %v7648 = vadd.f32 %v7520, 1.4214138
        %v7649 = vadd.f32 %v7521, 1.4214138
        %v7650 = vadd.f32 %v7522, 1.4214138
        %v7651 = vadd.f32 %v7523, 1.4214138
        %v7652 = vadd.f32 %v7524, 1.4214138
        %v7653 = vadd.f32 %v7525, 1.4214138
        %v7654 = vadd.f32 %v7526, 1.4214138
        %v7655 = vadd.f32 %v7527, 1.4214138
        %v7656 = vadd.f32 %v7528, 1.4214138
        %v7657 = vadd.f32 %v7529, 1.4214138
        %v7658 = vadd.f32 %v7530, 1.4214138
        %v7659 = vadd.f32 %v7531, 1.4214138
        %v7660 = vadd.f32 %v7532, 1.4214138
        %v7661 = vadd.f32 %v7533, 1.4214138
        %v7662 = vadd.f32 %v7534, 1.4214138
        %v7663 = vadd.f32 %v7535, 1.4214138
        %v7664 = vadd.f32 %v7536, 1.4214138
        %v7665 = vadd.f32 %v7537, 1.4214138
        %v7666 = vadd.f32 %v7538, 1.4214138
        %v7667 = vadd.f32 %v7539, 1.4214138
        %v7668 = vadd.f32 %v7540, 1.4214138
        %v7669 = vadd.f32 %v7541, 1.4214138
        %v7670 = vadd.f32 %v7542, 1.4214138
        %v7671 = vadd.f32 %v7543, 1.4214138
        %v7672 = vadd.f32 %v7544, 1.4214138
        %v7673 = vadd.f32 %v7545, 1.4214138
        %v7674 = vadd.f32 %v7546, 1.4214138
        %v7675 = vadd.f32 %v7547, 1.4214138
        %v7676 = vadd.f32 %v7548, 1.4214138
        %v7677 = vadd.f32 %v7549, 1.4214138
        %v7678 = vadd.f32 %v7550, 1.4214138
        %v7679 = vadd.f32 %v7551, 1.4214138
        %v7680 = vadd.f32 %v7552, 1.4214138
        %v7681 = vadd.f32 %v7553, 1.4214138
        %v7682 = vadd.f32 %v7554, 1.4214138
        %v7683 = vadd.f32 %v7555, 1.4214138
        %v7684 = vadd.f32 %v7556, 1.4214138
        %v7685 = vadd.f32 %v7557, 1.4214138
        %v7686 = vadd.f32 %v7558, 1.4214138
        %v7687 = vadd.f32 %v7559, 1.4214138
        %v7688 = vadd.f32 %v7560, 1.4214138
        %v7689 = vadd.f32 %v7561, 1.4214138
        %v7690 = vadd.f32 %v7562, 1.4214138
        %v7691 = vadd.f32 %v7563, 1.4214138
        %v7692 = vadd.f32 %v7564, 1.4214138
        %v7693 = vadd.f32 %v7565, 1.4214138
        %v7694 = vadd.f32 %v7566, 1.4214138
        %v7695 = vadd.f32 %v7567, 1.4214138
        %v7696 = vadd.f32 %v7568, 1.4214138
        %v7697 = vadd.f32 %v7569, 1.4214138
        %v7698 = vadd.f32 %v7570, 1.4214138
        %v7699 = vadd.f32 %v7571, 1.4214138
        %v7700 = vadd.f32 %v7572, 1.4214138
        %v7701 = vadd.f32 %v7573, 1.4214138
        %v7702 = vadd.f32 %v7574, 1.4214138
        %v7703 = vadd.f32 %v7575, 1.4214138
        %v7704 = vadd.f32 %v7576, 1.4214138
        %v7705 = vadd.f32 %v7577, 1.4214138
        %v7706 = vadd.f32 %v7578, 1.4214138
        %v7707 = vadd.f32 %v7579, 1.4214138
        %v7708 = vadd.f32 %v7580, 1.4214138
        %v7709 = vadd.f32 %v7581, 1.4214138
        %v7710 = vadd.f32 %v7582, 1.4214138
        %v7711 = vadd.f32 %v7583, 1.4214138
        %v7712 = vadd.f32 %v7584, 1.4214138
        %v7713 = vadd.f32 %v7585, 1.4214138
        %v7714 = vadd.f32 %v7586, 1.4214138
        %v7715 = vadd.f32 %v7587, 1.4214138
        %v7716 = vadd.f32 %v7588, 1.4214138
        %v7717 = vadd.f32 %v7589, 1.4214138
        %v7718 = vadd.f32 %v7590, 1.4214138
        %v7719 = vadd.f32 %v7591, 1.4214138
        %v7720 = vadd.f32 %v7592, 1.4214138
        %v7721 = vadd.f32 %v7593, 1.4214138
        %v7722 = vadd.f32 %v7594, 1.4214138
        %v7723 = vadd.f32 %v7595, 1.4214138
        %v7724 = vadd.f32 %v7596, 1.4214138
        %v7725 = vadd.f32 %v7597, 1.4214138
        %v7726 = vadd.f32 %v7598, 1.4214138
        %v7727 = vadd.f32 %v7599, 1.4214138
        %v7728 = vadd.f32 %v7600, 1.4214138
        %v7729 = vadd.f32 %v7601, 1.4214138
        %v7730 = vadd.f32 %v7602, 1.4214138
        %v7731 = vadd.f32 %v7603, 1.4214138
        %v7732 = vadd.f32 %v7604, 1.4214138
        %v7733 = vadd.f32 %v7605, 1.4214138
        %v7734 = vadd.f32 %v7606, 1.4214138
        %v7735 = vadd.f32 %v7607, 1.4214138
        %v7736 = vadd.f32 %v7608, 1.4214138
        %v7737 = vadd.f32 %v7609, 1.4214138
        %v7738 = vadd.f32 %v7610, 1.4214138
        %v7739 = vadd.f32 %v7611, 1.4214138
        %v7740 = vadd.f32 %v7612, 1.4214138
        %v7741 = vadd.f32 %v7613, 1.4214138
        %v7742 = vadd.f32 %v7614, 1.4214138
        %v7743 = vadd.f32 %v7615, 1.4214138
        %v7744 = vmul.f32 %v7616, %v5326
        %v7745 = vmul.f32 %v7617, %v5341
        %v7746 = vmul.f32 %v7618, %v5356
        %v7747 = vmul.f32 %v7619, %v5371
        %v7748 = vmul.f32 %v7620, %v5386
        %v7749 = vmul.f32 %v7621, %v5401
        %v7750 = vmul.f32 %v7622, %v5416
        %v7751 = vmul.f32 %v7623, %v5431
        %v7752 = vmul.f32 %v7624, %v5446
        %v7753 = vmul.f32 %v7625, %v5461
        %v7754 = vmul.f32 %v7626, %v5476
        %v7755 = vmul.f32 %v7627, %v5491
        %v7756 = vmul.f32 %v7628, %v5506
        %v7757 = vmul.f32 %v7629, %v5521
        %v7758 = vmul.f32 %v7630, %v5536
        %v7759 = vmul.f32 %v7631, %v5551
        %v7760 = vmul.f32 %v7632, %v5566
        %v7761 = vmul.f32 %v7633, %v5581
        %v7762 = vmul.f32 %v7634, %v5596
        %v7763 = vmul.f32 %v7635, %v5611
        %v7764 = vmul.f32 %v7636, %v5626
        %v7765 = vmul.f32 %v7637, %v5641
        %v7766 = vmul.f32 %v7638, %v5656
        %v7767 = vmul.f32 %v7639, %v5671
        %v7768 = vmul.f32 %v7640, %v5686
        %v7769 = vmul.f32 %v7641, %v5701
        %v7770 = vmul.f32 %v7642, %v5716
        %v7771 = vmul.f32 %v7643, %v5731
        %v7772 = vmul.f32 %v7644, %v5746
        %v7773 = vmul.f32 %v7645, %v5761
        %v7774 = vmul.f32 %v7646, %v5776
        %v7775 = vmul.f32 %v7647, %v5791
        %v7776 = vmul.f32 %v7648, %v5806
        %v7777 = vmul.f32 %v7649, %v5821
        %v7778 = vmul.f32 %v7650, %v5836
        %v7779 = vmul.f32 %v7651, %v5851
        %v7780 = vmul.f32 %v7652, %v5866
        %v7781 = vmul.f32 %v7653, %v5881
        %v7782 = vmul.f32 %v7654, %v5896
        %v7783 = vmul.f32 %v7655, %v5911
        %v7784 = vmul.f32 %v7656, %v5926
        %v7785 = vmul.f32 %v7657, %v5941
        %v7786 = vmul.f32 %v7658, %v5956
        %v7787 = vmul.f32 %v7659, %v5971
        %v7788 = vmul.f32 %v7660, %v5986
        %v7789 = vmul.f32 %v7661, %v6001
        %v7790 = vmul.f32 %v7662, %v6016
        %v7791 = vmul.f32 %v7663, %v6031
        %v7792 = vmul.f32 %v7664, %v6046
        %v7793 = vmul.f32 %v7665, %v6061
        %v7794 = vmul.f32 %v7666, %v6076
        %v7795 = vmul.f32 %v7667, %v6091
        %v7796 = vmul.f32 %v7668, %v6106
        %v7797 = vmul.f32 %v7669, %v6121
        %v7798 = vmul.f32 %v7670, %v6136
        %v7799 = vmul.f32 %v7671, %v6151
        %v7800 = vmul.f32 %v7672, %v6166
        %v7801 = vmul.f32 %v7673, %v6181
        %v7802 = vmul.f32 %v7674, %v6196
        %v7803 = vmul.f32 %v7675, %v6211
        %v7804 = vmul.f32 %v7676, %v6226
        %v7805 = vmul.f32 %v7677, %v6241
        %v7806 = vmul.f32 %v7678, %v6256
        %v7807 = vmul.f32 %v7679, %v6271
        %v7808 = vmul.f32 %v7680, %v6286
        %v7809 = vmul.f32 %v7681, %v6301
        %v7810 = vmul.f32 %v7682, %v6316
        %v7811 = vmul.f32 %v7683, %v6331
        %v7812 = vmul.f32 %v7684, %v6346
        %v7813 = vmul.f32 %v7685, %v6361
        %v7814 = vmul.f32 %v7686, %v6376
        %v7815 = vmul.f32 %v7687, %v6391
        %v7816 = vmul.f32 %v7688, %v6406
        %v7817 = vmul.f32 %v7689, %v6421
        %v7818 = vmul.f32 %v7690, %v6436
        %v7819 = vmul.f32 %v7691, %v6451
        %v7820 = vmul.f32 %v7692, %v6466
        %v7821 = vmul.f32 %v7693, %v6481
        %v7822 = vmul.f32 %v7694, %v6496
        %v7823 = vmul.f32 %v7695, %v6511
        %v7824 = vmul.f32 %v7696, %v6526
        %v7825 = vmul.f32 %v7697, %v6541
        %v7826 = vmul.f32 %v7698, %v6556
        %v7827 = vmul.f32 %v7699, %v6571
        %v7828 = vmul.f32 %v7700, %v6586
        %v7829 = vmul.f32 %v7701, %v6601
        %v7830 = vmul.f32 %v7702, %v6616
        %v7831 = vmul.f32 %v7703, %v6631
        %v7832 = vmul.f32 %v7704, %v6646
        %v7833 = vmul.f32 %v7705, %v6661
        %v7834 = vmul.f32 %v7706, %v6676
        %v7835 = vmul.f32 %v7707, %v6691
        %v7836 = vmul.f32 %v7708, %v6706
        %v7837 = vmul.f32 %v7709, %v6721
        %v7838 = vmul.f32 %v7710, %v6736
        %v7839 = vmul.f32 %v7711, %v6751
        %v7840 = vmul.f32 %v7712, %v6766
        %v7841 = vmul.f32 %v7713, %v6781
        %v7842 = vmul.f32 %v7714, %v6796
        %v7843 = vmul.f32 %v7715, %v6811
        %v7844 = vmul.f32 %v7716, %v6826
        %v7845 = vmul.f32 %v7717, %v6841
        %v7846 = vmul.f32 %v7718, %v6856
        %v7847 = vmul.f32 %v7719, %v6871
        %v7848 = vmul.f32 %v7720, %v6886
        %v7849 = vmul.f32 %v7721, %v6901
        %v7850 = vmul.f32 %v7722, %v6916
        %v7851 = vmul.f32 %v7723, %v6931
        %v7852 = vmul.f32 %v7724, %v6946
        %v7853 = vmul.f32 %v7725, %v6961
        %v7854 = vmul.f32 %v7726, %v6976
        %v7855 = vmul.f32 %v7727, %v6991
        %v7856 = vmul.f32 %v7728, %v7006
        %v7857 = vmul.f32 %v7729, %v7021
        %v7858 = vmul.f32 %v7730, %v7036
        %v7859 = vmul.f32 %v7731, %v7051
        %v7860 = vmul.f32 %v7732, %v7066
        %v7861 = vmul.f32 %v7733, %v7081
        %v7862 = vmul.f32 %v7734, %v7096
        %v7863 = vmul.f32 %v7735, %v7111
        %v7864 = vmul.f32 %v7736, %v7126
        %v7865 = vmul.f32 %v7737, %v7141
        %v7866 = vmul.f32 %v7738, %v7156
        %v7867 = vmul.f32 %v7739, %v7171
        %v7868 = vmul.f32 %v7740, %v7186
        %v7869 = vmul.f32 %v7741, %v7201
        %v7870 = vmul.f32 %v7742, %v7216
        %v7871 = vmul.f32 %v7743, %v7231
        %v7872 = vadd.f32 %v7744, -0.28449672
        %v7873 = vadd.f32 %v7745, -0.28449672
        %v7874 = vadd.f32 %v7746, -0.28449672
        %v7875 = vadd.f32 %v7747, -0.28449672
        %v7876 = vadd.f32 %v7748, -0.28449672
        %v7877 = vadd.f32 %v7749, -0.28449672
        %v7878 = vadd.f32 %v7750, -0.28449672
        %v7879 = vadd.f32 %v7751, -0.28449672
        %v7880 = vadd.f32 %v7752, -0.28449672
        %v7881 = vadd.f32 %v7753, -0.28449672
        %v7882 = vadd.f32 %v7754, -0.28449672
        %v7883 = vadd.f32 %v7755, -0.28449672
        %v7884 = vadd.f32 %v7756, -0.28449672
        %v7885 = vadd.f32 %v7757, -0.28449672
        %v7886 = vadd.f32 %v7758, -0.28449672
        %v7887 = vadd.f32 %v7759, -0.28449672
        %v7888 = vadd.f32 %v7760, -0.28449672
        %v7889 = vadd.f32 %v7761, -0.28449672
        %v7890 = vadd.f32 %v7762, -0.28449672
        %v7891 = vadd.f32 %v7763, -0.28449672
        %v7892 = vadd.f32 %v7764, -0.28449672
        %v7893 = vadd.f32 %v7765, -0.28449672
        %v7894 = vadd.f32 %v7766, -0.28449672
        %v7895 = vadd.f32 %v7767, -0.28449672
        %v7896 = vadd.f32 %v7768, -0.28449672
        %v7897 = vadd.f32 %v7769, -0.28449672
        %v7898 = vadd.f32 %v7770, -0.28449672
        %v7899 = vadd.f32 %v7771, -0.28449672
        %v7900 = vadd.f32 %v7772, -0.28449672
        %v7901 = vadd.f32 %v7773, -0.28449672
        %v7902 = vadd.f32 %v7774, -0.28449672
        %v7903 = vadd.f32 %v7775, -0.28449672
        %v7904 = vadd.f32 %v7776, -0.28449672
        %v7905 = vadd.f32 %v7777, -0.28449672
        %v7906 = vadd.f32 %v7778, -0.28449672
        %v7907 = vadd.f32 %v7779, -0.28449672
        %v7908 = vadd.f32 %v7780, -0.28449672
        %v7909 = vadd.f32 %v7781, -0.28449672
        %v7910 = vadd.f32 %v7782, -0.28449672
        %v7911 = vadd.f32 %v7783, -0.28449672
        %v7912 = vadd.f32 %v7784, -0.28449672
        %v7913 = vadd.f32 %v7785, -0.28449672
        %v7914 = vadd.f32 %v7786, -0.28449672
        %v7915 = vadd.f32 %v7787, -0.28449672
        %v7916 = vadd.f32 %v7788, -0.28449672
        %v7917 = vadd.f32 %v7789, -0.28449672
        %v7918 = vadd.f32 %v7790, -0.28449672
        %v7919 = vadd.f32 %v7791, -0.28449672
        %v7920 = vadd.f32 %v7792, -0.28449672
        %v7921 = vadd.f32 %v7793, -0.28449672
        %v7922 = vadd.f32 %v7794, -0.28449672
        %v7923 = vadd.f32 %v7795, -0.28449672
        %v7924 = vadd.f32 %v7796, -0.28449672
        %v7925 = vadd.f32 %v7797, -0.28449672
        %v7926 = vadd.f32 %v7798, -0.28449672
        %v7927 = vadd.f32 %v7799, -0.28449672
        %v7928 = vadd.f32 %v7800, -0.28449672
        %v7929 = vadd.f32 %v7801, -0.28449672
        %v7930 = vadd.f32 %v7802, -0.28449672
        %v7931 = vadd.f32 %v7803, -0.28449672
        %v7932 = vadd.f32 %v7804, -0.28449672
        %v7933 = vadd.f32 %v7805, -0.28449672
        %v7934 = vadd.f32 %v7806, -0.28449672
        %v7935 = vadd.f32 %v7807, -0.28449672
        %v7936 = vadd.f32 %v7808, -0.28449672
        %v7937 = vadd.f32 %v7809, -0.28449672
        %v7938 = vadd.f32 %v7810, -0.28449672
        %v7939 = vadd.f32 %v7811, -0.28449672
        %v7940 = vadd.f32 %v7812, -0.28449672
        %v7941 = vadd.f32 %v7813, -0.28449672
        %v7942 = vadd.f32 %v7814, -0.28449672
        %v7943 = vadd.f32 %v7815, -0.28449672
        %v7944 = vadd.f32 %v7816, -0.28449672
        %v7945 = vadd.f32 %v7817, -0.28449672
        %v7946 = vadd.f32 %v7818, -0.28449672
        %v7947 = vadd.f32 %v7819, -0.28449672
        %v7948 = vadd.f32 %v7820, -0.28449672
        %v7949 = vadd.f32 %v7821, -0.28449672
        %v7950 = vadd.f32 %v7822, -0.28449672
        %v7951 = vadd.f32 %v7823, -0.28449672
        %v7952 = vadd.f32 %v7824, -0.28449672
        %v7953 = vadd.f32 %v7825, -0.28449672
        %v7954 = vadd.f32 %v7826, -0.28449672
        %v7955 = vadd.f32 %v7827, -0.28449672
        %v7956 = vadd.f32 %v7828, -0.28449672
        %v7957 = vadd.f32 %v7829, -0.28449672
        %v7958 = vadd.f32 %v7830, -0.28449672
        %v7959 = vadd.f32 %v7831, -0.28449672
        %v7960 = vadd.f32 %v7832, -0.28449672
        %v7961 = vadd.f32 %v7833, -0.28449672
        %v7962 = vadd.f32 %v7834, -0.28449672
        %v7963 = vadd.f32 %v7835, -0.28449672
        %v7964 = vadd.f32 %v7836, -0.28449672
        %v7965 = vadd.f32 %v7837, -0.28449672
        %v7966 = vadd.f32 %v7838, -0.28449672
        %v7967 = vadd.f32 %v7839, -0.28449672
        %v7968 = vadd.f32 %v7840, -0.28449672
        %v7969 = vadd.f32 %v7841, -0.28449672
        %v7970 = vadd.f32 %v7842, -0.28449672
        %v7971 = vadd.f32 %v7843, -0.28449672
        %v7972 = vadd.f32 %v7844, -0.28449672
        %v7973 = vadd.f32 %v7845, -0.28449672
        %v7974 = vadd.f32 %v7846, -0.28449672
        %v7975 = vadd.f32 %v7847, -0.28449672
        %v7976 = vadd.f32 %v7848, -0.28449672
        %v7977 = vadd.f32 %v7849, -0.28449672
        %v7978 = vadd.f32 %v7850, -0.28449672
        %v7979 = vadd.f32 %v7851, -0.28449672
        %v7980 = vadd.f32 %v7852, -0.28449672
        %v7981 = vadd.f32 %v7853, -0.28449672
        %v7982 = vadd.f32 %v7854, -0.28449672
        %v7983 = vadd.f32 %v7855, -0.28449672
        %v7984 = vadd.f32 %v7856, -0.28449672
        %v7985 = vadd.f32 %v7857, -0.28449672
        %v7986 = vadd.f32 %v7858, -0.28449672
        %v7987 = vadd.f32 %v7859, -0.28449672
        %v7988 = vadd.f32 %v7860, -0.28449672
        %v7989 = vadd.f32 %v7861, -0.28449672
        %v7990 = vadd.f32 %v7862, -0.28449672
        %v7991 = vadd.f32 %v7863, -0.28449672
        %v7992 = vadd.f32 %v7864, -0.28449672
        %v7993 = vadd.f32 %v7865, -0.28449672
        %v7994 = vadd.f32 %v7866, -0.28449672
        %v7995 = vadd.f32 %v7867, -0.28449672
        %v7996 = vadd.f32 %v7868, -0.28449672
        %v7997 = vadd.f32 %v7869, -0.28449672
        %v7998 = vadd.f32 %v7870, -0.28449672
        %v7999 = vadd.f32 %v7871, -0.28449672
        %v8000 = vmul.f32 %v7872, %v5326
        %v8001 = vmul.f32 %v7873, %v5341
        %v8002 = vmul.f32 %v7874, %v5356
        %v8003 = vmul.f32 %v7875, %v5371
        %v8004 = vmul.f32 %v7876, %v5386
        %v8005 = vmul.f32 %v7877, %v5401
        %v8006 = vmul.f32 %v7878, %v5416
        %v8007 = vmul.f32 %v7879, %v5431
        %v8008 = vmul.f32 %v7880, %v5446
        %v8009 = vmul.f32 %v7881, %v5461
        %v8010 = vmul.f32 %v7882, %v5476
        %v8011 = vmul.f32 %v7883, %v5491
        %v8012 = vmul.f32 %v7884, %v5506
        %v8013 = vmul.f32 %v7885, %v5521
        %v8014 = vmul.f32 %v7886, %v5536
        %v8015 = vmul.f32 %v7887, %v5551
        %v8016 = vmul.f32 %v7888, %v5566
        %v8017 = vmul.f32 %v7889, %v5581
        %v8018 = vmul.f32 %v7890, %v5596
        %v8019 = vmul.f32 %v7891, %v5611
        %v8020 = vmul.f32 %v7892, %v5626
        %v8021 = vmul.f32 %v7893, %v5641
        %v8022 = vmul.f32 %v7894, %v5656
        %v8023 = vmul.f32 %v7895, %v5671
        %v8024 = vmul.f32 %v7896, %v5686
        %v8025 = vmul.f32 %v7897, %v5701
        %v8026 = vmul.f32 %v7898, %v5716
        %v8027 = vmul.f32 %v7899, %v5731
        %v8028 = vmul.f32 %v7900, %v5746
        %v8029 = vmul.f32 %v7901, %v5761
        %v8030 = vmul.f32 %v7902, %v5776
        %v8031 = vmul.f32 %v7903, %v5791
        %v8032 = vmul.f32 %v7904, %v5806
        %v8033 = vmul.f32 %v7905, %v5821
        %v8034 = vmul.f32 %v7906, %v5836
        %v8035 = vmul.f32 %v7907, %v5851
        %v8036 = vmul.f32 %v7908, %v5866
        %v8037 = vmul.f32 %v7909, %v5881
        %v8038 = vmul.f32 %v7910, %v5896
        %v8039 = vmul.f32 %v7911, %v5911
        %v8040 = vmul.f32 %v7912, %v5926
        %v8041 = vmul.f32 %v7913, %v5941
        %v8042 = vmul.f32 %v7914, %v5956
        %v8043 = vmul.f32 %v7915, %v5971
        %v8044 = vmul.f32 %v7916, %v5986
        %v8045 = vmul.f32 %v7917, %v6001
        %v8046 = vmul.f32 %v7918, %v6016
        %v8047 = vmul.f32 %v7919, %v6031
        %v8048 = vmul.f32 %v7920, %v6046
        %v8049 = vmul.f32 %v7921, %v6061
        %v8050 = vmul.f32 %v7922, %v6076
        %v8051 = vmul.f32 %v7923, %v6091
        %v8052 = vmul.f32 %v7924, %v6106
        %v8053 = vmul.f32 %v7925, %v6121
        %v8054 = vmul.f32 %v7926, %v6136
        %v8055 = vmul.f32 %v7927, %v6151
        %v8056 = vmul.f32 %v7928, %v6166
        %v8057 = vmul.f32 %v7929, %v6181
        %v8058 = vmul.f32 %v7930, %v6196
        %v8059 = vmul.f32 %v7931, %v6211
        %v8060 = vmul.f32 %v7932, %v6226
        %v8061 = vmul.f32 %v7933, %v6241
        %v8062 = vmul.f32 %v7934, %v6256
        %v8063 = vmul.f32 %v7935, %v6271
        %v8064 = vmul.f32 %v7936, %v6286
        %v8065 = vmul.f32 %v7937, %v6301
        %v8066 = vmul.f32 %v7938, %v6316
        %v8067 = vmul.f32 %v7939, %v6331
        %v8068 = vmul.f32 %v7940, %v6346
        %v8069 = vmul.f32 %v7941, %v6361
        %v8070 = vmul.f32 %v7942, %v6376
        %v8071 = vmul.f32 %v7943, %v6391
        %v8072 = vmul.f32 %v7944, %v6406
        %v8073 = vmul.f32 %v7945, %v6421
        %v8074 = vmul.f32 %v7946, %v6436
        %v8075 = vmul.f32 %v7947, %v6451
        %v8076 = vmul.f32 %v7948, %v6466
        %v8077 = vmul.f32 %v7949, %v6481
        %v8078 = vmul.f32 %v7950, %v6496
        %v8079 = vmul.f32 %v7951, %v6511
        %v8080 = vmul.f32 %v7952, %v6526
        %v8081 = vmul.f32 %v7953, %v6541
        %v8082 = vmul.f32 %v7954, %v6556
        %v8083 = vmul.f32 %v7955, %v6571
        %v8084 = vmul.f32 %v7956, %v6586
        %v8085 = vmul.f32 %v7957, %v6601
        %v8086 = vmul.f32 %v7958, %v6616
        %v8087 = vmul.f32 %v7959, %v6631
        %v8088 = vmul.f32 %v7960, %v6646
        %v8089 = vmul.f32 %v7961, %v6661
        %v8090 = vmul.f32 %v7962, %v6676
        %v8091 = vmul.f32 %v7963, %v6691
        %v8092 = vmul.f32 %v7964, %v6706
        %v8093 = vmul.f32 %v7965, %v6721
        %v8094 = vmul.f32 %v7966, %v6736
        %v8095 = vmul.f32 %v7967, %v6751
        %v8096 = vmul.f32 %v7968, %v6766
        %v8097 = vmul.f32 %v7969, %v6781
        %v8098 = vmul.f32 %v7970, %v6796
        %v8099 = vmul.f32 %v7971, %v6811
        %v8100 = vmul.f32 %v7972, %v6826
        %v8101 = vmul.f32 %v7973, %v6841
        %v8102 = vmul.f32 %v7974, %v6856
        %v8103 = vmul.f32 %v7975, %v6871
        %v8104 = vmul.f32 %v7976, %v6886
        %v8105 = vmul.f32 %v7977, %v6901
        %v8106 = vmul.f32 %v7978, %v6916
        %v8107 = vmul.f32 %v7979, %v6931
        %v8108 = vmul.f32 %v7980, %v6946
        %v8109 = vmul.f32 %v7981, %v6961
        %v8110 = vmul.f32 %v7982, %v6976
        %v8111 = vmul.f32 %v7983, %v6991
        %v8112 = vmul.f32 %v7984, %v7006
        %v8113 = vmul.f32 %v7985, %v7021
        %v8114 = vmul.f32 %v7986, %v7036
        %v8115 = vmul.f32 %v7987, %v7051
        %v8116 = vmul.f32 %v7988, %v7066
        %v8117 = vmul.f32 %v7989, %v7081
        %v8118 = vmul.f32 %v7990, %v7096
        %v8119 = vmul.f32 %v7991, %v7111
        %v8120 = vmul.f32 %v7992, %v7126
        %v8121 = vmul.f32 %v7993, %v7141
        %v8122 = vmul.f32 %v7994, %v7156
        %v8123 = vmul.f32 %v7995, %v7171
        %v8124 = vmul.f32 %v7996, %v7186
        %v8125 = vmul.f32 %v7997, %v7201
        %v8126 = vmul.f32 %v7998, %v7216
        %v8127 = vmul.f32 %v7999, %v7231
        %v8128 = vadd.f32 %v8000, 0.2548296
        %v8129 = vadd.f32 %v8001, 0.2548296
        %v8130 = vadd.f32 %v8002, 0.2548296
        %v8131 = vadd.f32 %v8003, 0.2548296
        %v8132 = vadd.f32 %v8004, 0.2548296
        %v8133 = vadd.f32 %v8005, 0.2548296
        %v8134 = vadd.f32 %v8006, 0.2548296
        %v8135 = vadd.f32 %v8007, 0.2548296
        %v8136 = vadd.f32 %v8008, 0.2548296
        %v8137 = vadd.f32 %v8009, 0.2548296
        %v8138 = vadd.f32 %v8010, 0.2548296
        %v8139 = vadd.f32 %v8011, 0.2548296
        %v8140 = vadd.f32 %v8012, 0.2548296
        %v8141 = vadd.f32 %v8013, 0.2548296
        %v8142 = vadd.f32 %v8014, 0.2548296
        %v8143 = vadd.f32 %v8015, 0.2548296
        %v8144 = vadd.f32 %v8016, 0.2548296
        %v8145 = vadd.f32 %v8017, 0.2548296
        %v8146 = vadd.f32 %v8018, 0.2548296
        %v8147 = vadd.f32 %v8019, 0.2548296
        %v8148 = vadd.f32 %v8020, 0.2548296
        %v8149 = vadd.f32 %v8021, 0.2548296
        %v8150 = vadd.f32 %v8022, 0.2548296
        %v8151 = vadd.f32 %v8023, 0.2548296
        %v8152 = vadd.f32 %v8024, 0.2548296
        %v8153 = vadd.f32 %v8025, 0.2548296
        %v8154 = vadd.f32 %v8026, 0.2548296
        %v8155 = vadd.f32 %v8027, 0.2548296
        %v8156 = vadd.f32 %v8028, 0.2548296
        %v8157 = vadd.f32 %v8029, 0.2548296
        %v8158 = vadd.f32 %v8030, 0.2548296
        %v8159 = vadd.f32 %v8031, 0.2548296
        %v8160 = vadd.f32 %v8032, 0.2548296
        %v8161 = vadd.f32 %v8033, 0.2548296
        %v8162 = vadd.f32 %v8034, 0.2548296
        %v8163 = vadd.f32 %v8035, 0.2548296
        %v8164 = vadd.f32 %v8036, 0.2548296
        %v8165 = vadd.f32 %v8037, 0.2548296
        %v8166 = vadd.f32 %v8038, 0.2548296
        %v8167 = vadd.f32 %v8039, 0.2548296
        %v8168 = vadd.f32 %v8040, 0.2548296
        %v8169 = vadd.f32 %v8041, 0.2548296
        %v8170 = vadd.f32 %v8042, 0.2548296
        %v8171 = vadd.f32 %v8043, 0.2548296
        %v8172 = vadd.f32 %v8044, 0.2548296
        %v8173 = vadd.f32 %v8045, 0.2548296
        %v8174 = vadd.f32 %v8046, 0.2548296
        %v8175 = vadd.f32 %v8047, 0.2548296
        %v8176 = vadd.f32 %v8048, 0.2548296
        %v8177 = vadd.f32 %v8049, 0.2548296
        %v8178 = vadd.f32 %v8050, 0.2548296
        %v8179 = vadd.f32 %v8051, 0.2548296
        %v8180 = vadd.f32 %v8052, 0.2548296
        %v8181 = vadd.f32 %v8053, 0.2548296
        %v8182 = vadd.f32 %v8054, 0.2548296
        %v8183 = vadd.f32 %v8055, 0.2548296
        %v8184 = vadd.f32 %v8056, 0.2548296
        %v8185 = vadd.f32 %v8057, 0.2548296
        %v8186 = vadd.f32 %v8058, 0.2548296
        %v8187 = vadd.f32 %v8059, 0.2548296
        %v8188 = vadd.f32 %v8060, 0.2548296
        %v8189 = vadd.f32 %v8061, 0.2548296
        %v8190 = vadd.f32 %v8062, 0.2548296
        %v8191 = vadd.f32 %v8063, 0.2548296
        %v8192 = vadd.f32 %v8064, 0.2548296
        %v8193 = vadd.f32 %v8065, 0.2548296
        %v8194 = vadd.f32 %v8066, 0.2548296
        %v8195 = vadd.f32 %v8067, 0.2548296
        %v8196 = vadd.f32 %v8068, 0.2548296
        %v8197 = vadd.f32 %v8069, 0.2548296
        %v8198 = vadd.f32 %v8070, 0.2548296
        %v8199 = vadd.f32 %v8071, 0.2548296
        %v8200 = vadd.f32 %v8072, 0.2548296
        %v8201 = vadd.f32 %v8073, 0.2548296
        %v8202 = vadd.f32 %v8074, 0.2548296
        %v8203 = vadd.f32 %v8075, 0.2548296
        %v8204 = vadd.f32 %v8076, 0.2548296
        %v8205 = vadd.f32 %v8077, 0.2548296
        %v8206 = vadd.f32 %v8078, 0.2548296
        %v8207 = vadd.f32 %v8079, 0.2548296
        %v8208 = vadd.f32 %v8080, 0.2548296
        %v8209 = vadd.f32 %v8081, 0.2548296
        %v8210 = vadd.f32 %v8082, 0.2548296
        %v8211 = vadd.f32 %v8083, 0.2548296
        %v8212 = vadd.f32 %v8084, 0.2548296
        %v8213 = vadd.f32 %v8085, 0.2548296
        %v8214 = vadd.f32 %v8086, 0.2548296
        %v8215 = vadd.f32 %v8087, 0.2548296
        %v8216 = vadd.f32 %v8088, 0.2548296
        %v8217 = vadd.f32 %v8089, 0.2548296
        %v8218 = vadd.f32 %v8090, 0.2548296
        %v8219 = vadd.f32 %v8091, 0.2548296
        %v8220 = vadd.f32 %v8092, 0.2548296
        %v8221 = vadd.f32 %v8093, 0.2548296
        %v8222 = vadd.f32 %v8094, 0.2548296
        %v8223 = vadd.f32 %v8095, 0.2548296
        %v8224 = vadd.f32 %v8096, 0.2548296
        %v8225 = vadd.f32 %v8097, 0.2548296
        %v8226 = vadd.f32 %v8098, 0.2548296
        %v8227 = vadd.f32 %v8099, 0.2548296
        %v8228 = vadd.f32 %v8100, 0.2548296
        %v8229 = vadd.f32 %v8101, 0.2548296
        %v8230 = vadd.f32 %v8102, 0.2548296
        %v8231 = vadd.f32 %v8103, 0.2548296
        %v8232 = vadd.f32 %v8104, 0.2548296
        %v8233 = vadd.f32 %v8105, 0.2548296
        %v8234 = vadd.f32 %v8106, 0.2548296
        %v8235 = vadd.f32 %v8107, 0.2548296
        %v8236 = vadd.f32 %v8108, 0.2548296
        %v8237 = vadd.f32 %v8109, 0.2548296
        %v8238 = vadd.f32 %v8110, 0.2548296
        %v8239 = vadd.f32 %v8111, 0.2548296
        %v8240 = vadd.f32 %v8112, 0.2548296
        %v8241 = vadd.f32 %v8113, 0.2548296
        %v8242 = vadd.f32 %v8114, 0.2548296
        %v8243 = vadd.f32 %v8115, 0.2548296
        %v8244 = vadd.f32 %v8116, 0.2548296
        %v8245 = vadd.f32 %v8117, 0.2548296
        %v8246 = vadd.f32 %v8118, 0.2548296
        %v8247 = vadd.f32 %v8119, 0.2548296
        %v8248 = vadd.f32 %v8120, 0.2548296
        %v8249 = vadd.f32 %v8121, 0.2548296
        %v8250 = vadd.f32 %v8122, 0.2548296
        %v8251 = vadd.f32 %v8123, 0.2548296
        %v8252 = vadd.f32 %v8124, 0.2548296
        %v8253 = vadd.f32 %v8125, 0.2548296
        %v8254 = vadd.f32 %v8126, 0.2548296
        %v8255 = vadd.f32 %v8127, 0.2548296
        %v8256 = vmul.f32 %v8128, %v5326
        %v8257 = vmul.f32 %v8129, %v5341
        %v8258 = vmul.f32 %v8130, %v5356
        %v8259 = vmul.f32 %v8131, %v5371
        %v8260 = vmul.f32 %v8132, %v5386
        %v8261 = vmul.f32 %v8133, %v5401
        %v8262 = vmul.f32 %v8134, %v5416
        %v8263 = vmul.f32 %v8135, %v5431
        %v8264 = vmul.f32 %v8136, %v5446
        %v8265 = vmul.f32 %v8137, %v5461
        %v8266 = vmul.f32 %v8138, %v5476
        %v8267 = vmul.f32 %v8139, %v5491
        %v8268 = vmul.f32 %v8140, %v5506
        %v8269 = vmul.f32 %v8141, %v5521
        %v8270 = vmul.f32 %v8142, %v5536
        %v8271 = vmul.f32 %v8143, %v5551
        %v8272 = vmul.f32 %v8144, %v5566
        %v8273 = vmul.f32 %v8145, %v5581
        %v8274 = vmul.f32 %v8146, %v5596
        %v8275 = vmul.f32 %v8147, %v5611
        %v8276 = vmul.f32 %v8148, %v5626
        %v8277 = vmul.f32 %v8149, %v5641
        %v8278 = vmul.f32 %v8150, %v5656
        %v8279 = vmul.f32 %v8151, %v5671
        %v8280 = vmul.f32 %v8152, %v5686
        %v8281 = vmul.f32 %v8153, %v5701
        %v8282 = vmul.f32 %v8154, %v5716
        %v8283 = vmul.f32 %v8155, %v5731
        %v8284 = vmul.f32 %v8156, %v5746
        %v8285 = vmul.f32 %v8157, %v5761
        %v8286 = vmul.f32 %v8158, %v5776
        %v8287 = vmul.f32 %v8159, %v5791
        %v8288 = vmul.f32 %v8160, %v5806
        %v8289 = vmul.f32 %v8161, %v5821
        %v8290 = vmul.f32 %v8162, %v5836
        %v8291 = vmul.f32 %v8163, %v5851
        %v8292 = vmul.f32 %v8164, %v5866
        %v8293 = vmul.f32 %v8165, %v5881
        %v8294 = vmul.f32 %v8166, %v5896
        %v8295 = vmul.f32 %v8167, %v5911
        %v8296 = vmul.f32 %v8168, %v5926
        %v8297 = vmul.f32 %v8169, %v5941
        %v8298 = vmul.f32 %v8170, %v5956
        %v8299 = vmul.f32 %v8171, %v5971
        %v8300 = vmul.f32 %v8172, %v5986
        %v8301 = vmul.f32 %v8173, %v6001
        %v8302 = vmul.f32 %v8174, %v6016
        %v8303 = vmul.f32 %v8175, %v6031
        %v8304 = vmul.f32 %v8176, %v6046
        %v8305 = vmul.f32 %v8177, %v6061
        %v8306 = vmul.f32 %v8178, %v6076
        %v8307 = vmul.f32 %v8179, %v6091
        %v8308 = vmul.f32 %v8180, %v6106
        %v8309 = vmul.f32 %v8181, %v6121
        %v8310 = vmul.f32 %v8182, %v6136
        %v8311 = vmul.f32 %v8183, %v6151
        %v8312 = vmul.f32 %v8184, %v6166
        %v8313 = vmul.f32 %v8185, %v6181
        %v8314 = vmul.f32 %v8186, %v6196
        %v8315 = vmul.f32 %v8187, %v6211
        %v8316 = vmul.f32 %v8188, %v6226
        %v8317 = vmul.f32 %v8189, %v6241
        %v8318 = vmul.f32 %v8190, %v6256
        %v8319 = vmul.f32 %v8191, %v6271
        %v8320 = vmul.f32 %v8192, %v6286
        %v8321 = vmul.f32 %v8193, %v6301
        %v8322 = vmul.f32 %v8194, %v6316
        %v8323 = vmul.f32 %v8195, %v6331
        %v8324 = vmul.f32 %v8196, %v6346
        %v8325 = vmul.f32 %v8197, %v6361
        %v8326 = vmul.f32 %v8198, %v6376
        %v8327 = vmul.f32 %v8199, %v6391
        %v8328 = vmul.f32 %v8200, %v6406
        %v8329 = vmul.f32 %v8201, %v6421
        %v8330 = vmul.f32 %v8202, %v6436
        %v8331 = vmul.f32 %v8203, %v6451
        %v8332 = vmul.f32 %v8204, %v6466
        %v8333 = vmul.f32 %v8205, %v6481
        %v8334 = vmul.f32 %v8206, %v6496
        %v8335 = vmul.f32 %v8207, %v6511
        %v8336 = vmul.f32 %v8208, %v6526
        %v8337 = vmul.f32 %v8209, %v6541
        %v8338 = vmul.f32 %v8210, %v6556
        %v8339 = vmul.f32 %v8211, %v6571
        %v8340 = vmul.f32 %v8212, %v6586
        %v8341 = vmul.f32 %v8213, %v6601
        %v8342 = vmul.f32 %v8214, %v6616
        %v8343 = vmul.f32 %v8215, %v6631
        %v8344 = vmul.f32 %v8216, %v6646
        %v8345 = vmul.f32 %v8217, %v6661
        %v8346 = vmul.f32 %v8218, %v6676
        %v8347 = vmul.f32 %v8219, %v6691
        %v8348 = vmul.f32 %v8220, %v6706
        %v8349 = vmul.f32 %v8221, %v6721
        %v8350 = vmul.f32 %v8222, %v6736
        %v8351 = vmul.f32 %v8223, %v6751
        %v8352 = vmul.f32 %v8224, %v6766
        %v8353 = vmul.f32 %v8225, %v6781
        %v8354 = vmul.f32 %v8226, %v6796
        %v8355 = vmul.f32 %v8227, %v6811
        %v8356 = vmul.f32 %v8228, %v6826
        %v8357 = vmul.f32 %v8229, %v6841
        %v8358 = vmul.f32 %v8230, %v6856
        %v8359 = vmul.f32 %v8231, %v6871
        %v8360 = vmul.f32 %v8232, %v6886
        %v8361 = vmul.f32 %v8233, %v6901
        %v8362 = vmul.f32 %v8234, %v6916
        %v8363 = vmul.f32 %v8235, %v6931
        %v8364 = vmul.f32 %v8236, %v6946
        %v8365 = vmul.f32 %v8237, %v6961
        %v8366 = vmul.f32 %v8238, %v6976
        %v8367 = vmul.f32 %v8239, %v6991
        %v8368 = vmul.f32 %v8240, %v7006
        %v8369 = vmul.f32 %v8241, %v7021
        %v8370 = vmul.f32 %v8242, %v7036
        %v8371 = vmul.f32 %v8243, %v7051
        %v8372 = vmul.f32 %v8244, %v7066
        %v8373 = vmul.f32 %v8245, %v7081
        %v8374 = vmul.f32 %v8246, %v7096
        %v8375 = vmul.f32 %v8247, %v7111
        %v8376 = vmul.f32 %v8248, %v7126
        %v8377 = vmul.f32 %v8249, %v7141
        %v8378 = vmul.f32 %v8250, %v7156
        %v8379 = vmul.f32 %v8251, %v7171
        %v8380 = vmul.f32 %v8252, %v7186
        %v8381 = vmul.f32 %v8253, %v7201
        %v8382 = vmul.f32 %v8254, %v7216
        %v8383 = vmul.f32 %v8255, %v7231
        %v8384 = vsub.f32 0.0, %v4928
        %v8385 = vsub.f32 0.0, %v4929
        %v8386 = vsub.f32 0.0, %v4930
        %v8387 = vsub.f32 0.0, %v4931
        %v8388 = vsub.f32 0.0, %v4932
        %v8389 = vsub.f32 0.0, %v4933
        %v8390 = vsub.f32 0.0, %v4934
        %v8391 = vsub.f32 0.0, %v4935
        %v8392 = vsub.f32 0.0, %v4936
        %v8393 = vsub.f32 0.0, %v4937
        %v8394 = vsub.f32 0.0, %v4938
        %v8395 = vsub.f32 0.0, %v4939
        %v8396 = vsub.f32 0.0, %v4940
        %v8397 = vsub.f32 0.0, %v4941
        %v8398 = vsub.f32 0.0, %v4942
        %v8399 = vsub.f32 0.0, %v4943
        %v8400 = vsub.f32 0.0, %v4944
        %v8401 = vsub.f32 0.0, %v4945
        %v8402 = vsub.f32 0.0, %v4946
        %v8403 = vsub.f32 0.0, %v4947
        %v8404 = vsub.f32 0.0, %v4948
        %v8405 = vsub.f32 0.0, %v4949
        %v8406 = vsub.f32 0.0, %v4950
        %v8407 = vsub.f32 0.0, %v4951
        %v8408 = vsub.f32 0.0, %v4952
        %v8409 = vsub.f32 0.0, %v4953
        %v8410 = vsub.f32 0.0, %v4954
        %v8411 = vsub.f32 0.0, %v4955
        %v8412 = vsub.f32 0.0, %v4956
        %v8413 = vsub.f32 0.0, %v4957
        %v8414 = vsub.f32 0.0, %v4958
        %v8415 = vsub.f32 0.0, %v4959
        %v8416 = vsub.f32 0.0, %v4960
        %v8417 = vsub.f32 0.0, %v4961
        %v8418 = vsub.f32 0.0, %v4962
        %v8419 = vsub.f32 0.0, %v4963
        %v8420 = vsub.f32 0.0, %v4964
        %v8421 = vsub.f32 0.0, %v4965
        %v8422 = vsub.f32 0.0, %v4966
        %v8423 = vsub.f32 0.0, %v4967
        %v8424 = vsub.f32 0.0, %v4968
        %v8425 = vsub.f32 0.0, %v4969
        %v8426 = vsub.f32 0.0, %v4970
        %v8427 = vsub.f32 0.0, %v4971
        %v8428 = vsub.f32 0.0, %v4972
        %v8429 = vsub.f32 0.0, %v4973
        %v8430 = vsub.f32 0.0, %v4974
        %v8431 = vsub.f32 0.0, %v4975
        %v8432 = vsub.f32 0.0, %v4976
        %v8433 = vsub.f32 0.0, %v4977
        %v8434 = vsub.f32 0.0, %v4978
        %v8435 = vsub.f32 0.0, %v4979
        %v8436 = vsub.f32 0.0, %v4980
        %v8437 = vsub.f32 0.0, %v4981
        %v8438 = vsub.f32 0.0, %v4982
        %v8439 = vsub.f32 0.0, %v4983
        %v8440 = vsub.f32 0.0, %v4984
        %v8441 = vsub.f32 0.0, %v4985
        %v8442 = vsub.f32 0.0, %v4986
        %v8443 = vsub.f32 0.0, %v4987
        %v8444 = vsub.f32 0.0, %v4988
        %v8445 = vsub.f32 0.0, %v4989
        %v8446 = vsub.f32 0.0, %v4990
        %v8447 = vsub.f32 0.0, %v4991
        %v8448 = vsub.f32 0.0, %v4992
        %v8449 = vsub.f32 0.0, %v4993
        %v8450 = vsub.f32 0.0, %v4994
        %v8451 = vsub.f32 0.0, %v4995
        %v8452 = vsub.f32 0.0, %v4996
        %v8453 = vsub.f32 0.0, %v4997
        %v8454 = vsub.f32 0.0, %v4998
        %v8455 = vsub.f32 0.0, %v4999
        %v8456 = vsub.f32 0.0, %v5000
        %v8457 = vsub.f32 0.0, %v5001
        %v8458 = vsub.f32 0.0, %v5002
        %v8459 = vsub.f32 0.0, %v5003
        %v8460 = vsub.f32 0.0, %v5004
        %v8461 = vsub.f32 0.0, %v5005
        %v8462 = vsub.f32 0.0, %v5006
        %v8463 = vsub.f32 0.0, %v5007
        %v8464 = vsub.f32 0.0, %v5008
        %v8465 = vsub.f32 0.0, %v5009
        %v8466 = vsub.f32 0.0, %v5010
        %v8467 = vsub.f32 0.0, %v5011
        %v8468 = vsub.f32 0.0, %v5012
        %v8469 = vsub.f32 0.0, %v5013
        %v8470 = vsub.f32 0.0, %v5014
        %v8471 = vsub.f32 0.0, %v5015
        %v8472 = vsub.f32 0.0, %v5016
        %v8473 = vsub.f32 0.0, %v5017
        %v8474 = vsub.f32 0.0, %v5018
        %v8475 = vsub.f32 0.0, %v5019
        %v8476 = vsub.f32 0.0, %v5020
        %v8477 = vsub.f32 0.0, %v5021
        %v8478 = vsub.f32 0.0, %v5022
        %v8479 = vsub.f32 0.0, %v5023
        %v8480 = vsub.f32 0.0, %v5024
        %v8481 = vsub.f32 0.0, %v5025
        %v8482 = vsub.f32 0.0, %v5026
        %v8483 = vsub.f32 0.0, %v5027
        %v8484 = vsub.f32 0.0, %v5028
        %v8485 = vsub.f32 0.0, %v5029
        %v8486 = vsub.f32 0.0, %v5030
        %v8487 = vsub.f32 0.0, %v5031
        %v8488 = vsub.f32 0.0, %v5032
        %v8489 = vsub.f32 0.0, %v5033
        %v8490 = vsub.f32 0.0, %v5034
        %v8491 = vsub.f32 0.0, %v5035
        %v8492 = vsub.f32 0.0, %v5036
        %v8493 = vsub.f32 0.0, %v5037
        %v8494 = vsub.f32 0.0, %v5038
        %v8495 = vsub.f32 0.0, %v5039
        %v8496 = vsub.f32 0.0, %v5040
        %v8497 = vsub.f32 0.0, %v5041
        %v8498 = vsub.f32 0.0, %v5042
        %v8499 = vsub.f32 0.0, %v5043
        %v8500 = vsub.f32 0.0, %v5044
        %v8501 = vsub.f32 0.0, %v5045
        %v8502 = vsub.f32 0.0, %v5046
        %v8503 = vsub.f32 0.0, %v5047
        %v8504 = vsub.f32 0.0, %v5048
        %v8505 = vsub.f32 0.0, %v5049
        %v8506 = vsub.f32 0.0, %v5050
        %v8507 = vsub.f32 0.0, %v5051
        %v8508 = vsub.f32 0.0, %v5052
        %v8509 = vsub.f32 0.0, %v5053
        %v8510 = vsub.f32 0.0, %v5054
        %v8511 = vsub.f32 0.0, %v5055
        %v8512 = vmul.f32 %v8384, %v4928
        %v8513 = vmul.f32 %v8385, %v4929
        %v8514 = vmul.f32 %v8386, %v4930
        %v8515 = vmul.f32 %v8387, %v4931
        %v8516 = vmul.f32 %v8388, %v4932
        %v8517 = vmul.f32 %v8389, %v4933
        %v8518 = vmul.f32 %v8390, %v4934
        %v8519 = vmul.f32 %v8391, %v4935
        %v8520 = vmul.f32 %v8392, %v4936
        %v8521 = vmul.f32 %v8393, %v4937
        %v8522 = vmul.f32 %v8394, %v4938
        %v8523 = vmul.f32 %v8395, %v4939
        %v8524 = vmul.f32 %v8396, %v4940
        %v8525 = vmul.f32 %v8397, %v4941
        %v8526 = vmul.f32 %v8398, %v4942
        %v8527 = vmul.f32 %v8399, %v4943
        %v8528 = vmul.f32 %v8400, %v4944
        %v8529 = vmul.f32 %v8401, %v4945
        %v8530 = vmul.f32 %v8402, %v4946
        %v8531 = vmul.f32 %v8403, %v4947
        %v8532 = vmul.f32 %v8404, %v4948
        %v8533 = vmul.f32 %v8405, %v4949
        %v8534 = vmul.f32 %v8406, %v4950
        %v8535 = vmul.f32 %v8407, %v4951
        %v8536 = vmul.f32 %v8408, %v4952
        %v8537 = vmul.f32 %v8409, %v4953
        %v8538 = vmul.f32 %v8410, %v4954
        %v8539 = vmul.f32 %v8411, %v4955
        %v8540 = vmul.f32 %v8412, %v4956
        %v8541 = vmul.f32 %v8413, %v4957
        %v8542 = vmul.f32 %v8414, %v4958
        %v8543 = vmul.f32 %v8415, %v4959
        %v8544 = vmul.f32 %v8416, %v4960
        %v8545 = vmul.f32 %v8417, %v4961
        %v8546 = vmul.f32 %v8418, %v4962
        %v8547 = vmul.f32 %v8419, %v4963
        %v8548 = vmul.f32 %v8420, %v4964
        %v8549 = vmul.f32 %v8421, %v4965
        %v8550 = vmul.f32 %v8422, %v4966
        %v8551 = vmul.f32 %v8423, %v4967
        %v8552 = vmul.f32 %v8424, %v4968
        %v8553 = vmul.f32 %v8425, %v4969
        %v8554 = vmul.f32 %v8426, %v4970
        %v8555 = vmul.f32 %v8427, %v4971
        %v8556 = vmul.f32 %v8428, %v4972
        %v8557 = vmul.f32 %v8429, %v4973
        %v8558 = vmul.f32 %v8430, %v4974
        %v8559 = vmul.f32 %v8431, %v4975
        %v8560 = vmul.f32 %v8432, %v4976
        %v8561 = vmul.f32 %v8433, %v4977
        %v8562 = vmul.f32 %v8434, %v4978
        %v8563 = vmul.f32 %v8435, %v4979
        %v8564 = vmul.f32 %v8436, %v4980
        %v8565 = vmul.f32 %v8437, %v4981
        %v8566 = vmul.f32 %v8438, %v4982
        %v8567 = vmul.f32 %v8439, %v4983
        %v8568 = vmul.f32 %v8440, %v4984
        %v8569 = vmul.f32 %v8441, %v4985
        %v8570 = vmul.f32 %v8442, %v4986
        %v8571 = vmul.f32 %v8443, %v4987
        %v8572 = vmul.f32 %v8444, %v4988
        %v8573 = vmul.f32 %v8445, %v4989
        %v8574 = vmul.f32 %v8446, %v4990
        %v8575 = vmul.f32 %v8447, %v4991
        %v8576 = vmul.f32 %v8448, %v4992
        %v8577 = vmul.f32 %v8449, %v4993
        %v8578 = vmul.f32 %v8450, %v4994
        %v8579 = vmul.f32 %v8451, %v4995
        %v8580 = vmul.f32 %v8452, %v4996
        %v8581 = vmul.f32 %v8453, %v4997
        %v8582 = vmul.f32 %v8454, %v4998
        %v8583 = vmul.f32 %v8455, %v4999
        %v8584 = vmul.f32 %v8456, %v5000
        %v8585 = vmul.f32 %v8457, %v5001
        %v8586 = vmul.f32 %v8458, %v5002
        %v8587 = vmul.f32 %v8459, %v5003
        %v8588 = vmul.f32 %v8460, %v5004
        %v8589 = vmul.f32 %v8461, %v5005
        %v8590 = vmul.f32 %v8462, %v5006
        %v8591 = vmul.f32 %v8463, %v5007
        %v8592 = vmul.f32 %v8464, %v5008
        %v8593 = vmul.f32 %v8465, %v5009
        %v8594 = vmul.f32 %v8466, %v5010
        %v8595 = vmul.f32 %v8467, %v5011
        %v8596 = vmul.f32 %v8468, %v5012
        %v8597 = vmul.f32 %v8469, %v5013
        %v8598 = vmul.f32 %v8470, %v5014
        %v8599 = vmul.f32 %v8471, %v5015
        %v8600 = vmul.f32 %v8472, %v5016
        %v8601 = vmul.f32 %v8473, %v5017
        %v8602 = vmul.f32 %v8474, %v5018
        %v8603 = vmul.f32 %v8475, %v5019
        %v8604 = vmul.f32 %v8476, %v5020
        %v8605 = vmul.f32 %v8477, %v5021
        %v8606 = vmul.f32 %v8478, %v5022
        %v8607 = vmul.f32 %v8479, %v5023
        %v8608 = vmul.f32 %v8480, %v5024
        %v8609 = vmul.f32 %v8481, %v5025
        %v8610 = vmul.f32 %v8482, %v5026
        %v8611 = vmul.f32 %v8483, %v5027
        %v8612 = vmul.f32 %v8484, %v5028
        %v8613 = vmul.f32 %v8485, %v5029
        %v8614 = vmul.f32 %v8486, %v5030
        %v8615 = vmul.f32 %v8487, %v5031
        %v8616 = vmul.f32 %v8488, %v5032
        %v8617 = vmul.f32 %v8489, %v5033
        %v8618 = vmul.f32 %v8490, %v5034
        %v8619 = vmul.f32 %v8491, %v5035
        %v8620 = vmul.f32 %v8492, %v5036
        %v8621 = vmul.f32 %v8493, %v5037
        %v8622 = vmul.f32 %v8494, %v5038
        %v8623 = vmul.f32 %v8495, %v5039
        %v8624 = vmul.f32 %v8496, %v5040
        %v8625 = vmul.f32 %v8497, %v5041
        %v8626 = vmul.f32 %v8498, %v5042
        %v8627 = vmul.f32 %v8499, %v5043
        %v8628 = vmul.f32 %v8500, %v5044
        %v8629 = vmul.f32 %v8501, %v5045
        %v8630 = vmul.f32 %v8502, %v5046
        %v8631 = vmul.f32 %v8503, %v5047
        %v8632 = vmul.f32 %v8504, %v5048
        %v8633 = vmul.f32 %v8505, %v5049
        %v8634 = vmul.f32 %v8506, %v5050
        %v8635 = vmul.f32 %v8507, %v5051
        %v8636 = vmul.f32 %v8508, %v5052
        %v8637 = vmul.f32 %v8509, %v5053
        %v8638 = vmul.f32 %v8510, %v5054
        %v8639 = vmul.f32 %v8511, %v5055
        %v8640 = vmul.f32 %v8512, 1.442695
        %v8641 = vpow.pop %v8640
        %v8642 = vmul.f32 %v8513, 1.442695
        %v8643 = vpow.pop %v8642
        %v8644 = vmul.f32 %v8514, 1.442695
        %v8645 = vpow.pop %v8644
        %v8646 = vmul.f32 %v8515, 1.442695
        %v8647 = vpow.pop %v8646
        %v8648 = vmul.f32 %v8516, 1.442695
        %v8649 = vpow.pop %v8648
        %v8650 = vmul.f32 %v8517, 1.442695
        %v8651 = vpow.pop %v8650
        %v8652 = vmul.f32 %v8518, 1.442695
        %v8653 = vpow.pop %v8652
        %v8654 = vmul.f32 %v8519, 1.442695
        %v8655 = vpow.pop %v8654
        %v8656 = vmul.f32 %v8520, 1.442695
        %v8657 = vpow.pop %v8656
        %v8658 = vmul.f32 %v8521, 1.442695
        %v8659 = vpow.pop %v8658
        %v8660 = vmul.f32 %v8522, 1.442695
        %v8661 = vpow.pop %v8660
        %v8662 = vmul.f32 %v8523, 1.442695
        %v8663 = vpow.pop %v8662
        %v8664 = vmul.f32 %v8524, 1.442695
        %v8665 = vpow.pop %v8664
        %v8666 = vmul.f32 %v8525, 1.442695
        %v8667 = vpow.pop %v8666
        %v8668 = vmul.f32 %v8526, 1.442695
        %v8669 = vpow.pop %v8668
        %v8670 = vmul.f32 %v8527, 1.442695
        %v8671 = vpow.pop %v8670
        %v8672 = vmul.f32 %v8528, 1.442695
        %v8673 = vpow.pop %v8672
        %v8674 = vmul.f32 %v8529, 1.442695
        %v8675 = vpow.pop %v8674
        %v8676 = vmul.f32 %v8530, 1.442695
        %v8677 = vpow.pop %v8676
        %v8678 = vmul.f32 %v8531, 1.442695
        %v8679 = vpow.pop %v8678
        %v8680 = vmul.f32 %v8532, 1.442695
        %v8681 = vpow.pop %v8680
        %v8682 = vmul.f32 %v8533, 1.442695
        %v8683 = vpow.pop %v8682
        %v8684 = vmul.f32 %v8534, 1.442695
        %v8685 = vpow.pop %v8684
        %v8686 = vmul.f32 %v8535, 1.442695
        %v8687 = vpow.pop %v8686
        %v8688 = vmul.f32 %v8536, 1.442695
        %v8689 = vpow.pop %v8688
        %v8690 = vmul.f32 %v8537, 1.442695
        %v8691 = vpow.pop %v8690
        %v8692 = vmul.f32 %v8538, 1.442695
        %v8693 = vpow.pop %v8692
        %v8694 = vmul.f32 %v8539, 1.442695
        %v8695 = vpow.pop %v8694
        %v8696 = vmul.f32 %v8540, 1.442695
        %v8697 = vpow.pop %v8696
        %v8698 = vmul.f32 %v8541, 1.442695
        %v8699 = vpow.pop %v8698
        %v8700 = vmul.f32 %v8542, 1.442695
        %v8701 = vpow.pop %v8700
        %v8702 = vmul.f32 %v8543, 1.442695
        %v8703 = vpow.pop %v8702
        %v8704 = vmul.f32 %v8544, 1.442695
        %v8705 = vpow.pop %v8704
        %v8706 = vmul.f32 %v8545, 1.442695
        %v8707 = vpow.pop %v8706
        %v8708 = vmul.f32 %v8546, 1.442695
        %v8709 = vpow.pop %v8708
        %v8710 = vmul.f32 %v8547, 1.442695
        %v8711 = vpow.pop %v8710
        %v8712 = vmul.f32 %v8548, 1.442695
        %v8713 = vpow.pop %v8712
        %v8714 = vmul.f32 %v8549, 1.442695
        %v8715 = vpow.pop %v8714
        %v8716 = vmul.f32 %v8550, 1.442695
        %v8717 = vpow.pop %v8716
        %v8718 = vmul.f32 %v8551, 1.442695
        %v8719 = vpow.pop %v8718
        %v8720 = vmul.f32 %v8552, 1.442695
        %v8721 = vpow.pop %v8720
        %v8722 = vmul.f32 %v8553, 1.442695
        %v8723 = vpow.pop %v8722
        %v8724 = vmul.f32 %v8554, 1.442695
        %v8725 = vpow.pop %v8724
        %v8726 = vmul.f32 %v8555, 1.442695
        %v8727 = vpow.pop %v8726
        %v8728 = vmul.f32 %v8556, 1.442695
        %v8729 = vpow.pop %v8728
        %v8730 = vmul.f32 %v8557, 1.442695
        %v8731 = vpow.pop %v8730
        %v8732 = vmul.f32 %v8558, 1.442695
        %v8733 = vpow.pop %v8732
        %v8734 = vmul.f32 %v8559, 1.442695
        %v8735 = vpow.pop %v8734
        %v8736 = vmul.f32 %v8560, 1.442695
        %v8737 = vpow.pop %v8736
        %v8738 = vmul.f32 %v8561, 1.442695
        %v8739 = vpow.pop %v8738
        %v8740 = vmul.f32 %v8562, 1.442695
        %v8741 = vpow.pop %v8740
        %v8742 = vmul.f32 %v8563, 1.442695
        %v8743 = vpow.pop %v8742
        %v8744 = vmul.f32 %v8564, 1.442695
        %v8745 = vpow.pop %v8744
        %v8746 = vmul.f32 %v8565, 1.442695
        %v8747 = vpow.pop %v8746
        %v8748 = vmul.f32 %v8566, 1.442695
        %v8749 = vpow.pop %v8748
        %v8750 = vmul.f32 %v8567, 1.442695
        %v8751 = vpow.pop %v8750
        %v8752 = vmul.f32 %v8568, 1.442695
        %v8753 = vpow.pop %v8752
        %v8754 = vmul.f32 %v8569, 1.442695
        %v8755 = vpow.pop %v8754
        %v8756 = vmul.f32 %v8570, 1.442695
        %v8757 = vpow.pop %v8756
        %v8758 = vmul.f32 %v8571, 1.442695
        %v8759 = vpow.pop %v8758
        %v8760 = vmul.f32 %v8572, 1.442695
        %v8761 = vpow.pop %v8760
        %v8762 = vmul.f32 %v8573, 1.442695
        %v8763 = vpow.pop %v8762
        %v8764 = vmul.f32 %v8574, 1.442695
        %v8765 = vpow.pop %v8764
        %v8766 = vmul.f32 %v8575, 1.442695
        %v8767 = vpow.pop %v8766
        %v8768 = vmul.f32 %v8576, 1.442695
        %v8769 = vpow.pop %v8768
        %v8770 = vmul.f32 %v8577, 1.442695
        %v8771 = vpow.pop %v8770
        %v8772 = vmul.f32 %v8578, 1.442695
        %v8773 = vpow.pop %v8772
        %v8774 = vmul.f32 %v8579, 1.442695
        %v8775 = vpow.pop %v8774
        %v8776 = vmul.f32 %v8580, 1.442695
        %v8777 = vpow.pop %v8776
        %v8778 = vmul.f32 %v8581, 1.442695
        %v8779 = vpow.pop %v8778
        %v8780 = vmul.f32 %v8582, 1.442695
        %v8781 = vpow.pop %v8780
        %v8782 = vmul.f32 %v8583, 1.442695
        %v8783 = vpow.pop %v8782
        %v8784 = vmul.f32 %v8584, 1.442695
        %v8785 = vpow.pop %v8784
        %v8786 = vmul.f32 %v8585, 1.442695
        %v8787 = vpow.pop %v8786
        %v8788 = vmul.f32 %v8586, 1.442695
        %v8789 = vpow.pop %v8788
        %v8790 = vmul.f32 %v8587, 1.442695
        %v8791 = vpow.pop %v8790
        %v8792 = vmul.f32 %v8588, 1.442695
        %v8793 = vpow.pop %v8792
        %v8794 = vmul.f32 %v8589, 1.442695
        %v8795 = vpow.pop %v8794
        %v8796 = vmul.f32 %v8590, 1.442695
        %v8797 = vpow.pop %v8796
        %v8798 = vmul.f32 %v8591, 1.442695
        %v8799 = vpow.pop %v8798
        %v8800 = vmul.f32 %v8592, 1.442695
        %v8801 = vpow.pop %v8800
        %v8802 = vmul.f32 %v8593, 1.442695
        %v8803 = vpow.pop %v8802
        %v8804 = vmul.f32 %v8594, 1.442695
        %v8805 = vpow.pop %v8804
        %v8806 = vmul.f32 %v8595, 1.442695
        %v8807 = vpow.pop %v8806
        %v8808 = vmul.f32 %v8596, 1.442695
        %v8809 = vpow.pop %v8808
        %v8810 = vmul.f32 %v8597, 1.442695
        %v8811 = vpow.pop %v8810
        %v8812 = vmul.f32 %v8598, 1.442695
        %v8813 = vpow.pop %v8812
        %v8814 = vmul.f32 %v8599, 1.442695
        %v8815 = vpow.pop %v8814
        %v8816 = vmul.f32 %v8600, 1.442695
        %v8817 = vpow.pop %v8816
        %v8818 = vmul.f32 %v8601, 1.442695
        %v8819 = vpow.pop %v8818
        %v8820 = vmul.f32 %v8602, 1.442695
        %v8821 = vpow.pop %v8820
        %v8822 = vmul.f32 %v8603, 1.442695
        %v8823 = vpow.pop %v8822
        %v8824 = vmul.f32 %v8604, 1.442695
        %v8825 = vpow.pop %v8824
        %v8826 = vmul.f32 %v8605, 1.442695
        %v8827 = vpow.pop %v8826
        %v8828 = vmul.f32 %v8606, 1.442695
        %v8829 = vpow.pop %v8828
        %v8830 = vmul.f32 %v8607, 1.442695
        %v8831 = vpow.pop %v8830
        %v8832 = vmul.f32 %v8608, 1.442695
        %v8833 = vpow.pop %v8832
        %v8834 = vmul.f32 %v8609, 1.442695
        %v8835 = vpow.pop %v8834
        %v8836 = vmul.f32 %v8610, 1.442695
        %v8837 = vpow.pop %v8836
        %v8838 = vmul.f32 %v8611, 1.442695
        %v8839 = vpow.pop %v8838
        %v8840 = vmul.f32 %v8612, 1.442695
        %v8841 = vpow.pop %v8840
        %v8842 = vmul.f32 %v8613, 1.442695
        %v8843 = vpow.pop %v8842
        %v8844 = vmul.f32 %v8614, 1.442695
        %v8845 = vpow.pop %v8844
        %v8846 = vmul.f32 %v8615, 1.442695
        %v8847 = vpow.pop %v8846
        %v8848 = vmul.f32 %v8616, 1.442695
        %v8849 = vpow.pop %v8848
        %v8850 = vmul.f32 %v8617, 1.442695
        %v8851 = vpow.pop %v8850
        %v8852 = vmul.f32 %v8618, 1.442695
        %v8853 = vpow.pop %v8852
        %v8854 = vmul.f32 %v8619, 1.442695
        %v8855 = vpow.pop %v8854
        %v8856 = vmul.f32 %v8620, 1.442695
        %v8857 = vpow.pop %v8856
        %v8858 = vmul.f32 %v8621, 1.442695
        %v8859 = vpow.pop %v8858
        %v8860 = vmul.f32 %v8622, 1.442695
        %v8861 = vpow.pop %v8860
        %v8862 = vmul.f32 %v8623, 1.442695
        %v8863 = vpow.pop %v8862
        %v8864 = vmul.f32 %v8624, 1.442695
        %v8865 = vpow.pop %v8864
        %v8866 = vmul.f32 %v8625, 1.442695
        %v8867 = vpow.pop %v8866
        %v8868 = vmul.f32 %v8626, 1.442695
        %v8869 = vpow.pop %v8868
        %v8870 = vmul.f32 %v8627, 1.442695
        %v8871 = vpow.pop %v8870
        %v8872 = vmul.f32 %v8628, 1.442695
        %v8873 = vpow.pop %v8872
        %v8874 = vmul.f32 %v8629, 1.442695
        %v8875 = vpow.pop %v8874
        %v8876 = vmul.f32 %v8630, 1.442695
        %v8877 = vpow.pop %v8876
        %v8878 = vmul.f32 %v8631, 1.442695
        %v8879 = vpow.pop %v8878
        %v8880 = vmul.f32 %v8632, 1.442695
        %v8881 = vpow.pop %v8880
        %v8882 = vmul.f32 %v8633, 1.442695
        %v8883 = vpow.pop %v8882
        %v8884 = vmul.f32 %v8634, 1.442695
        %v8885 = vpow.pop %v8884
        %v8886 = vmul.f32 %v8635, 1.442695
        %v8887 = vpow.pop %v8886
        %v8888 = vmul.f32 %v8636, 1.442695
        %v8889 = vpow.pop %v8888
        %v8890 = vmul.f32 %v8637, 1.442695
        %v8891 = vpow.pop %v8890
        %v8892 = vmul.f32 %v8638, 1.442695
        %v8893 = vpow.pop %v8892
        %v8894 = vmul.f32 %v8639, 1.442695
        %v8895 = vpow.pop %v8894
        %v8896 = vmul.f32 %v8256, %v8641
        %v8897 = vmul.f32 %v8257, %v8643
        %v8898 = vmul.f32 %v8258, %v8645
        %v8899 = vmul.f32 %v8259, %v8647
        %v8900 = vmul.f32 %v8260, %v8649
        %v8901 = vmul.f32 %v8261, %v8651
        %v8902 = vmul.f32 %v8262, %v8653
        %v8903 = vmul.f32 %v8263, %v8655
        %v8904 = vmul.f32 %v8264, %v8657
        %v8905 = vmul.f32 %v8265, %v8659
        %v8906 = vmul.f32 %v8266, %v8661
        %v8907 = vmul.f32 %v8267, %v8663
        %v8908 = vmul.f32 %v8268, %v8665
        %v8909 = vmul.f32 %v8269, %v8667
        %v8910 = vmul.f32 %v8270, %v8669
        %v8911 = vmul.f32 %v8271, %v8671
        %v8912 = vmul.f32 %v8272, %v8673
        %v8913 = vmul.f32 %v8273, %v8675
        %v8914 = vmul.f32 %v8274, %v8677
        %v8915 = vmul.f32 %v8275, %v8679
        %v8916 = vmul.f32 %v8276, %v8681
        %v8917 = vmul.f32 %v8277, %v8683
        %v8918 = vmul.f32 %v8278, %v8685
        %v8919 = vmul.f32 %v8279, %v8687
        %v8920 = vmul.f32 %v8280, %v8689
        %v8921 = vmul.f32 %v8281, %v8691
        %v8922 = vmul.f32 %v8282, %v8693
        %v8923 = vmul.f32 %v8283, %v8695
        %v8924 = vmul.f32 %v8284, %v8697
        %v8925 = vmul.f32 %v8285, %v8699
        %v8926 = vmul.f32 %v8286, %v8701
        %v8927 = vmul.f32 %v8287, %v8703
        %v8928 = vmul.f32 %v8288, %v8705
        %v8929 = vmul.f32 %v8289, %v8707
        %v8930 = vmul.f32 %v8290, %v8709
        %v8931 = vmul.f32 %v8291, %v8711
        %v8932 = vmul.f32 %v8292, %v8713
        %v8933 = vmul.f32 %v8293, %v8715
        %v8934 = vmul.f32 %v8294, %v8717
        %v8935 = vmul.f32 %v8295, %v8719
        %v8936 = vmul.f32 %v8296, %v8721
        %v8937 = vmul.f32 %v8297, %v8723
        %v8938 = vmul.f32 %v8298, %v8725
        %v8939 = vmul.f32 %v8299, %v8727
        %v8940 = vmul.f32 %v8300, %v8729
        %v8941 = vmul.f32 %v8301, %v8731
        %v8942 = vmul.f32 %v8302, %v8733
        %v8943 = vmul.f32 %v8303, %v8735
        %v8944 = vmul.f32 %v8304, %v8737
        %v8945 = vmul.f32 %v8305, %v8739
        %v8946 = vmul.f32 %v8306, %v8741
        %v8947 = vmul.f32 %v8307, %v8743
        %v8948 = vmul.f32 %v8308, %v8745
        %v8949 = vmul.f32 %v8309, %v8747
        %v8950 = vmul.f32 %v8310, %v8749
        %v8951 = vmul.f32 %v8311, %v8751
        %v8952 = vmul.f32 %v8312, %v8753
        %v8953 = vmul.f32 %v8313, %v8755
        %v8954 = vmul.f32 %v8314, %v8757
        %v8955 = vmul.f32 %v8315, %v8759
        %v8956 = vmul.f32 %v8316, %v8761
        %v8957 = vmul.f32 %v8317, %v8763
        %v8958 = vmul.f32 %v8318, %v8765
        %v8959 = vmul.f32 %v8319, %v8767
        %v8960 = vmul.f32 %v8320, %v8769
        %v8961 = vmul.f32 %v8321, %v8771
        %v8962 = vmul.f32 %v8322, %v8773
        %v8963 = vmul.f32 %v8323, %v8775
        %v8964 = vmul.f32 %v8324, %v8777
        %v8965 = vmul.f32 %v8325, %v8779
        %v8966 = vmul.f32 %v8326, %v8781
        %v8967 = vmul.f32 %v8327, %v8783
        %v8968 = vmul.f32 %v8328, %v8785
        %v8969 = vmul.f32 %v8329, %v8787
        %v8970 = vmul.f32 %v8330, %v8789
        %v8971 = vmul.f32 %v8331, %v8791
        %v8972 = vmul.f32 %v8332, %v8793
        %v8973 = vmul.f32 %v8333, %v8795
        %v8974 = vmul.f32 %v8334, %v8797
        %v8975 = vmul.f32 %v8335, %v8799
        %v8976 = vmul.f32 %v8336, %v8801
        %v8977 = vmul.f32 %v8337, %v8803
        %v8978 = vmul.f32 %v8338, %v8805
        %v8979 = vmul.f32 %v8339, %v8807
        %v8980 = vmul.f32 %v8340, %v8809
        %v8981 = vmul.f32 %v8341, %v8811
        %v8982 = vmul.f32 %v8342, %v8813
        %v8983 = vmul.f32 %v8343, %v8815
        %v8984 = vmul.f32 %v8344, %v8817
        %v8985 = vmul.f32 %v8345, %v8819
        %v8986 = vmul.f32 %v8346, %v8821
        %v8987 = vmul.f32 %v8347, %v8823
        %v8988 = vmul.f32 %v8348, %v8825
        %v8989 = vmul.f32 %v8349, %v8827
        %v8990 = vmul.f32 %v8350, %v8829
        %v8991 = vmul.f32 %v8351, %v8831
        %v8992 = vmul.f32 %v8352, %v8833
        %v8993 = vmul.f32 %v8353, %v8835
        %v8994 = vmul.f32 %v8354, %v8837
        %v8995 = vmul.f32 %v8355, %v8839
        %v8996 = vmul.f32 %v8356, %v8841
        %v8997 = vmul.f32 %v8357, %v8843
        %v8998 = vmul.f32 %v8358, %v8845
        %v8999 = vmul.f32 %v8359, %v8847
        %v9000 = vmul.f32 %v8360, %v8849
        %v9001 = vmul.f32 %v8361, %v8851
        %v9002 = vmul.f32 %v8362, %v8853
        %v9003 = vmul.f32 %v8363, %v8855
        %v9004 = vmul.f32 %v8364, %v8857
        %v9005 = vmul.f32 %v8365, %v8859
        %v9006 = vmul.f32 %v8366, %v8861
        %v9007 = vmul.f32 %v8367, %v8863
        %v9008 = vmul.f32 %v8368, %v8865
        %v9009 = vmul.f32 %v8369, %v8867
        %v9010 = vmul.f32 %v8370, %v8869
        %v9011 = vmul.f32 %v8371, %v8871
        %v9012 = vmul.f32 %v8372, %v8873
        %v9013 = vmul.f32 %v8373, %v8875
        %v9014 = vmul.f32 %v8374, %v8877
        %v9015 = vmul.f32 %v8375, %v8879
        %v9016 = vmul.f32 %v8376, %v8881
        %v9017 = vmul.f32 %v8377, %v8883
        %v9018 = vmul.f32 %v8378, %v8885
        %v9019 = vmul.f32 %v8379, %v8887
        %v9020 = vmul.f32 %v8380, %v8889
        %v9021 = vmul.f32 %v8381, %v8891
        %v9022 = vmul.f32 %v8382, %v8893
        %v9023 = vmul.f32 %v8383, %v8895
        %v9024 = vsub.f32 1.0, %v8896
        %v9025 = vsub.f32 1.0, %v8897
        %v9026 = vsub.f32 1.0, %v8898
        %v9027 = vsub.f32 1.0, %v8899
        %v9028 = vsub.f32 1.0, %v8900
        %v9029 = vsub.f32 1.0, %v8901
        %v9030 = vsub.f32 1.0, %v8902
        %v9031 = vsub.f32 1.0, %v8903
        %v9032 = vsub.f32 1.0, %v8904
        %v9033 = vsub.f32 1.0, %v8905
        %v9034 = vsub.f32 1.0, %v8906
        %v9035 = vsub.f32 1.0, %v8907
        %v9036 = vsub.f32 1.0, %v8908
        %v9037 = vsub.f32 1.0, %v8909
        %v9038 = vsub.f32 1.0, %v8910
        %v9039 = vsub.f32 1.0, %v8911
        %v9040 = vsub.f32 1.0, %v8912
        %v9041 = vsub.f32 1.0, %v8913
        %v9042 = vsub.f32 1.0, %v8914
        %v9043 = vsub.f32 1.0, %v8915
        %v9044 = vsub.f32 1.0, %v8916
        %v9045 = vsub.f32 1.0, %v8917
        %v9046 = vsub.f32 1.0, %v8918
        %v9047 = vsub.f32 1.0, %v8919
        %v9048 = vsub.f32 1.0, %v8920
        %v9049 = vsub.f32 1.0, %v8921
        %v9050 = vsub.f32 1.0, %v8922
        %v9051 = vsub.f32 1.0, %v8923
        %v9052 = vsub.f32 1.0, %v8924
        %v9053 = vsub.f32 1.0, %v8925
        %v9054 = vsub.f32 1.0, %v8926
        %v9055 = vsub.f32 1.0, %v8927
        %v9056 = vsub.f32 1.0, %v8928
        %v9057 = vsub.f32 1.0, %v8929
        %v9058 = vsub.f32 1.0, %v8930
        %v9059 = vsub.f32 1.0, %v8931
        %v9060 = vsub.f32 1.0, %v8932
        %v9061 = vsub.f32 1.0, %v8933
        %v9062 = vsub.f32 1.0, %v8934
        %v9063 = vsub.f32 1.0, %v8935
        %v9064 = vsub.f32 1.0, %v8936
        %v9065 = vsub.f32 1.0, %v8937
        %v9066 = vsub.f32 1.0, %v8938
        %v9067 = vsub.f32 1.0, %v8939
        %v9068 = vsub.f32 1.0, %v8940
        %v9069 = vsub.f32 1.0, %v8941
        %v9070 = vsub.f32 1.0, %v8942
        %v9071 = vsub.f32 1.0, %v8943
        %v9072 = vsub.f32 1.0, %v8944
        %v9073 = vsub.f32 1.0, %v8945
        %v9074 = vsub.f32 1.0, %v8946
        %v9075 = vsub.f32 1.0, %v8947
        %v9076 = vsub.f32 1.0, %v8948
        %v9077 = vsub.f32 1.0, %v8949
        %v9078 = vsub.f32 1.0, %v8950
        %v9079 = vsub.f32 1.0, %v8951
        %v9080 = vsub.f32 1.0, %v8952
        %v9081 = vsub.f32 1.0, %v8953
        %v9082 = vsub.f32 1.0, %v8954
        %v9083 = vsub.f32 1.0, %v8955
        %v9084 = vsub.f32 1.0, %v8956
        %v9085 = vsub.f32 1.0, %v8957
        %v9086 = vsub.f32 1.0, %v8958
        %v9087 = vsub.f32 1.0, %v8959
        %v9088 = vsub.f32 1.0, %v8960
        %v9089 = vsub.f32 1.0, %v8961
        %v9090 = vsub.f32 1.0, %v8962
        %v9091 = vsub.f32 1.0, %v8963
        %v9092 = vsub.f32 1.0, %v8964
        %v9093 = vsub.f32 1.0, %v8965
        %v9094 = vsub.f32 1.0, %v8966
        %v9095 = vsub.f32 1.0, %v8967
        %v9096 = vsub.f32 1.0, %v8968
        %v9097 = vsub.f32 1.0, %v8969
        %v9098 = vsub.f32 1.0, %v8970
        %v9099 = vsub.f32 1.0, %v8971
        %v9100 = vsub.f32 1.0, %v8972
        %v9101 = vsub.f32 1.0, %v8973
        %v9102 = vsub.f32 1.0, %v8974
        %v9103 = vsub.f32 1.0, %v8975
        %v9104 = vsub.f32 1.0, %v8976
        %v9105 = vsub.f32 1.0, %v8977
        %v9106 = vsub.f32 1.0, %v8978
        %v9107 = vsub.f32 1.0, %v8979
        %v9108 = vsub.f32 1.0, %v8980
        %v9109 = vsub.f32 1.0, %v8981
        %v9110 = vsub.f32 1.0, %v8982
        %v9111 = vsub.f32 1.0, %v8983
        %v9112 = vsub.f32 1.0, %v8984
        %v9113 = vsub.f32 1.0, %v8985
        %v9114 = vsub.f32 1.0, %v8986
        %v9115 = vsub.f32 1.0, %v8987
        %v9116 = vsub.f32 1.0, %v8988
        %v9117 = vsub.f32 1.0, %v8989
        %v9118 = vsub.f32 1.0, %v8990
        %v9119 = vsub.f32 1.0, %v8991
        %v9120 = vsub.f32 1.0, %v8992
        %v9121 = vsub.f32 1.0, %v8993
        %v9122 = vsub.f32 1.0, %v8994
        %v9123 = vsub.f32 1.0, %v8995
        %v9124 = vsub.f32 1.0, %v8996
        %v9125 = vsub.f32 1.0, %v8997
        %v9126 = vsub.f32 1.0, %v8998
        %v9127 = vsub.f32 1.0, %v8999
        %v9128 = vsub.f32 1.0, %v9000
        %v9129 = vsub.f32 1.0, %v9001
        %v9130 = vsub.f32 1.0, %v9002
        %v9131 = vsub.f32 1.0, %v9003
        %v9132 = vsub.f32 1.0, %v9004
        %v9133 = vsub.f32 1.0, %v9005
        %v9134 = vsub.f32 1.0, %v9006
        %v9135 = vsub.f32 1.0, %v9007
        %v9136 = vsub.f32 1.0, %v9008
        %v9137 = vsub.f32 1.0, %v9009
        %v9138 = vsub.f32 1.0, %v9010
        %v9139 = vsub.f32 1.0, %v9011
        %v9140 = vsub.f32 1.0, %v9012
        %v9141 = vsub.f32 1.0, %v9013
        %v9142 = vsub.f32 1.0, %v9014
        %v9143 = vsub.f32 1.0, %v9015
        %v9144 = vsub.f32 1.0, %v9016
        %v9145 = vsub.f32 1.0, %v9017
        %v9146 = vsub.f32 1.0, %v9018
        %v9147 = vsub.f32 1.0, %v9019
        %v9148 = vsub.f32 1.0, %v9020
        %v9149 = vsub.f32 1.0, %v9021
        %v9150 = vsub.f32 1.0, %v9022
        %v9151 = vsub.f32 1.0, %v9023
        %v9152 = vmul.f32 %v4800, %v9024
        %v9153 = vmul.f32 %v4801, %v9025
        %v9154 = vmul.f32 %v4802, %v9026
        %v9155 = vmul.f32 %v4803, %v9027
        %v9156 = vmul.f32 %v4804, %v9028
        %v9157 = vmul.f32 %v4805, %v9029
        %v9158 = vmul.f32 %v4806, %v9030
        %v9159 = vmul.f32 %v4807, %v9031
        %v9160 = vmul.f32 %v4808, %v9032
        %v9161 = vmul.f32 %v4809, %v9033
        %v9162 = vmul.f32 %v4810, %v9034
        %v9163 = vmul.f32 %v4811, %v9035
        %v9164 = vmul.f32 %v4812, %v9036
        %v9165 = vmul.f32 %v4813, %v9037
        %v9166 = vmul.f32 %v4814, %v9038
        %v9167 = vmul.f32 %v4815, %v9039
        %v9168 = vmul.f32 %v4816, %v9040
        %v9169 = vmul.f32 %v4817, %v9041
        %v9170 = vmul.f32 %v4818, %v9042
        %v9171 = vmul.f32 %v4819, %v9043
        %v9172 = vmul.f32 %v4820, %v9044
        %v9173 = vmul.f32 %v4821, %v9045
        %v9174 = vmul.f32 %v4822, %v9046
        %v9175 = vmul.f32 %v4823, %v9047
        %v9176 = vmul.f32 %v4824, %v9048
        %v9177 = vmul.f32 %v4825, %v9049
        %v9178 = vmul.f32 %v4826, %v9050
        %v9179 = vmul.f32 %v4827, %v9051
        %v9180 = vmul.f32 %v4828, %v9052
        %v9181 = vmul.f32 %v4829, %v9053
        %v9182 = vmul.f32 %v4830, %v9054
        %v9183 = vmul.f32 %v4831, %v9055
        %v9184 = vmul.f32 %v4832, %v9056
        %v9185 = vmul.f32 %v4833, %v9057
        %v9186 = vmul.f32 %v4834, %v9058
        %v9187 = vmul.f32 %v4835, %v9059
        %v9188 = vmul.f32 %v4836, %v9060
        %v9189 = vmul.f32 %v4837, %v9061
        %v9190 = vmul.f32 %v4838, %v9062
        %v9191 = vmul.f32 %v4839, %v9063
        %v9192 = vmul.f32 %v4840, %v9064
        %v9193 = vmul.f32 %v4841, %v9065
        %v9194 = vmul.f32 %v4842, %v9066
        %v9195 = vmul.f32 %v4843, %v9067
        %v9196 = vmul.f32 %v4844, %v9068
        %v9197 = vmul.f32 %v4845, %v9069
        %v9198 = vmul.f32 %v4846, %v9070
        %v9199 = vmul.f32 %v4847, %v9071
        %v9200 = vmul.f32 %v4848, %v9072
        %v9201 = vmul.f32 %v4849, %v9073
        %v9202 = vmul.f32 %v4850, %v9074
        %v9203 = vmul.f32 %v4851, %v9075
        %v9204 = vmul.f32 %v4852, %v9076
        %v9205 = vmul.f32 %v4853, %v9077
        %v9206 = vmul.f32 %v4854, %v9078
        %v9207 = vmul.f32 %v4855, %v9079
        %v9208 = vmul.f32 %v4856, %v9080
        %v9209 = vmul.f32 %v4857, %v9081
        %v9210 = vmul.f32 %v4858, %v9082
        %v9211 = vmul.f32 %v4859, %v9083
        %v9212 = vmul.f32 %v4860, %v9084
        %v9213 = vmul.f32 %v4861, %v9085
        %v9214 = vmul.f32 %v4862, %v9086
        %v9215 = vmul.f32 %v4863, %v9087
        %v9216 = vmul.f32 %v4864, %v9088
        %v9217 = vmul.f32 %v4865, %v9089
        %v9218 = vmul.f32 %v4866, %v9090
        %v9219 = vmul.f32 %v4867, %v9091
        %v9220 = vmul.f32 %v4868, %v9092
        %v9221 = vmul.f32 %v4869, %v9093
        %v9222 = vmul.f32 %v4870, %v9094
        %v9223 = vmul.f32 %v4871, %v9095
        %v9224 = vmul.f32 %v4872, %v9096
        %v9225 = vmul.f32 %v4873, %v9097
        %v9226 = vmul.f32 %v4874, %v9098
        %v9227 = vmul.f32 %v4875, %v9099
        %v9228 = vmul.f32 %v4876, %v9100
        %v9229 = vmul.f32 %v4877, %v9101
        %v9230 = vmul.f32 %v4878, %v9102
        %v9231 = vmul.f32 %v4879, %v9103
        %v9232 = vmul.f32 %v4880, %v9104
        %v9233 = vmul.f32 %v4881, %v9105
        %v9234 = vmul.f32 %v4882, %v9106
        %v9235 = vmul.f32 %v4883, %v9107
        %v9236 = vmul.f32 %v4884, %v9108
        %v9237 = vmul.f32 %v4885, %v9109
        %v9238 = vmul.f32 %v4886, %v9110
        %v9239 = vmul.f32 %v4887, %v9111
        %v9240 = vmul.f32 %v4888, %v9112
        %v9241 = vmul.f32 %v4889, %v9113
        %v9242 = vmul.f32 %v4890, %v9114
        %v9243 = vmul.f32 %v4891, %v9115
        %v9244 = vmul.f32 %v4892, %v9116
        %v9245 = vmul.f32 %v4893, %v9117
        %v9246 = vmul.f32 %v4894, %v9118
        %v9247 = vmul.f32 %v4895, %v9119
        %v9248 = vmul.f32 %v4896, %v9120
        %v9249 = vmul.f32 %v4897, %v9121
        %v9250 = vmul.f32 %v4898, %v9122
        %v9251 = vmul.f32 %v4899, %v9123
        %v9252 = vmul.f32 %v4900, %v9124
        %v9253 = vmul.f32 %v4901, %v9125
        %v9254 = vmul.f32 %v4902, %v9126
        %v9255 = vmul.f32 %v4903, %v9127
        %v9256 = vmul.f32 %v4904, %v9128
        %v9257 = vmul.f32 %v4905, %v9129
        %v9258 = vmul.f32 %v4906, %v9130
        %v9259 = vmul.f32 %v4907, %v9131
        %v9260 = vmul.f32 %v4908, %v9132
        %v9261 = vmul.f32 %v4909, %v9133
        %v9262 = vmul.f32 %v4910, %v9134
        %v9263 = vmul.f32 %v4911, %v9135
        %v9264 = vmul.f32 %v4912, %v9136
        %v9265 = vmul.f32 %v4913, %v9137
        %v9266 = vmul.f32 %v4914, %v9138
        %v9267 = vmul.f32 %v4915, %v9139
        %v9268 = vmul.f32 %v4916, %v9140
        %v9269 = vmul.f32 %v4917, %v9141
        %v9270 = vmul.f32 %v4918, %v9142
        %v9271 = vmul.f32 %v4919, %v9143
        %v9272 = vmul.f32 %v4920, %v9144
        %v9273 = vmul.f32 %v4921, %v9145
        %v9274 = vmul.f32 %v4922, %v9146
        %v9275 = vmul.f32 %v4923, %v9147
        %v9276 = vmul.f32 %v4924, %v9148
        %v9277 = vmul.f32 %v4925, %v9149
        %v9278 = vmul.f32 %v4926, %v9150
        %v9279 = vmul.f32 %v4927, %v9151
        %v9280 = vadd.f32 %v9152, 1.0
        %v9281 = vadd.f32 %v9153, 1.0
        %v9282 = vadd.f32 %v9154, 1.0
        %v9283 = vadd.f32 %v9155, 1.0
        %v9284 = vadd.f32 %v9156, 1.0
        %v9285 = vadd.f32 %v9157, 1.0
        %v9286 = vadd.f32 %v9158, 1.0
        %v9287 = vadd.f32 %v9159, 1.0
        %v9288 = vadd.f32 %v9160, 1.0
        %v9289 = vadd.f32 %v9161, 1.0
        %v9290 = vadd.f32 %v9162, 1.0
        %v9291 = vadd.f32 %v9163, 1.0
        %v9292 = vadd.f32 %v9164, 1.0
        %v9293 = vadd.f32 %v9165, 1.0
        %v9294 = vadd.f32 %v9166, 1.0
        %v9295 = vadd.f32 %v9167, 1.0
        %v9296 = vadd.f32 %v9168, 1.0
        %v9297 = vadd.f32 %v9169, 1.0
        %v9298 = vadd.f32 %v9170, 1.0
        %v9299 = vadd.f32 %v9171, 1.0
        %v9300 = vadd.f32 %v9172, 1.0
        %v9301 = vadd.f32 %v9173, 1.0
        %v9302 = vadd.f32 %v9174, 1.0
        %v9303 = vadd.f32 %v9175, 1.0
        %v9304 = vadd.f32 %v9176, 1.0
        %v9305 = vadd.f32 %v9177, 1.0
        %v9306 = vadd.f32 %v9178, 1.0
        %v9307 = vadd.f32 %v9179, 1.0
        %v9308 = vadd.f32 %v9180, 1.0
        %v9309 = vadd.f32 %v9181, 1.0
        %v9310 = vadd.f32 %v9182, 1.0
        %v9311 = vadd.f32 %v9183, 1.0
        %v9312 = vadd.f32 %v9184, 1.0
        %v9313 = vadd.f32 %v9185, 1.0
        %v9314 = vadd.f32 %v9186, 1.0
        %v9315 = vadd.f32 %v9187, 1.0
        %v9316 = vadd.f32 %v9188, 1.0
        %v9317 = vadd.f32 %v9189, 1.0
        %v9318 = vadd.f32 %v9190, 1.0
        %v9319 = vadd.f32 %v9191, 1.0
        %v9320 = vadd.f32 %v9192, 1.0
        %v9321 = vadd.f32 %v9193, 1.0
        %v9322 = vadd.f32 %v9194, 1.0
        %v9323 = vadd.f32 %v9195, 1.0
        %v9324 = vadd.f32 %v9196, 1.0
        %v9325 = vadd.f32 %v9197, 1.0
        %v9326 = vadd.f32 %v9198, 1.0
        %v9327 = vadd.f32 %v9199, 1.0
        %v9328 = vadd.f32 %v9200, 1.0
        %v9329 = vadd.f32 %v9201, 1.0
        %v9330 = vadd.f32 %v9202, 1.0
        %v9331 = vadd.f32 %v9203, 1.0
        %v9332 = vadd.f32 %v9204, 1.0
        %v9333 = vadd.f32 %v9205, 1.0
        %v9334 = vadd.f32 %v9206, 1.0
        %v9335 = vadd.f32 %v9207, 1.0
        %v9336 = vadd.f32 %v9208, 1.0
        %v9337 = vadd.f32 %v9209, 1.0
        %v9338 = vadd.f32 %v9210, 1.0
        %v9339 = vadd.f32 %v9211, 1.0
        %v9340 = vadd.f32 %v9212, 1.0
        %v9341 = vadd.f32 %v9213, 1.0
        %v9342 = vadd.f32 %v9214, 1.0
        %v9343 = vadd.f32 %v9215, 1.0
        %v9344 = vadd.f32 %v9216, 1.0
        %v9345 = vadd.f32 %v9217, 1.0
        %v9346 = vadd.f32 %v9218, 1.0
        %v9347 = vadd.f32 %v9219, 1.0
        %v9348 = vadd.f32 %v9220, 1.0
        %v9349 = vadd.f32 %v9221, 1.0
        %v9350 = vadd.f32 %v9222, 1.0
        %v9351 = vadd.f32 %v9223, 1.0
        %v9352 = vadd.f32 %v9224, 1.0
        %v9353 = vadd.f32 %v9225, 1.0
        %v9354 = vadd.f32 %v9226, 1.0
        %v9355 = vadd.f32 %v9227, 1.0
        %v9356 = vadd.f32 %v9228, 1.0
        %v9357 = vadd.f32 %v9229, 1.0
        %v9358 = vadd.f32 %v9230, 1.0
        %v9359 = vadd.f32 %v9231, 1.0
        %v9360 = vadd.f32 %v9232, 1.0
        %v9361 = vadd.f32 %v9233, 1.0
        %v9362 = vadd.f32 %v9234, 1.0
        %v9363 = vadd.f32 %v9235, 1.0
        %v9364 = vadd.f32 %v9236, 1.0
        %v9365 = vadd.f32 %v9237, 1.0
        %v9366 = vadd.f32 %v9238, 1.0
        %v9367 = vadd.f32 %v9239, 1.0
        %v9368 = vadd.f32 %v9240, 1.0
        %v9369 = vadd.f32 %v9241, 1.0
        %v9370 = vadd.f32 %v9242, 1.0
        %v9371 = vadd.f32 %v9243, 1.0
        %v9372 = vadd.f32 %v9244, 1.0
        %v9373 = vadd.f32 %v9245, 1.0
        %v9374 = vadd.f32 %v9246, 1.0
        %v9375 = vadd.f32 %v9247, 1.0
        %v9376 = vadd.f32 %v9248, 1.0
        %v9377 = vadd.f32 %v9249, 1.0
        %v9378 = vadd.f32 %v9250, 1.0
        %v9379 = vadd.f32 %v9251, 1.0
        %v9380 = vadd.f32 %v9252, 1.0
        %v9381 = vadd.f32 %v9253, 1.0
        %v9382 = vadd.f32 %v9254, 1.0
        %v9383 = vadd.f32 %v9255, 1.0
        %v9384 = vadd.f32 %v9256, 1.0
        %v9385 = vadd.f32 %v9257, 1.0
        %v9386 = vadd.f32 %v9258, 1.0
        %v9387 = vadd.f32 %v9259, 1.0
        %v9388 = vadd.f32 %v9260, 1.0
        %v9389 = vadd.f32 %v9261, 1.0
        %v9390 = vadd.f32 %v9262, 1.0
        %v9391 = vadd.f32 %v9263, 1.0
        %v9392 = vadd.f32 %v9264, 1.0
        %v9393 = vadd.f32 %v9265, 1.0
        %v9394 = vadd.f32 %v9266, 1.0
        %v9395 = vadd.f32 %v9267, 1.0
        %v9396 = vadd.f32 %v9268, 1.0
        %v9397 = vadd.f32 %v9269, 1.0
        %v9398 = vadd.f32 %v9270, 1.0
        %v9399 = vadd.f32 %v9271, 1.0
        %v9400 = vadd.f32 %v9272, 1.0
        %v9401 = vadd.f32 %v9273, 1.0
        %v9402 = vadd.f32 %v9274, 1.0
        %v9403 = vadd.f32 %v9275, 1.0
        %v9404 = vadd.f32 %v9276, 1.0
        %v9405 = vadd.f32 %v9277, 1.0
        %v9406 = vadd.f32 %v9278, 1.0
        %v9407 = vadd.f32 %v9279, 1.0
        %v9408 = vmul.f32 %v4416, %v9280
        %v9409 = vmul.f32 %v4417, %v9281
        %v9410 = vmul.f32 %v4418, %v9282
        %v9411 = vmul.f32 %v4419, %v9283
        %v9412 = vmul.f32 %v4420, %v9284
        %v9413 = vmul.f32 %v4421, %v9285
        %v9414 = vmul.f32 %v4422, %v9286
        %v9415 = vmul.f32 %v4423, %v9287
        %v9416 = vmul.f32 %v4424, %v9288
        %v9417 = vmul.f32 %v4425, %v9289
        %v9418 = vmul.f32 %v4426, %v9290
        %v9419 = vmul.f32 %v4427, %v9291
        %v9420 = vmul.f32 %v4428, %v9292
        %v9421 = vmul.f32 %v4429, %v9293
        %v9422 = vmul.f32 %v4430, %v9294
        %v9423 = vmul.f32 %v4431, %v9295
        %v9424 = vmul.f32 %v4432, %v9296
        %v9425 = vmul.f32 %v4433, %v9297
        %v9426 = vmul.f32 %v4434, %v9298
        %v9427 = vmul.f32 %v4435, %v9299
        %v9428 = vmul.f32 %v4436, %v9300
        %v9429 = vmul.f32 %v4437, %v9301
        %v9430 = vmul.f32 %v4438, %v9302
        %v9431 = vmul.f32 %v4439, %v9303
        %v9432 = vmul.f32 %v4440, %v9304
        %v9433 = vmul.f32 %v4441, %v9305
        %v9434 = vmul.f32 %v4442, %v9306
        %v9435 = vmul.f32 %v4443, %v9307
        %v9436 = vmul.f32 %v4444, %v9308
        %v9437 = vmul.f32 %v4445, %v9309
        %v9438 = vmul.f32 %v4446, %v9310
        %v9439 = vmul.f32 %v4447, %v9311
        %v9440 = vmul.f32 %v4448, %v9312
        %v9441 = vmul.f32 %v4449, %v9313
        %v9442 = vmul.f32 %v4450, %v9314
        %v9443 = vmul.f32 %v4451, %v9315
        %v9444 = vmul.f32 %v4452, %v9316
        %v9445 = vmul.f32 %v4453, %v9317
        %v9446 = vmul.f32 %v4454, %v9318
        %v9447 = vmul.f32 %v4455, %v9319
        %v9448 = vmul.f32 %v4456, %v9320
        %v9449 = vmul.f32 %v4457, %v9321
        %v9450 = vmul.f32 %v4458, %v9322
        %v9451 = vmul.f32 %v4459, %v9323
        %v9452 = vmul.f32 %v4460, %v9324
        %v9453 = vmul.f32 %v4461, %v9325
        %v9454 = vmul.f32 %v4462, %v9326
        %v9455 = vmul.f32 %v4463, %v9327
        %v9456 = vmul.f32 %v4464, %v9328
        %v9457 = vmul.f32 %v4465, %v9329
        %v9458 = vmul.f32 %v4466, %v9330
        %v9459 = vmul.f32 %v4467, %v9331
        %v9460 = vmul.f32 %v4468, %v9332
        %v9461 = vmul.f32 %v4469, %v9333
        %v9462 = vmul.f32 %v4470, %v9334
        %v9463 = vmul.f32 %v4471, %v9335
        %v9464 = vmul.f32 %v4472, %v9336
        %v9465 = vmul.f32 %v4473, %v9337
        %v9466 = vmul.f32 %v4474, %v9338
        %v9467 = vmul.f32 %v4475, %v9339
        %v9468 = vmul.f32 %v4476, %v9340
        %v9469 = vmul.f32 %v4477, %v9341
        %v9470 = vmul.f32 %v4478, %v9342
        %v9471 = vmul.f32 %v4479, %v9343
        %v9472 = vmul.f32 %v4480, %v9344
        %v9473 = vmul.f32 %v4481, %v9345
        %v9474 = vmul.f32 %v4482, %v9346
        %v9475 = vmul.f32 %v4483, %v9347
        %v9476 = vmul.f32 %v4484, %v9348
        %v9477 = vmul.f32 %v4485, %v9349
        %v9478 = vmul.f32 %v4486, %v9350
        %v9479 = vmul.f32 %v4487, %v9351
        %v9480 = vmul.f32 %v4488, %v9352
        %v9481 = vmul.f32 %v4489, %v9353
        %v9482 = vmul.f32 %v4490, %v9354
        %v9483 = vmul.f32 %v4491, %v9355
        %v9484 = vmul.f32 %v4492, %v9356
        %v9485 = vmul.f32 %v4493, %v9357
        %v9486 = vmul.f32 %v4494, %v9358
        %v9487 = vmul.f32 %v4495, %v9359
        %v9488 = vmul.f32 %v4496, %v9360
        %v9489 = vmul.f32 %v4497, %v9361
        %v9490 = vmul.f32 %v4498, %v9362
        %v9491 = vmul.f32 %v4499, %v9363
        %v9492 = vmul.f32 %v4500, %v9364
        %v9493 = vmul.f32 %v4501, %v9365
        %v9494 = vmul.f32 %v4502, %v9366
        %v9495 = vmul.f32 %v4503, %v9367
        %v9496 = vmul.f32 %v4504, %v9368
        %v9497 = vmul.f32 %v4505, %v9369
        %v9498 = vmul.f32 %v4506, %v9370
        %v9499 = vmul.f32 %v4507, %v9371
        %v9500 = vmul.f32 %v4508, %v9372
        %v9501 = vmul.f32 %v4509, %v9373
        %v9502 = vmul.f32 %v4510, %v9374
        %v9503 = vmul.f32 %v4511, %v9375
        %v9504 = vmul.f32 %v4512, %v9376
        %v9505 = vmul.f32 %v4513, %v9377
        %v9506 = vmul.f32 %v4514, %v9378
        %v9507 = vmul.f32 %v4515, %v9379
        %v9508 = vmul.f32 %v4516, %v9380
        %v9509 = vmul.f32 %v4517, %v9381
        %v9510 = vmul.f32 %v4518, %v9382
        %v9511 = vmul.f32 %v4519, %v9383
        %v9512 = vmul.f32 %v4520, %v9384
        %v9513 = vmul.f32 %v4521, %v9385
        %v9514 = vmul.f32 %v4522, %v9386
        %v9515 = vmul.f32 %v4523, %v9387
        %v9516 = vmul.f32 %v4524, %v9388
        %v9517 = vmul.f32 %v4525, %v9389
        %v9518 = vmul.f32 %v4526, %v9390
        %v9519 = vmul.f32 %v4527, %v9391
        %v9520 = vmul.f32 %v4528, %v9392
        %v9521 = vmul.f32 %v4529, %v9393
        %v9522 = vmul.f32 %v4530, %v9394
        %v9523 = vmul.f32 %v4531, %v9395
        %v9524 = vmul.f32 %v4532, %v9396
        %v9525 = vmul.f32 %v4533, %v9397
        %v9526 = vmul.f32 %v4534, %v9398
        %v9527 = vmul.f32 %v4535, %v9399
        %v9528 = vmul.f32 %v4536, %v9400
        %v9529 = vmul.f32 %v4537, %v9401
        %v9530 = vmul.f32 %v4538, %v9402
        %v9531 = vmul.f32 %v4539, %v9403
        %v9532 = vmul.f32 %v4540, %v9404
        %v9533 = vmul.f32 %v4541, %v9405
        %v9534 = vmul.f32 %v4542, %v9406
        %v9535 = vmul.f32 %v4543, %v9407
        %v9536 = vld [vmem:[#allocation6] sm:$0xff]
        %v9537 = vld [vmem:[#allocation6 + $0x8] sm:$0xff]
        %v9538 = vld [vmem:[#allocation6 + $0x10] sm:$0xff]
        %v9539 = vld [vmem:[#allocation6 + $0x18] sm:$0xff]
        %v9540 = vld [vmem:[#allocation6 + $0x20] sm:$0xff]
        %v9541 = vld [vmem:[#allocation6 + $0x28] sm:$0xff]
        %v9542 = vld [vmem:[#allocation6 + $0x30] sm:$0xff]
        %v9543 = vld [vmem:[#allocation6 + $0x38] sm:$0xff]
        %v9544 = vld [vmem:[#allocation6 + $0x40] sm:$0xff]
        %v9545 = vld [vmem:[#allocation6 + $0x48] sm:$0xff]
        %v9546 = vld [vmem:[#allocation6 + $0x50] sm:$0xff]
        %v9547 = vld [vmem:[#allocation6 + $0x58] sm:$0xff]
        %v9548 = vld [vmem:[#allocation6 + $0x60] sm:$0xff]
        %v9549 = vld [vmem:[#allocation6 + $0x68] sm:$0xff]
        %v9550 = vld [vmem:[#allocation6 + $0x70] sm:$0xff]
        %v9551 = vld [vmem:[#allocation6 + $0x78] sm:$0xff]
        %v9552 = vld [vmem:[#allocation6 + $0x80] sm:$0xff]
        %v9553 = vld [vmem:[#allocation6 + $0x88] sm:$0xff]
        %v9554 = vld [vmem:[#allocation6 + $0x90] sm:$0xff]
        %v9555 = vld [vmem:[#allocation6 + $0x98] sm:$0xff]
        %v9556 = vld [vmem:[#allocation6 + $0xa0] sm:$0xff]
        %v9557 = vld [vmem:[#allocation6 + $0xa8] sm:$0xff]
        %v9558 = vld [vmem:[#allocation6 + $0xb0] sm:$0xff]
        %v9559 = vld [vmem:[#allocation6 + $0xb8] sm:$0xff]
        %v9560 = vld [vmem:[#allocation6 + $0xc0] sm:$0xff]
        %v9561 = vld [vmem:[#allocation6 + $0xc8] sm:$0xff]
        %v9562 = vld [vmem:[#allocation6 + $0xd0] sm:$0xff]
        %v9563 = vld [vmem:[#allocation6 + $0xd8] sm:$0xff]
        %v9564 = vld [vmem:[#allocation6 + $0xe0] sm:$0xff]
        %v9565 = vld [vmem:[#allocation6 + $0xe8] sm:$0xff]
        %v9566 = vld [vmem:[#allocation6 + $0xf0] sm:$0xff]
        %v9567 = vld [vmem:[#allocation6 + $0xf8] sm:$0xff]
        %v9568 = vld [vmem:[#allocation6 + $0x100] sm:$0xff]
        %v9569 = vld [vmem:[#allocation6 + $0x108] sm:$0xff]
        %v9570 = vld [vmem:[#allocation6 + $0x110] sm:$0xff]
        %v9571 = vld [vmem:[#allocation6 + $0x118] sm:$0xff]
        %v9572 = vld [vmem:[#allocation6 + $0x120] sm:$0xff]
        %v9573 = vld [vmem:[#allocation6 + $0x128] sm:$0xff]
        %v9574 = vld [vmem:[#allocation6 + $0x130] sm:$0xff]
        %v9575 = vld [vmem:[#allocation6 + $0x138] sm:$0xff]
        %v9576 = vld [vmem:[#allocation6 + $0x140] sm:$0xff]
        %v9577 = vld [vmem:[#allocation6 + $0x148] sm:$0xff]
        %v9578 = vld [vmem:[#allocation6 + $0x150] sm:$0xff]
        %v9579 = vld [vmem:[#allocation6 + $0x158] sm:$0xff]
        %v9580 = vld [vmem:[#allocation6 + $0x160] sm:$0xff]
        %v9581 = vld [vmem:[#allocation6 + $0x168] sm:$0xff]
        %v9582 = vld [vmem:[#allocation6 + $0x170] sm:$0xff]
        %v9583 = vld [vmem:[#allocation6 + $0x178] sm:$0xff]
        %v9584 = vld [vmem:[#allocation6 + $0x180] sm:$0xff]
        %v9585 = vld [vmem:[#allocation6 + $0x188] sm:$0xff]
        %v9586 = vld [vmem:[#allocation6 + $0x190] sm:$0xff]
        %v9587 = vld [vmem:[#allocation6 + $0x198] sm:$0xff]
        %v9588 = vld [vmem:[#allocation6 + $0x1a0] sm:$0xff]
        %v9589 = vld [vmem:[#allocation6 + $0x1a8] sm:$0xff]
        %v9590 = vld [vmem:[#allocation6 + $0x1b0] sm:$0xff]
        %v9591 = vld [vmem:[#allocation6 + $0x1b8] sm:$0xff]
        %v9592 = vld [vmem:[#allocation6 + $0x1c0] sm:$0xff]
        %v9593 = vld [vmem:[#allocation6 + $0x1c8] sm:$0xff]
        %v9594 = vld [vmem:[#allocation6 + $0x1d0] sm:$0xff]
        %v9595 = vld [vmem:[#allocation6 + $0x1d8] sm:$0xff]
        %v9596 = vld [vmem:[#allocation6 + $0x1e0] sm:$0xff]
        %v9597 = vld [vmem:[#allocation6 + $0x1e8] sm:$0xff]
        %v9598 = vld [vmem:[#allocation6 + $0x1f0] sm:$0xff]
        %v9599 = vld [vmem:[#allocation6 + $0x1f8] sm:$0xff]
        %v9600 = vld [vmem:[%s12] sm:$0x1]
        %v9602 = vperm.slane %v9600, 0
        %9604 = vmatpush.msra.mxu0 %v9551
        %9605 = vmatpush.msra.mxu0 %v9550
        %9606 = vmatpush.msra.mxu0 %v9549
        %9607 = vmatpush.msra.mxu0 %v9548
        %9608 = vmatpush.msra.mxu0 %v9547
        %9609 = vmatpush.msra.mxu0 %v9546
        %9610 = vmatpush.msra.mxu0 %v9545
        %9611 = vmatpush.msra.mxu0 %v9544
        %9612 = vmatpush.msra.mxu0 %v9543
        %9613 = vmatpush.msra.mxu0 %v9542
        %9614 = vmatpush.msra.mxu0 %v9541
        %9615 = vmatpush.msra.mxu0 %v9540
        %9616 = vmatpush.msra.mxu0 %v9539
        %9617 = vmatpush.msra.mxu0 %v9538
        %9618 = vmatpush.msra.mxu0 %v9537
        %9619 = vmatpush.msra.mxu0 %v9536
        %9620 = vmatmul.f32.gmra.mxu0 %v9408
        %v9621 = vpop.f32.mrf.mxu0
        %v9622 = vadd.f32 %v9602, %v9621
        %9623 = vmatmul.f32.gmra.mxu0 %v9412
        %v9624 = vpop.f32.mrf.mxu0
        %v9625 = vadd.f32 %v9602, %v9624
        %9626 = vmatmul.f32.gmra.mxu0 %v9416
        %v9627 = vpop.f32.mrf.mxu0
        %v9628 = vadd.f32 %v9602, %v9627
        %9629 = vmatmul.f32.gmra.mxu0 %v9420
        %v9630 = vpop.f32.mrf.mxu0
        %v9631 = vadd.f32 %v9602, %v9630
        %9632 = vmatmul.f32.gmra.mxu0 %v9424
        %v9633 = vpop.f32.mrf.mxu0
        %v9634 = vadd.f32 %v9602, %v9633
        %9635 = vmatmul.f32.gmra.mxu0 %v9428
        %v9636 = vpop.f32.mrf.mxu0
        %v9637 = vadd.f32 %v9602, %v9636
        %9638 = vmatmul.f32.gmra.mxu0 %v9432
        %v9639 = vpop.f32.mrf.mxu0
        %v9640 = vadd.f32 %v9602, %v9639
        %9641 = vmatmul.f32.gmra.mxu0 %v9436
        %v9642 = vpop.f32.mrf.mxu0
        %v9643 = vadd.f32 %v9602, %v9642
        %9644 = vmatmul.f32.gmra.mxu0 %v9440
        %v9645 = vpop.f32.mrf.mxu0
        %v9646 = vadd.f32 %v9602, %v9645
        %9647 = vmatmul.f32.gmra.mxu0 %v9444
        %v9648 = vpop.f32.mrf.mxu0
        %v9649 = vadd.f32 %v9602, %v9648
        %9650 = vmatmul.f32.gmra.mxu0 %v9448
        %v9651 = vpop.f32.mrf.mxu0
        %v9652 = vadd.f32 %v9602, %v9651
        %9653 = vmatmul.f32.gmra.mxu0 %v9452
        %v9654 = vpop.f32.mrf.mxu0
        %v9655 = vadd.f32 %v9602, %v9654
        %9656 = vmatmul.f32.gmra.mxu0 %v9456
        %v9657 = vpop.f32.mrf.mxu0
        %v9658 = vadd.f32 %v9602, %v9657
        %9659 = vmatmul.f32.gmra.mxu0 %v9460
        %v9660 = vpop.f32.mrf.mxu0
        %v9661 = vadd.f32 %v9602, %v9660
        %9662 = vmatmul.f32.gmra.mxu0 %v9464
        %v9663 = vpop.f32.mrf.mxu0
        %v9664 = vadd.f32 %v9602, %v9663
        %9665 = vmatmul.f32.gmra.mxu0 %v9468
        %v9666 = vpop.f32.mrf.mxu0
        %v9667 = vadd.f32 %v9602, %v9666
        %9668 = vmatmul.f32.gmra.mxu0 %v9472
        %v9669 = vpop.f32.mrf.mxu0
        %v9670 = vadd.f32 %v9602, %v9669
        %9671 = vmatmul.f32.gmra.mxu0 %v9476
        %v9672 = vpop.f32.mrf.mxu0
        %v9673 = vadd.f32 %v9602, %v9672
        %9674 = vmatmul.f32.gmra.mxu0 %v9480
        %v9675 = vpop.f32.mrf.mxu0
        %v9676 = vadd.f32 %v9602, %v9675
        %9677 = vmatmul.f32.gmra.mxu0 %v9484
        %v9678 = vpop.f32.mrf.mxu0
        %v9679 = vadd.f32 %v9602, %v9678
        %9680 = vmatmul.f32.gmra.mxu0 %v9488
        %v9681 = vpop.f32.mrf.mxu0
        %v9682 = vadd.f32 %v9602, %v9681
        %9683 = vmatmul.f32.gmra.mxu0 %v9492
        %v9684 = vpop.f32.mrf.mxu0
        %v9685 = vadd.f32 %v9602, %v9684
        %9686 = vmatmul.f32.gmra.mxu0 %v9496
        %v9687 = vpop.f32.mrf.mxu0
        %v9688 = vadd.f32 %v9602, %v9687
        %9689 = vmatmul.f32.gmra.mxu0 %v9500
        %v9690 = vpop.f32.mrf.mxu0
        %v9691 = vadd.f32 %v9602, %v9690
        %9692 = vmatmul.f32.gmra.mxu0 %v9504
        %v9693 = vpop.f32.mrf.mxu0
        %v9694 = vadd.f32 %v9602, %v9693
        %9695 = vmatmul.f32.gmra.mxu0 %v9508
        %v9696 = vpop.f32.mrf.mxu0
        %v9697 = vadd.f32 %v9602, %v9696
        %9698 = vmatmul.f32.gmra.mxu0 %v9512
        %v9699 = vpop.f32.mrf.mxu0
        %v9700 = vadd.f32 %v9602, %v9699
        %9701 = vmatmul.f32.gmra.mxu0 %v9516
        %v9702 = vpop.f32.mrf.mxu0
        %v9703 = vadd.f32 %v9602, %v9702
        %9704 = vmatmul.f32.gmra.mxu0 %v9520
        %v9705 = vpop.f32.mrf.mxu0
        %v9706 = vadd.f32 %v9602, %v9705
        %9707 = vmatmul.f32.gmra.mxu0 %v9524
        %v9708 = vpop.f32.mrf.mxu0
        %v9709 = vadd.f32 %v9602, %v9708
        %9710 = vmatmul.f32.gmra.mxu0 %v9528
        %v9711 = vpop.f32.mrf.mxu0
        %v9712 = vadd.f32 %v9602, %v9711
        %9713 = vmatmul.f32.gmra.mxu0 %v9532
        %v9714 = vpop.f32.mrf.mxu0
        %v9715 = vadd.f32 %v9602, %v9714
        %9716 = vdwg.mxu0
        %9717 = vmatpush.msra.mxu0 %v9567
        %9718 = vmatpush.msra.mxu0 %v9566
        %9719 = vmatpush.msra.mxu0 %v9565
        %9720 = vmatpush.msra.mxu0 %v9564
        %9721 = vmatpush.msra.mxu0 %v9563
        %9722 = vmatpush.msra.mxu0 %v9562
        %9723 = vmatpush.msra.mxu0 %v9561
        %9724 = vmatpush.msra.mxu0 %v9560
        %9725 = vmatpush.msra.mxu0 %v9559
        %9726 = vmatpush.msra.mxu0 %v9558
        %9727 = vmatpush.msra.mxu0 %v9557
        %9728 = vmatpush.msra.mxu0 %v9556
        %9729 = vmatpush.msra.mxu0 %v9555
        %9730 = vmatpush.msra.mxu0 %v9554
        %9731 = vmatpush.msra.mxu0 %v9553
        %9732 = vmatpush.msra.mxu0 %v9552
        %9733 = vmatmul.f32.gmra.mxu0 %v9409
        %v9734 = vpop.f32.mrf.mxu0
        %v9735 = vadd.f32 %v9622, %v9734
        %9736 = vmatmul.f32.gmra.mxu0 %v9413
        %v9737 = vpop.f32.mrf.mxu0
        %v9738 = vadd.f32 %v9625, %v9737
        %9739 = vmatmul.f32.gmra.mxu0 %v9417
        %v9740 = vpop.f32.mrf.mxu0
        %v9741 = vadd.f32 %v9628, %v9740
        %9742 = vmatmul.f32.gmra.mxu0 %v9421
        %v9743 = vpop.f32.mrf.mxu0
        %v9744 = vadd.f32 %v9631, %v9743
        %9745 = vmatmul.f32.gmra.mxu0 %v9425
        %v9746 = vpop.f32.mrf.mxu0
        %v9747 = vadd.f32 %v9634, %v9746
        %9748 = vmatmul.f32.gmra.mxu0 %v9429
        %v9749 = vpop.f32.mrf.mxu0
        %v9750 = vadd.f32 %v9637, %v9749
        %9751 = vmatmul.f32.gmra.mxu0 %v9433
        %v9752 = vpop.f32.mrf.mxu0
        %v9753 = vadd.f32 %v9640, %v9752
        %9754 = vmatmul.f32.gmra.mxu0 %v9437
        %v9755 = vpop.f32.mrf.mxu0
        %v9756 = vadd.f32 %v9643, %v9755
        %9757 = vmatmul.f32.gmra.mxu0 %v9441
        %v9758 = vpop.f32.mrf.mxu0
        %v9759 = vadd.f32 %v9646, %v9758
        %9760 = vmatmul.f32.gmra.mxu0 %v9445
        %v9761 = vpop.f32.mrf.mxu0
        %v9762 = vadd.f32 %v9649, %v9761
        %9763 = vmatmul.f32.gmra.mxu0 %v9449
        %v9764 = vpop.f32.mrf.mxu0
        %v9765 = vadd.f32 %v9652, %v9764
        %9766 = vmatmul.f32.gmra.mxu0 %v9453
        %v9767 = vpop.f32.mrf.mxu0
        %v9768 = vadd.f32 %v9655, %v9767
        %9769 = vmatmul.f32.gmra.mxu0 %v9457
        %v9770 = vpop.f32.mrf.mxu0
        %v9771 = vadd.f32 %v9658, %v9770
        %9772 = vmatmul.f32.gmra.mxu0 %v9461
        %v9773 = vpop.f32.mrf.mxu0
        %v9774 = vadd.f32 %v9661, %v9773
        %9775 = vmatmul.f32.gmra.mxu0 %v9465
        %v9776 = vpop.f32.mrf.mxu0
        %v9777 = vadd.f32 %v9664, %v9776
        %9778 = vmatmul.f32.gmra.mxu0 %v9469
        %v9779 = vpop.f32.mrf.mxu0
        %v9780 = vadd.f32 %v9667, %v9779
        %9781 = vmatmul.f32.gmra.mxu0 %v9473
        %v9782 = vpop.f32.mrf.mxu0
        %v9783 = vadd.f32 %v9670, %v9782
        %9784 = vmatmul.f32.gmra.mxu0 %v9477
        %v9785 = vpop.f32.mrf.mxu0
        %v9786 = vadd.f32 %v9673, %v9785
        %9787 = vmatmul.f32.gmra.mxu0 %v9481
        %v9788 = vpop.f32.mrf.mxu0
        %v9789 = vadd.f32 %v9676, %v9788
        %9790 = vmatmul.f32.gmra.mxu0 %v9485
        %v9791 = vpop.f32.mrf.mxu0
        %v9792 = vadd.f32 %v9679, %v9791
        %9793 = vmatmul.f32.gmra.mxu0 %v9489
        %v9794 = vpop.f32.mrf.mxu0
        %v9795 = vadd.f32 %v9682, %v9794
        %9796 = vmatmul.f32.gmra.mxu0 %v9493
        %v9797 = vpop.f32.mrf.mxu0
        %v9798 = vadd.f32 %v9685, %v9797
        %9799 = vmatmul.f32.gmra.mxu0 %v9497
        %v9800 = vpop.f32.mrf.mxu0
        %v9801 = vadd.f32 %v9688, %v9800
        %9802 = vmatmul.f32.gmra.mxu0 %v9501
        %v9803 = vpop.f32.mrf.mxu0
        %v9804 = vadd.f32 %v9691, %v9803
        %9805 = vmatmul.f32.gmra.mxu0 %v9505
        %v9806 = vpop.f32.mrf.mxu0
        %v9807 = vadd.f32 %v9694, %v9806
        %9808 = vmatmul.f32.gmra.mxu0 %v9509
        %v9809 = vpop.f32.mrf.mxu0
        %v9810 = vadd.f32 %v9697, %v9809
        %9811 = vmatmul.f32.gmra.mxu0 %v9513
        %v9812 = vpop.f32.mrf.mxu0
        %v9813 = vadd.f32 %v9700, %v9812
        %9814 = vmatmul.f32.gmra.mxu0 %v9517
        %v9815 = vpop.f32.mrf.mxu0
        %v9816 = vadd.f32 %v9703, %v9815
        %9817 = vmatmul.f32.gmra.mxu0 %v9521
        %v9818 = vpop.f32.mrf.mxu0
        %v9819 = vadd.f32 %v9706, %v9818
        %9820 = vmatmul.f32.gmra.mxu0 %v9525
        %v9821 = vpop.f32.mrf.mxu0
        %v9822 = vadd.f32 %v9709, %v9821
        %9823 = vmatmul.f32.gmra.mxu0 %v9529
        %v9824 = vpop.f32.mrf.mxu0
        %v9825 = vadd.f32 %v9712, %v9824
        %9826 = vmatmul.f32.gmra.mxu0 %v9533
        %v9827 = vpop.f32.mrf.mxu0
        %v9828 = vadd.f32 %v9715, %v9827
        %9829 = vdwg.mxu0
        %9830 = vmatpush.msra.mxu0 %v9583
        %9831 = vmatpush.msra.mxu0 %v9582
        %9832 = vmatpush.msra.mxu0 %v9581
        %9833 = vmatpush.msra.mxu0 %v9580
        %9834 = vmatpush.msra.mxu0 %v9579
        %9835 = vmatpush.msra.mxu0 %v9578
        %9836 = vmatpush.msra.mxu0 %v9577
        %9837 = vmatpush.msra.mxu0 %v9576
        %9838 = vmatpush.msra.mxu0 %v9575
        %9839 = vmatpush.msra.mxu0 %v9574
        %9840 = vmatpush.msra.mxu0 %v9573
        %9841 = vmatpush.msra.mxu0 %v9572
        %9842 = vmatpush.msra.mxu0 %v9571
        %9843 = vmatpush.msra.mxu0 %v9570
        %9844 = vmatpush.msra.mxu0 %v9569
        %9845 = vmatpush.msra.mxu0 %v9568
        %9846 = vmatmul.f32.gmra.mxu0 %v9410
        %v9847 = vpop.f32.mrf.mxu0
        %v9848 = vadd.f32 %v9735, %v9847
        %9849 = vmatmul.f32.gmra.mxu0 %v9414
        %v9850 = vpop.f32.mrf.mxu0
        %v9851 = vadd.f32 %v9738, %v9850
        %9852 = vmatmul.f32.gmra.mxu0 %v9418
        %v9853 = vpop.f32.mrf.mxu0
        %v9854 = vadd.f32 %v9741, %v9853
        %9855 = vmatmul.f32.gmra.mxu0 %v9422
        %v9856 = vpop.f32.mrf.mxu0
        %v9857 = vadd.f32 %v9744, %v9856
        %9858 = vmatmul.f32.gmra.mxu0 %v9426
        %v9859 = vpop.f32.mrf.mxu0
        %v9860 = vadd.f32 %v9747, %v9859
        %9861 = vmatmul.f32.gmra.mxu0 %v9430
        %v9862 = vpop.f32.mrf.mxu0
        %v9863 = vadd.f32 %v9750, %v9862
        %9864 = vmatmul.f32.gmra.mxu0 %v9434
        %v9865 = vpop.f32.mrf.mxu0
        %v9866 = vadd.f32 %v9753, %v9865
        %9867 = vmatmul.f32.gmra.mxu0 %v9438
        %v9868 = vpop.f32.mrf.mxu0
        %v9869 = vadd.f32 %v9756, %v9868
        %9870 = vmatmul.f32.gmra.mxu0 %v9442
        %v9871 = vpop.f32.mrf.mxu0
        %v9872 = vadd.f32 %v9759, %v9871
        %9873 = vmatmul.f32.gmra.mxu0 %v9446
        %v9874 = vpop.f32.mrf.mxu0
        %v9875 = vadd.f32 %v9762, %v9874
        %9876 = vmatmul.f32.gmra.mxu0 %v9450
        %v9877 = vpop.f32.mrf.mxu0
        %v9878 = vadd.f32 %v9765, %v9877
        %9879 = vmatmul.f32.gmra.mxu0 %v9454
        %v9880 = vpop.f32.mrf.mxu0
        %v9881 = vadd.f32 %v9768, %v9880
        %9882 = vmatmul.f32.gmra.mxu0 %v9458
        %v9883 = vpop.f32.mrf.mxu0
        %v9884 = vadd.f32 %v9771, %v9883
        %9885 = vmatmul.f32.gmra.mxu0 %v9462
        %v9886 = vpop.f32.mrf.mxu0
        %v9887 = vadd.f32 %v9774, %v9886
        %9888 = vmatmul.f32.gmra.mxu0 %v9466
        %v9889 = vpop.f32.mrf.mxu0
        %v9890 = vadd.f32 %v9777, %v9889
        %9891 = vmatmul.f32.gmra.mxu0 %v9470
        %v9892 = vpop.f32.mrf.mxu0
        %v9893 = vadd.f32 %v9780, %v9892
        %9894 = vmatmul.f32.gmra.mxu0 %v9474
        %v9895 = vpop.f32.mrf.mxu0
        %v9896 = vadd.f32 %v9783, %v9895
        %9897 = vmatmul.f32.gmra.mxu0 %v9478
        %v9898 = vpop.f32.mrf.mxu0
        %v9899 = vadd.f32 %v9786, %v9898
        %9900 = vmatmul.f32.gmra.mxu0 %v9482
        %v9901 = vpop.f32.mrf.mxu0
        %v9902 = vadd.f32 %v9789, %v9901
        %9903 = vmatmul.f32.gmra.mxu0 %v9486
        %v9904 = vpop.f32.mrf.mxu0
        %v9905 = vadd.f32 %v9792, %v9904
        %9906 = vmatmul.f32.gmra.mxu0 %v9490
        %v9907 = vpop.f32.mrf.mxu0
        %v9908 = vadd.f32 %v9795, %v9907
        %9909 = vmatmul.f32.gmra.mxu0 %v9494
        %v9910 = vpop.f32.mrf.mxu0
        %v9911 = vadd.f32 %v9798, %v9910
        %9912 = vmatmul.f32.gmra.mxu0 %v9498
        %v9913 = vpop.f32.mrf.mxu0
        %v9914 = vadd.f32 %v9801, %v9913
        %9915 = vmatmul.f32.gmra.mxu0 %v9502
        %v9916 = vpop.f32.mrf.mxu0
        %v9917 = vadd.f32 %v9804, %v9916
        %9918 = vmatmul.f32.gmra.mxu0 %v9506
        %v9919 = vpop.f32.mrf.mxu0
        %v9920 = vadd.f32 %v9807, %v9919
        %9921 = vmatmul.f32.gmra.mxu0 %v9510
        %v9922 = vpop.f32.mrf.mxu0
        %v9923 = vadd.f32 %v9810, %v9922
        %9924 = vmatmul.f32.gmra.mxu0 %v9514
        %v9925 = vpop.f32.mrf.mxu0
        %v9926 = vadd.f32 %v9813, %v9925
        %9927 = vmatmul.f32.gmra.mxu0 %v9518
        %v9928 = vpop.f32.mrf.mxu0
        %v9929 = vadd.f32 %v9816, %v9928
        %9930 = vmatmul.f32.gmra.mxu0 %v9522
        %v9931 = vpop.f32.mrf.mxu0
        %v9932 = vadd.f32 %v9819, %v9931
        %9933 = vmatmul.f32.gmra.mxu0 %v9526
        %v9934 = vpop.f32.mrf.mxu0
        %v9935 = vadd.f32 %v9822, %v9934
        %9936 = vmatmul.f32.gmra.mxu0 %v9530
        %v9937 = vpop.f32.mrf.mxu0
        %v9938 = vadd.f32 %v9825, %v9937
        %9939 = vmatmul.f32.gmra.mxu0 %v9534
        %v9940 = vpop.f32.mrf.mxu0
        %v9941 = vadd.f32 %v9828, %v9940
        %9942 = vdwg.mxu0
        %9943 = vmatpush.msra.mxu0 %v9599
        %9944 = vmatpush.msra.mxu0 %v9598
        %9945 = vmatpush.msra.mxu0 %v9597
        %9946 = vmatpush.msra.mxu0 %v9596
        %9947 = vmatpush.msra.mxu0 %v9595
        %9948 = vmatpush.msra.mxu0 %v9594
        %9949 = vmatpush.msra.mxu0 %v9593
        %9950 = vmatpush.msra.mxu0 %v9592
        %9951 = vmatpush.msra.mxu0 %v9591
        %9952 = vmatpush.msra.mxu0 %v9590
        %9953 = vmatpush.msra.mxu0 %v9589
        %9954 = vmatpush.msra.mxu0 %v9588
        %9955 = vmatpush.msra.mxu0 %v9587
        %9956 = vmatpush.msra.mxu0 %v9586
        %9957 = vmatpush.msra.mxu0 %v9585
        %9958 = vmatpush.msra.mxu0 %v9584
        %9959 = vmatmul.f32.gmra.mxu0 %v9411
        %v9960 = vpop.f32.mrf.mxu0
        %v9961 = vadd.f32 %v9848, %v9960
        %9962 = vmatmul.f32.gmra.mxu0 %v9415
        %v9963 = vpop.f32.mrf.mxu0
        %v9964 = vadd.f32 %v9851, %v9963
        %9965 = vmatmul.f32.gmra.mxu0 %v9419
        %v9966 = vpop.f32.mrf.mxu0
        %v9967 = vadd.f32 %v9854, %v9966
        %9968 = vmatmul.f32.gmra.mxu0 %v9423
        %v9969 = vpop.f32.mrf.mxu0
        %v9970 = vadd.f32 %v9857, %v9969
        %9971 = vmatmul.f32.gmra.mxu0 %v9427
        %v9972 = vpop.f32.mrf.mxu0
        %v9973 = vadd.f32 %v9860, %v9972
        %9974 = vmatmul.f32.gmra.mxu0 %v9431
        %v9975 = vpop.f32.mrf.mxu0
        %v9976 = vadd.f32 %v9863, %v9975
        %9977 = vmatmul.f32.gmra.mxu0 %v9435
        %v9978 = vpop.f32.mrf.mxu0
        %v9979 = vadd.f32 %v9866, %v9978
        %9980 = vmatmul.f32.gmra.mxu0 %v9439
        %v9981 = vpop.f32.mrf.mxu0
        %v9982 = vadd.f32 %v9869, %v9981
        %9983 = vmatmul.f32.gmra.mxu0 %v9443
        %v9984 = vpop.f32.mrf.mxu0
        %v9985 = vadd.f32 %v9872, %v9984
        %9986 = vmatmul.f32.gmra.mxu0 %v9447
        %v9987 = vpop.f32.mrf.mxu0
        %v9988 = vadd.f32 %v9875, %v9987
        %9989 = vmatmul.f32.gmra.mxu0 %v9451
        %v9990 = vpop.f32.mrf.mxu0
        %v9991 = vadd.f32 %v9878, %v9990
        %9992 = vmatmul.f32.gmra.mxu0 %v9455
        %v9993 = vpop.f32.mrf.mxu0
        %v9994 = vadd.f32 %v9881, %v9993
        %9995 = vmatmul.f32.gmra.mxu0 %v9459
        %v9996 = vpop.f32.mrf.mxu0
        %v9997 = vadd.f32 %v9884, %v9996
        %9998 = vmatmul.f32.gmra.mxu0 %v9463
        %v9999 = vpop.f32.mrf.mxu0
        %v10000 = vadd.f32 %v9887, %v9999
        %10001 = vmatmul.f32.gmra.mxu0 %v9467
        %v10002 = vpop.f32.mrf.mxu0
        %v10003 = vadd.f32 %v9890, %v10002
        %10004 = vmatmul.f32.gmra.mxu0 %v9471
        %v10005 = vpop.f32.mrf.mxu0
        %v10006 = vadd.f32 %v9893, %v10005
        %10007 = vmatmul.f32.gmra.mxu0 %v9475
        %v10008 = vpop.f32.mrf.mxu0
        %v10009 = vadd.f32 %v9896, %v10008
        %10010 = vmatmul.f32.gmra.mxu0 %v9479
        %v10011 = vpop.f32.mrf.mxu0
        %v10012 = vadd.f32 %v9899, %v10011
        %10013 = vmatmul.f32.gmra.mxu0 %v9483
        %v10014 = vpop.f32.mrf.mxu0
        %v10015 = vadd.f32 %v9902, %v10014
        %10016 = vmatmul.f32.gmra.mxu0 %v9487
        %v10017 = vpop.f32.mrf.mxu0
        %v10018 = vadd.f32 %v9905, %v10017
        %10019 = vmatmul.f32.gmra.mxu0 %v9491
        %v10020 = vpop.f32.mrf.mxu0
        %v10021 = vadd.f32 %v9908, %v10020
        %10022 = vmatmul.f32.gmra.mxu0 %v9495
        %v10023 = vpop.f32.mrf.mxu0
        %v10024 = vadd.f32 %v9911, %v10023
        %10025 = vmatmul.f32.gmra.mxu0 %v9499
        %v10026 = vpop.f32.mrf.mxu0
        %v10027 = vadd.f32 %v9914, %v10026
        %10028 = vmatmul.f32.gmra.mxu0 %v9503
        %v10029 = vpop.f32.mrf.mxu0
        %v10030 = vadd.f32 %v9917, %v10029
        %10031 = vmatmul.f32.gmra.mxu0 %v9507
        %v10032 = vpop.f32.mrf.mxu0
        %v10033 = vadd.f32 %v9920, %v10032
        %10034 = vmatmul.f32.gmra.mxu0 %v9511
        %v10035 = vpop.f32.mrf.mxu0
        %v10036 = vadd.f32 %v9923, %v10035
        %10037 = vmatmul.f32.gmra.mxu0 %v9515
        %v10038 = vpop.f32.mrf.mxu0
        %v10039 = vadd.f32 %v9926, %v10038
        %10040 = vmatmul.f32.gmra.mxu0 %v9519
        %v10041 = vpop.f32.mrf.mxu0
        %v10042 = vadd.f32 %v9929, %v10041
        %10043 = vmatmul.f32.gmra.mxu0 %v9523
        %v10044 = vpop.f32.mrf.mxu0
        %v10045 = vadd.f32 %v9932, %v10044
        %10046 = vmatmul.f32.gmra.mxu0 %v9527
        %v10047 = vpop.f32.mrf.mxu0
        %v10048 = vadd.f32 %v9935, %v10047
        %10049 = vmatmul.f32.gmra.mxu0 %v9531
        %v10050 = vpop.f32.mrf.mxu0
        %v10051 = vadd.f32 %v9938, %v10050
        %10052 = vmatmul.f32.gmra.mxu0 %v9535
        %v10053 = vpop.f32.mrf.mxu0
        %v10054 = vadd.f32 %v9941, %v10053
        %10055 = vdwg.mxu0
        %v10056 = vadd.f32 %v3139, %v9961
        %v10057 = vadd.f32 %v3140, %v9964
        %v10058 = vadd.f32 %v3141, %v9967
        %v10059 = vadd.f32 %v3142, %v9970
        %v10060 = vadd.f32 %v3143, %v9973
        %v10061 = vadd.f32 %v3144, %v9976
        %v10062 = vadd.f32 %v3145, %v9979
        %v10063 = vadd.f32 %v3146, %v9982
        %v10064 = vadd.f32 %v3147, %v9985
        %v10065 = vadd.f32 %v3148, %v9988
        %v10066 = vadd.f32 %v3149, %v9991
        %v10067 = vadd.f32 %v3150, %v9994
        %v10068 = vadd.f32 %v3151, %v9997
        %v10069 = vadd.f32 %v3152, %v10000
        %v10070 = vadd.f32 %v3153, %v10003
        %v10071 = vadd.f32 %v3154, %v10006
        %v10072 = vadd.f32 %v3155, %v10009
        %v10073 = vadd.f32 %v3156, %v10012
        %v10074 = vadd.f32 %v3157, %v10015
        %v10075 = vadd.f32 %v3158, %v10018
        %v10076 = vadd.f32 %v3159, %v10021
        %v10077 = vadd.f32 %v3160, %v10024
        %v10078 = vadd.f32 %v3161, %v10027
        %v10079 = vadd.f32 %v3162, %v10030
        %v10080 = vadd.f32 %v3163, %v10033
        %v10081 = vadd.f32 %v3164, %v10036
        %v10082 = vadd.f32 %v3165, %v10039
        %v10083 = vadd.f32 %v3166, %v10042
        %v10084 = vadd.f32 %v3167, %v10045
        %v10085 = vadd.f32 %v3168, %v10048
        %v10086 = vadd.f32 %v3169, %v10051
        %v10087 = vadd.f32 %v3170, %v10054
        %10088 = vst [vmem:[%s680] sm:$0xff] %v10056
        %10089 = vst [vmem:[%s680 + $0x8] sm:$0xff] %v10057
        %10090 = vst [vmem:[%s680 + $0x10] sm:$0xff] %v10058
        %10091 = vst [vmem:[%s680 + $0x18] sm:$0xff] %v10059
        %10092 = vst [vmem:[%s680 + $0x20] sm:$0xff] %v10060
        %10093 = vst [vmem:[%s680 + $0x28] sm:$0xff] %v10061
        %10094 = vst [vmem:[%s680 + $0x30] sm:$0xff] %v10062
        %10095 = vst [vmem:[%s680 + $0x38] sm:$0xff] %v10063
        %10096 = vst [vmem:[%s680 + $0x40] sm:$0xff] %v10064
        %10097 = vst [vmem:[%s680 + $0x48] sm:$0xff] %v10065
        %10098 = vst [vmem:[%s680 + $0x50] sm:$0xff] %v10066
        %10099 = vst [vmem:[%s680 + $0x58] sm:$0xff] %v10067
        %10100 = vst [vmem:[%s680 + $0x60] sm:$0xff] %v10068
        %10101 = vst [vmem:[%s680 + $0x68] sm:$0xff] %v10069
        %10102 = vst [vmem:[%s680 + $0x70] sm:$0xff] %v10070
        %10103 = vst [vmem:[%s680 + $0x78] sm:$0xff] %v10071
        %10104 = vst [vmem:[%s680 + $0x80] sm:$0xff] %v10072
        %10105 = vst [vmem:[%s680 + $0x88] sm:$0xff] %v10073
        %10106 = vst [vmem:[%s680 + $0x90] sm:$0xff] %v10074
        %10107 = vst [vmem:[%s680 + $0x98] sm:$0xff] %v10075
        %10108 = vst [vmem:[%s680 + $0xa0] sm:$0xff] %v10076
        %10109 = vst [vmem:[%s680 + $0xa8] sm:$0xff] %v10077
        %10110 = vst [vmem:[%s680 + $0xb0] sm:$0xff] %v10078
        %10111 = vst [vmem:[%s680 + $0xb8] sm:$0xff] %v10079
        %10112 = vst [vmem:[%s680 + $0xc0] sm:$0xff] %v10080
        %10113 = vst [vmem:[%s680 + $0xc8] sm:$0xff] %v10081
        %10114 = vst [vmem:[%s680 + $0xd0] sm:$0xff] %v10082
        %10115 = vst [vmem:[%s680 + $0xd8] sm:$0xff] %v10083
        %10116 = vst [vmem:[%s680 + $0xe0] sm:$0xff] %v10084
        %10117 = vst [vmem:[%s680 + $0xe8] sm:$0xff] %v10085
        %10118 = vst [vmem:[%s680 + $0xf0] sm:$0xff] %v10086
        %10119 = vst [vmem:[%s680 + $0xf8] sm:$0xff] %v10087
        %s10120 = sand.u32 %s401, 1
        %s10121 = scalar_lea.sflag [#allocation5], %s10120
        %s10122 = sand.u32 %s401, 1
        %s10123 = smul.addr %s10122, 256
        %s10124 = scalar_lea.vmem [#allocation11], %s10123
        // Predicated region
        $region105: #{tpu_custom_call.1} parent=83 // pred_check
          %p10125 = pneg %p411
        $region106: #{tpu_custom_call.1} parent=83 // pred_check_branch
          %10127 = sbr.rel (%p10125) target = $region108
        $region107: #{tpu_custom_call.1} parent=83 // pred_region
          %10129 = vsyncadd %s10121, 0
          %s10130 = smul.addr %s32, 32
          %s10131 = smul.addr %s10130, 8
          %s10132 = scalar_lea.hbm %s16, %s10131
          %s10133 = sshll.u32 %s10124, 4
          %s10134 = int_to_ptr.vmem [resolvable:$true] %s10133
          %s10135 = sshll.u32 %s10132, 4
          %s10136 = int_to_ptr.hbm [resolvable:$true] %s10135
          %10141 = dma.vmem_to_hbm [thread:$0]  %s10134, 4096, %s10136, %s10121, 128, 128, 8
        $region108: #{tpu_custom_call.1} parent=83 // pred_fallthru
          _
      $region84: #{tpu_custom_call.1} parent=5 // pred_fallthru
        _
      %p10142 = scmp.le.s32.totalorder 2, %s27
      // Predicated region
      $region109: #{tpu_custom_call.1} parent=5 // pred_check
        %p10143 = pneg %p10142
      $region110: #{tpu_custom_call.1} parent=5 // pred_check_branch
        %10145 = sbr.rel (%p10143) target = $region112
      $region111: #{tpu_custom_call.1} parent=5 // pred_region
        %s10146 = ssub.s32 %s27, 2
        // Predicated region
        $region113: #{tpu_custom_call.1} parent=111 // pred_check
          %p10147 = pneg %p417
        $region114: #{tpu_custom_call.1} parent=111 // pred_check_branch
          %10149 = sbr.rel (%p10147) target = $region116
        $region115: #{tpu_custom_call.1} parent=111 // pred_region
          %s10150 = sand.u32 %s402, 1
          %s10151 = scalar_lea.sflag [#allocation5], %s10150
          %s10152 = sand.u32 %s402, 1
          %s10153 = smul.addr %s10152, 256
          %s10154 = scalar_lea.vmem [#allocation11], %s10153
          %10156 = dma.done %s10151, 4096
        $region116: #{tpu_custom_call.1} parent=111 // pred_fallthru
          _
      $region112: #{tpu_custom_call.1} parent=5 // pred_fallthru
        _
    $region6: #{tpu_custom_call.1} parent=1 // loop_footer
      %s31 = sadd.s32 1, %s27
    $region7: #{tpu_custom_call.1} parent=1 // loop_footer_branch
      %26 = sbr.rel target = $region3
    $region8: #{tpu_custom_call.1} parent=1 // loop_exit
      _
    %10157 = vsyncpa [#allocation4], 1
    %s10158 = scalar_lea.sflag [#allocation4], 1
    %10159 = vsyncpa %s10158, 1
    %10160 = vsyncpa [#allocation7], 1
    %10161 = vsyncpa [#allocation5], 1
    %s10162 = scalar_lea.sflag [#allocation5], 1
    %10163 = vsyncpa %s10162, 1

</llo_original>
